<compile_context>
chip_gen: v7x
topology: tpu7x:2x2x1
jax: 0.10.0
libtpu: 0.0.40
codegen_flags: <defaults>
</compile_context>

<pallas_src>
import numpy as np
import jax
import jax.numpy as jnp
from jax.experimental import pallas as pl
from jax.experimental.pallas import tpu as pltpu

NUM_CLASSES = 3
NCLS_PAD = 128          # lane-dense padded width of the dense output
BN_EPS = 1e-5
L_IN = 1500             # input length implied by Linear(2816 = 256 * 11)

# conv layers: (Cin, Cout, kernel_size, stride)
CONV_CFG = [
    (2, 16, 20, 4),
    (16, 32, 10, 2),
    (32, 64, 5, 2),
    (64, 128, 3, 2),
    (128, 256, 2, 4),
]

SEQ = [L_IN]
for (_ci, _co, _k, _s) in CONV_CFG:
    SEQ.append((SEQ[-1] - _k) // _s + 1)          # [1500, 371, 181, 89, 44, 11]
FEAT = CONV_CFG[-1][1] * SEQ[-1]                  # 256 * 11 = 2816

# Layer-1 host packing: stride 4 divides both K=20 and L_IN, so pack 4 time
# steps (x 2 channels) per row -> 5 contiguous row-taps of width 8.
PACK0 = CONV_CFG[0][3]                            # 4
ROWS0_VALID = L_IN // PACK0                       # 375
X_ROWS = 392                                      # padded (covers 384-row overcompute + 4 taps)
X_LANES = PACK0 * CONV_CFG[0][0]                  # 8

# Per-layer static plan: (taps, row_stride, rows_computed, chunk_rows, out_ch).
# Layer 0 overcomputes 371 -> 384 rows (source is zero-padded); the extra rows
# are never read downstream.
PLAN = [
    (CONV_CFG[0][2] // PACK0, 1, 384, 128, 16),   # conv1: contraction 40
    (10, 2, SEQ[2], 64, 32),                      # conv2: contraction 160
    (5, 2, SEQ[3], 128, 64),                      # conv3: contraction 160
    (3, 2, SEQ[4], 128, 128),                     # conv4: contraction 192
    (2, 4, SEQ[5], 128, 256),                     # conv5: contraction 256
    (SEQ[5], 1, 1, 128, NCLS_PAD),                # dense as a K=11 "conv": contraction 2816
]

# Inter-layer activation slabs (per batch element), kept in VMEM scratch.
ACT_SHAPES = [(384, 16), (184, 32), (96, 64), (48, 128), (16, 256)]
ACT_DTYPES = [jnp.float32, jnp.float32, jnp.float32, jnp.float32, jnp.bfloat16]


# ------------------------------ fused kernel -------------------------------


def _cnn_fused_kernel(x_ref, *refs):
    """refs = (w0, aff0, ..., w5, aff5, o_ref, act0, ..., act4)."""
    n = len(PLAN)
    w_refs = [refs[2 * i] for i in range(n)]
    aff_refs = [refs[2 * i + 1] for i in range(n)]
    o_ref = refs[2 * n]
    acts = list(refs[2 * n + 1:])

    srcs = [x_ref] + acts                     # input slab of each layer

    for li, (taps, stride, rows, chunk, _cout) in enumerate(PLAN):
        src = srcs[li]
        is_dense = li == n - 1
        if is_dense:
            shift = aff_refs[li][1:2, :]                       # bias (1, 128)
        else:
            scale = aff_refs[li][0:1, :]                       # BN scale (1, C)
            shift = aff_refs[li][1:2, :]                       # BN shift (1, C)
            alpha = aff_refs[li][2:3, :]                       # PReLU slope (1, C)

        c0 = 0
        while c0 < rows:                                       # static Python loop
            cl = min(chunk, rows - c0)
            # Build the (cl, taps*Cin) im2col tile: K strided tap reads fused
            # on the lane axis -> one matmul with a large contraction.
            pieces = []
            for k in range(taps):
                start = c0 * stride + k
                if stride == 1:
                    rsl = pl.ds(start, cl)
                else:
                    rsl = pl.ds(start, cl, stride=stride)
                pieces.append(src[rsl, :].astype(jnp.bfloat16))
            lhs = pieces[0] if taps == 1 else jnp.concatenate(pieces, axis=1)
            w = w_refs[li][...]                                # (taps*Cin, Cout) bf16
            acc = jnp.dot(lhs, w, preferred_element_type=jnp.float32)

            if is_dense:
                y = acc + shift                                # Linear bias, no PReLU
                o_ref[0] = jnp.broadcast_to(y, (8, NCLS_PAD))  # lane/sublane-dense store
            else:
                y = acc * scale + shift                        # BatchNorm (eval) in f32
                y = jnp.where(y >= 0.0, y, alpha * y)          # PReLU
                acts[li][pl.ds(c0, cl), :] = y.astype(acts[li].dtype)
                # Dropout(p=0.2) is identity in eval mode.
            c0 += cl


# ------------------------------ host wrappers -------------------------------


def init_params(key):
    params = {"convs": []}
    for (cin, cout, k, _s) in CONV_CFG:
        key, kw, kg, kb = jax.random.split(key, 4)
        bound = 1.0 / np.sqrt(cin * k)
        w = jax.random.uniform(kw, (cout, cin, k), jnp.float32, -bound, bound)
        gamma = 1.0 + 0.1 * jax.random.normal(kg, (cout,), jnp.float32)
        beta = 0.1 * jax.random.normal(kb, (cout,), jnp.float32)
        mean = jnp.zeros((cout,), jnp.float32)       # BN running stats (fresh module)
        var = jnp.ones((cout,), jnp.float32)
        alpha = jnp.full((1,), 0.25, jnp.float32)    # PReLU default init
        params["convs"].append((w, gamma, beta, mean, var, alpha))
    key, kw, kb = jax.random.split(key, 3)
    bound = 1.0 / np.sqrt(FEAT)
    params["dense_w"] = jax.random.uniform(kw, (NUM_CLASSES, FEAT), jnp.float32,
                                           -bound, bound)
    params["dense_b"] = jax.random.uniform(kb, (NUM_CLASSES,), jnp.float32,
                                           -bound, bound)
    return params


def prepare_params(params):
    """One-time prep: weights permuted to fused-tap (K*Cin, Cout) bf16 layout;
    BN scale/shift and PReLU alpha kept in a small f32 (3, Cout) epilogue table;
    the Linear weight is pre-permuted to match the kernel's l*256+c lane order
    and lane-padded to 128 output columns."""
    layers = []
    for (w, gamma, beta, mean, var, alpha), (cin, cout, k, _s) in zip(
            params["convs"], CONV_CFG):
        scale = gamma / jnp.sqrt(var + BN_EPS)
        shift = beta - mean * scale
        wf = jnp.transpose(w, (2, 1, 0)).reshape(k * cin, cout).astype(jnp.bfloat16)
        aff = jnp.stack([scale, shift,
                         jnp.broadcast_to(alpha, (cout,))]).astype(jnp.float32)
        layers.append((wf, aff))

    l5, c5 = SEQ[-1], CONV_CFG[-1][1]                          # 11, 256
    wd = params["dense_w"].reshape(NUM_CLASSES, c5, l5)        # [n, c, l]
    wd = jnp.transpose(wd, (2, 1, 0)).reshape(l5 * c5, NUM_CLASSES)   # lane = l*256+c
    wd_pad = jnp.zeros((l5 * c5, NCLS_PAD), jnp.float32).at[:, :NUM_CLASSES].set(wd)
    bias = jnp.zeros((NCLS_PAD,), jnp.float32).at[:NUM_CLASSES].set(params["dense_b"])
    aff = jnp.stack([jnp.ones((NCLS_PAD,), jnp.float32), bias,
                     jnp.zeros((NCLS_PAD,), jnp.float32)])
    layers.append((wd_pad.astype(jnp.bfloat16), aff))
    return {"layers": layers}


def cnn_forward(x, prep):
    """x: (B, 2, 1500) float32 in NCL layout (as in the PyTorch module)."""
    B = x.shape[0]
    # Pack 4 time steps x 2 channels per row; pad rows so layer-0 overcompute
    # stays in-bounds (pad rows are zeros and never influence valid outputs).
    xt = jnp.transpose(x, (0, 2, 1)).reshape(B, ROWS0_VALID, X_LANES)
    xt = jnp.pad(xt, ((0, 0), (0, X_ROWS - ROWS0_VALID), (0, 0)))
    x_rows = xt.reshape(B * X_ROWS, X_LANES).astype(jnp.bfloat16)

    in_specs = [pl.BlockSpec((X_ROWS, X_LANES), lambda b: (b, 0))]
    args = [x_rows]
    flops = 0
    weight_bytes = 0
    for (wf, aff), (_taps, _stride, rows, _chunk, cout) in zip(prep["layers"], PLAN):
        in_specs.append(pl.BlockSpec(wf.shape, lambda b: (0, 0)))
        in_specs.append(pl.BlockSpec(aff.shape, lambda b: (0, 0)))
        args += [wf, aff]
        flops += 2 * rows * wf.shape[0] * cout
        weight_bytes += int(np.prod(wf.shape)) * 2 + int(np.prod(aff.shape)) * 4
    flops *= B
    bytes_accessed = x_rows.size * 2 + weight_bytes + B * 8 * NCLS_PAD * 4

    out = pl.pallas_call(
        _cnn_fused_kernel,
        grid=(B,),
        out_shape=jax.ShapeDtypeStruct((B, 8, NCLS_PAD), jnp.float32),
        in_specs=in_specs,
        out_specs=pl.BlockSpec((1, 8, NCLS_PAD), lambda b: (b, 0, 0)),
        scratch_shapes=[pltpu.VMEM(s, d) for s, d in zip(ACT_SHAPES, ACT_DTYPES)],
        compiler_params=pltpu.CompilerParams(dimension_semantics=("parallel",)),
        cost_estimate=pl.CostEstimate(flops=int(flops), transcendentals=0,
                                      bytes_accessed=int(bytes_accessed)),
    )(*args)
    return out[:, 0, :NUM_CLASSES]                   # (B, 3)


def cnn_reference(x, params):
    """Pure-JAX f32 reference of the same eval-mode forward (sanity check)."""
    out = x
    for (w, g, b, m, v, a), (_ci, _co, _k, stride) in zip(params["convs"], CONV_CFG):
        out = jax.lax.conv_general_dilated(
            out, w, (stride,), "VALID",
            dimension_numbers=("NCH", "OIH", "NCH"),
            precision=jax.lax.Precision.HIGHEST,
        )
        scale = g / jnp.sqrt(v + BN_EPS)
        out = out * scale[None, :, None] + (b - m * scale)[None, :, None]
        out = jnp.where(out >= 0, out, a[0] * out)
    out = out.reshape(out.shape[0], -1)
    return out @ params["dense_w"].T + params["dense_b"]


if __name__ == "__main__":
    key = jax.random.PRNGKey(0)
    key, kx = jax.random.split(key)
    # Input length 1500 is implied by the module: 1500 -> 371 -> 181 -> 89 -> 44 -> 11,
    # and 256 * 11 = 2816 (the Linear fan-in).  Batch kept small (2).
    x = jax.random.normal(kx, (2, 2, L_IN), jnp.float32)
    params = init_params(key)
    prep = prepare_params(params)

    fwd = jax.jit(cnn_forward)
    out = jax.block_until_ready(fwd(x, prep))
    assert out.shape == (2, NUM_CLASSES), out.shape

    ref = jax.block_until_ready(cnn_reference(x, params))
    # bf16 MXU operands / bf16 input with f32 accumulation and f32 BN epilogue.
    np.testing.assert_allclose(np.asarray(out), np.asarray(ref), rtol=5e-2, atol=1e-2)

    print("KERNEL_OK")
</pallas_src>

<mosaic_0001>
module attributes {stable_mosaic.version = 11 : i64} {
  func.func @_cnn_fused_kernel(%arg0: i32, %arg1: memref<392x8xbf16, #tpu.memory_space<vmem>>, %arg2: memref<40x16xbf16, #tpu.memory_space<vmem>>, %arg3: memref<3x16xf32, #tpu.memory_space<vmem>>, %arg4: memref<160x32xbf16, #tpu.memory_space<vmem>>, %arg5: memref<3x32xf32, #tpu.memory_space<vmem>>, %arg6: memref<160x64xbf16, #tpu.memory_space<vmem>>, %arg7: memref<3x64xf32, #tpu.memory_space<vmem>>, %arg8: memref<192x128xbf16, #tpu.memory_space<vmem>>, %arg9: memref<3x128xf32, #tpu.memory_space<vmem>>, %arg10: memref<256x256xbf16, #tpu.memory_space<vmem>>, %arg11: memref<3x256xf32, #tpu.memory_space<vmem>>, %arg12: memref<2816x128xbf16, #tpu.memory_space<vmem>>, %arg13: memref<3x128xf32, #tpu.memory_space<vmem>>, %arg14: memref<1x8x128xf32, #tpu.memory_space<vmem>>, %arg15: memref<384x16xf32, #tpu.memory_space<vmem>>, %arg16: memref<184x32xf32, #tpu.memory_space<vmem>>, %arg17: memref<96x64xf32, #tpu.memory_space<vmem>>, %arg18: memref<48x128xf32, #tpu.memory_space<vmem>>, %arg19: memref<16x256xbf16, #tpu.memory_space<vmem>>) attributes {dimension_semantics = [#tpu.dimension_semantics<parallel>], iteration_bounds = array<i64: 2>, scalar_prefetch = 0 : i64, scratch_operands = 5 : i64, tpu.core_type = #tpu.core_type<tc>, window_params = [{transform_indices = @transform_0, window_bounds = array<i64: 392, 8>}, {pipeline_mode = #tpu.pipeline_mode<synchronous>, transform_indices = @transform_1, window_bounds = array<i64: 40, 16>}, {pipeline_mode = #tpu.pipeline_mode<synchronous>, transform_indices = @transform_2, window_bounds = array<i64: 3, 16>}, {pipeline_mode = #tpu.pipeline_mode<synchronous>, transform_indices = @transform_3, window_bounds = array<i64: 160, 32>}, {pipeline_mode = #tpu.pipeline_mode<synchronous>, transform_indices = @transform_4, window_bounds = array<i64: 3, 32>}, {pipeline_mode = #tpu.pipeline_mode<synchronous>, transform_indices = @transform_5, window_bounds = array<i64: 160, 64>}, {pipeline_mode = #tpu.pipeline_mode<synchronous>, transform_indices = @transform_6, window_bounds = array<i64: 3, 64>}, {pipeline_mode = #tpu.pipeline_mode<synchronous>, transform_indices = @transform_7, window_bounds = array<i64: 192, 128>}, {pipeline_mode = #tpu.pipeline_mode<synchronous>, transform_indices = @transform_8, window_bounds = array<i64: 3, 128>}, {pipeline_mode = #tpu.pipeline_mode<synchronous>, transform_indices = @transform_9, window_bounds = array<i64: 256, 256>}, {pipeline_mode = #tpu.pipeline_mode<synchronous>, transform_indices = @transform_10, window_bounds = array<i64: 3, 256>}, {pipeline_mode = #tpu.pipeline_mode<synchronous>, transform_indices = @transform_11, window_bounds = array<i64: 2816, 128>}, {pipeline_mode = #tpu.pipeline_mode<synchronous>, transform_indices = @transform_12, window_bounds = array<i64: 3, 128>}, {transform_indices = @transform_13, window_bounds = array<i64: 1, 8, 128>}]} {
    %c0 = arith.constant 0 : index
    %c0_0 = arith.constant 0 : index
    %0 = vector.load %arg3[%c0, %c0_0] : memref<3x16xf32, #tpu.memory_space<vmem>>, vector<1x16xf32>
    %c1 = arith.constant 1 : index
    %c0_1 = arith.constant 0 : index
    %1 = vector.load %arg3[%c1, %c0_1] : memref<3x16xf32, #tpu.memory_space<vmem>>, vector<1x16xf32>
    %c2 = arith.constant 2 : index
    %c0_2 = arith.constant 0 : index
    %2 = vector.load %arg3[%c2, %c0_2] : memref<3x16xf32, #tpu.memory_space<vmem>>, vector<1x16xf32>
    %c0_3 = arith.constant 0 : index
    %c0_4 = arith.constant 0 : index
    %3 = vector.load %arg1[%c0_3, %c0_4] : memref<392x8xbf16, #tpu.memory_space<vmem>>, vector<128x8xbf16>
    %c1_5 = arith.constant 1 : index
    %c0_6 = arith.constant 0 : index
    %4 = vector.load %arg1[%c1_5, %c0_6] : memref<392x8xbf16, #tpu.memory_space<vmem>>, vector<128x8xbf16>
    %c2_7 = arith.constant 2 : index
    %c0_8 = arith.constant 0 : index
    %5 = vector.load %arg1[%c2_7, %c0_8] : memref<392x8xbf16, #tpu.memory_space<vmem>>, vector<128x8xbf16>
    %c3 = arith.constant 3 : index
    %c0_9 = arith.constant 0 : index
    %6 = vector.load %arg1[%c3, %c0_9] : memref<392x8xbf16, #tpu.memory_space<vmem>>, vector<128x8xbf16>
    %c4 = arith.constant 4 : index
    %c0_10 = arith.constant 0 : index
    %7 = vector.load %arg1[%c4, %c0_10] : memref<392x8xbf16, #tpu.memory_space<vmem>>, vector<128x8xbf16>
    %8 = tpu.concatenate %3, %4, %5, %6, %7 in 1 : vector<128x8xbf16>, vector<128x8xbf16>, vector<128x8xbf16>, vector<128x8xbf16>, vector<128x8xbf16> -> vector<128x40xbf16>
    %c0_11 = arith.constant 0 : index
    %c0_12 = arith.constant 0 : index
    %9 = vector.load %arg2[%c0_11, %c0_12] : memref<40x16xbf16, #tpu.memory_space<vmem>>, vector<40x16xbf16>
    %cst = arith.constant dense<0.000000e+00> : vector<128x16xf32>
    %10 = tpu.matmul %8, %9, %cst {dimension_numbers = #tpu.dot_dimension_numbers<[1], [0], [0], [1], [0, 0, 1, 1], [], []>} : vector<128x40xbf16>, vector<40x16xbf16>, vector<128x16xf32> -> vector<128x16xf32>
    %11 = vector.broadcast %0 : vector<1x16xf32> to vector<128x16xf32>
    %12 = arith.mulf %10, %11 : vector<128x16xf32>
    %13 = vector.broadcast %1 : vector<1x16xf32> to vector<128x16xf32>
    %14 = arith.addf %12, %13 : vector<128x16xf32>
    %cst_13 = arith.constant 0.000000e+00 : f32
    %15 = vector.broadcast %cst_13 : f32 to vector<128x16xf32>
    %16 = arith.cmpf oge, %14, %15 : vector<128x16xf32>
    %17 = vector.broadcast %2 : vector<1x16xf32> to vector<128x16xf32>
    %18 = arith.mulf %17, %14 : vector<128x16xf32>
    %19 = arith.select %16, %14, %18 : vector<128x16xi1>, vector<128x16xf32>
    %c0_14 = arith.constant 0 : index
    %c0_15 = arith.constant 0 : index
    %20 = vector.load %arg15[%c0_14, %c0_15] : memref<384x16xf32, #tpu.memory_space<vmem>>, vector<128x16xf32>
    tpu.vector_store %arg15[%c0_14, %c0_15], %19 {strides = array<i32>} : memref<384x16xf32, #tpu.memory_space<vmem>>, vector<128x16xf32>,
    %c128 = arith.constant 128 : index
    %c0_16 = arith.constant 0 : index
    %21 = vector.load %arg1[%c128, %c0_16] : memref<392x8xbf16, #tpu.memory_space<vmem>>, vector<128x8xbf16>
    %c129 = arith.constant 129 : index
    %c0_17 = arith.constant 0 : index
    %22 = vector.load %arg1[%c129, %c0_17] : memref<392x8xbf16, #tpu.memory_space<vmem>>, vector<128x8xbf16>
    %c130 = arith.constant 130 : index
    %c0_18 = arith.constant 0 : index
    %23 = vector.load %arg1[%c130, %c0_18] : memref<392x8xbf16, #tpu.memory_space<vmem>>, vector<128x8xbf16>
    %c131 = arith.constant 131 : index
    %c0_19 = arith.constant 0 : index
    %24 = vector.load %arg1[%c131, %c0_19] : memref<392x8xbf16, #tpu.memory_space<vmem>>, vector<128x8xbf16>
    %c132 = arith.constant 132 : index
    %c0_20 = arith.constant 0 : index
    %25 = vector.load %arg1[%c132, %c0_20] : memref<392x8xbf16, #tpu.memory_space<vmem>>, vector<128x8xbf16>
    %26 = tpu.concatenate %21, %22, %23, %24, %25 in 1 : vector<128x8xbf16>, vector<128x8xbf16>, vector<128x8xbf16>, vector<128x8xbf16>, vector<128x8xbf16> -> vector<128x40xbf16>
    %c0_21 = arith.constant 0 : index
    %c0_22 = arith.constant 0 : index
    %27 = vector.load %arg2[%c0_21, %c0_22] : memref<40x16xbf16, #tpu.memory_space<vmem>>, vector<40x16xbf16>
    %cst_23 = arith.constant dense<0.000000e+00> : vector<128x16xf32>
    %28 = tpu.matmul %26, %27, %cst_23 {dimension_numbers = #tpu.dot_dimension_numbers<[1], [0], [0], [1], [0, 0, 1, 1], [], []>} : vector<128x40xbf16>, vector<40x16xbf16>, vector<128x16xf32> -> vector<128x16xf32>
    %29 = vector.broadcast %0 : vector<1x16xf32> to vector<128x16xf32>
    %30 = arith.mulf %28, %29 : vector<128x16xf32>
    %31 = vector.broadcast %1 : vector<1x16xf32> to vector<128x16xf32>
    %32 = arith.addf %30, %31 : vector<128x16xf32>
    %cst_24 = arith.constant 0.000000e+00 : f32
    %33 = vector.broadcast %cst_24 : f32 to vector<128x16xf32>
    %34 = arith.cmpf oge, %32, %33 : vector<128x16xf32>
    %35 = vector.broadcast %2 : vector<1x16xf32> to vector<128x16xf32>
    %36 = arith.mulf %35, %32 : vector<128x16xf32>
    %37 = arith.select %34, %32, %36 : vector<128x16xi1>, vector<128x16xf32>
    %c128_25 = arith.constant 128 : index
    %c0_26 = arith.constant 0 : index
    %38 = vector.load %arg15[%c128_25, %c0_26] : memref<384x16xf32, #tpu.memory_space<vmem>>, vector<128x16xf32>
    tpu.vector_store %arg15[%c128_25, %c0_26], %37 {strides = array<i32>} : memref<384x16xf32, #tpu.memory_space<vmem>>, vector<128x16xf32>,
    %c256 = arith.constant 256 : index
    %c0_27 = arith.constant 0 : index
    %39 = vector.load %arg1[%c256, %c0_27] : memref<392x8xbf16, #tpu.memory_space<vmem>>, vector<128x8xbf16>
    %c257 = arith.constant 257 : index
    %c0_28 = arith.constant 0 : index
    %40 = vector.load %arg1[%c257, %c0_28] : memref<392x8xbf16, #tpu.memory_space<vmem>>, vector<128x8xbf16>
    %c258 = arith.constant 258 : index
    %c0_29 = arith.constant 0 : index
    %41 = vector.load %arg1[%c258, %c0_29] : memref<392x8xbf16, #tpu.memory_space<vmem>>, vector<128x8xbf16>
    %c259 = arith.constant 259 : index
    %c0_30 = arith.constant 0 : index
    %42 = vector.load %arg1[%c259, %c0_30] : memref<392x8xbf16, #tpu.memory_space<vmem>>, vector<128x8xbf16>
    %c260 = arith.constant 260 : index
    %c0_31 = arith.constant 0 : index
    %43 = vector.load %arg1[%c260, %c0_31] : memref<392x8xbf16, #tpu.memory_space<vmem>>, vector<128x8xbf16>
    %44 = tpu.concatenate %39, %40, %41, %42, %43 in 1 : vector<128x8xbf16>, vector<128x8xbf16>, vector<128x8xbf16>, vector<128x8xbf16>, vector<128x8xbf16> -> vector<128x40xbf16>
    %c0_32 = arith.constant 0 : index
    %c0_33 = arith.constant 0 : index
    %45 = vector.load %arg2[%c0_32, %c0_33] : memref<40x16xbf16, #tpu.memory_space<vmem>>, vector<40x16xbf16>
    %cst_34 = arith.constant dense<0.000000e+00> : vector<128x16xf32>
    %46 = tpu.matmul %44, %45, %cst_34 {dimension_numbers = #tpu.dot_dimension_numbers<[1], [0], [0], [1], [0, 0, 1, 1], [], []>} : vector<128x40xbf16>, vector<40x16xbf16>, vector<128x16xf32> -> vector<128x16xf32>
    %47 = vector.broadcast %0 : vector<1x16xf32> to vector<128x16xf32>
    %48 = arith.mulf %46, %47 : vector<128x16xf32>
    %49 = vector.broadcast %1 : vector<1x16xf32> to vector<128x16xf32>
    %50 = arith.addf %48, %49 : vector<128x16xf32>
    %cst_35 = arith.constant 0.000000e+00 : f32
    %51 = vector.broadcast %cst_35 : f32 to vector<128x16xf32>
    %52 = arith.cmpf oge, %50, %51 : vector<128x16xf32>
    %53 = vector.broadcast %2 : vector<1x16xf32> to vector<128x16xf32>
    %54 = arith.mulf %53, %50 : vector<128x16xf32>
    %55 = arith.select %52, %50, %54 : vector<128x16xi1>, vector<128x16xf32>
    %c256_36 = arith.constant 256 : index
    %c0_37 = arith.constant 0 : index
    %56 = vector.load %arg15[%c256_36, %c0_37] : memref<384x16xf32, #tpu.memory_space<vmem>>, vector<128x16xf32>
    tpu.vector_store %arg15[%c256_36, %c0_37], %55 {strides = array<i32>} : memref<384x16xf32, #tpu.memory_space<vmem>>, vector<128x16xf32>,
    %c0_38 = arith.constant 0 : index
    %c0_39 = arith.constant 0 : index
    %57 = vector.load %arg5[%c0_38, %c0_39] : memref<3x32xf32, #tpu.memory_space<vmem>>, vector<1x32xf32>
    %c1_40 = arith.constant 1 : index
    %c0_41 = arith.constant 0 : index
    %58 = vector.load %arg5[%c1_40, %c0_41] : memref<3x32xf32, #tpu.memory_space<vmem>>, vector<1x32xf32>
    %c2_42 = arith.constant 2 : index
    %c0_43 = arith.constant 0 : index
    %59 = vector.load %arg5[%c2_42, %c0_43] : memref<3x32xf32, #tpu.memory_space<vmem>>, vector<1x32xf32>
    %c0_44 = arith.constant 0 : index
    %c0_45 = arith.constant 0 : index
    %60 = tpu.strided_load %arg15[%c0_44, %c0_45] {strides = array<i32: 2, 1>} : memref<384x16xf32, #tpu.memory_space<vmem>>, vector<64x16xf32>
    %61 = arith.truncf %60 : vector<64x16xf32> to vector<64x16xbf16>
    %c1_46 = arith.constant 1 : index
    %c0_47 = arith.constant 0 : index
    %62 = tpu.strided_load %arg15[%c1_46, %c0_47] {strides = array<i32: 2, 1>} : memref<384x16xf32, #tpu.memory_space<vmem>>, vector<64x16xf32>
    %63 = arith.truncf %62 : vector<64x16xf32> to vector<64x16xbf16>
    %c2_48 = arith.constant 2 : index
    %c0_49 = arith.constant 0 : index
    %64 = tpu.strided_load %arg15[%c2_48, %c0_49] {strides = array<i32: 2, 1>} : memref<384x16xf32, #tpu.memory_space<vmem>>, vector<64x16xf32>
    %65 = arith.truncf %64 : vector<64x16xf32> to vector<64x16xbf16>
    %c3_50 = arith.constant 3 : index
    %c0_51 = arith.constant 0 : index
    %66 = tpu.strided_load %arg15[%c3_50, %c0_51] {strides = array<i32: 2, 1>} : memref<384x16xf32, #tpu.memory_space<vmem>>, vector<64x16xf32>
    %67 = arith.truncf %66 : vector<64x16xf32> to vector<64x16xbf16>
    %c4_52 = arith.constant 4 : index
    %c0_53 = arith.constant 0 : index
    %68 = tpu.strided_load %arg15[%c4_52, %c0_53] {strides = array<i32: 2, 1>} : memref<384x16xf32, #tpu.memory_space<vmem>>, vector<64x16xf32>
    %69 = arith.truncf %68 : vector<64x16xf32> to vector<64x16xbf16>
    %c5 = arith.constant 5 : index
    %c0_54 = arith.constant 0 : index
    %70 = tpu.strided_load %arg15[%c5, %c0_54] {strides = array<i32: 2, 1>} : memref<384x16xf32, #tpu.memory_space<vmem>>, vector<64x16xf32>
    %71 = arith.truncf %70 : vector<64x16xf32> to vector<64x16xbf16>
    %c6 = arith.constant 6 : index
    %c0_55 = arith.constant 0 : index
    %72 = tpu.strided_load %arg15[%c6, %c0_55] {strides = array<i32: 2, 1>} : memref<384x16xf32, #tpu.memory_space<vmem>>, vector<64x16xf32>
    %73 = arith.truncf %72 : vector<64x16xf32> to vector<64x16xbf16>
    %c7 = arith.constant 7 : index
    %c0_56 = arith.constant 0 : index
    %74 = tpu.strided_load %arg15[%c7, %c0_56] {strides = array<i32: 2, 1>} : memref<384x16xf32, #tpu.memory_space<vmem>>, vector<64x16xf32>
    %75 = arith.truncf %74 : vector<64x16xf32> to vector<64x16xbf16>
    %c8 = arith.constant 8 : index
    %c0_57 = arith.constant 0 : index
    %76 = tpu.strided_load %arg15[%c8, %c0_57] {strides = array<i32: 2, 1>} : memref<384x16xf32, #tpu.memory_space<vmem>>, vector<64x16xf32>
    %77 = arith.truncf %76 : vector<64x16xf32> to vector<64x16xbf16>
    %c9 = arith.constant 9 : index
    %c0_58 = arith.constant 0 : index
    %78 = tpu.strided_load %arg15[%c9, %c0_58] {strides = array<i32: 2, 1>} : memref<384x16xf32, #tpu.memory_space<vmem>>, vector<64x16xf32>
    %79 = arith.truncf %78 : vector<64x16xf32> to vector<64x16xbf16>
    %80 = tpu.concatenate %61, %63, %65, %67, %69, %71, %73, %75, %77, %79 in 1 : vector<64x16xbf16>, vector<64x16xbf16>, vector<64x16xbf16>, vector<64x16xbf16>, vector<64x16xbf16>, vector<64x16xbf16>, vector<64x16xbf16>, vector<64x16xbf16>, vector<64x16xbf16>, vector<64x16xbf16> -> vector<64x160xbf16>
    %c0_59 = arith.constant 0 : index
    %c0_60 = arith.constant 0 : index
    %81 = vector.load %arg4[%c0_59, %c0_60] : memref<160x32xbf16, #tpu.memory_space<vmem>>, vector<160x32xbf16>
    %cst_61 = arith.constant dense<0.000000e+00> : vector<64x32xf32>
    %82 = tpu.matmul %80, %81, %cst_61 {dimension_numbers = #tpu.dot_dimension_numbers<[1], [0], [0], [1], [0, 0, 1, 1], [], []>} : vector<64x160xbf16>, vector<160x32xbf16>, vector<64x32xf32> -> vector<64x32xf32>
    %83 = vector.broadcast %57 : vector<1x32xf32> to vector<64x32xf32>
    %84 = arith.mulf %82, %83 : vector<64x32xf32>
    %85 = vector.broadcast %58 : vector<1x32xf32> to vector<64x32xf32>
    %86 = arith.addf %84, %85 : vector<64x32xf32>
    %cst_62 = arith.constant 0.000000e+00 : f32
    %87 = vector.broadcast %cst_62 : f32 to vector<64x32xf32>
    %88 = arith.cmpf oge, %86, %87 : vector<64x32xf32>
    %89 = vector.broadcast %59 : vector<1x32xf32> to vector<64x32xf32>
    %90 = arith.mulf %89, %86 : vector<64x32xf32>
    %91 = arith.select %88, %86, %90 : vector<64x32xi1>, vector<64x32xf32>
    %c0_63 = arith.constant 0 : index
    %c0_64 = arith.constant 0 : index
    %92 = vector.load %arg16[%c0_63, %c0_64] : memref<184x32xf32, #tpu.memory_space<vmem>>, vector<64x32xf32>
    tpu.vector_store %arg16[%c0_63, %c0_64], %91 {strides = array<i32>} : memref<184x32xf32, #tpu.memory_space<vmem>>, vector<64x32xf32>,
    %c128_65 = arith.constant 128 : index
    %c0_66 = arith.constant 0 : index
    %93 = tpu.strided_load %arg15[%c128_65, %c0_66] {strides = array<i32: 2, 1>} : memref<384x16xf32, #tpu.memory_space<vmem>>, vector<64x16xf32>
    %94 = arith.truncf %93 : vector<64x16xf32> to vector<64x16xbf16>
    %c129_67 = arith.constant 129 : index
    %c0_68 = arith.constant 0 : index
    %95 = tpu.strided_load %arg15[%c129_67, %c0_68] {strides = array<i32: 2, 1>} : memref<384x16xf32, #tpu.memory_space<vmem>>, vector<64x16xf32>
    %96 = arith.truncf %95 : vector<64x16xf32> to vector<64x16xbf16>
    %c130_69 = arith.constant 130 : index
    %c0_70 = arith.constant 0 : index
    %97 = tpu.strided_load %arg15[%c130_69, %c0_70] {strides = array<i32: 2, 1>} : memref<384x16xf32, #tpu.memory_space<vmem>>, vector<64x16xf32>
    %98 = arith.truncf %97 : vector<64x16xf32> to vector<64x16xbf16>
    %c131_71 = arith.constant 131 : index
    %c0_72 = arith.constant 0 : index
    %99 = tpu.strided_load %arg15[%c131_71, %c0_72] {strides = array<i32: 2, 1>} : memref<384x16xf32, #tpu.memory_space<vmem>>, vector<64x16xf32>
    %100 = arith.truncf %99 : vector<64x16xf32> to vector<64x16xbf16>
    %c132_73 = arith.constant 132 : index
    %c0_74 = arith.constant 0 : index
    %101 = tpu.strided_load %arg15[%c132_73, %c0_74] {strides = array<i32: 2, 1>} : memref<384x16xf32, #tpu.memory_space<vmem>>, vector<64x16xf32>
    %102 = arith.truncf %101 : vector<64x16xf32> to vector<64x16xbf16>
    %c133 = arith.constant 133 : index
    %c0_75 = arith.constant 0 : index
    %103 = tpu.strided_load %arg15[%c133, %c0_75] {strides = array<i32: 2, 1>} : memref<384x16xf32, #tpu.memory_space<vmem>>, vector<64x16xf32>
    %104 = arith.truncf %103 : vector<64x16xf32> to vector<64x16xbf16>
    %c134 = arith.constant 134 : index
    %c0_76 = arith.constant 0 : index
    %105 = tpu.strided_load %arg15[%c134, %c0_76] {strides = array<i32: 2, 1>} : memref<384x16xf32, #tpu.memory_space<vmem>>, vector<64x16xf32>
    %106 = arith.truncf %105 : vector<64x16xf32> to vector<64x16xbf16>
    %c135 = arith.constant 135 : index
    %c0_77 = arith.constant 0 : index
    %107 = tpu.strided_load %arg15[%c135, %c0_77] {strides = array<i32: 2, 1>} : memref<384x16xf32, #tpu.memory_space<vmem>>, vector<64x16xf32>
    %108 = arith.truncf %107 : vector<64x16xf32> to vector<64x16xbf16>
    %c136 = arith.constant 136 : index
    %c0_78 = arith.constant 0 : index
    %109 = tpu.strided_load %arg15[%c136, %c0_78] {strides = array<i32: 2, 1>} : memref<384x16xf32, #tpu.memory_space<vmem>>, vector<64x16xf32>
    %110 = arith.truncf %109 : vector<64x16xf32> to vector<64x16xbf16>
    %c137 = arith.constant 137 : index
    %c0_79 = arith.constant 0 : index
    %111 = tpu.strided_load %arg15[%c137, %c0_79] {strides = array<i32: 2, 1>} : memref<384x16xf32, #tpu.memory_space<vmem>>, vector<64x16xf32>
    %112 = arith.truncf %111 : vector<64x16xf32> to vector<64x16xbf16>
    %113 = tpu.concatenate %94, %96, %98, %100, %102, %104, %106, %108, %110, %112 in 1 : vector<64x16xbf16>, vector<64x16xbf16>, vector<64x16xbf16>, vector<64x16xbf16>, vector<64x16xbf16>, vector<64x16xbf16>, vector<64x16xbf16>, vector<64x16xbf16>, vector<64x16xbf16>, vector<64x16xbf16> -> vector<64x160xbf16>
    %c0_80 = arith.constant 0 : index
    %c0_81 = arith.constant 0 : index
    %114 = vector.load %arg4[%c0_80, %c0_81] : memref<160x32xbf16, #tpu.memory_space<vmem>>, vector<160x32xbf16>
    %cst_82 = arith.constant dense<0.000000e+00> : vector<64x32xf32>
    %115 = tpu.matmul %113, %114, %cst_82 {dimension_numbers = #tpu.dot_dimension_numbers<[1], [0], [0], [1], [0, 0, 1, 1], [], []>} : vector<64x160xbf16>, vector<160x32xbf16>, vector<64x32xf32> -> vector<64x32xf32>
    %116 = vector.broadcast %57 : vector<1x32xf32> to vector<64x32xf32>
    %117 = arith.mulf %115, %116 : vector<64x32xf32>
    %118 = vector.broadcast %58 : vector<1x32xf32> to vector<64x32xf32>
    %119 = arith.addf %117, %118 : vector<64x32xf32>
    %cst_83 = arith.constant 0.000000e+00 : f32
    %120 = vector.broadcast %cst_83 : f32 to vector<64x32xf32>
    %121 = arith.cmpf oge, %119, %120 : vector<64x32xf32>
    %122 = vector.broadcast %59 : vector<1x32xf32> to vector<64x32xf32>
    %123 = arith.mulf %122, %119 : vector<64x32xf32>
    %124 = arith.select %121, %119, %123 : vector<64x32xi1>, vector<64x32xf32>
    %c64 = arith.constant 64 : index
    %c0_84 = arith.constant 0 : index
    %125 = vector.load %arg16[%c64, %c0_84] : memref<184x32xf32, #tpu.memory_space<vmem>>, vector<64x32xf32>
    tpu.vector_store %arg16[%c64, %c0_84], %124 {strides = array<i32>} : memref<184x32xf32, #tpu.memory_space<vmem>>, vector<64x32xf32>,
    %c256_85 = arith.constant 256 : index
    %c0_86 = arith.constant 0 : index
    %126 = tpu.strided_load %arg15[%c256_85, %c0_86] {strides = array<i32: 2, 1>} : memref<384x16xf32, #tpu.memory_space<vmem>>, vector<53x16xf32>
    %127 = arith.truncf %126 : vector<53x16xf32> to vector<53x16xbf16>
    %c257_87 = arith.constant 257 : index
    %c0_88 = arith.constant 0 : index
    %128 = tpu.strided_load %arg15[%c257_87, %c0_88] {strides = array<i32: 2, 1>} : memref<384x16xf32, #tpu.memory_space<vmem>>, vector<53x16xf32>
    %129 = arith.truncf %128 : vector<53x16xf32> to vector<53x16xbf16>
    %c258_89 = arith.constant 258 : index
    %c0_90 = arith.constant 0 : index
    %130 = tpu.strided_load %arg15[%c258_89, %c0_90] {strides = array<i32: 2, 1>} : memref<384x16xf32, #tpu.memory_space<vmem>>, vector<53x16xf32>
    %131 = arith.truncf %130 : vector<53x16xf32> to vector<53x16xbf16>
    %c259_91 = arith.constant 259 : index
    %c0_92 = arith.constant 0 : index
    %132 = tpu.strided_load %arg15[%c259_91, %c0_92] {strides = array<i32: 2, 1>} : memref<384x16xf32, #tpu.memory_space<vmem>>, vector<53x16xf32>
    %133 = arith.truncf %132 : vector<53x16xf32> to vector<53x16xbf16>
    %c260_93 = arith.constant 260 : index
    %c0_94 = arith.constant 0 : index
    %134 = tpu.strided_load %arg15[%c260_93, %c0_94] {strides = array<i32: 2, 1>} : memref<384x16xf32, #tpu.memory_space<vmem>>, vector<53x16xf32>
    %135 = arith.truncf %134 : vector<53x16xf32> to vector<53x16xbf16>
    %c261 = arith.constant 261 : index
    %c0_95 = arith.constant 0 : index
    %136 = tpu.strided_load %arg15[%c261, %c0_95] {strides = array<i32: 2, 1>} : memref<384x16xf32, #tpu.memory_space<vmem>>, vector<53x16xf32>
    %137 = arith.truncf %136 : vector<53x16xf32> to vector<53x16xbf16>
    %c262 = arith.constant 262 : index
    %c0_96 = arith.constant 0 : index
    %138 = tpu.strided_load %arg15[%c262, %c0_96] {strides = array<i32: 2, 1>} : memref<384x16xf32, #tpu.memory_space<vmem>>, vector<53x16xf32>
    %139 = arith.truncf %138 : vector<53x16xf32> to vector<53x16xbf16>
    %c263 = arith.constant 263 : index
    %c0_97 = arith.constant 0 : index
    %140 = tpu.strided_load %arg15[%c263, %c0_97] {strides = array<i32: 2, 1>} : memref<384x16xf32, #tpu.memory_space<vmem>>, vector<53x16xf32>
    %141 = arith.truncf %140 : vector<53x16xf32> to vector<53x16xbf16>
    %c264 = arith.constant 264 : index
    %c0_98 = arith.constant 0 : index
    %142 = tpu.strided_load %arg15[%c264, %c0_98] {strides = array<i32: 2, 1>} : memref<384x16xf32, #tpu.memory_space<vmem>>, vector<53x16xf32>
    %143 = arith.truncf %142 : vector<53x16xf32> to vector<53x16xbf16>
    %c265 = arith.constant 265 : index
    %c0_99 = arith.constant 0 : index
    %144 = tpu.strided_load %arg15[%c265, %c0_99] {strides = array<i32: 2, 1>} : memref<384x16xf32, #tpu.memory_space<vmem>>, vector<53x16xf32>
    %145 = arith.truncf %144 : vector<53x16xf32> to vector<53x16xbf16>
    %146 = tpu.concatenate %127, %129, %131, %133, %135, %137, %139, %141, %143, %145 in 1 : vector<53x16xbf16>, vector<53x16xbf16>, vector<53x16xbf16>, vector<53x16xbf16>, vector<53x16xbf16>, vector<53x16xbf16>, vector<53x16xbf16>, vector<53x16xbf16>, vector<53x16xbf16>, vector<53x16xbf16> -> vector<53x160xbf16>
    %c0_100 = arith.constant 0 : index
    %c0_101 = arith.constant 0 : index
    %147 = vector.load %arg4[%c0_100, %c0_101] : memref<160x32xbf16, #tpu.memory_space<vmem>>, vector<160x32xbf16>
    %cst_102 = arith.constant dense<0.000000e+00> : vector<53x32xf32>
    %148 = tpu.matmul %146, %147, %cst_102 {dimension_numbers = #tpu.dot_dimension_numbers<[1], [0], [0], [1], [0, 0, 1, 1], [], []>} : vector<53x160xbf16>, vector<160x32xbf16>, vector<53x32xf32> -> vector<53x32xf32>
    %149 = vector.broadcast %57 : vector<1x32xf32> to vector<53x32xf32>
    %150 = arith.mulf %148, %149 : vector<53x32xf32>
    %151 = vector.broadcast %58 : vector<1x32xf32> to vector<53x32xf32>
    %152 = arith.addf %150, %151 : vector<53x32xf32>
    %cst_103 = arith.constant 0.000000e+00 : f32
    %153 = vector.broadcast %cst_103 : f32 to vector<53x32xf32>
    %154 = arith.cmpf oge, %152, %153 : vector<53x32xf32>
    %155 = vector.broadcast %59 : vector<1x32xf32> to vector<53x32xf32>
    %156 = arith.mulf %155, %152 : vector<53x32xf32>
    %157 = arith.select %154, %152, %156 : vector<53x32xi1>, vector<53x32xf32>
    %c128_104 = arith.constant 128 : index
    %c0_105 = arith.constant 0 : index
    %158 = vector.load %arg16[%c128_104, %c0_105] : memref<184x32xf32, #tpu.memory_space<vmem>>, vector<53x32xf32>
    tpu.vector_store %arg16[%c128_104, %c0_105], %157 {strides = array<i32>} : memref<184x32xf32, #tpu.memory_space<vmem>>, vector<53x32xf32>,
    %c0_106 = arith.constant 0 : index
    %c0_107 = arith.constant 0 : index
    %159 = vector.load %arg7[%c0_106, %c0_107] : memref<3x64xf32, #tpu.memory_space<vmem>>, vector<1x64xf32>
    %c1_108 = arith.constant 1 : index
    %c0_109 = arith.constant 0 : index
    %160 = vector.load %arg7[%c1_108, %c0_109] : memref<3x64xf32, #tpu.memory_space<vmem>>, vector<1x64xf32>
    %c2_110 = arith.constant 2 : index
    %c0_111 = arith.constant 0 : index
    %161 = vector.load %arg7[%c2_110, %c0_111] : memref<3x64xf32, #tpu.memory_space<vmem>>, vector<1x64xf32>
    %c0_112 = arith.constant 0 : index
    %c0_113 = arith.constant 0 : index
    %162 = tpu.strided_load %arg16[%c0_112, %c0_113] {strides = array<i32: 2, 1>} : memref<184x32xf32, #tpu.memory_space<vmem>>, vector<89x32xf32>
    %163 = arith.truncf %162 : vector<89x32xf32> to vector<89x32xbf16>
    %c1_114 = arith.constant 1 : index
    %c0_115 = arith.constant 0 : index
    %164 = tpu.strided_load %arg16[%c1_114, %c0_115] {strides = array<i32: 2, 1>} : memref<184x32xf32, #tpu.memory_space<vmem>>, vector<89x32xf32>
    %165 = arith.truncf %164 : vector<89x32xf32> to vector<89x32xbf16>
    %c2_116 = arith.constant 2 : index
    %c0_117 = arith.constant 0 : index
    %166 = tpu.strided_load %arg16[%c2_116, %c0_117] {strides = array<i32: 2, 1>} : memref<184x32xf32, #tpu.memory_space<vmem>>, vector<89x32xf32>
    %167 = arith.truncf %166 : vector<89x32xf32> to vector<89x32xbf16>
    %c3_118 = arith.constant 3 : index
    %c0_119 = arith.constant 0 : index
    %168 = tpu.strided_load %arg16[%c3_118, %c0_119] {strides = array<i32: 2, 1>} : memref<184x32xf32, #tpu.memory_space<vmem>>, vector<89x32xf32>
    %169 = arith.truncf %168 : vector<89x32xf32> to vector<89x32xbf16>
    %c4_120 = arith.constant 4 : index
    %c0_121 = arith.constant 0 : index
    %170 = tpu.strided_load %arg16[%c4_120, %c0_121] {strides = array<i32: 2, 1>} : memref<184x32xf32, #tpu.memory_space<vmem>>, vector<89x32xf32>
    %171 = arith.truncf %170 : vector<89x32xf32> to vector<89x32xbf16>
    %172 = tpu.concatenate %163, %165, %167, %169, %171 in 1 : vector<89x32xbf16>, vector<89x32xbf16>, vector<89x32xbf16>, vector<89x32xbf16>, vector<89x32xbf16> -> vector<89x160xbf16>
    %c0_122 = arith.constant 0 : index
    %c0_123 = arith.constant 0 : index
    %173 = vector.load %arg6[%c0_122, %c0_123] : memref<160x64xbf16, #tpu.memory_space<vmem>>, vector<160x64xbf16>
    %cst_124 = arith.constant dense<0.000000e+00> : vector<89x64xf32>
    %174 = tpu.matmul %172, %173, %cst_124 {dimension_numbers = #tpu.dot_dimension_numbers<[1], [0], [0], [1], [0, 0, 1, 1], [], []>} : vector<89x160xbf16>, vector<160x64xbf16>, vector<89x64xf32> -> vector<89x64xf32>
    %175 = vector.broadcast %159 : vector<1x64xf32> to vector<89x64xf32>
    %176 = arith.mulf %174, %175 : vector<89x64xf32>
    %177 = vector.broadcast %160 : vector<1x64xf32> to vector<89x64xf32>
    %178 = arith.addf %176, %177 : vector<89x64xf32>
    %cst_125 = arith.constant 0.000000e+00 : f32
    %179 = vector.broadcast %cst_125 : f32 to vector<89x64xf32>
    %180 = arith.cmpf oge, %178, %179 : vector<89x64xf32>
    %181 = vector.broadcast %161 : vector<1x64xf32> to vector<89x64xf32>
    %182 = arith.mulf %181, %178 : vector<89x64xf32>
    %183 = arith.select %180, %178, %182 : vector<89x64xi1>, vector<89x64xf32>
    %c0_126 = arith.constant 0 : index
    %c0_127 = arith.constant 0 : index
    %184 = vector.load %arg17[%c0_126, %c0_127] : memref<96x64xf32, #tpu.memory_space<vmem>>, vector<89x64xf32>
    tpu.vector_store %arg17[%c0_126, %c0_127], %183 {strides = array<i32>} : memref<96x64xf32, #tpu.memory_space<vmem>>, vector<89x64xf32>,
    %c0_128 = arith.constant 0 : index
    %c0_129 = arith.constant 0 : index
    %185 = vector.load %arg9[%c0_128, %c0_129] : memref<3x128xf32, #tpu.memory_space<vmem>>, vector<1x128xf32>
    %c1_130 = arith.constant 1 : index
    %c0_131 = arith.constant 0 : index
    %186 = vector.load %arg9[%c1_130, %c0_131] : memref<3x128xf32, #tpu.memory_space<vmem>>, vector<1x128xf32>
    %c2_132 = arith.constant 2 : index
    %c0_133 = arith.constant 0 : index
    %187 = vector.load %arg9[%c2_132, %c0_133] : memref<3x128xf32, #tpu.memory_space<vmem>>, vector<1x128xf32>
    %c0_134 = arith.constant 0 : index
    %c0_135 = arith.constant 0 : index
    %188 = tpu.strided_load %arg17[%c0_134, %c0_135] {strides = array<i32: 2, 1>} : memref<96x64xf32, #tpu.memory_space<vmem>>, vector<44x64xf32>
    %189 = arith.truncf %188 : vector<44x64xf32> to vector<44x64xbf16>
    %c1_136 = arith.constant 1 : index
    %c0_137 = arith.constant 0 : index
    %190 = tpu.strided_load %arg17[%c1_136, %c0_137] {strides = array<i32: 2, 1>} : memref<96x64xf32, #tpu.memory_space<vmem>>, vector<44x64xf32>
    %191 = arith.truncf %190 : vector<44x64xf32> to vector<44x64xbf16>
    %c2_138 = arith.constant 2 : index
    %c0_139 = arith.constant 0 : index
    %192 = tpu.strided_load %arg17[%c2_138, %c0_139] {strides = array<i32: 2, 1>} : memref<96x64xf32, #tpu.memory_space<vmem>>, vector<44x64xf32>
    %193 = arith.truncf %192 : vector<44x64xf32> to vector<44x64xbf16>
    %194 = tpu.concatenate %189, %191, %193 in 1 : vector<44x64xbf16>, vector<44x64xbf16>, vector<44x64xbf16> -> vector<44x192xbf16>
    %c0_140 = arith.constant 0 : index
    %c0_141 = arith.constant 0 : index
    %195 = vector.load %arg8[%c0_140, %c0_141] : memref<192x128xbf16, #tpu.memory_space<vmem>>, vector<192x128xbf16>
    %cst_142 = arith.constant dense<0.000000e+00> : vector<44x128xf32>
    %196 = tpu.matmul %194, %195, %cst_142 {dimension_numbers = #tpu.dot_dimension_numbers<[1], [0], [0], [1], [0, 0, 1, 1], [], []>} : vector<44x192xbf16>, vector<192x128xbf16>, vector<44x128xf32> -> vector<44x128xf32>
    %197 = vector.broadcast %185 : vector<1x128xf32> to vector<44x128xf32>
    %198 = arith.mulf %196, %197 : vector<44x128xf32>
    %199 = vector.broadcast %186 : vector<1x128xf32> to vector<44x128xf32>
    %200 = arith.addf %198, %199 : vector<44x128xf32>
    %cst_143 = arith.constant 0.000000e+00 : f32
    %201 = vector.broadcast %cst_143 : f32 to vector<44x128xf32>
    %202 = arith.cmpf oge, %200, %201 : vector<44x128xf32>
    %203 = vector.broadcast %187 : vector<1x128xf32> to vector<44x128xf32>
    %204 = arith.mulf %203, %200 : vector<44x128xf32>
    %205 = arith.select %202, %200, %204 : vector<44x128xi1>, vector<44x128xf32>
    %c0_144 = arith.constant 0 : index
    %c0_145 = arith.constant 0 : index
    %206 = vector.load %arg18[%c0_144, %c0_145] : memref<48x128xf32, #tpu.memory_space<vmem>>, vector<44x128xf32>
    tpu.vector_store %arg18[%c0_144, %c0_145], %205 {strides = array<i32>} : memref<48x128xf32, #tpu.memory_space<vmem>>, vector<44x128xf32>,
    %c0_146 = arith.constant 0 : index
    %c0_147 = arith.constant 0 : index
    %207 = vector.load %arg11[%c0_146, %c0_147] : memref<3x256xf32, #tpu.memory_space<vmem>>, vector<1x256xf32>
    %c1_148 = arith.constant 1 : index
    %c0_149 = arith.constant 0 : index
    %208 = vector.load %arg11[%c1_148, %c0_149] : memref<3x256xf32, #tpu.memory_space<vmem>>, vector<1x256xf32>
    %c2_150 = arith.constant 2 : index
    %c0_151 = arith.constant 0 : index
    %209 = vector.load %arg11[%c2_150, %c0_151] : memref<3x256xf32, #tpu.memory_space<vmem>>, vector<1x256xf32>
    %c0_152 = arith.constant 0 : index
    %c0_153 = arith.constant 0 : index
    %210 = tpu.strided_load %arg18[%c0_152, %c0_153] {strides = array<i32: 4, 1>} : memref<48x128xf32, #tpu.memory_space<vmem>>, vector<11x128xf32>
    %211 = arith.truncf %210 : vector<11x128xf32> to vector<11x128xbf16>
    %c1_154 = arith.constant 1 : index
    %c0_155 = arith.constant 0 : index
    %212 = tpu.strided_load %arg18[%c1_154, %c0_155] {strides = array<i32: 4, 1>} : memref<48x128xf32, #tpu.memory_space<vmem>>, vector<11x128xf32>
    %213 = arith.truncf %212 : vector<11x128xf32> to vector<11x128xbf16>
    %214 = tpu.concatenate %211, %213 in 1 : vector<11x128xbf16>, vector<11x128xbf16> -> vector<11x256xbf16>
    %c0_156 = arith.constant 0 : index
    %c0_157 = arith.constant 0 : index
    %215 = vector.load %arg10[%c0_156, %c0_157] : memref<256x256xbf16, #tpu.memory_space<vmem>>, vector<256x256xbf16>
    %cst_158 = arith.constant dense<0.000000e+00> : vector<11x256xf32>
    %216 = tpu.matmul %214, %215, %cst_158 {dimension_numbers = #tpu.dot_dimension_numbers<[1], [0], [0], [1], [0, 0, 1, 1], [], []>} : vector<11x256xbf16>, vector<256x256xbf16>, vector<11x256xf32> -> vector<11x256xf32>
    %217 = vector.broadcast %207 : vector<1x256xf32> to vector<11x256xf32>
    %218 = arith.mulf %216, %217 : vector<11x256xf32>
    %219 = vector.broadcast %208 : vector<1x256xf32> to vector<11x256xf32>
    %220 = arith.addf %218, %219 : vector<11x256xf32>
    %cst_159 = arith.constant 0.000000e+00 : f32
    %221 = vector.broadcast %cst_159 : f32 to vector<11x256xf32>
    %222 = arith.cmpf oge, %220, %221 : vector<11x256xf32>
    %223 = vector.broadcast %209 : vector<1x256xf32> to vector<11x256xf32>
    %224 = arith.mulf %223, %220 : vector<11x256xf32>
    %225 = arith.select %222, %220, %224 : vector<11x256xi1>, vector<11x256xf32>
    %226 = arith.truncf %225 : vector<11x256xf32> to vector<11x256xbf16>
    %c0_160 = arith.constant 0 : index
    %c0_161 = arith.constant 0 : index
    %227 = vector.load %arg19[%c0_160, %c0_161] : memref<16x256xbf16, #tpu.memory_space<vmem>>, vector<11x256xbf16>
    tpu.vector_store %arg19[%c0_160, %c0_161], %226 {strides = array<i32>} : memref<16x256xbf16, #tpu.memory_space<vmem>>, vector<11x256xbf16>,
    %c1_162 = arith.constant 1 : index
    %c0_163 = arith.constant 0 : index
    %228 = vector.load %arg13[%c1_162, %c0_163] : memref<3x128xf32, #tpu.memory_space<vmem>>, vector<1x128xf32>
    %c0_164 = arith.constant 0 : index
    %c0_165 = arith.constant 0 : index
    %229 = vector.load %arg19[%c0_164, %c0_165] : memref<16x256xbf16, #tpu.memory_space<vmem>>, vector<1x256xbf16>
    %c1_166 = arith.constant 1 : index
    %c0_167 = arith.constant 0 : index
    %230 = vector.load %arg19[%c1_166, %c0_167] : memref<16x256xbf16, #tpu.memory_space<vmem>>, vector<1x256xbf16>
    %c2_168 = arith.constant 2 : index
    %c0_169 = arith.constant 0 : index
    %231 = vector.load %arg19[%c2_168, %c0_169] : memref<16x256xbf16, #tpu.memory_space<vmem>>, vector<1x256xbf16>
    %c3_170 = arith.constant 3 : index
    %c0_171 = arith.constant 0 : index
    %232 = vector.load %arg19[%c3_170, %c0_171] : memref<16x256xbf16, #tpu.memory_space<vmem>>, vector<1x256xbf16>
    %c4_172 = arith.constant 4 : index
    %c0_173 = arith.constant 0 : index
    %233 = vector.load %arg19[%c4_172, %c0_173] : memref<16x256xbf16, #tpu.memory_space<vmem>>, vector<1x256xbf16>
    %c5_174 = arith.constant 5 : index
    %c0_175 = arith.constant 0 : index
    %234 = vector.load %arg19[%c5_174, %c0_175] : memref<16x256xbf16, #tpu.memory_space<vmem>>, vector<1x256xbf16>
    %c6_176 = arith.constant 6 : index
    %c0_177 = arith.constant 0 : index
    %235 = vector.load %arg19[%c6_176, %c0_177] : memref<16x256xbf16, #tpu.memory_space<vmem>>, vector<1x256xbf16>
    %c7_178 = arith.constant 7 : index
    %c0_179 = arith.constant 0 : index
    %236 = vector.load %arg19[%c7_178, %c0_179] : memref<16x256xbf16, #tpu.memory_space<vmem>>, vector<1x256xbf16>
    %c8_180 = arith.constant 8 : index
    %c0_181 = arith.constant 0 : index
    %237 = vector.load %arg19[%c8_180, %c0_181] : memref<16x256xbf16, #tpu.memory_space<vmem>>, vector<1x256xbf16>
    %c9_182 = arith.constant 9 : index
    %c0_183 = arith.constant 0 : index
    %238 = vector.load %arg19[%c9_182, %c0_183] : memref<16x256xbf16, #tpu.memory_space<vmem>>, vector<1x256xbf16>
    %c10 = arith.constant 10 : index
    %c0_184 = arith.constant 0 : index
    %239 = vector.load %arg19[%c10, %c0_184] : memref<16x256xbf16, #tpu.memory_space<vmem>>, vector<1x256xbf16>
    %240 = tpu.concatenate %229, %230, %231, %232, %233, %234, %235, %236, %237, %238, %239 in 1 : vector<1x256xbf16>, vector<1x256xbf16>, vector<1x256xbf16>, vector<1x256xbf16>, vector<1x256xbf16>, vector<1x256xbf16>, vector<1x256xbf16>, vector<1x256xbf16>, vector<1x256xbf16>, vector<1x256xbf16>, vector<1x256xbf16> -> vector<1x2816xbf16>
    %c0_185 = arith.constant 0 : index
    %c0_186 = arith.constant 0 : index
    %241 = vector.load %arg12[%c0_185, %c0_186] : memref<2816x128xbf16, #tpu.memory_space<vmem>>, vector<2816x128xbf16>
    %cst_187 = arith.constant dense<0.000000e+00> : vector<1x128xf32>
    %242 = tpu.matmul %240, %241, %cst_187 {dimension_numbers = #tpu.dot_dimension_numbers<[1], [0], [0], [1], [0, 0, 1, 1], [], []>} : vector<1x2816xbf16>, vector<2816x128xbf16>, vector<1x128xf32> -> vector<1x128xf32>
    %243 = arith.addf %242, %228 : vector<1x128xf32>
    %244 = vector.shape_cast %243 : vector<1x128xf32> to vector<1x128xf32>
    %245 = vector.broadcast %244 : vector<1x128xf32> to vector<8x128xf32>
    %c0_188 = arith.constant 0 : index
    %c0_189 = arith.constant 0 : index
    %c0_190 = arith.constant 0 : index
    %246 = vector.load %arg14[%c0_188, %c0_189, %c0_190] : memref<1x8x128xf32, #tpu.memory_space<vmem>>, vector<1x8x128xf32>
    %247 = vector.shape_cast %246 : vector<1x8x128xf32> to vector<8x128xf32>
    %248 = vector.shape_cast %245 : vector<8x128xf32> to vector<1x8x128xf32>
    tpu.vector_store %arg14[%c0_188, %c0_189, %c0_190], %248 {strides = array<i32>} : memref<1x8x128xf32, #tpu.memory_space<vmem>>, vector<1x8x128xf32>,
    return
  }
  func.func @transform_0(%arg0: i32) -> (i32, i32) {
    %c0_i32 = arith.constant 0 : i32
    %c0_i32_0 = arith.constant 0 : i32
    return %arg0, %c0_i32 : i32, i32
  }
  func.func @transform_1(%arg0: i32) -> (i32, i32) {
    %c0_i32 = arith.constant 0 : i32
    %c0_i32_0 = arith.constant 0 : i32
    %c0_i32_1 = arith.constant 0 : i32
    return %c0_i32, %c0_i32_0 : i32, i32
  }
  func.func @transform_2(%arg0: i32) -> (i32, i32) {
    %c0_i32 = arith.constant 0 : i32
    %c0_i32_0 = arith.constant 0 : i32
    %c0_i32_1 = arith.constant 0 : i32
    return %c0_i32, %c0_i32_0 : i32, i32
  }
  func.func @transform_3(%arg0: i32) -> (i32, i32) {
    %c0_i32 = arith.constant 0 : i32
    %c0_i32_0 = arith.constant 0 : i32
    %c0_i32_1 = arith.constant 0 : i32
    return %c0_i32, %c0_i32_0 : i32, i32
  }
  func.func @transform_4(%arg0: i32) -> (i32, i32) {
    %c0_i32 = arith.constant 0 : i32
    %c0_i32_0 = arith.constant 0 : i32
    %c0_i32_1 = arith.constant 0 : i32
    return %c0_i32, %c0_i32_0 : i32, i32
  }
  func.func @transform_5(%arg0: i32) -> (i32, i32) {
    %c0_i32 = arith.constant 0 : i32
    %c0_i32_0 = arith.constant 0 : i32
    %c0_i32_1 = arith.constant 0 : i32
    return %c0_i32, %c0_i32_0 : i32, i32
  }
  func.func @transform_6(%arg0: i32) -> (i32, i32) {
    %c0_i32 = arith.constant 0 : i32
    %c0_i32_0 = arith.constant 0 : i32
    %c0_i32_1 = arith.constant 0 : i32
    return %c0_i32, %c0_i32_0 : i32, i32
  }
  func.func @transform_7(%arg0: i32) -> (i32, i32) {
    %c0_i32 = arith.constant 0 : i32
    %c0_i32_0 = arith.constant 0 : i32
    %c0_i32_1 = arith.constant 0 : i32
    return %c0_i32, %c0_i32_0 : i32, i32
  }
  func.func @transform_8(%arg0: i32) -> (i32, i32) {
    %c0_i32 = arith.constant 0 : i32
    %c0_i32_0 = arith.constant 0 : i32
    %c0_i32_1 = arith.constant 0 : i32
    return %c0_i32, %c0_i32_0 : i32, i32
  }
  func.func @transform_9(%arg0: i32) -> (i32, i32) {
    %c0_i32 = arith.constant 0 : i32
    %c0_i32_0 = arith.constant 0 : i32
    %c0_i32_1 = arith.constant 0 : i32
    return %c0_i32, %c0_i32_0 : i32, i32
  }
  func.func @transform_10(%arg0: i32) -> (i32, i32) {
    %c0_i32 = arith.constant 0 : i32
    %c0_i32_0 = arith.constant 0 : i32
    %c0_i32_1 = arith.constant 0 : i32
    return %c0_i32, %c0_i32_0 : i32, i32
  }
  func.func @transform_11(%arg0: i32) -> (i32, i32) {
    %c0_i32 = arith.constant 0 : i32
    %c0_i32_0 = arith.constant 0 : i32
    %c0_i32_1 = arith.constant 0 : i32
    return %c0_i32, %c0_i32_0 : i32, i32
  }
  func.func @transform_12(%arg0: i32) -> (i32, i32) {
    %c0_i32 = arith.constant 0 : i32
    %c0_i32_0 = arith.constant 0 : i32
    %c0_i32_1 = arith.constant 0 : i32
    return %c0_i32, %c0_i32_0 : i32, i32
  }
  func.func @transform_13(%arg0: i32) -> (i32, i32, i32) {
    %c0_i32 = arith.constant 0 : i32
    %c0_i32_0 = arith.constant 0 : i32
    %c0_i32_1 = arith.constant 0 : i32
    return %arg0, %c0_i32, %c0_i32_0 : i32, i32, i32
  }
}

</mosaic_0001>

<llo_original>
// kernel: cnn_forward.1
$region0: #{cnn_forward.1}
  #allocation0 [shape = 'u32[]', space=smem, size = 0x4, offset = 0x4, fixed_abs, tag = 'smem constant byte address 0x4 - core index']
  #allocation1 [shape = 'u32[144,128]{1,0:T(1,128)}', space=vmem, size = 0x12000, scoped, tag = 'internal scratch']
  #allocation2 [shape = 'f32[384,16]{1,0:T(8,128)}', space=vmem, size = 0x30000, scoped, tag = 'scratch operand']
  #allocation3 [shape = 'f32[184,32]{1,0:T(8,128)}', space=vmem, size = 0x17000, scoped, tag = 'scratch operand']
  #allocation4 [shape = 'f32[96,64]{1,0:T(8,128)}', space=vmem, size = 0xc000, scoped, tag = 'scratch operand']
  #allocation5 [shape = 'f32[48,128]{1,0:T(8,128)}', space=vmem, size = 0x6000, scoped, tag = 'scratch operand']
  #allocation6 [shape = 'bf16[16,256]{1,0:T(16,128)(2,1)}', space=vmem, size = 0x2000, scoped, tag = 'scratch operand']
  %s0 = inlined_call_operand.vmem [shape: bf16[784,8], index: 0, kind: input, shape index: {}]
  %s1 = inlined_call_operand.vmem [shape: bf16[40,16], index: 1, kind: input, shape index: {}]
  %s2 = inlined_call_operand.vmem [shape: f32[3,16], index: 2, kind: input, shape index: {}]
  %s3 = inlined_call_operand.vmem [shape: bf16[160,32], index: 3, kind: input, shape index: {}]
  %s4 = inlined_call_operand.vmem [shape: f32[3,32], index: 4, kind: input, shape index: {}]
  %s5 = inlined_call_operand.vmem [shape: bf16[160,64], index: 5, kind: input, shape index: {}]
  %s6 = inlined_call_operand.vmem [shape: f32[3,64], index: 6, kind: input, shape index: {}]
  %s7 = inlined_call_operand.vmem [shape: bf16[192,128], index: 7, kind: input, shape index: {}]
  %s8 = inlined_call_operand.vmem [shape: f32[3,128], index: 8, kind: input, shape index: {}]
  %s9 = inlined_call_operand.vmem [shape: bf16[256,256], index: 9, kind: input, shape index: {}]
  %s10 = inlined_call_operand.vmem [shape: f32[3,256], index: 10, kind: input, shape index: {}]
  %s11 = inlined_call_operand.vmem [shape: bf16[2816,128], index: 11, kind: input, shape index: {}]
  %s12 = inlined_call_operand.vmem [shape: f32[3,128], index: 12, kind: input, shape index: {}]
  %s13 = inlined_call_operand.vmem [shape: f32[2,8,128], index: 13, kind: output, shape index: {}]
  %s14 = sld [smem:[#allocation0]]
  $region85: #{cnn_forward.1} parent=0
    _
  %s16 = ssub.s32 1, %s14
  %s17 = scalar_select 0, %s16, %s14
  loop: start=0, step=1, limit=4
  $region2: #{cnn_forward.1} parent=0 // loop_pre_header
    _
  $region3: #{cnn_forward.1} parent=0 // loop_header
    %s19 = sphi 0, %s23
    %p20 = scmp.ge.s32.totalorder %s19, 4
    %s29 = sphi 0, %s31
    %s32 = sphi 0, %s29
    %s33 = sphi 0, %s32
    %s49 = sphi 0, %s33
    %s53 = sphi 0, %s53
    %s55 = sphi 0, %s53
    %s56 = sphi 0, %s55
    %s70 = sphi 0, %s56
    %s74 = sphi 0, %s74
    %s76 = sphi 0, %s74
    %s77 = sphi 0, %s76
    %s91 = sphi 0, %s77
    %s95 = sphi 0, %s95
    %s97 = sphi 0, %s95
    %s98 = sphi 0, %s97
    %s112 = sphi 0, %s98
    %s116 = sphi 0, %s116
    %s118 = sphi 0, %s116
    %s119 = sphi 0, %s118
    %s133 = sphi 0, %s119
    %s137 = sphi 0, %s137
    %s139 = sphi 0, %s137
    %s140 = sphi 0, %s139
    %s154 = sphi 0, %s140
    %s158 = sphi 0, %s158
    %s160 = sphi 0, %s158
    %s161 = sphi 0, %s160
    %s175 = sphi 0, %s161
    %s179 = sphi 0, %s179
    %s181 = sphi 0, %s179
    %s182 = sphi 0, %s181
    %s196 = sphi 0, %s182
    %s200 = sphi 0, %s200
    %s202 = sphi 0, %s200
    %s203 = sphi 0, %s202
    %s217 = sphi 0, %s203
    %s221 = sphi 0, %s221
    %s223 = sphi 0, %s221
    %s224 = sphi 0, %s223
    %s238 = sphi 0, %s224
    %s242 = sphi 0, %s242
    %s244 = sphi 0, %s242
    %s245 = sphi 0, %s244
    %s259 = sphi 0, %s245
    %s263 = sphi 0, %s263
    %s265 = sphi 0, %s263
    %s266 = sphi 0, %s265
    %s280 = sphi 0, %s266
    %s284 = sphi 0, %s284
    %s286 = sphi 0, %s284
    %s287 = sphi 0, %s286
    %s301 = sphi 0, %s287
    %s307 = sphi 0, %s309
    %s310 = sphi 0, %s307
    %s311 = sphi 0, %s310
    %s327 = sphi 0, %s311
  $region4: #{cnn_forward.1} parent=0 // loop_header_branch
    %22 = sbr.rel (%p20) target = $region8
  $region5: #{cnn_forward.1} parent=0 // loop_body
    %s24 = ssub.s32 %s19, 1
    %s25 = ssub.s32 %s19, 2
    %s26 = sadd.s32 %s19, 1
    %s27 = ssub.s32 %s19, %s26
    %p28 = scmp.eq.s32.totalorder %s27, 0
    %s30 = sadd.s32 %s29, 1
    %s31 = scalar_select %p28, %s29, %s30
    %p34 = pneg %p28
    %p35 = scmp.eq.s32.totalorder %s19, 1
    %p36 = por %p34, %p35
    %p37 = scmp.ne.s32.totalorder %s29, %s32
    %p38 = scmp.eq.s32.totalorder %s19, 0
    %p39 = por %p37, %p38
    %p40 = scmp.ne.s32.totalorder %s29, %s32
    %p41 = scmp.eq.s32.totalorder %s24, 1
    %p42 = por %p40, %p41
    %p43 = scmp.ne.s32.totalorder %s32, %s33
    %p44 = scmp.eq.s32.totalorder %s24, 0
    %p45 = por %p43, %p44
    %p46 = scmp.ne.s32.totalorder %s32, %s33
    %p47 = scmp.eq.s32.totalorder %s25, 1
    %p48 = por %p46, %p47
    %p50 = scmp.ne.s32.totalorder %s33, %s49
    %p51 = scmp.eq.s32.totalorder %s25, 0
    %p52 = por %p50, %p51
    %s54 = sadd.s32 %s53, 1
    %p57 = scmp.eq.s32.totalorder %s19, 1
    %p58 = scmp.ne.s32.totalorder %s53, %s55
    %p59 = scmp.eq.s32.totalorder %s19, 0
    %p60 = por %p58, %p59
    %p61 = scmp.ne.s32.totalorder %s53, %s55
    %p62 = scmp.eq.s32.totalorder %s24, 1
    %p63 = por %p61, %p62
    %p64 = scmp.ne.s32.totalorder %s55, %s56
    %p65 = scmp.eq.s32.totalorder %s24, 0
    %p66 = por %p64, %p65
    %p67 = scmp.ne.s32.totalorder %s55, %s56
    %p68 = scmp.eq.s32.totalorder %s25, 1
    %p69 = por %p67, %p68
    %p71 = scmp.ne.s32.totalorder %s56, %s70
    %p72 = scmp.eq.s32.totalorder %s25, 0
    %p73 = por %p71, %p72
    %s75 = sadd.s32 %s74, 1
    %p78 = scmp.eq.s32.totalorder %s19, 1
    %p79 = scmp.ne.s32.totalorder %s74, %s76
    %p80 = scmp.eq.s32.totalorder %s19, 0
    %p81 = por %p79, %p80
    %p82 = scmp.ne.s32.totalorder %s74, %s76
    %p83 = scmp.eq.s32.totalorder %s24, 1
    %p84 = por %p82, %p83
    %p85 = scmp.ne.s32.totalorder %s76, %s77
    %p86 = scmp.eq.s32.totalorder %s24, 0
    %p87 = por %p85, %p86
    %p88 = scmp.ne.s32.totalorder %s76, %s77
    %p89 = scmp.eq.s32.totalorder %s25, 1
    %p90 = por %p88, %p89
    %p92 = scmp.ne.s32.totalorder %s77, %s91
    %p93 = scmp.eq.s32.totalorder %s25, 0
    %p94 = por %p92, %p93
    %s96 = sadd.s32 %s95, 1
    %p99 = scmp.eq.s32.totalorder %s19, 1
    %p100 = scmp.ne.s32.totalorder %s95, %s97
    %p101 = scmp.eq.s32.totalorder %s19, 0
    %p102 = por %p100, %p101
    %p103 = scmp.ne.s32.totalorder %s95, %s97
    %p104 = scmp.eq.s32.totalorder %s24, 1
    %p105 = por %p103, %p104
    %p106 = scmp.ne.s32.totalorder %s97, %s98
    %p107 = scmp.eq.s32.totalorder %s24, 0
    %p108 = por %p106, %p107
    %p109 = scmp.ne.s32.totalorder %s97, %s98
    %p110 = scmp.eq.s32.totalorder %s25, 1
    %p111 = por %p109, %p110
    %p113 = scmp.ne.s32.totalorder %s98, %s112
    %p114 = scmp.eq.s32.totalorder %s25, 0
    %p115 = por %p113, %p114
    %s117 = sadd.s32 %s116, 1
    %p120 = scmp.eq.s32.totalorder %s19, 1
    %p121 = scmp.ne.s32.totalorder %s116, %s118
    %p122 = scmp.eq.s32.totalorder %s19, 0
    %p123 = por %p121, %p122
    %p124 = scmp.ne.s32.totalorder %s116, %s118
    %p125 = scmp.eq.s32.totalorder %s24, 1
    %p126 = por %p124, %p125
    %p127 = scmp.ne.s32.totalorder %s118, %s119
    %p128 = scmp.eq.s32.totalorder %s24, 0
    %p129 = por %p127, %p128
    %p130 = scmp.ne.s32.totalorder %s118, %s119
    %p131 = scmp.eq.s32.totalorder %s25, 1
    %p132 = por %p130, %p131
    %p134 = scmp.ne.s32.totalorder %s119, %s133
    %p135 = scmp.eq.s32.totalorder %s25, 0
    %p136 = por %p134, %p135
    %s138 = sadd.s32 %s137, 1
    %p141 = scmp.eq.s32.totalorder %s19, 1
    %p142 = scmp.ne.s32.totalorder %s137, %s139
    %p143 = scmp.eq.s32.totalorder %s19, 0
    %p144 = por %p142, %p143
    %p145 = scmp.ne.s32.totalorder %s137, %s139
    %p146 = scmp.eq.s32.totalorder %s24, 1
    %p147 = por %p145, %p146
    %p148 = scmp.ne.s32.totalorder %s139, %s140
    %p149 = scmp.eq.s32.totalorder %s24, 0
    %p150 = por %p148, %p149
    %p151 = scmp.ne.s32.totalorder %s139, %s140
    %p152 = scmp.eq.s32.totalorder %s25, 1
    %p153 = por %p151, %p152
    %p155 = scmp.ne.s32.totalorder %s140, %s154
    %p156 = scmp.eq.s32.totalorder %s25, 0
    %p157 = por %p155, %p156
    %s159 = sadd.s32 %s158, 1
    %p162 = scmp.eq.s32.totalorder %s19, 1
    %p163 = scmp.ne.s32.totalorder %s158, %s160
    %p164 = scmp.eq.s32.totalorder %s19, 0
    %p165 = por %p163, %p164
    %p166 = scmp.ne.s32.totalorder %s158, %s160
    %p167 = scmp.eq.s32.totalorder %s24, 1
    %p168 = por %p166, %p167
    %p169 = scmp.ne.s32.totalorder %s160, %s161
    %p170 = scmp.eq.s32.totalorder %s24, 0
    %p171 = por %p169, %p170
    %p172 = scmp.ne.s32.totalorder %s160, %s161
    %p173 = scmp.eq.s32.totalorder %s25, 1
    %p174 = por %p172, %p173
    %p176 = scmp.ne.s32.totalorder %s161, %s175
    %p177 = scmp.eq.s32.totalorder %s25, 0
    %p178 = por %p176, %p177
    %s180 = sadd.s32 %s179, 1
    %p183 = scmp.eq.s32.totalorder %s19, 1
    %p184 = scmp.ne.s32.totalorder %s179, %s181
    %p185 = scmp.eq.s32.totalorder %s19, 0
    %p186 = por %p184, %p185
    %p187 = scmp.ne.s32.totalorder %s179, %s181
    %p188 = scmp.eq.s32.totalorder %s24, 1
    %p189 = por %p187, %p188
    %p190 = scmp.ne.s32.totalorder %s181, %s182
    %p191 = scmp.eq.s32.totalorder %s24, 0
    %p192 = por %p190, %p191
    %p193 = scmp.ne.s32.totalorder %s181, %s182
    %p194 = scmp.eq.s32.totalorder %s25, 1
    %p195 = por %p193, %p194
    %p197 = scmp.ne.s32.totalorder %s182, %s196
    %p198 = scmp.eq.s32.totalorder %s25, 0
    %p199 = por %p197, %p198
    %s201 = sadd.s32 %s200, 1
    %p204 = scmp.eq.s32.totalorder %s19, 1
    %p205 = scmp.ne.s32.totalorder %s200, %s202
    %p206 = scmp.eq.s32.totalorder %s19, 0
    %p207 = por %p205, %p206
    %p208 = scmp.ne.s32.totalorder %s200, %s202
    %p209 = scmp.eq.s32.totalorder %s24, 1
    %p210 = por %p208, %p209
    %p211 = scmp.ne.s32.totalorder %s202, %s203
    %p212 = scmp.eq.s32.totalorder %s24, 0
    %p213 = por %p211, %p212
    %p214 = scmp.ne.s32.totalorder %s202, %s203
    %p215 = scmp.eq.s32.totalorder %s25, 1
    %p216 = por %p214, %p215
    %p218 = scmp.ne.s32.totalorder %s203, %s217
    %p219 = scmp.eq.s32.totalorder %s25, 0
    %p220 = por %p218, %p219
    %s222 = sadd.s32 %s221, 1
    %p225 = scmp.eq.s32.totalorder %s19, 1
    %p226 = scmp.ne.s32.totalorder %s221, %s223
    %p227 = scmp.eq.s32.totalorder %s19, 0
    %p228 = por %p226, %p227
    %p229 = scmp.ne.s32.totalorder %s221, %s223
    %p230 = scmp.eq.s32.totalorder %s24, 1
    %p231 = por %p229, %p230
    %p232 = scmp.ne.s32.totalorder %s223, %s224
    %p233 = scmp.eq.s32.totalorder %s24, 0
    %p234 = por %p232, %p233
    %p235 = scmp.ne.s32.totalorder %s223, %s224
    %p236 = scmp.eq.s32.totalorder %s25, 1
    %p237 = por %p235, %p236
    %p239 = scmp.ne.s32.totalorder %s224, %s238
    %p240 = scmp.eq.s32.totalorder %s25, 0
    %p241 = por %p239, %p240
    %s243 = sadd.s32 %s242, 1
    %p246 = scmp.eq.s32.totalorder %s19, 1
    %p247 = scmp.ne.s32.totalorder %s242, %s244
    %p248 = scmp.eq.s32.totalorder %s19, 0
    %p249 = por %p247, %p248
    %p250 = scmp.ne.s32.totalorder %s242, %s244
    %p251 = scmp.eq.s32.totalorder %s24, 1
    %p252 = por %p250, %p251
    %p253 = scmp.ne.s32.totalorder %s244, %s245
    %p254 = scmp.eq.s32.totalorder %s24, 0
    %p255 = por %p253, %p254
    %p256 = scmp.ne.s32.totalorder %s244, %s245
    %p257 = scmp.eq.s32.totalorder %s25, 1
    %p258 = por %p256, %p257
    %p260 = scmp.ne.s32.totalorder %s245, %s259
    %p261 = scmp.eq.s32.totalorder %s25, 0
    %p262 = por %p260, %p261
    %s264 = sadd.s32 %s263, 1
    %p267 = scmp.eq.s32.totalorder %s19, 1
    %p268 = scmp.ne.s32.totalorder %s263, %s265
    %p269 = scmp.eq.s32.totalorder %s19, 0
    %p270 = por %p268, %p269
    %p271 = scmp.ne.s32.totalorder %s263, %s265
    %p272 = scmp.eq.s32.totalorder %s24, 1
    %p273 = por %p271, %p272
    %p274 = scmp.ne.s32.totalorder %s265, %s266
    %p275 = scmp.eq.s32.totalorder %s24, 0
    %p276 = por %p274, %p275
    %p277 = scmp.ne.s32.totalorder %s265, %s266
    %p278 = scmp.eq.s32.totalorder %s25, 1
    %p279 = por %p277, %p278
    %p281 = scmp.ne.s32.totalorder %s266, %s280
    %p282 = scmp.eq.s32.totalorder %s25, 0
    %p283 = por %p281, %p282
    %s285 = sadd.s32 %s284, 1
    %p288 = scmp.eq.s32.totalorder %s19, 1
    %p289 = scmp.ne.s32.totalorder %s284, %s286
    %p290 = scmp.eq.s32.totalorder %s19, 0
    %p291 = por %p289, %p290
    %p292 = scmp.ne.s32.totalorder %s284, %s286
    %p293 = scmp.eq.s32.totalorder %s24, 1
    %p294 = por %p292, %p293
    %p295 = scmp.ne.s32.totalorder %s286, %s287
    %p296 = scmp.eq.s32.totalorder %s24, 0
    %p297 = por %p295, %p296
    %p298 = scmp.ne.s32.totalorder %s286, %s287
    %p299 = scmp.eq.s32.totalorder %s25, 1
    %p300 = por %p298, %p299
    %p302 = scmp.ne.s32.totalorder %s287, %s301
    %p303 = scmp.eq.s32.totalorder %s25, 0
    %p304 = por %p302, %p303
    %s305 = ssub.s32 %s19, %s26
    %p306 = scmp.eq.s32.totalorder %s305, 0
    %s308 = sadd.s32 %s307, 1
    %s309 = scalar_select %p306, %s307, %s308
    %p312 = pneg %p306
    %p313 = scmp.eq.s32.totalorder %s19, 1
    %p314 = por %p312, %p313
    %p315 = scmp.ne.s32.totalorder %s307, %s310
    %p316 = scmp.eq.s32.totalorder %s19, 0
    %p317 = por %p315, %p316
    %p318 = scmp.ne.s32.totalorder %s307, %s310
    %p319 = scmp.eq.s32.totalorder %s24, 1
    %p320 = por %p318, %p319
    %p321 = scmp.ne.s32.totalorder %s310, %s311
    %p322 = scmp.eq.s32.totalorder %s24, 0
    %p323 = por %p321, %p322
    %p324 = scmp.ne.s32.totalorder %s310, %s311
    %p325 = scmp.eq.s32.totalorder %s25, 1
    %p326 = por %p324, %p325
    %p328 = scmp.ne.s32.totalorder %s311, %s327
    %p329 = scmp.eq.s32.totalorder %s25, 0
    %p330 = por %p328, %p329
    %p331 = scmp.le.s32.totalorder 1, %s19
    %p332 = scmp.lt.s32.totalorder %s19, 3
    %p333 = pnand %p331, %p332
    %p334 = pneg %p333
    // Predicated region
    $region9: #{cnn_forward.1} parent=5 // pred_check
      _
    $region10: #{cnn_forward.1} parent=5 // pred_check_branch
      %336 = sbr.rel (%p333) target = $region12
    $region11: #{cnn_forward.1} parent=5 // pred_region
      %s337 = ssub.s32 %s19, 1
      // Predicated region
      $region13: #{cnn_forward.1} parent=11 // pred_check
        %p338 = pneg %p66
      $region14: #{cnn_forward.1} parent=11 // pred_check_branch
        %340 = sbr.rel (%p338) target = $region16
      $region15: #{cnn_forward.1} parent=11 // pred_region
        _
      $region16: #{cnn_forward.1} parent=11 // pred_fallthru
        _
      // Predicated region
      $region17: #{cnn_forward.1} parent=11 // pred_check
        %p341 = pneg %p87
      $region18: #{cnn_forward.1} parent=11 // pred_check_branch
        %343 = sbr.rel (%p341) target = $region20
      $region19: #{cnn_forward.1} parent=11 // pred_region
        _
      $region20: #{cnn_forward.1} parent=11 // pred_fallthru
        _
      // Predicated region
      $region21: #{cnn_forward.1} parent=11 // pred_check
        %p344 = pneg %p108
      $region22: #{cnn_forward.1} parent=11 // pred_check_branch
        %346 = sbr.rel (%p344) target = $region24
      $region23: #{cnn_forward.1} parent=11 // pred_region
        _
      $region24: #{cnn_forward.1} parent=11 // pred_fallthru
        _
      // Predicated region
      $region25: #{cnn_forward.1} parent=11 // pred_check
        %p347 = pneg %p129
      $region26: #{cnn_forward.1} parent=11 // pred_check_branch
        %349 = sbr.rel (%p347) target = $region28
      $region27: #{cnn_forward.1} parent=11 // pred_region
        _
      $region28: #{cnn_forward.1} parent=11 // pred_fallthru
        _
      // Predicated region
      $region29: #{cnn_forward.1} parent=11 // pred_check
        %p350 = pneg %p150
      $region30: #{cnn_forward.1} parent=11 // pred_check_branch
        %352 = sbr.rel (%p350) target = $region32
      $region31: #{cnn_forward.1} parent=11 // pred_region
        _
      $region32: #{cnn_forward.1} parent=11 // pred_fallthru
        _
      // Predicated region
      $region33: #{cnn_forward.1} parent=11 // pred_check
        %p353 = pneg %p171
      $region34: #{cnn_forward.1} parent=11 // pred_check_branch
        %355 = sbr.rel (%p353) target = $region36
      $region35: #{cnn_forward.1} parent=11 // pred_region
        _
      $region36: #{cnn_forward.1} parent=11 // pred_fallthru
        _
      // Predicated region
      $region37: #{cnn_forward.1} parent=11 // pred_check
        %p356 = pneg %p192
      $region38: #{cnn_forward.1} parent=11 // pred_check_branch
        %358 = sbr.rel (%p356) target = $region40
      $region39: #{cnn_forward.1} parent=11 // pred_region
        _
      $region40: #{cnn_forward.1} parent=11 // pred_fallthru
        _
      // Predicated region
      $region41: #{cnn_forward.1} parent=11 // pred_check
        %p359 = pneg %p213
      $region42: #{cnn_forward.1} parent=11 // pred_check_branch
        %361 = sbr.rel (%p359) target = $region44
      $region43: #{cnn_forward.1} parent=11 // pred_region
        _
      $region44: #{cnn_forward.1} parent=11 // pred_fallthru
        _
      // Predicated region
      $region45: #{cnn_forward.1} parent=11 // pred_check
        %p362 = pneg %p234
      $region46: #{cnn_forward.1} parent=11 // pred_check_branch
        %364 = sbr.rel (%p362) target = $region48
      $region47: #{cnn_forward.1} parent=11 // pred_region
        _
      $region48: #{cnn_forward.1} parent=11 // pred_fallthru
        _
      // Predicated region
      $region49: #{cnn_forward.1} parent=11 // pred_check
        %p365 = pneg %p255
      $region50: #{cnn_forward.1} parent=11 // pred_check_branch
        %367 = sbr.rel (%p365) target = $region52
      $region51: #{cnn_forward.1} parent=11 // pred_region
        _
      $region52: #{cnn_forward.1} parent=11 // pred_fallthru
        _
      // Predicated region
      $region53: #{cnn_forward.1} parent=11 // pred_check
        %p368 = pneg %p276
      $region54: #{cnn_forward.1} parent=11 // pred_check_branch
        %370 = sbr.rel (%p368) target = $region56
      $region55: #{cnn_forward.1} parent=11 // pred_region
        _
      $region56: #{cnn_forward.1} parent=11 // pred_fallthru
        _
      // Predicated region
      $region57: #{cnn_forward.1} parent=11 // pred_check
        %p371 = pneg %p297
      $region58: #{cnn_forward.1} parent=11 // pred_check_branch
        %373 = sbr.rel (%p371) target = $region60
      $region59: #{cnn_forward.1} parent=11 // pred_region
        _
      $region60: #{cnn_forward.1} parent=11 // pred_fallthru
        _
    $region12: #{cnn_forward.1} parent=5 // pred_fallthru
      _
    %p374 = scmp.lt.s32.totalorder %s19, 2
    // Predicated region
    $region61: #{cnn_forward.1} parent=5 // pred_check
      %p375 = pneg %p374
    $region62: #{cnn_forward.1} parent=5 // pred_check_branch
      %377 = sbr.rel (%p375) target = $region64
    $region63: #{cnn_forward.1} parent=5 // pred_region
      // Predicated region
      $region65: #{cnn_forward.1} parent=63 // pred_check
        %p378 = pneg %p39
      $region66: #{cnn_forward.1} parent=63 // pred_check_branch
        %380 = sbr.rel (%p378) target = $region68
      $region67: #{cnn_forward.1} parent=63 // pred_region
        %s381 = smul.u32 49, %s19
        %p382 = scmp.lt.s32.totalorder %s381, 97
        %s383 = scalar_select %p382, %s381, 97
        %s384 = smul.addr %s383, 4
        %s385 = scalar_lea.vmem %s0, %s384
        %s386 = smul.u32 49, %s19
      $region68: #{cnn_forward.1} parent=63 // pred_fallthru
        _
    $region64: #{cnn_forward.1} parent=5 // pred_fallthru
      _
    %p387 = scmp.le.s32.totalorder 1, %s19
    %p388 = scmp.lt.s32.totalorder %s19, 3
    %p389 = pnand %p387, %p388
    %p390 = pneg %p389
    // Predicated region
    $region69: #{cnn_forward.1} parent=5 // pred_check
      _
    $region70: #{cnn_forward.1} parent=5 // pred_check_branch
      %392 = sbr.rel (%p389) target = $region72
    $region71: #{cnn_forward.1} parent=5 // pred_region
      %s393 = ssub.s32 %s19, 1
      %s394 = smul.u32 49, %s24
      %p395 = scmp.lt.s32.totalorder %s394, 97
      %s396 = scalar_select %p395, %s394, 97
      %s397 = smul.addr %s396, 4
      %s398 = scalar_lea.vmem %s0, %s397
      %p399 = pneg %p45
      %p400 = pneg %p42
      %p401 = pneg %p66
      %p402 = pneg %p63
      %p403 = pneg %p87
      %p404 = pneg %p84
      %p405 = pneg %p108
      %p406 = pneg %p105
      %p407 = pneg %p129
      %p408 = pneg %p126
      %p409 = pneg %p150
      %p410 = pneg %p147
      %p411 = pneg %p171
      %p412 = pneg %p168
      %p413 = pneg %p192
      %p414 = pneg %p189
      %p415 = pneg %p213
      %p416 = pneg %p210
      %p417 = pneg %p234
      %p418 = pneg %p231
      %p419 = pneg %p255
      %p420 = pneg %p252
      %p421 = pneg %p276
      %p422 = pneg %p273
      %p423 = pneg %p297
      %p424 = pneg %p294
      %p425 = pneg %p323
      %p426 = pneg %p320
      %p427 = scmp.lt.s32.totalorder %s24, 1
      %s428 = scalar_select %p427, %s24, 1
      %s429 = smul.addr %s428, 8
      %s430 = scalar_lea.vmem %s13, %s429
      %s431 = smul.u32 49, %s24
      %p432 = scmp.lt.s32.totalorder %s431, 97
      %s433 = scalar_select %p432, %s431, 97
      %s434 = smul.addr %s433, 4
      %s435 = scalar_lea.vmem %s0, %s434
      %s436 = smul.u32 49, %s24
      %p437 = scmp.lt.s32.totalorder %s24, 1
      %s438 = scalar_select %p437, %s24, 1
      %s439 = smul.addr %s438, 8
      %s440 = scalar_lea.vmem %s13, %s439
      %v442 = vld [vmem:[%s2] sm:$0x1]
      %v443 = vld [vmem:[%s2 + $0x1] sm:$0x1]
      %v444 = vld [vmem:[%s2 + $0x2] sm:$0x1]
      %v445 = vld [vmem:[%s435] sm:$0xf]
      %v446 = vld [vmem:[%s435 + $0x4] sm:$0xf]
      %v447 = vld [vmem:[%s435 + $0x8] sm:$0xf]
      %v448 = vld [vmem:[%s435 + $0xc] sm:$0xf]
      %v449 = vld [vmem:[%s435 + $0x10] sm:$0xf]
      %v450 = vld [vmem:[%s435 + $0x14] sm:$0xf]
      %v451 = vld [vmem:[%s435 + $0x18] sm:$0xf]
      %v452 = vld [vmem:[%s435 + $0x1c] sm:$0xf]
      %v453 = vld [vmem:[%s435 + $0x20] sm:$0xf]
      %v454 = vld [vmem:[%s435 + $0x24] sm:$0xf]
      %v455 = vld [vmem:[%s435 + $0x28] sm:$0xf]
      %v456 = vld [vmem:[%s435 + $0x2c] sm:$0xf]
      %v457 = vld [vmem:[%s435 + $0x30] sm:$0xf]
      %v458 = vld [vmem:[%s435 + $0x34] sm:$0xf]
      %v459 = vld [vmem:[%s435 + $0x38] sm:$0xf]
      %v460 = vld [vmem:[%s435 + $0x3c] sm:$0xf]
      %v461 = vld [vmem:[%s435 + $0x40] sm:$0x1]
      %v462 = vld [vmem:[%s435] sm:$0xe]
      %v463 = vld [vmem:[%s435 + $0x40] sm:$0x3]
      %v464 = vld [vmem:[%s435] sm:$0xc]
      %v481 = vunpack.c.l.b16 %v445
      %v482 = vunpack.c.l.b16 %v446
      %v483 = vunpack.c.l.b16 %v447
      %v484 = vunpack.c.l.b16 %v448
      %v485 = vunpack.c.l.b16 %v449
      %v486 = vunpack.c.l.b16 %v450
      %v487 = vunpack.c.l.b16 %v451
      %v488 = vunpack.c.l.b16 %v452
      %v489 = vunpack.c.l.b16 %v453
      %v490 = vunpack.c.l.b16 %v454
      %v491 = vunpack.c.l.b16 %v455
      %v492 = vunpack.c.l.b16 %v456
      %v493 = vunpack.c.l.b16 %v457
      %v494 = vunpack.c.l.b16 %v458
      %v495 = vunpack.c.l.b16 %v459
      %v496 = vunpack.c.l.b16 %v460
      %v497 = vpack.c.b16 %v482, %v481
      %v498 = vpack.c.b16 %v484, %v483
      %v499 = vpack.c.b16 %v486, %v485
      %v500 = vpack.c.b16 %v488, %v487
      %v501 = vpack.c.b16 %v490, %v489
      %v502 = vpack.c.b16 %v492, %v491
      %v503 = vpack.c.b16 %v494, %v493
      %v504 = vpack.c.b16 %v496, %v495
      %v506 = vunpack.c.l.b16 %v461
      %v507 = vpack.c.b16 %v506, %v506
      %vm508 = vsmask.f32 7424
      %v510 = vshrl.u32 %v497, 16
      %v512 = vshll.u32 %v497, 16
      %v514 = vrot.slane %v512, 1
      %v515 = vor.u32 %v510, %v514
      %v517 = vshll.u32 %v498, 16
      %v519 = vrot.slane %v517, 1
      %v520 = vsel %vm508, %v515, %v519
      %v521 = vshrl.u32 %v498, 16
      %v523 = vor.u32 %v521, %v519
      %v525 = vshll.u32 %v499, 16
      %v527 = vrot.slane %v525, 1
      %v528 = vsel %vm508, %v523, %v527
      %v529 = vshrl.u32 %v499, 16
      %v531 = vor.u32 %v529, %v527
      %v533 = vshll.u32 %v500, 16
      %v535 = vrot.slane %v533, 1
      %v536 = vsel %vm508, %v531, %v535
      %v537 = vshrl.u32 %v500, 16
      %v539 = vor.u32 %v537, %v535
      %v541 = vshll.u32 %v501, 16
      %v543 = vrot.slane %v541, 1
      %v544 = vsel %vm508, %v539, %v543
      %v545 = vshrl.u32 %v501, 16
      %v547 = vor.u32 %v545, %v543
      %v549 = vshll.u32 %v502, 16
      %v551 = vrot.slane %v549, 1
      %v552 = vsel %vm508, %v547, %v551
      %v553 = vshrl.u32 %v502, 16
      %v555 = vor.u32 %v553, %v551
      %v557 = vshll.u32 %v503, 16
      %v559 = vrot.slane %v557, 1
      %v560 = vsel %vm508, %v555, %v559
      %v561 = vshrl.u32 %v503, 16
      %v563 = vor.u32 %v561, %v559
      %v565 = vshll.u32 %v504, 16
      %v567 = vrot.slane %v565, 1
      %v568 = vsel %vm508, %v563, %v567
      %v569 = vshrl.u32 %v504, 16
      %v571 = vor.u32 %v569, %v567
      %v573 = vshll.u32 %v507, 16
      %v575 = vrot.slane %v573, 1
      %v576 = vsel %vm508, %v571, %v575
      %577 = vrot.lane.b32.xlu0 %v520, 8
      %v578 = vpop.permute.xlu0 %577
      %579 = vrot.lane.b32.xlu0 %v528, 8
      %v580 = vpop.permute.xlu0 %579
      %581 = vrot.lane.b32.xlu0 %v536, 8
      %v582 = vpop.permute.xlu0 %581
      %583 = vrot.lane.b32.xlu0 %v544, 8
      %v584 = vpop.permute.xlu0 %583
      %585 = vrot.lane.b32.xlu0 %v552, 8
      %v586 = vpop.permute.xlu0 %585
      %587 = vrot.lane.b32.xlu0 %v560, 8
      %v588 = vpop.permute.xlu0 %587
      %589 = vrot.lane.b32.xlu0 %v568, 8
      %v590 = vpop.permute.xlu0 %589
      %591 = vrot.lane.b32.xlu0 %v576, 8
      %v592 = vpop.permute.xlu0 %591
      %v594 = vunpack.c.l.b16 %v462
      %v595 = vpack.c.b16 %v482, %v594
      %vm596 = vcmask 1046528
      %v597 = vrot.slane %v595, 1
      %v598 = vrot.slane %v498, 1
      %v599 = vsel %vm596, %v597, %v598
      %v600 = vrot.slane %v499, 1
      %v601 = vsel %vm596, %v598, %v600
      %v602 = vrot.slane %v500, 1
      %v603 = vsel %vm596, %v600, %v602
      %v604 = vrot.slane %v501, 1
      %v605 = vsel %vm596, %v602, %v604
      %v606 = vrot.slane %v502, 1
      %v607 = vsel %vm596, %v604, %v606
      %v608 = vrot.slane %v503, 1
      %v609 = vsel %vm596, %v606, %v608
      %v610 = vrot.slane %v504, 1
      %v611 = vsel %vm596, %v608, %v610
      %v612 = vrot.slane %v507, 1
      %v613 = vsel %vm596, %v610, %v612
      %614 = vrot.lane.b32.xlu0 %v599, 16
      %v615 = vpop.permute.xlu0 %614
      %616 = vrot.lane.b32.xlu0 %v601, 16
      %v617 = vpop.permute.xlu0 %616
      %618 = vrot.lane.b32.xlu0 %v603, 16
      %v619 = vpop.permute.xlu0 %618
      %620 = vrot.lane.b32.xlu0 %v605, 16
      %v621 = vpop.permute.xlu0 %620
      %622 = vrot.lane.b32.xlu0 %v607, 16
      %v623 = vpop.permute.xlu0 %622
      %624 = vrot.lane.b32.xlu0 %v609, 16
      %v625 = vpop.permute.xlu0 %624
      %626 = vrot.lane.b32.xlu0 %v611, 16
      %v627 = vpop.permute.xlu0 %626
      %628 = vrot.lane.b32.xlu0 %v613, 16
      %v629 = vpop.permute.xlu0 %628
      %v631 = vunpack.c.l.b16 %v463
      %v632 = vpack.c.b16 %v631, %v631
      %vm633 = vsmask.f32 6400
      %v635 = vshrl.u32 %v595, 16
      %v637 = vrot.slane %v635, 1
      %v638 = vshll.u32 %v595, 16
      %v640 = vrot.slane %v638, 2
      %v641 = vor.u32 %v637, %v640
      %v642 = vrot.slane %v521, 1
      %v643 = vrot.slane %v517, 2
      %v644 = vor.u32 %v642, %v643
      %v645 = vsel %vm633, %v641, %v644
      %v646 = vrot.slane %v529, 1
      %v647 = vrot.slane %v525, 2
      %v648 = vor.u32 %v646, %v647
      %v649 = vsel %vm633, %v644, %v648
      %v650 = vrot.slane %v537, 1
      %v651 = vrot.slane %v533, 2
      %v652 = vor.u32 %v650, %v651
      %v653 = vsel %vm633, %v648, %v652
      %v654 = vrot.slane %v545, 1
      %v655 = vrot.slane %v541, 2
      %v656 = vor.u32 %v654, %v655
      %v657 = vsel %vm633, %v652, %v656
      %v658 = vrot.slane %v553, 1
      %v659 = vrot.slane %v549, 2
      %v660 = vor.u32 %v658, %v659
      %v661 = vsel %vm633, %v656, %v660
      %v662 = vrot.slane %v561, 1
      %v663 = vrot.slane %v557, 2
      %v664 = vor.u32 %v662, %v663
      %v665 = vsel %vm633, %v660, %v664
      %v666 = vrot.slane %v569, 1
      %v667 = vrot.slane %v565, 2
      %v668 = vor.u32 %v666, %v667
      %v669 = vsel %vm633, %v664, %v668
      %v671 = vshrl.u32 %v632, 16
      %v673 = vrot.slane %v671, 1
      %v674 = vshll.u32 %v632, 16
      %v676 = vrot.slane %v674, 2
      %v677 = vor.u32 %v673, %v676
      %v678 = vsel %vm633, %v668, %v677
      %679 = vrot.lane.b32.xlu0 %v645, 24
      %v680 = vpop.permute.xlu0 %679
      %681 = vrot.lane.b32.xlu0 %v649, 24
      %v682 = vpop.permute.xlu0 %681
      %683 = vrot.lane.b32.xlu0 %v653, 24
      %v684 = vpop.permute.xlu0 %683
      %685 = vrot.lane.b32.xlu0 %v657, 24
      %v686 = vpop.permute.xlu0 %685
      %687 = vrot.lane.b32.xlu0 %v661, 24
      %v688 = vpop.permute.xlu0 %687
      %689 = vrot.lane.b32.xlu0 %v665, 24
      %v690 = vpop.permute.xlu0 %689
      %691 = vrot.lane.b32.xlu0 %v669, 24
      %v692 = vpop.permute.xlu0 %691
      %693 = vrot.lane.b32.xlu0 %v678, 24
      %v694 = vpop.permute.xlu0 %693
      %v696 = vunpack.c.l.b16 %v464
      %v697 = vpack.c.b16 %v482, %v696
      %vm698 = vcmask 1045504
      %v699 = vrot.slane %v697, 2
      %v700 = vrot.slane %v498, 2
      %v701 = vsel %vm698, %v699, %v700
      %v702 = vrot.slane %v499, 2
      %v703 = vsel %vm698, %v700, %v702
      %v704 = vrot.slane %v500, 2
      %v705 = vsel %vm698, %v702, %v704
      %v706 = vrot.slane %v501, 2
      %v707 = vsel %vm698, %v704, %v706
      %v708 = vrot.slane %v502, 2
      %v709 = vsel %vm698, %v706, %v708
      %v710 = vrot.slane %v503, 2
      %v711 = vsel %vm698, %v708, %v710
      %v712 = vrot.slane %v504, 2
      %v713 = vsel %vm698, %v710, %v712
      %v714 = vrot.slane %v632, 2
      %v715 = vsel %vm698, %v712, %v714
      %716 = vrot.lane.b32.xlu0 %v701, 32
      %v717 = vpop.permute.xlu0 %716
      %718 = vrot.lane.b32.xlu0 %v703, 32
      %v719 = vpop.permute.xlu0 %718
      %720 = vrot.lane.b32.xlu0 %v705, 32
      %v721 = vpop.permute.xlu0 %720
      %722 = vrot.lane.b32.xlu0 %v707, 32
      %v723 = vpop.permute.xlu0 %722
      %724 = vrot.lane.b32.xlu0 %v709, 32
      %v725 = vpop.permute.xlu0 %724
      %726 = vrot.lane.b32.xlu0 %v711, 32
      %v727 = vpop.permute.xlu0 %726
      %728 = vrot.lane.b32.xlu0 %v713, 32
      %v729 = vpop.permute.xlu0 %728
      %730 = vrot.lane.b32.xlu0 %v715, 32
      %v731 = vpop.permute.xlu0 %730
      %vm732 = vcmask 64512
      %v734 = vsel %vm732, %v497, %v578
      %v736 = vsel %vm732, %v498, %v580
      %v738 = vsel %vm732, %v499, %v582
      %v740 = vsel %vm732, %v500, %v584
      %v742 = vsel %vm732, %v501, %v586
      %v744 = vsel %vm732, %v502, %v588
      %v746 = vsel %vm732, %v503, %v590
      %v748 = vsel %vm732, %v504, %v592
      %vm749 = vcmask 130048
      %v751 = vsel %vm749, %v734, %v615
      %v753 = vsel %vm749, %v736, %v617
      %v755 = vsel %vm749, %v738, %v619
      %v757 = vsel %vm749, %v740, %v621
      %v759 = vsel %vm749, %v742, %v623
      %v761 = vsel %vm749, %v744, %v625
      %v763 = vsel %vm749, %v746, %v627
      %v765 = vsel %vm749, %v748, %v629
      %vm766 = vcmask 195584
      %v768 = vsel %vm766, %v751, %v680
      %v770 = vsel %vm766, %v753, %v682
      %v772 = vsel %vm766, %v755, %v684
      %v774 = vsel %vm766, %v757, %v686
      %v776 = vsel %vm766, %v759, %v688
      %v778 = vsel %vm766, %v761, %v690
      %v780 = vsel %vm766, %v763, %v692
      %v782 = vsel %vm766, %v765, %v694
      %vm783 = vcmask 261120
      %v785 = vsel %vm783, %v768, %v717
      %v787 = vsel %vm783, %v770, %v719
      %v789 = vsel %vm783, %v772, %v721
      %v791 = vsel %vm783, %v774, %v723
      %v793 = vsel %vm783, %v776, %v725
      %v795 = vsel %vm783, %v778, %v727
      %v797 = vsel %vm783, %v780, %v729
      %v799 = vsel %vm783, %v782, %v731
      %v800 = vld [vmem:[%s1] sm:$0xf]
      %v801 = vld [vmem:[%s1 + $0x4] sm:$0xf]
      %v802 = vld [vmem:[%s1 + $0x8] sm:$0xf]
      %v803 = vld [vmem:[%s1 + $0xc] sm:$0xf]
      %v804 = vld [vmem:[%s1 + $0x10] sm:$0xf]
      %v810 = vunpack.c.l.b16 %v800
      %v811 = vunpack.c.l.b16 %v801
      %v812 = vunpack.c.l.b16 %v802
      %v813 = vunpack.c.l.b16 %v803
      %v814 = vunpack.c.l.b16 %v804
      %v815 = vpack.c.b16 %v811, %v810
      %v816 = vpack.c.b16 %v813, %v812
      %v817 = vpack.c.b16 %v814, %v814
      %vm820 = vcmask 326656
      %v821 = vsel %vm820, %v785, 0
      %v823 = vsel %vm820, %v787, 0
      %v825 = vsel %vm820, %v789, 0
      %v827 = vsel %vm820, %v791, 0
      %v829 = vsel %vm820, %v793, 0
      %v831 = vsel %vm820, %v795, 0
      %v833 = vsel %vm820, %v797, 0
      %v835 = vsel %vm820, %v799, 0
      %vm837 = vcmask 1043456
      %v839 = vsel %vm837, %v817, 0
      %841 = vmatprep.subr.bf16.mxu0 0
      %842 = vmatpush1.bf16.msra.mxu0 %v815
      %843 = vmatprep.subr.bf16.mxu0 0
      %844 = vmatpush1.bf16.msra.mxu0 %v816
      %845 = vmatprep.subr.bf16.mxu0 0
      %846 = vmatpush1.bf16.msra.mxu0 %v839
      %847 = vmatprep.subr.bf16.mxu0 0
      %848 = vmatpush1.bf16.msra.mxu0 0
      %849 = vmatprep.subr.bf16.mxu0 0
      %850 = vmatpush1.bf16.msra.mxu0 0
      %851 = vmatprep.subr.bf16.mxu0 0
      %852 = vmatpush1.bf16.msra.mxu0 0
      %853 = vmatprep.subr.bf16.mxu0 0
      %854 = vmatpush1.bf16.msra.mxu0 0
      %855 = vmatprep.subr.bf16.mxu0 0
      %856 = vmatpush1.bf16.msra.mxu0 0
      %857 = vmatprep.subr.bf16.mxu0 0
      %858 = vmatpush1.bf16.msra.mxu0 0
      %859 = vmatprep.subr.bf16.mxu0 0
      %860 = vmatpush1.bf16.msra.mxu0 0
      %861 = vmatprep.subr.bf16.mxu0 0
      %862 = vmatpush1.bf16.msra.mxu0 0
      %863 = vmatprep.subr.bf16.mxu0 0
      %864 = vmatpush1.bf16.msra.mxu0 0
      %865 = vmatprep.subr.bf16.mxu0 0
      %866 = vmatpush1.bf16.msra.mxu0 0
      %867 = vmatprep.subr.bf16.mxu0 0
      %868 = vmatpush1.bf16.msra.mxu0 0
      %869 = vmatprep.subr.bf16.mxu0 0
      %870 = vmatpush1.bf16.msra.mxu0 0
      %871 = vmatprep.subr.bf16.mxu0 0
      %872 = vmatpush1.bf16.msra.mxu0 0
      %873 = vmatprep.mubr.bf16.mxu0 0
      %874 = vmatmul.mubr.bf16.gmra.mrb[0].mxu0 %v821
      %v875 = vpop.f32.mrb[0].mxu0
      %v876 = vadd.f32 0.0, %v875
      %v877 = vpop.f32.mrb[0].mxu0
      %v878 = vpop.f32.mrb[0].mxu0
      %v879 = vadd.f32 0.0, %v878
      %v880 = vpop.f32.mrb[0].mxu0
      %881 = vmatprep.mubr.bf16.mxu0 0
      %882 = vmatmul.mubr.bf16.gmra.mrb[0].mxu0 %v823
      %v883 = vpop.f32.mrb[0].mxu0
      %v884 = vadd.f32 0.0, %v883
      %v885 = vpop.f32.mrb[0].mxu0
      %v886 = vpop.f32.mrb[0].mxu0
      %v887 = vadd.f32 0.0, %v886
      %v888 = vpop.f32.mrb[0].mxu0
      %889 = vmatprep.mubr.bf16.mxu0 0
      %890 = vmatmul.mubr.bf16.gmra.mrb[0].mxu0 %v825
      %v891 = vpop.f32.mrb[0].mxu0
      %v892 = vadd.f32 0.0, %v891
      %v893 = vpop.f32.mrb[0].mxu0
      %v894 = vpop.f32.mrb[0].mxu0
      %v895 = vadd.f32 0.0, %v894
      %v896 = vpop.f32.mrb[0].mxu0
      %897 = vmatprep.mubr.bf16.mxu0 0
      %898 = vmatmul.mubr.bf16.gmra.mrb[0].mxu0 %v827
      %v899 = vpop.f32.mrb[0].mxu0
      %v900 = vadd.f32 0.0, %v899
      %v901 = vpop.f32.mrb[0].mxu0
      %v902 = vpop.f32.mrb[0].mxu0
      %v903 = vadd.f32 0.0, %v902
      %v904 = vpop.f32.mrb[0].mxu0
      %905 = vmatprep.mubr.bf16.mxu0 0
      %906 = vmatmul.mubr.bf16.gmra.mrb[0].mxu0 %v829
      %v907 = vpop.f32.mrb[0].mxu0
      %v908 = vadd.f32 0.0, %v907
      %v909 = vpop.f32.mrb[0].mxu0
      %v910 = vpop.f32.mrb[0].mxu0
      %v911 = vadd.f32 0.0, %v910
      %v912 = vpop.f32.mrb[0].mxu0
      %913 = vmatprep.mubr.bf16.mxu0 0
      %914 = vmatmul.mubr.bf16.gmra.mrb[0].mxu0 %v831
      %v915 = vpop.f32.mrb[0].mxu0
      %v916 = vadd.f32 0.0, %v915
      %v917 = vpop.f32.mrb[0].mxu0
      %v918 = vpop.f32.mrb[0].mxu0
      %v919 = vadd.f32 0.0, %v918
      %v920 = vpop.f32.mrb[0].mxu0
      %921 = vmatprep.mubr.bf16.mxu0 0
      %922 = vmatmul.mubr.bf16.gmra.mrb[0].mxu0 %v833
      %v923 = vpop.f32.mrb[0].mxu0
      %v924 = vadd.f32 0.0, %v923
      %v925 = vpop.f32.mrb[0].mxu0
      %v926 = vpop.f32.mrb[0].mxu0
      %v927 = vadd.f32 0.0, %v926
      %v928 = vpop.f32.mrb[0].mxu0
      %929 = vmatprep.mubr.bf16.mxu0 0
      %930 = vmatmul.mubr.bf16.gmra.mrb[0].mxu0 %v835
      %v931 = vpop.f32.mrb[0].mxu0
      %v932 = vadd.f32 0.0, %v931
      %v933 = vpop.f32.mrb[0].mxu0
      %v934 = vpop.f32.mrb[0].mxu0
      %v935 = vadd.f32 0.0, %v934
      %v936 = vpop.f32.mrb[0].mxu0
      %937 = vdwg.mxu0
      %v938 = vlaneseq
      %v939 = vshrl.u32 %v938, 7
      %v940 = vsub.s32 0, %v939
      %v941 = vrot.slane %v442, %v940
      %v942 = vmul.f32 %v876, %v941
      %v943 = vmul.f32 %v879, %v941
      %v944 = vmul.f32 %v884, %v941
      %v945 = vmul.f32 %v887, %v941
      %v946 = vmul.f32 %v892, %v941
      %v947 = vmul.f32 %v895, %v941
      %v948 = vmul.f32 %v900, %v941
      %v949 = vmul.f32 %v903, %v941
      %v950 = vmul.f32 %v908, %v941
      %v951 = vmul.f32 %v911, %v941
      %v952 = vmul.f32 %v916, %v941
      %v953 = vmul.f32 %v919, %v941
      %v954 = vmul.f32 %v924, %v941
      %v955 = vmul.f32 %v927, %v941
      %v956 = vmul.f32 %v932, %v941
      %v957 = vmul.f32 %v935, %v941
      %v958 = vlaneseq
      %v959 = vshrl.u32 %v958, 7
      %v960 = vsub.s32 0, %v959
      %v961 = vrot.slane %v443, %v960
      %v962 = vadd.f32 %v942, %v961
      %v963 = vadd.f32 %v943, %v961
      %v964 = vadd.f32 %v944, %v961
      %v965 = vadd.f32 %v945, %v961
      %v966 = vadd.f32 %v946, %v961
      %v967 = vadd.f32 %v947, %v961
      %v968 = vadd.f32 %v948, %v961
      %v969 = vadd.f32 %v949, %v961
      %v970 = vadd.f32 %v950, %v961
      %v971 = vadd.f32 %v951, %v961
      %v972 = vadd.f32 %v952, %v961
      %v973 = vadd.f32 %v953, %v961
      %v974 = vadd.f32 %v954, %v961
      %v975 = vadd.f32 %v955, %v961
      %v976 = vadd.f32 %v956, %v961
      %v977 = vadd.f32 %v957, %v961
      %vm978 = vcmp.ge.f32.partialorder %v962, 0.0
      %vm979 = vcmp.ge.f32.partialorder %v963, 0.0
      %vm980 = vcmp.ge.f32.partialorder %v964, 0.0
      %vm981 = vcmp.ge.f32.partialorder %v965, 0.0
      %vm982 = vcmp.ge.f32.partialorder %v966, 0.0
      %vm983 = vcmp.ge.f32.partialorder %v967, 0.0
      %vm984 = vcmp.ge.f32.partialorder %v968, 0.0
      %vm985 = vcmp.ge.f32.partialorder %v969, 0.0
      %vm986 = vcmp.ge.f32.partialorder %v970, 0.0
      %vm987 = vcmp.ge.f32.partialorder %v971, 0.0
      %vm988 = vcmp.ge.f32.partialorder %v972, 0.0
      %vm989 = vcmp.ge.f32.partialorder %v973, 0.0
      %vm990 = vcmp.ge.f32.partialorder %v974, 0.0
      %vm991 = vcmp.ge.f32.partialorder %v975, 0.0
      %vm992 = vcmp.ge.f32.partialorder %v976, 0.0
      %vm993 = vcmp.ge.f32.partialorder %v977, 0.0
      %v994 = vlaneseq
      %v995 = vshrl.u32 %v994, 7
      %v996 = vsub.s32 0, %v995
      %v997 = vrot.slane %v444, %v996
      %v998 = vmul.f32 %v997, %v962
      %v999 = vmul.f32 %v997, %v963
      %v1000 = vmul.f32 %v997, %v964
      %v1001 = vmul.f32 %v997, %v965
      %v1002 = vmul.f32 %v997, %v966
      %v1003 = vmul.f32 %v997, %v967
      %v1004 = vmul.f32 %v997, %v968
      %v1005 = vmul.f32 %v997, %v969
      %v1006 = vmul.f32 %v997, %v970
      %v1007 = vmul.f32 %v997, %v971
      %v1008 = vmul.f32 %v997, %v972
      %v1009 = vmul.f32 %v997, %v973
      %v1010 = vmul.f32 %v997, %v974
      %v1011 = vmul.f32 %v997, %v975
      %v1012 = vmul.f32 %v997, %v976
      %v1013 = vmul.f32 %v997, %v977
      %v1014 = vsel %vm978, %v962, %v998
      %v1015 = vsel %vm979, %v963, %v999
      %v1016 = vsel %vm980, %v964, %v1000
      %v1017 = vsel %vm981, %v965, %v1001
      %v1018 = vsel %vm982, %v966, %v1002
      %v1019 = vsel %vm983, %v967, %v1003
      %v1020 = vsel %vm984, %v968, %v1004
      %v1021 = vsel %vm985, %v969, %v1005
      %v1022 = vsel %vm986, %v970, %v1006
      %v1023 = vsel %vm987, %v971, %v1007
      %v1024 = vsel %vm988, %v972, %v1008
      %v1025 = vsel %vm989, %v973, %v1009
      %v1026 = vsel %vm990, %v974, %v1010
      %v1027 = vsel %vm991, %v975, %v1011
      %v1028 = vsel %vm992, %v976, %v1012
      %v1029 = vsel %vm993, %v977, %v1013
      %1030 = vst.msk [vmem:[#allocation2] sm:$0xff] %vm749, %v1014
      %1031 = vst.msk [vmem:[#allocation2 + $0x8] sm:$0xff] %vm749, %v1015
      %1032 = vst.msk [vmem:[#allocation2 + $0x10] sm:$0xff] %vm749, %v1016
      %1033 = vst.msk [vmem:[#allocation2 + $0x18] sm:$0xff] %vm749, %v1017
      %1034 = vst.msk [vmem:[#allocation2 + $0x20] sm:$0xff] %vm749, %v1018
      %1035 = vst.msk [vmem:[#allocation2 + $0x28] sm:$0xff] %vm749, %v1019
      %1036 = vst.msk [vmem:[#allocation2 + $0x30] sm:$0xff] %vm749, %v1020
      %1037 = vst.msk [vmem:[#allocation2 + $0x38] sm:$0xff] %vm749, %v1021
      %1038 = vst.msk [vmem:[#allocation2 + $0x40] sm:$0xff] %vm749, %v1022
      %1039 = vst.msk [vmem:[#allocation2 + $0x48] sm:$0xff] %vm749, %v1023
      %1040 = vst.msk [vmem:[#allocation2 + $0x50] sm:$0xff] %vm749, %v1024
      %1041 = vst.msk [vmem:[#allocation2 + $0x58] sm:$0xff] %vm749, %v1025
      %1042 = vst.msk [vmem:[#allocation2 + $0x60] sm:$0xff] %vm749, %v1026
      %1043 = vst.msk [vmem:[#allocation2 + $0x68] sm:$0xff] %vm749, %v1027
      %1044 = vst.msk [vmem:[#allocation2 + $0x70] sm:$0xff] %vm749, %v1028
      %1045 = vst.msk [vmem:[#allocation2 + $0x78] sm:$0xff] %vm749, %v1029
      %v1046 = vld [vmem:[%s435 + $0x40] sm:$0xf]
      %v1047 = vld [vmem:[%s435 + $0x44] sm:$0xf]
      %v1048 = vld [vmem:[%s435 + $0x48] sm:$0xf]
      %v1049 = vld [vmem:[%s435 + $0x4c] sm:$0xf]
      %v1050 = vld [vmem:[%s435 + $0x50] sm:$0xf]
      %v1051 = vld [vmem:[%s435 + $0x54] sm:$0xf]
      %v1052 = vld [vmem:[%s435 + $0x58] sm:$0xf]
      %v1053 = vld [vmem:[%s435 + $0x5c] sm:$0xf]
      %v1054 = vld [vmem:[%s435 + $0x60] sm:$0xf]
      %v1055 = vld [vmem:[%s435 + $0x64] sm:$0xf]
      %v1056 = vld [vmem:[%s435 + $0x68] sm:$0xf]
      %v1057 = vld [vmem:[%s435 + $0x6c] sm:$0xf]
      %v1058 = vld [vmem:[%s435 + $0x70] sm:$0xf]
      %v1059 = vld [vmem:[%s435 + $0x74] sm:$0xf]
      %v1060 = vld [vmem:[%s435 + $0x78] sm:$0xf]
      %v1061 = vld [vmem:[%s435 + $0x7c] sm:$0xf]
      %v1062 = vld [vmem:[%s435 + $0x80] sm:$0x1]
      %v1063 = vld [vmem:[%s435 + $0x40] sm:$0xe]
      %v1064 = vld [vmem:[%s435 + $0x80] sm:$0x3]
      %v1065 = vld [vmem:[%s435 + $0x40] sm:$0xc]
      %v1082 = vunpack.c.l.b16 %v1046
      %v1083 = vunpack.c.l.b16 %v1047
      %v1084 = vunpack.c.l.b16 %v1048
      %v1085 = vunpack.c.l.b16 %v1049
      %v1086 = vunpack.c.l.b16 %v1050
      %v1087 = vunpack.c.l.b16 %v1051
      %v1088 = vunpack.c.l.b16 %v1052
      %v1089 = vunpack.c.l.b16 %v1053
      %v1090 = vunpack.c.l.b16 %v1054
      %v1091 = vunpack.c.l.b16 %v1055
      %v1092 = vunpack.c.l.b16 %v1056
      %v1093 = vunpack.c.l.b16 %v1057
      %v1094 = vunpack.c.l.b16 %v1058
      %v1095 = vunpack.c.l.b16 %v1059
      %v1096 = vunpack.c.l.b16 %v1060
      %v1097 = vunpack.c.l.b16 %v1061
      %v1098 = vpack.c.b16 %v1083, %v1082
      %v1099 = vpack.c.b16 %v1085, %v1084
      %v1100 = vpack.c.b16 %v1087, %v1086
      %v1101 = vpack.c.b16 %v1089, %v1088
      %v1102 = vpack.c.b16 %v1091, %v1090
      %v1103 = vpack.c.b16 %v1093, %v1092
      %v1104 = vpack.c.b16 %v1095, %v1094
      %v1105 = vpack.c.b16 %v1097, %v1096
      %v1107 = vunpack.c.l.b16 %v1062
      %v1108 = vpack.c.b16 %v1107, %v1107
      %v1110 = vshrl.u32 %v1098, 16
      %v1112 = vshll.u32 %v1098, 16
      %v1114 = vrot.slane %v1112, 1
      %v1115 = vor.u32 %v1110, %v1114
      %v1117 = vshll.u32 %v1099, 16
      %v1119 = vrot.slane %v1117, 1
      %v1120 = vsel %vm508, %v1115, %v1119
      %v1121 = vshrl.u32 %v1099, 16
      %v1123 = vor.u32 %v1121, %v1119
      %v1125 = vshll.u32 %v1100, 16
      %v1127 = vrot.slane %v1125, 1
      %v1128 = vsel %vm508, %v1123, %v1127
      %v1129 = vshrl.u32 %v1100, 16
      %v1131 = vor.u32 %v1129, %v1127
      %v1133 = vshll.u32 %v1101, 16
      %v1135 = vrot.slane %v1133, 1
      %v1136 = vsel %vm508, %v1131, %v1135
      %v1137 = vshrl.u32 %v1101, 16
      %v1139 = vor.u32 %v1137, %v1135
      %v1141 = vshll.u32 %v1102, 16
      %v1143 = vrot.slane %v1141, 1
      %v1144 = vsel %vm508, %v1139, %v1143
      %v1145 = vshrl.u32 %v1102, 16
      %v1147 = vor.u32 %v1145, %v1143
      %v1149 = vshll.u32 %v1103, 16
      %v1151 = vrot.slane %v1149, 1
      %v1152 = vsel %vm508, %v1147, %v1151
      %v1153 = vshrl.u32 %v1103, 16
      %v1155 = vor.u32 %v1153, %v1151
      %v1157 = vshll.u32 %v1104, 16
      %v1159 = vrot.slane %v1157, 1
      %v1160 = vsel %vm508, %v1155, %v1159
      %v1161 = vshrl.u32 %v1104, 16
      %v1163 = vor.u32 %v1161, %v1159
      %v1165 = vshll.u32 %v1105, 16
      %v1167 = vrot.slane %v1165, 1
      %v1168 = vsel %vm508, %v1163, %v1167
      %v1169 = vshrl.u32 %v1105, 16
      %v1171 = vor.u32 %v1169, %v1167
      %v1173 = vshll.u32 %v1108, 16
      %v1175 = vrot.slane %v1173, 1
      %v1176 = vsel %vm508, %v1171, %v1175
      %1177 = vrot.lane.b32.xlu0 %v1120, 8
      %v1178 = vpop.permute.xlu0 %1177
      %1179 = vrot.lane.b32.xlu0 %v1128, 8
      %v1180 = vpop.permute.xlu0 %1179
      %1181 = vrot.lane.b32.xlu0 %v1136, 8
      %v1182 = vpop.permute.xlu0 %1181
      %1183 = vrot.lane.b32.xlu0 %v1144, 8
      %v1184 = vpop.permute.xlu0 %1183
      %1185 = vrot.lane.b32.xlu0 %v1152, 8
      %v1186 = vpop.permute.xlu0 %1185
      %1187 = vrot.lane.b32.xlu0 %v1160, 8
      %v1188 = vpop.permute.xlu0 %1187
      %1189 = vrot.lane.b32.xlu0 %v1168, 8
      %v1190 = vpop.permute.xlu0 %1189
      %1191 = vrot.lane.b32.xlu0 %v1176, 8
      %v1192 = vpop.permute.xlu0 %1191
      %v1194 = vunpack.c.l.b16 %v1063
      %v1195 = vpack.c.b16 %v1083, %v1194
      %v1196 = vrot.slane %v1195, 1
      %v1197 = vrot.slane %v1099, 1
      %v1198 = vsel %vm596, %v1196, %v1197
      %v1199 = vrot.slane %v1100, 1
      %v1200 = vsel %vm596, %v1197, %v1199
      %v1201 = vrot.slane %v1101, 1
      %v1202 = vsel %vm596, %v1199, %v1201
      %v1203 = vrot.slane %v1102, 1
      %v1204 = vsel %vm596, %v1201, %v1203
      %v1205 = vrot.slane %v1103, 1
      %v1206 = vsel %vm596, %v1203, %v1205
      %v1207 = vrot.slane %v1104, 1
      %v1208 = vsel %vm596, %v1205, %v1207
      %v1209 = vrot.slane %v1105, 1
      %v1210 = vsel %vm596, %v1207, %v1209
      %v1211 = vrot.slane %v1108, 1
      %v1212 = vsel %vm596, %v1209, %v1211
      %1213 = vrot.lane.b32.xlu0 %v1198, 16
      %v1214 = vpop.permute.xlu0 %1213
      %1215 = vrot.lane.b32.xlu0 %v1200, 16
      %v1216 = vpop.permute.xlu0 %1215
      %1217 = vrot.lane.b32.xlu0 %v1202, 16
      %v1218 = vpop.permute.xlu0 %1217
      %1219 = vrot.lane.b32.xlu0 %v1204, 16
      %v1220 = vpop.permute.xlu0 %1219
      %1221 = vrot.lane.b32.xlu0 %v1206, 16
      %v1222 = vpop.permute.xlu0 %1221
      %1223 = vrot.lane.b32.xlu0 %v1208, 16
      %v1224 = vpop.permute.xlu0 %1223
      %1225 = vrot.lane.b32.xlu0 %v1210, 16
      %v1226 = vpop.permute.xlu0 %1225
      %1227 = vrot.lane.b32.xlu0 %v1212, 16
      %v1228 = vpop.permute.xlu0 %1227
      %v1230 = vunpack.c.l.b16 %v1064
      %v1231 = vpack.c.b16 %v1230, %v1230
      %v1233 = vshrl.u32 %v1195, 16
      %v1235 = vrot.slane %v1233, 1
      %v1236 = vshll.u32 %v1195, 16
      %v1238 = vrot.slane %v1236, 2
      %v1239 = vor.u32 %v1235, %v1238
      %v1240 = vrot.slane %v1121, 1
      %v1241 = vrot.slane %v1117, 2
      %v1242 = vor.u32 %v1240, %v1241
      %v1243 = vsel %vm633, %v1239, %v1242
      %v1244 = vrot.slane %v1129, 1
      %v1245 = vrot.slane %v1125, 2
      %v1246 = vor.u32 %v1244, %v1245
      %v1247 = vsel %vm633, %v1242, %v1246
      %v1248 = vrot.slane %v1137, 1
      %v1249 = vrot.slane %v1133, 2
      %v1250 = vor.u32 %v1248, %v1249
      %v1251 = vsel %vm633, %v1246, %v1250
      %v1252 = vrot.slane %v1145, 1
      %v1253 = vrot.slane %v1141, 2
      %v1254 = vor.u32 %v1252, %v1253
      %v1255 = vsel %vm633, %v1250, %v1254
      %v1256 = vrot.slane %v1153, 1
      %v1257 = vrot.slane %v1149, 2
      %v1258 = vor.u32 %v1256, %v1257
      %v1259 = vsel %vm633, %v1254, %v1258
      %v1260 = vrot.slane %v1161, 1
      %v1261 = vrot.slane %v1157, 2
      %v1262 = vor.u32 %v1260, %v1261
      %v1263 = vsel %vm633, %v1258, %v1262
      %v1264 = vrot.slane %v1169, 1
      %v1265 = vrot.slane %v1165, 2
      %v1266 = vor.u32 %v1264, %v1265
      %v1267 = vsel %vm633, %v1262, %v1266
      %v1269 = vshrl.u32 %v1231, 16
      %v1271 = vrot.slane %v1269, 1
      %v1272 = vshll.u32 %v1231, 16
      %v1274 = vrot.slane %v1272, 2
      %v1275 = vor.u32 %v1271, %v1274
      %v1276 = vsel %vm633, %v1266, %v1275
      %1277 = vrot.lane.b32.xlu0 %v1243, 24
      %v1278 = vpop.permute.xlu0 %1277
      %1279 = vrot.lane.b32.xlu0 %v1247, 24
      %v1280 = vpop.permute.xlu0 %1279
      %1281 = vrot.lane.b32.xlu0 %v1251, 24
      %v1282 = vpop.permute.xlu0 %1281
      %1283 = vrot.lane.b32.xlu0 %v1255, 24
      %v1284 = vpop.permute.xlu0 %1283
      %1285 = vrot.lane.b32.xlu0 %v1259, 24
      %v1286 = vpop.permute.xlu0 %1285
      %1287 = vrot.lane.b32.xlu0 %v1263, 24
      %v1288 = vpop.permute.xlu0 %1287
      %1289 = vrot.lane.b32.xlu0 %v1267, 24
      %v1290 = vpop.permute.xlu0 %1289
      %1291 = vrot.lane.b32.xlu0 %v1276, 24
      %v1292 = vpop.permute.xlu0 %1291
      %v1294 = vunpack.c.l.b16 %v1065
      %v1295 = vpack.c.b16 %v1083, %v1294
      %v1296 = vrot.slane %v1295, 2
      %v1297 = vrot.slane %v1099, 2
      %v1298 = vsel %vm698, %v1296, %v1297
      %v1299 = vrot.slane %v1100, 2
      %v1300 = vsel %vm698, %v1297, %v1299
      %v1301 = vrot.slane %v1101, 2
      %v1302 = vsel %vm698, %v1299, %v1301
      %v1303 = vrot.slane %v1102, 2
      %v1304 = vsel %vm698, %v1301, %v1303
      %v1305 = vrot.slane %v1103, 2
      %v1306 = vsel %vm698, %v1303, %v1305
      %v1307 = vrot.slane %v1104, 2
      %v1308 = vsel %vm698, %v1305, %v1307
      %v1309 = vrot.slane %v1105, 2
      %v1310 = vsel %vm698, %v1307, %v1309
      %v1311 = vrot.slane %v1231, 2
      %v1312 = vsel %vm698, %v1309, %v1311
      %1313 = vrot.lane.b32.xlu0 %v1298, 32
      %v1314 = vpop.permute.xlu0 %1313
      %1315 = vrot.lane.b32.xlu0 %v1300, 32
      %v1316 = vpop.permute.xlu0 %1315
      %1317 = vrot.lane.b32.xlu0 %v1302, 32
      %v1318 = vpop.permute.xlu0 %1317
      %1319 = vrot.lane.b32.xlu0 %v1304, 32
      %v1320 = vpop.permute.xlu0 %1319
      %1321 = vrot.lane.b32.xlu0 %v1306, 32
      %v1322 = vpop.permute.xlu0 %1321
      %1323 = vrot.lane.b32.xlu0 %v1308, 32
      %v1324 = vpop.permute.xlu0 %1323
      %1325 = vrot.lane.b32.xlu0 %v1310, 32
      %v1326 = vpop.permute.xlu0 %1325
      %1327 = vrot.lane.b32.xlu0 %v1312, 32
      %v1328 = vpop.permute.xlu0 %1327
      %v1330 = vsel %vm732, %v1098, %v1178
      %v1332 = vsel %vm732, %v1099, %v1180
      %v1334 = vsel %vm732, %v1100, %v1182
      %v1336 = vsel %vm732, %v1101, %v1184
      %v1338 = vsel %vm732, %v1102, %v1186
      %v1340 = vsel %vm732, %v1103, %v1188
      %v1342 = vsel %vm732, %v1104, %v1190
      %v1344 = vsel %vm732, %v1105, %v1192
      %v1346 = vsel %vm749, %v1330, %v1214
      %v1348 = vsel %vm749, %v1332, %v1216
      %v1350 = vsel %vm749, %v1334, %v1218
      %v1352 = vsel %vm749, %v1336, %v1220
      %v1354 = vsel %vm749, %v1338, %v1222
      %v1356 = vsel %vm749, %v1340, %v1224
      %v1358 = vsel %vm749, %v1342, %v1226
      %v1360 = vsel %vm749, %v1344, %v1228
      %v1362 = vsel %vm766, %v1346, %v1278
      %v1364 = vsel %vm766, %v1348, %v1280
      %v1366 = vsel %vm766, %v1350, %v1282
      %v1368 = vsel %vm766, %v1352, %v1284
      %v1370 = vsel %vm766, %v1354, %v1286
      %v1372 = vsel %vm766, %v1356, %v1288
      %v1374 = vsel %vm766, %v1358, %v1290
      %v1376 = vsel %vm766, %v1360, %v1292
      %v1378 = vsel %vm783, %v1362, %v1314
      %v1380 = vsel %vm783, %v1364, %v1316
      %v1382 = vsel %vm783, %v1366, %v1318
      %v1384 = vsel %vm783, %v1368, %v1320
      %v1386 = vsel %vm783, %v1370, %v1322
      %v1388 = vsel %vm783, %v1372, %v1324
      %v1390 = vsel %vm783, %v1374, %v1326
      %v1392 = vsel %vm783, %v1376, %v1328
      %v1393 = vld [vmem:[%s1] sm:$0xf]
      %v1394 = vld [vmem:[%s1 + $0x4] sm:$0xf]
      %v1395 = vld [vmem:[%s1 + $0x8] sm:$0xf]
      %v1396 = vld [vmem:[%s1 + $0xc] sm:$0xf]
      %v1397 = vld [vmem:[%s1 + $0x10] sm:$0xf]
      %v1403 = vunpack.c.l.b16 %v1393
      %v1404 = vunpack.c.l.b16 %v1394
      %v1405 = vunpack.c.l.b16 %v1395
      %v1406 = vunpack.c.l.b16 %v1396
      %v1407 = vunpack.c.l.b16 %v1397
      %v1408 = vpack.c.b16 %v1404, %v1403
      %v1409 = vpack.c.b16 %v1406, %v1405
      %v1410 = vpack.c.b16 %v1407, %v1407
      %v1413 = vsel %vm820, %v1378, 0
      %v1415 = vsel %vm820, %v1380, 0
      %v1417 = vsel %vm820, %v1382, 0
      %v1419 = vsel %vm820, %v1384, 0
      %v1421 = vsel %vm820, %v1386, 0
      %v1423 = vsel %vm820, %v1388, 0
      %v1425 = vsel %vm820, %v1390, 0
      %v1427 = vsel %vm820, %v1392, 0
      %v1430 = vsel %vm837, %v1410, 0
      %1432 = vmatprep.subr.bf16.mxu0 0
      %1433 = vmatpush1.bf16.msra.mxu0 %v1408
      %1434 = vmatprep.subr.bf16.mxu0 0
      %1435 = vmatpush1.bf16.msra.mxu0 %v1409
      %1436 = vmatprep.subr.bf16.mxu0 0
      %1437 = vmatpush1.bf16.msra.mxu0 %v1430
      %1438 = vmatprep.subr.bf16.mxu0 0
      %1439 = vmatpush1.bf16.msra.mxu0 0
      %1440 = vmatprep.subr.bf16.mxu0 0
      %1441 = vmatpush1.bf16.msra.mxu0 0
      %1442 = vmatprep.subr.bf16.mxu0 0
      %1443 = vmatpush1.bf16.msra.mxu0 0
      %1444 = vmatprep.subr.bf16.mxu0 0
      %1445 = vmatpush1.bf16.msra.mxu0 0
      %1446 = vmatprep.subr.bf16.mxu0 0
      %1447 = vmatpush1.bf16.msra.mxu0 0
      %1448 = vmatprep.subr.bf16.mxu0 0
      %1449 = vmatpush1.bf16.msra.mxu0 0
      %1450 = vmatprep.subr.bf16.mxu0 0
      %1451 = vmatpush1.bf16.msra.mxu0 0
      %1452 = vmatprep.subr.bf16.mxu0 0
      %1453 = vmatpush1.bf16.msra.mxu0 0
      %1454 = vmatprep.subr.bf16.mxu0 0
      %1455 = vmatpush1.bf16.msra.mxu0 0
      %1456 = vmatprep.subr.bf16.mxu0 0
      %1457 = vmatpush1.bf16.msra.mxu0 0
      %1458 = vmatprep.subr.bf16.mxu0 0
      %1459 = vmatpush1.bf16.msra.mxu0 0
      %1460 = vmatprep.subr.bf16.mxu0 0
      %1461 = vmatpush1.bf16.msra.mxu0 0
      %1462 = vmatprep.subr.bf16.mxu0 0
      %1463 = vmatpush1.bf16.msra.mxu0 0
      %1464 = vmatprep.mubr.bf16.mxu0 0
      %1465 = vmatmul.mubr.bf16.gmra.mrb[0].mxu0 %v1413
      %v1466 = vpop.f32.mrb[0].mxu0
      %v1467 = vadd.f32 0.0, %v1466
      %v1468 = vpop.f32.mrb[0].mxu0
      %v1469 = vpop.f32.mrb[0].mxu0
      %v1470 = vadd.f32 0.0, %v1469
      %v1471 = vpop.f32.mrb[0].mxu0
      %1472 = vmatprep.mubr.bf16.mxu0 0
      %1473 = vmatmul.mubr.bf16.gmra.mrb[0].mxu0 %v1415
      %v1474 = vpop.f32.mrb[0].mxu0
      %v1475 = vadd.f32 0.0, %v1474
      %v1476 = vpop.f32.mrb[0].mxu0
      %v1477 = vpop.f32.mrb[0].mxu0
      %v1478 = vadd.f32 0.0, %v1477
      %v1479 = vpop.f32.mrb[0].mxu0
      %1480 = vmatprep.mubr.bf16.mxu0 0
      %1481 = vmatmul.mubr.bf16.gmra.mrb[0].mxu0 %v1417
      %v1482 = vpop.f32.mrb[0].mxu0
      %v1483 = vadd.f32 0.0, %v1482
      %v1484 = vpop.f32.mrb[0].mxu0
      %v1485 = vpop.f32.mrb[0].mxu0
      %v1486 = vadd.f32 0.0, %v1485
      %v1487 = vpop.f32.mrb[0].mxu0
      %1488 = vmatprep.mubr.bf16.mxu0 0
      %1489 = vmatmul.mubr.bf16.gmra.mrb[0].mxu0 %v1419
      %v1490 = vpop.f32.mrb[0].mxu0
      %v1491 = vadd.f32 0.0, %v1490
      %v1492 = vpop.f32.mrb[0].mxu0
      %v1493 = vpop.f32.mrb[0].mxu0
      %v1494 = vadd.f32 0.0, %v1493
      %v1495 = vpop.f32.mrb[0].mxu0
      %1496 = vmatprep.mubr.bf16.mxu0 0
      %1497 = vmatmul.mubr.bf16.gmra.mrb[0].mxu0 %v1421
      %v1498 = vpop.f32.mrb[0].mxu0
      %v1499 = vadd.f32 0.0, %v1498
      %v1500 = vpop.f32.mrb[0].mxu0
      %v1501 = vpop.f32.mrb[0].mxu0
      %v1502 = vadd.f32 0.0, %v1501
      %v1503 = vpop.f32.mrb[0].mxu0
      %1504 = vmatprep.mubr.bf16.mxu0 0
      %1505 = vmatmul.mubr.bf16.gmra.mrb[0].mxu0 %v1423
      %v1506 = vpop.f32.mrb[0].mxu0
      %v1507 = vadd.f32 0.0, %v1506
      %v1508 = vpop.f32.mrb[0].mxu0
      %v1509 = vpop.f32.mrb[0].mxu0
      %v1510 = vadd.f32 0.0, %v1509
      %v1511 = vpop.f32.mrb[0].mxu0
      %1512 = vmatprep.mubr.bf16.mxu0 0
      %1513 = vmatmul.mubr.bf16.gmra.mrb[0].mxu0 %v1425
      %v1514 = vpop.f32.mrb[0].mxu0
      %v1515 = vadd.f32 0.0, %v1514
      %v1516 = vpop.f32.mrb[0].mxu0
      %v1517 = vpop.f32.mrb[0].mxu0
      %v1518 = vadd.f32 0.0, %v1517
      %v1519 = vpop.f32.mrb[0].mxu0
      %1520 = vmatprep.mubr.bf16.mxu0 0
      %1521 = vmatmul.mubr.bf16.gmra.mrb[0].mxu0 %v1427
      %v1522 = vpop.f32.mrb[0].mxu0
      %v1523 = vadd.f32 0.0, %v1522
      %v1524 = vpop.f32.mrb[0].mxu0
      %v1525 = vpop.f32.mrb[0].mxu0
      %v1526 = vadd.f32 0.0, %v1525
      %v1527 = vpop.f32.mrb[0].mxu0
      %1528 = vdwg.mxu0
      %v1529 = vmul.f32 %v1467, %v941
      %v1530 = vmul.f32 %v1470, %v941
      %v1531 = vmul.f32 %v1475, %v941
      %v1532 = vmul.f32 %v1478, %v941
      %v1533 = vmul.f32 %v1483, %v941
      %v1534 = vmul.f32 %v1486, %v941
      %v1535 = vmul.f32 %v1491, %v941
      %v1536 = vmul.f32 %v1494, %v941
      %v1537 = vmul.f32 %v1499, %v941
      %v1538 = vmul.f32 %v1502, %v941
      %v1539 = vmul.f32 %v1507, %v941
      %v1540 = vmul.f32 %v1510, %v941
      %v1541 = vmul.f32 %v1515, %v941
      %v1542 = vmul.f32 %v1518, %v941
      %v1543 = vmul.f32 %v1523, %v941
      %v1544 = vmul.f32 %v1526, %v941
      %v1545 = vadd.f32 %v1529, %v961
      %v1546 = vadd.f32 %v1530, %v961
      %v1547 = vadd.f32 %v1531, %v961
      %v1548 = vadd.f32 %v1532, %v961
      %v1549 = vadd.f32 %v1533, %v961
      %v1550 = vadd.f32 %v1534, %v961
      %v1551 = vadd.f32 %v1535, %v961
      %v1552 = vadd.f32 %v1536, %v961
      %v1553 = vadd.f32 %v1537, %v961
      %v1554 = vadd.f32 %v1538, %v961
      %v1555 = vadd.f32 %v1539, %v961
      %v1556 = vadd.f32 %v1540, %v961
      %v1557 = vadd.f32 %v1541, %v961
      %v1558 = vadd.f32 %v1542, %v961
      %v1559 = vadd.f32 %v1543, %v961
      %v1560 = vadd.f32 %v1544, %v961
      %vm1561 = vcmp.ge.f32.partialorder %v1545, 0.0
      %vm1562 = vcmp.ge.f32.partialorder %v1546, 0.0
      %vm1563 = vcmp.ge.f32.partialorder %v1547, 0.0
      %vm1564 = vcmp.ge.f32.partialorder %v1548, 0.0
      %vm1565 = vcmp.ge.f32.partialorder %v1549, 0.0
      %vm1566 = vcmp.ge.f32.partialorder %v1550, 0.0
      %vm1567 = vcmp.ge.f32.partialorder %v1551, 0.0
      %vm1568 = vcmp.ge.f32.partialorder %v1552, 0.0
      %vm1569 = vcmp.ge.f32.partialorder %v1553, 0.0
      %vm1570 = vcmp.ge.f32.partialorder %v1554, 0.0
      %vm1571 = vcmp.ge.f32.partialorder %v1555, 0.0
      %vm1572 = vcmp.ge.f32.partialorder %v1556, 0.0
      %vm1573 = vcmp.ge.f32.partialorder %v1557, 0.0
      %vm1574 = vcmp.ge.f32.partialorder %v1558, 0.0
      %vm1575 = vcmp.ge.f32.partialorder %v1559, 0.0
      %vm1576 = vcmp.ge.f32.partialorder %v1560, 0.0
      %v1577 = vmul.f32 %v997, %v1545
      %v1578 = vmul.f32 %v997, %v1546
      %v1579 = vmul.f32 %v997, %v1547
      %v1580 = vmul.f32 %v997, %v1548
      %v1581 = vmul.f32 %v997, %v1549
      %v1582 = vmul.f32 %v997, %v1550
      %v1583 = vmul.f32 %v997, %v1551
      %v1584 = vmul.f32 %v997, %v1552
      %v1585 = vmul.f32 %v997, %v1553
      %v1586 = vmul.f32 %v997, %v1554
      %v1587 = vmul.f32 %v997, %v1555
      %v1588 = vmul.f32 %v997, %v1556
      %v1589 = vmul.f32 %v997, %v1557
      %v1590 = vmul.f32 %v997, %v1558
      %v1591 = vmul.f32 %v997, %v1559
      %v1592 = vmul.f32 %v997, %v1560
      %v1593 = vsel %vm1561, %v1545, %v1577
      %v1594 = vsel %vm1562, %v1546, %v1578
      %v1595 = vsel %vm1563, %v1547, %v1579
      %v1596 = vsel %vm1564, %v1548, %v1580
      %v1597 = vsel %vm1565, %v1549, %v1581
      %v1598 = vsel %vm1566, %v1550, %v1582
      %v1599 = vsel %vm1567, %v1551, %v1583
      %v1600 = vsel %vm1568, %v1552, %v1584
      %v1601 = vsel %vm1569, %v1553, %v1585
      %v1602 = vsel %vm1570, %v1554, %v1586
      %v1603 = vsel %vm1571, %v1555, %v1587
      %v1604 = vsel %vm1572, %v1556, %v1588
      %v1605 = vsel %vm1573, %v1557, %v1589
      %v1606 = vsel %vm1574, %v1558, %v1590
      %v1607 = vsel %vm1575, %v1559, %v1591
      %v1608 = vsel %vm1576, %v1560, %v1592
      %1609 = vst.msk [vmem:[#allocation2 + $0x80] sm:$0xff] %vm749, %v1593
      %1610 = vst.msk [vmem:[#allocation2 + $0x88] sm:$0xff] %vm749, %v1594
      %1611 = vst.msk [vmem:[#allocation2 + $0x90] sm:$0xff] %vm749, %v1595
      %1612 = vst.msk [vmem:[#allocation2 + $0x98] sm:$0xff] %vm749, %v1596
      %1613 = vst.msk [vmem:[#allocation2 + $0xa0] sm:$0xff] %vm749, %v1597
      %1614 = vst.msk [vmem:[#allocation2 + $0xa8] sm:$0xff] %vm749, %v1598
      %1615 = vst.msk [vmem:[#allocation2 + $0xb0] sm:$0xff] %vm749, %v1599
      %1616 = vst.msk [vmem:[#allocation2 + $0xb8] sm:$0xff] %vm749, %v1600
      %1617 = vst.msk [vmem:[#allocation2 + $0xc0] sm:$0xff] %vm749, %v1601
      %1618 = vst.msk [vmem:[#allocation2 + $0xc8] sm:$0xff] %vm749, %v1602
      %1619 = vst.msk [vmem:[#allocation2 + $0xd0] sm:$0xff] %vm749, %v1603
      %1620 = vst.msk [vmem:[#allocation2 + $0xd8] sm:$0xff] %vm749, %v1604
      %1621 = vst.msk [vmem:[#allocation2 + $0xe0] sm:$0xff] %vm749, %v1605
      %1622 = vst.msk [vmem:[#allocation2 + $0xe8] sm:$0xff] %vm749, %v1606
      %1623 = vst.msk [vmem:[#allocation2 + $0xf0] sm:$0xff] %vm749, %v1607
      %1624 = vst.msk [vmem:[#allocation2 + $0xf8] sm:$0xff] %vm749, %v1608
      %v1625 = vld [vmem:[%s435 + $0x80] sm:$0xf]
      %v1626 = vld [vmem:[%s435 + $0x84] sm:$0xf]
      %v1627 = vld [vmem:[%s435 + $0x88] sm:$0xf]
      %v1628 = vld [vmem:[%s435 + $0x8c] sm:$0xf]
      %v1629 = vld [vmem:[%s435 + $0x90] sm:$0xf]
      %v1630 = vld [vmem:[%s435 + $0x94] sm:$0xf]
      %v1631 = vld [vmem:[%s435 + $0x98] sm:$0xf]
      %v1632 = vld [vmem:[%s435 + $0x9c] sm:$0xf]
      %v1633 = vld [vmem:[%s435 + $0xa0] sm:$0xf]
      %v1634 = vld [vmem:[%s435 + $0xa4] sm:$0xf]
      %v1635 = vld [vmem:[%s435 + $0xa8] sm:$0xf]
      %v1636 = vld [vmem:[%s435 + $0xac] sm:$0xf]
      %v1637 = vld [vmem:[%s435 + $0xb0] sm:$0xf]
      %v1638 = vld [vmem:[%s435 + $0xb4] sm:$0xf]
      %v1639 = vld [vmem:[%s435 + $0xb8] sm:$0xf]
      %v1640 = vld [vmem:[%s435 + $0xbc] sm:$0xf]
      %v1641 = vld [vmem:[%s435 + $0xc0] sm:$0x1]
      %v1642 = vld [vmem:[%s435 + $0x80] sm:$0xe]
      %v1643 = vld [vmem:[%s435 + $0xc0] sm:$0x3]
      %v1644 = vld [vmem:[%s435 + $0x80] sm:$0xc]
      %v1661 = vunpack.c.l.b16 %v1625
      %v1662 = vunpack.c.l.b16 %v1626
      %v1663 = vunpack.c.l.b16 %v1627
      %v1664 = vunpack.c.l.b16 %v1628
      %v1665 = vunpack.c.l.b16 %v1629
      %v1666 = vunpack.c.l.b16 %v1630
      %v1667 = vunpack.c.l.b16 %v1631
      %v1668 = vunpack.c.l.b16 %v1632
      %v1669 = vunpack.c.l.b16 %v1633
      %v1670 = vunpack.c.l.b16 %v1634
      %v1671 = vunpack.c.l.b16 %v1635
      %v1672 = vunpack.c.l.b16 %v1636
      %v1673 = vunpack.c.l.b16 %v1637
      %v1674 = vunpack.c.l.b16 %v1638
      %v1675 = vunpack.c.l.b16 %v1639
      %v1676 = vunpack.c.l.b16 %v1640
      %v1677 = vpack.c.b16 %v1662, %v1661
      %v1678 = vpack.c.b16 %v1664, %v1663
      %v1679 = vpack.c.b16 %v1666, %v1665
      %v1680 = vpack.c.b16 %v1668, %v1667
      %v1681 = vpack.c.b16 %v1670, %v1669
      %v1682 = vpack.c.b16 %v1672, %v1671
      %v1683 = vpack.c.b16 %v1674, %v1673
      %v1684 = vpack.c.b16 %v1676, %v1675
      %v1686 = vunpack.c.l.b16 %v1641
      %v1687 = vpack.c.b16 %v1686, %v1686
      %v1689 = vshrl.u32 %v1677, 16
      %v1691 = vshll.u32 %v1677, 16
      %v1693 = vrot.slane %v1691, 1
      %v1694 = vor.u32 %v1689, %v1693
      %v1696 = vshll.u32 %v1678, 16
      %v1698 = vrot.slane %v1696, 1
      %v1699 = vsel %vm508, %v1694, %v1698
      %v1700 = vshrl.u32 %v1678, 16
      %v1702 = vor.u32 %v1700, %v1698
      %v1704 = vshll.u32 %v1679, 16
      %v1706 = vrot.slane %v1704, 1
      %v1707 = vsel %vm508, %v1702, %v1706
      %v1708 = vshrl.u32 %v1679, 16
      %v1710 = vor.u32 %v1708, %v1706
      %v1712 = vshll.u32 %v1680, 16
      %v1714 = vrot.slane %v1712, 1
      %v1715 = vsel %vm508, %v1710, %v1714
      %v1716 = vshrl.u32 %v1680, 16
      %v1718 = vor.u32 %v1716, %v1714
      %v1720 = vshll.u32 %v1681, 16
      %v1722 = vrot.slane %v1720, 1
      %v1723 = vsel %vm508, %v1718, %v1722
      %v1724 = vshrl.u32 %v1681, 16
      %v1726 = vor.u32 %v1724, %v1722
      %v1728 = vshll.u32 %v1682, 16
      %v1730 = vrot.slane %v1728, 1
      %v1731 = vsel %vm508, %v1726, %v1730
      %v1732 = vshrl.u32 %v1682, 16
      %v1734 = vor.u32 %v1732, %v1730
      %v1736 = vshll.u32 %v1683, 16
      %v1738 = vrot.slane %v1736, 1
      %v1739 = vsel %vm508, %v1734, %v1738
      %v1740 = vshrl.u32 %v1683, 16
      %v1742 = vor.u32 %v1740, %v1738
      %v1744 = vshll.u32 %v1684, 16
      %v1746 = vrot.slane %v1744, 1
      %v1747 = vsel %vm508, %v1742, %v1746
      %v1748 = vshrl.u32 %v1684, 16
      %v1750 = vor.u32 %v1748, %v1746
      %v1752 = vshll.u32 %v1687, 16
      %v1754 = vrot.slane %v1752, 1
      %v1755 = vsel %vm508, %v1750, %v1754
      %1756 = vrot.lane.b32.xlu0 %v1699, 8
      %v1757 = vpop.permute.xlu0 %1756
      %1758 = vrot.lane.b32.xlu0 %v1707, 8
      %v1759 = vpop.permute.xlu0 %1758
      %1760 = vrot.lane.b32.xlu0 %v1715, 8
      %v1761 = vpop.permute.xlu0 %1760
      %1762 = vrot.lane.b32.xlu0 %v1723, 8
      %v1763 = vpop.permute.xlu0 %1762
      %1764 = vrot.lane.b32.xlu0 %v1731, 8
      %v1765 = vpop.permute.xlu0 %1764
      %1766 = vrot.lane.b32.xlu0 %v1739, 8
      %v1767 = vpop.permute.xlu0 %1766
      %1768 = vrot.lane.b32.xlu0 %v1747, 8
      %v1769 = vpop.permute.xlu0 %1768
      %1770 = vrot.lane.b32.xlu0 %v1755, 8
      %v1771 = vpop.permute.xlu0 %1770
      %v1773 = vunpack.c.l.b16 %v1642
      %v1774 = vpack.c.b16 %v1662, %v1773
      %v1775 = vrot.slane %v1774, 1
      %v1776 = vrot.slane %v1678, 1
      %v1777 = vsel %vm596, %v1775, %v1776
      %v1778 = vrot.slane %v1679, 1
      %v1779 = vsel %vm596, %v1776, %v1778
      %v1780 = vrot.slane %v1680, 1
      %v1781 = vsel %vm596, %v1778, %v1780
      %v1782 = vrot.slane %v1681, 1
      %v1783 = vsel %vm596, %v1780, %v1782
      %v1784 = vrot.slane %v1682, 1
      %v1785 = vsel %vm596, %v1782, %v1784
      %v1786 = vrot.slane %v1683, 1
      %v1787 = vsel %vm596, %v1784, %v1786
      %v1788 = vrot.slane %v1684, 1
      %v1789 = vsel %vm596, %v1786, %v1788
      %v1790 = vrot.slane %v1687, 1
      %v1791 = vsel %vm596, %v1788, %v1790
      %1792 = vrot.lane.b32.xlu0 %v1777, 16
      %v1793 = vpop.permute.xlu0 %1792
      %1794 = vrot.lane.b32.xlu0 %v1779, 16
      %v1795 = vpop.permute.xlu0 %1794
      %1796 = vrot.lane.b32.xlu0 %v1781, 16
      %v1797 = vpop.permute.xlu0 %1796
      %1798 = vrot.lane.b32.xlu0 %v1783, 16
      %v1799 = vpop.permute.xlu0 %1798
      %1800 = vrot.lane.b32.xlu0 %v1785, 16
      %v1801 = vpop.permute.xlu0 %1800
      %1802 = vrot.lane.b32.xlu0 %v1787, 16
      %v1803 = vpop.permute.xlu0 %1802
      %1804 = vrot.lane.b32.xlu0 %v1789, 16
      %v1805 = vpop.permute.xlu0 %1804
      %1806 = vrot.lane.b32.xlu0 %v1791, 16
      %v1807 = vpop.permute.xlu0 %1806
      %v1809 = vunpack.c.l.b16 %v1643
      %v1810 = vpack.c.b16 %v1809, %v1809
      %v1812 = vshrl.u32 %v1774, 16
      %v1814 = vrot.slane %v1812, 1
      %v1815 = vshll.u32 %v1774, 16
      %v1817 = vrot.slane %v1815, 2
      %v1818 = vor.u32 %v1814, %v1817
      %v1819 = vrot.slane %v1700, 1
      %v1820 = vrot.slane %v1696, 2
      %v1821 = vor.u32 %v1819, %v1820
      %v1822 = vsel %vm633, %v1818, %v1821
      %v1823 = vrot.slane %v1708, 1
      %v1824 = vrot.slane %v1704, 2
      %v1825 = vor.u32 %v1823, %v1824
      %v1826 = vsel %vm633, %v1821, %v1825
      %v1827 = vrot.slane %v1716, 1
      %v1828 = vrot.slane %v1712, 2
      %v1829 = vor.u32 %v1827, %v1828
      %v1830 = vsel %vm633, %v1825, %v1829
      %v1831 = vrot.slane %v1724, 1
      %v1832 = vrot.slane %v1720, 2
      %v1833 = vor.u32 %v1831, %v1832
      %v1834 = vsel %vm633, %v1829, %v1833
      %v1835 = vrot.slane %v1732, 1
      %v1836 = vrot.slane %v1728, 2
      %v1837 = vor.u32 %v1835, %v1836
      %v1838 = vsel %vm633, %v1833, %v1837
      %v1839 = vrot.slane %v1740, 1
      %v1840 = vrot.slane %v1736, 2
      %v1841 = vor.u32 %v1839, %v1840
      %v1842 = vsel %vm633, %v1837, %v1841
      %v1843 = vrot.slane %v1748, 1
      %v1844 = vrot.slane %v1744, 2
      %v1845 = vor.u32 %v1843, %v1844
      %v1846 = vsel %vm633, %v1841, %v1845
      %v1848 = vshrl.u32 %v1810, 16
      %v1850 = vrot.slane %v1848, 1
      %v1851 = vshll.u32 %v1810, 16
      %v1853 = vrot.slane %v1851, 2
      %v1854 = vor.u32 %v1850, %v1853
      %v1855 = vsel %vm633, %v1845, %v1854
      %1856 = vrot.lane.b32.xlu0 %v1822, 24
      %v1857 = vpop.permute.xlu0 %1856
      %1858 = vrot.lane.b32.xlu0 %v1826, 24
      %v1859 = vpop.permute.xlu0 %1858
      %1860 = vrot.lane.b32.xlu0 %v1830, 24
      %v1861 = vpop.permute.xlu0 %1860
      %1862 = vrot.lane.b32.xlu0 %v1834, 24
      %v1863 = vpop.permute.xlu0 %1862
      %1864 = vrot.lane.b32.xlu0 %v1838, 24
      %v1865 = vpop.permute.xlu0 %1864
      %1866 = vrot.lane.b32.xlu0 %v1842, 24
      %v1867 = vpop.permute.xlu0 %1866
      %1868 = vrot.lane.b32.xlu0 %v1846, 24
      %v1869 = vpop.permute.xlu0 %1868
      %1870 = vrot.lane.b32.xlu0 %v1855, 24
      %v1871 = vpop.permute.xlu0 %1870
      %v1873 = vunpack.c.l.b16 %v1644
      %v1874 = vpack.c.b16 %v1662, %v1873
      %v1875 = vrot.slane %v1874, 2
      %v1876 = vrot.slane %v1678, 2
      %v1877 = vsel %vm698, %v1875, %v1876
      %v1878 = vrot.slane %v1679, 2
      %v1879 = vsel %vm698, %v1876, %v1878
      %v1880 = vrot.slane %v1680, 2
      %v1881 = vsel %vm698, %v1878, %v1880
      %v1882 = vrot.slane %v1681, 2
      %v1883 = vsel %vm698, %v1880, %v1882
      %v1884 = vrot.slane %v1682, 2
      %v1885 = vsel %vm698, %v1882, %v1884
      %v1886 = vrot.slane %v1683, 2
      %v1887 = vsel %vm698, %v1884, %v1886
      %v1888 = vrot.slane %v1684, 2
      %v1889 = vsel %vm698, %v1886, %v1888
      %v1890 = vrot.slane %v1810, 2
      %v1891 = vsel %vm698, %v1888, %v1890
      %1892 = vrot.lane.b32.xlu0 %v1877, 32
      %v1893 = vpop.permute.xlu0 %1892
      %1894 = vrot.lane.b32.xlu0 %v1879, 32
      %v1895 = vpop.permute.xlu0 %1894
      %1896 = vrot.lane.b32.xlu0 %v1881, 32
      %v1897 = vpop.permute.xlu0 %1896
      %1898 = vrot.lane.b32.xlu0 %v1883, 32
      %v1899 = vpop.permute.xlu0 %1898
      %1900 = vrot.lane.b32.xlu0 %v1885, 32
      %v1901 = vpop.permute.xlu0 %1900
      %1902 = vrot.lane.b32.xlu0 %v1887, 32
      %v1903 = vpop.permute.xlu0 %1902
      %1904 = vrot.lane.b32.xlu0 %v1889, 32
      %v1905 = vpop.permute.xlu0 %1904
      %1906 = vrot.lane.b32.xlu0 %v1891, 32
      %v1907 = vpop.permute.xlu0 %1906
      %v1909 = vsel %vm732, %v1677, %v1757
      %v1911 = vsel %vm732, %v1678, %v1759
      %v1913 = vsel %vm732, %v1679, %v1761
      %v1915 = vsel %vm732, %v1680, %v1763
      %v1917 = vsel %vm732, %v1681, %v1765
      %v1919 = vsel %vm732, %v1682, %v1767
      %v1921 = vsel %vm732, %v1683, %v1769
      %v1923 = vsel %vm732, %v1684, %v1771
      %v1925 = vsel %vm749, %v1909, %v1793
      %v1927 = vsel %vm749, %v1911, %v1795
      %v1929 = vsel %vm749, %v1913, %v1797
      %v1931 = vsel %vm749, %v1915, %v1799
      %v1933 = vsel %vm749, %v1917, %v1801
      %v1935 = vsel %vm749, %v1919, %v1803
      %v1937 = vsel %vm749, %v1921, %v1805
      %v1939 = vsel %vm749, %v1923, %v1807
      %v1941 = vsel %vm766, %v1925, %v1857
      %v1943 = vsel %vm766, %v1927, %v1859
      %v1945 = vsel %vm766, %v1929, %v1861
      %v1947 = vsel %vm766, %v1931, %v1863
      %v1949 = vsel %vm766, %v1933, %v1865
      %v1951 = vsel %vm766, %v1935, %v1867
      %v1953 = vsel %vm766, %v1937, %v1869
      %v1955 = vsel %vm766, %v1939, %v1871
      %v1957 = vsel %vm783, %v1941, %v1893
      %v1959 = vsel %vm783, %v1943, %v1895
      %v1961 = vsel %vm783, %v1945, %v1897
      %v1963 = vsel %vm783, %v1947, %v1899
      %v1965 = vsel %vm783, %v1949, %v1901
      %v1967 = vsel %vm783, %v1951, %v1903
      %v1969 = vsel %vm783, %v1953, %v1905
      %v1971 = vsel %vm783, %v1955, %v1907
      %v1972 = vld [vmem:[%s1] sm:$0xf]
      %v1973 = vld [vmem:[%s1 + $0x4] sm:$0xf]
      %v1974 = vld [vmem:[%s1 + $0x8] sm:$0xf]
      %v1975 = vld [vmem:[%s1 + $0xc] sm:$0xf]
      %v1976 = vld [vmem:[%s1 + $0x10] sm:$0xf]
      %v1982 = vunpack.c.l.b16 %v1972
      %v1983 = vunpack.c.l.b16 %v1973
      %v1984 = vunpack.c.l.b16 %v1974
      %v1985 = vunpack.c.l.b16 %v1975
      %v1986 = vunpack.c.l.b16 %v1976
      %v1987 = vpack.c.b16 %v1983, %v1982
      %v1988 = vpack.c.b16 %v1985, %v1984
      %v1989 = vpack.c.b16 %v1986, %v1986
      %v1992 = vsel %vm820, %v1957, 0
      %v1994 = vsel %vm820, %v1959, 0
      %v1996 = vsel %vm820, %v1961, 0
      %v1998 = vsel %vm820, %v1963, 0
      %v2000 = vsel %vm820, %v1965, 0
      %v2002 = vsel %vm820, %v1967, 0
      %v2004 = vsel %vm820, %v1969, 0
      %v2006 = vsel %vm820, %v1971, 0
      %v2009 = vsel %vm837, %v1989, 0
      %2011 = vmatprep.subr.bf16.mxu0 0
      %2012 = vmatpush1.bf16.msra.mxu0 %v1987
      %2013 = vmatprep.subr.bf16.mxu0 0
      %2014 = vmatpush1.bf16.msra.mxu0 %v1988
      %2015 = vmatprep.subr.bf16.mxu0 0
      %2016 = vmatpush1.bf16.msra.mxu0 %v2009
      %2017 = vmatprep.subr.bf16.mxu0 0
      %2018 = vmatpush1.bf16.msra.mxu0 0
      %2019 = vmatprep.subr.bf16.mxu0 0
      %2020 = vmatpush1.bf16.msra.mxu0 0
      %2021 = vmatprep.subr.bf16.mxu0 0
      %2022 = vmatpush1.bf16.msra.mxu0 0
      %2023 = vmatprep.subr.bf16.mxu0 0
      %2024 = vmatpush1.bf16.msra.mxu0 0
      %2025 = vmatprep.subr.bf16.mxu0 0
      %2026 = vmatpush1.bf16.msra.mxu0 0
      %2027 = vmatprep.subr.bf16.mxu0 0
      %2028 = vmatpush1.bf16.msra.mxu0 0
      %2029 = vmatprep.subr.bf16.mxu0 0
      %2030 = vmatpush1.bf16.msra.mxu0 0
      %2031 = vmatprep.subr.bf16.mxu0 0
      %2032 = vmatpush1.bf16.msra.mxu0 0
      %2033 = vmatprep.subr.bf16.mxu0 0
      %2034 = vmatpush1.bf16.msra.mxu0 0
      %2035 = vmatprep.subr.bf16.mxu0 0
      %2036 = vmatpush1.bf16.msra.mxu0 0
      %2037 = vmatprep.subr.bf16.mxu0 0
      %2038 = vmatpush1.bf16.msra.mxu0 0
      %2039 = vmatprep.subr.bf16.mxu0 0
      %2040 = vmatpush1.bf16.msra.mxu0 0
      %2041 = vmatprep.subr.bf16.mxu0 0
      %2042 = vmatpush1.bf16.msra.mxu0 0
      %2043 = vmatprep.mubr.bf16.mxu0 0
      %2044 = vmatmul.mubr.bf16.gmra.mrb[0].mxu0 %v1992
      %v2045 = vpop.f32.mrb[0].mxu0
      %v2046 = vadd.f32 0.0, %v2045
      %v2047 = vpop.f32.mrb[0].mxu0
      %v2048 = vpop.f32.mrb[0].mxu0
      %v2049 = vadd.f32 0.0, %v2048
      %v2050 = vpop.f32.mrb[0].mxu0
      %2051 = vmatprep.mubr.bf16.mxu0 0
      %2052 = vmatmul.mubr.bf16.gmra.mrb[0].mxu0 %v1994
      %v2053 = vpop.f32.mrb[0].mxu0
      %v2054 = vadd.f32 0.0, %v2053
      %v2055 = vpop.f32.mrb[0].mxu0
      %v2056 = vpop.f32.mrb[0].mxu0
      %v2057 = vadd.f32 0.0, %v2056
      %v2058 = vpop.f32.mrb[0].mxu0
      %2059 = vmatprep.mubr.bf16.mxu0 0
      %2060 = vmatmul.mubr.bf16.gmra.mrb[0].mxu0 %v1996
      %v2061 = vpop.f32.mrb[0].mxu0
      %v2062 = vadd.f32 0.0, %v2061
      %v2063 = vpop.f32.mrb[0].mxu0
      %v2064 = vpop.f32.mrb[0].mxu0
      %v2065 = vadd.f32 0.0, %v2064
      %v2066 = vpop.f32.mrb[0].mxu0
      %2067 = vmatprep.mubr.bf16.mxu0 0
      %2068 = vmatmul.mubr.bf16.gmra.mrb[0].mxu0 %v1998
      %v2069 = vpop.f32.mrb[0].mxu0
      %v2070 = vadd.f32 0.0, %v2069
      %v2071 = vpop.f32.mrb[0].mxu0
      %v2072 = vpop.f32.mrb[0].mxu0
      %v2073 = vadd.f32 0.0, %v2072
      %v2074 = vpop.f32.mrb[0].mxu0
      %2075 = vmatprep.mubr.bf16.mxu0 0
      %2076 = vmatmul.mubr.bf16.gmra.mrb[0].mxu0 %v2000
      %v2077 = vpop.f32.mrb[0].mxu0
      %v2078 = vadd.f32 0.0, %v2077
      %v2079 = vpop.f32.mrb[0].mxu0
      %v2080 = vpop.f32.mrb[0].mxu0
      %v2081 = vadd.f32 0.0, %v2080
      %v2082 = vpop.f32.mrb[0].mxu0
      %2083 = vmatprep.mubr.bf16.mxu0 0
      %2084 = vmatmul.mubr.bf16.gmra.mrb[0].mxu0 %v2002
      %v2085 = vpop.f32.mrb[0].mxu0
      %v2086 = vadd.f32 0.0, %v2085
      %v2087 = vpop.f32.mrb[0].mxu0
      %v2088 = vpop.f32.mrb[0].mxu0
      %v2089 = vadd.f32 0.0, %v2088
      %v2090 = vpop.f32.mrb[0].mxu0
      %2091 = vmatprep.mubr.bf16.mxu0 0
      %2092 = vmatmul.mubr.bf16.gmra.mrb[0].mxu0 %v2004
      %v2093 = vpop.f32.mrb[0].mxu0
      %v2094 = vadd.f32 0.0, %v2093
      %v2095 = vpop.f32.mrb[0].mxu0
      %v2096 = vpop.f32.mrb[0].mxu0
      %v2097 = vadd.f32 0.0, %v2096
      %v2098 = vpop.f32.mrb[0].mxu0
      %2099 = vmatprep.mubr.bf16.mxu0 0
      %2100 = vmatmul.mubr.bf16.gmra.mrb[0].mxu0 %v2006
      %v2101 = vpop.f32.mrb[0].mxu0
      %v2102 = vadd.f32 0.0, %v2101
      %v2103 = vpop.f32.mrb[0].mxu0
      %v2104 = vpop.f32.mrb[0].mxu0
      %v2105 = vadd.f32 0.0, %v2104
      %v2106 = vpop.f32.mrb[0].mxu0
      %2107 = vdwg.mxu0
      %v2108 = vmul.f32 %v2046, %v941
      %v2109 = vmul.f32 %v2049, %v941
      %v2110 = vmul.f32 %v2054, %v941
      %v2111 = vmul.f32 %v2057, %v941
      %v2112 = vmul.f32 %v2062, %v941
      %v2113 = vmul.f32 %v2065, %v941
      %v2114 = vmul.f32 %v2070, %v941
      %v2115 = vmul.f32 %v2073, %v941
      %v2116 = vmul.f32 %v2078, %v941
      %v2117 = vmul.f32 %v2081, %v941
      %v2118 = vmul.f32 %v2086, %v941
      %v2119 = vmul.f32 %v2089, %v941
      %v2120 = vmul.f32 %v2094, %v941
      %v2121 = vmul.f32 %v2097, %v941
      %v2122 = vmul.f32 %v2102, %v941
      %v2123 = vmul.f32 %v2105, %v941
      %v2124 = vadd.f32 %v2108, %v961
      %v2125 = vadd.f32 %v2109, %v961
      %v2126 = vadd.f32 %v2110, %v961
      %v2127 = vadd.f32 %v2111, %v961
      %v2128 = vadd.f32 %v2112, %v961
      %v2129 = vadd.f32 %v2113, %v961
      %v2130 = vadd.f32 %v2114, %v961
      %v2131 = vadd.f32 %v2115, %v961
      %v2132 = vadd.f32 %v2116, %v961
      %v2133 = vadd.f32 %v2117, %v961
      %v2134 = vadd.f32 %v2118, %v961
      %v2135 = vadd.f32 %v2119, %v961
      %v2136 = vadd.f32 %v2120, %v961
      %v2137 = vadd.f32 %v2121, %v961
      %v2138 = vadd.f32 %v2122, %v961
      %v2139 = vadd.f32 %v2123, %v961
      %vm2140 = vcmp.ge.f32.partialorder %v2124, 0.0
      %vm2141 = vcmp.ge.f32.partialorder %v2125, 0.0
      %vm2142 = vcmp.ge.f32.partialorder %v2126, 0.0
      %vm2143 = vcmp.ge.f32.partialorder %v2127, 0.0
      %vm2144 = vcmp.ge.f32.partialorder %v2128, 0.0
      %vm2145 = vcmp.ge.f32.partialorder %v2129, 0.0
      %vm2146 = vcmp.ge.f32.partialorder %v2130, 0.0
      %vm2147 = vcmp.ge.f32.partialorder %v2131, 0.0
      %vm2148 = vcmp.ge.f32.partialorder %v2132, 0.0
      %vm2149 = vcmp.ge.f32.partialorder %v2133, 0.0
      %vm2150 = vcmp.ge.f32.partialorder %v2134, 0.0
      %vm2151 = vcmp.ge.f32.partialorder %v2135, 0.0
      %vm2152 = vcmp.ge.f32.partialorder %v2136, 0.0
      %vm2153 = vcmp.ge.f32.partialorder %v2137, 0.0
      %vm2154 = vcmp.ge.f32.partialorder %v2138, 0.0
      %vm2155 = vcmp.ge.f32.partialorder %v2139, 0.0
      %v2156 = vmul.f32 %v997, %v2124
      %v2157 = vmul.f32 %v997, %v2125
      %v2158 = vmul.f32 %v997, %v2126
      %v2159 = vmul.f32 %v997, %v2127
      %v2160 = vmul.f32 %v997, %v2128
      %v2161 = vmul.f32 %v997, %v2129
      %v2162 = vmul.f32 %v997, %v2130
      %v2163 = vmul.f32 %v997, %v2131
      %v2164 = vmul.f32 %v997, %v2132
      %v2165 = vmul.f32 %v997, %v2133
      %v2166 = vmul.f32 %v997, %v2134
      %v2167 = vmul.f32 %v997, %v2135
      %v2168 = vmul.f32 %v997, %v2136
      %v2169 = vmul.f32 %v997, %v2137
      %v2170 = vmul.f32 %v997, %v2138
      %v2171 = vmul.f32 %v997, %v2139
      %v2172 = vsel %vm2140, %v2124, %v2156
      %v2173 = vsel %vm2141, %v2125, %v2157
      %v2174 = vsel %vm2142, %v2126, %v2158
      %v2175 = vsel %vm2143, %v2127, %v2159
      %v2176 = vsel %vm2144, %v2128, %v2160
      %v2177 = vsel %vm2145, %v2129, %v2161
      %v2178 = vsel %vm2146, %v2130, %v2162
      %v2179 = vsel %vm2147, %v2131, %v2163
      %v2180 = vsel %vm2148, %v2132, %v2164
      %v2181 = vsel %vm2149, %v2133, %v2165
      %v2182 = vsel %vm2150, %v2134, %v2166
      %v2183 = vsel %vm2151, %v2135, %v2167
      %v2184 = vsel %vm2152, %v2136, %v2168
      %v2185 = vsel %vm2153, %v2137, %v2169
      %v2186 = vsel %vm2154, %v2138, %v2170
      %v2187 = vsel %vm2155, %v2139, %v2171
      %2188 = vst.msk [vmem:[#allocation2 + $0x100] sm:$0xff] %vm749, %v2172
      %2189 = vst.msk [vmem:[#allocation2 + $0x108] sm:$0xff] %vm749, %v2173
      %2190 = vst.msk [vmem:[#allocation2 + $0x110] sm:$0xff] %vm749, %v2174
      %2191 = vst.msk [vmem:[#allocation2 + $0x118] sm:$0xff] %vm749, %v2175
      %2192 = vst.msk [vmem:[#allocation2 + $0x120] sm:$0xff] %vm749, %v2176
      %2193 = vst.msk [vmem:[#allocation2 + $0x128] sm:$0xff] %vm749, %v2177
      %2194 = vst.msk [vmem:[#allocation2 + $0x130] sm:$0xff] %vm749, %v2178
      %2195 = vst.msk [vmem:[#allocation2 + $0x138] sm:$0xff] %vm749, %v2179
      %2196 = vst.msk [vmem:[#allocation2 + $0x140] sm:$0xff] %vm749, %v2180
      %2197 = vst.msk [vmem:[#allocation2 + $0x148] sm:$0xff] %vm749, %v2181
      %2198 = vst.msk [vmem:[#allocation2 + $0x150] sm:$0xff] %vm749, %v2182
      %2199 = vst.msk [vmem:[#allocation2 + $0x158] sm:$0xff] %vm749, %v2183
      %2200 = vst.msk [vmem:[#allocation2 + $0x160] sm:$0xff] %vm749, %v2184
      %2201 = vst.msk [vmem:[#allocation2 + $0x168] sm:$0xff] %vm749, %v2185
      %2202 = vst.msk [vmem:[#allocation2 + $0x170] sm:$0xff] %vm749, %v2186
      %2203 = vst.msk [vmem:[#allocation2 + $0x178] sm:$0xff] %vm749, %v2187
      %v2204 = vld [vmem:[%s4] sm:$0x1]
      %v2205 = vld [vmem:[%s4 + $0x1] sm:$0x1]
      %v2206 = vld [vmem:[%s4 + $0x2] sm:$0x1]
      %v2207 = vld [vmem:[#allocation2] ss:$2 sm:$0xff]
      %s2208 = scalar_lea.vmem [#allocation2], 16
      %v2209 = vld [vmem:[%s2208] ss:$2 sm:$0xff]
      %s2210 = scalar_lea.vmem [#allocation2], 32
      %v2211 = vld [vmem:[%s2210] ss:$2 sm:$0xff]
      %s2212 = scalar_lea.vmem [#allocation2], 48
      %v2213 = vld [vmem:[%s2212] ss:$2 sm:$0xff]
      %s2214 = scalar_lea.vmem [#allocation2], 64
      %v2215 = vld [vmem:[%s2214] ss:$2 sm:$0xff]
      %s2216 = scalar_lea.vmem [#allocation2], 80
      %v2217 = vld [vmem:[%s2216] ss:$2 sm:$0xff]
      %s2218 = scalar_lea.vmem [#allocation2], 96
      %v2219 = vld [vmem:[%s2218] ss:$2 sm:$0xff]
      %s2220 = scalar_lea.vmem [#allocation2], 112
      %v2221 = vld [vmem:[%s2220] ss:$2 sm:$0xff]
      %v2222 = vpack.c.bf16 %v2209, %v2207
      %v2223 = vpack.c.bf16 %v2213, %v2211
      %v2224 = vpack.c.bf16 %v2217, %v2215
      %v2225 = vpack.c.bf16 %v2221, %v2219
      %s2226 = scalar_lea.vmem [#allocation2], 1
      %v2227 = vld [vmem:[%s2226] ss:$2 sm:$0xff]
      %s2228 = scalar_lea.vmem [#allocation2], 17
      %v2229 = vld [vmem:[%s2228] ss:$2 sm:$0xff]
      %s2230 = scalar_lea.vmem [#allocation2], 33
      %v2231 = vld [vmem:[%s2230] ss:$2 sm:$0xff]
      %s2232 = scalar_lea.vmem [#allocation2], 49
      %v2233 = vld [vmem:[%s2232] ss:$2 sm:$0xff]
      %s2234 = scalar_lea.vmem [#allocation2], 65
      %v2235 = vld [vmem:[%s2234] ss:$2 sm:$0xff]
      %s2236 = scalar_lea.vmem [#allocation2], 81
      %v2237 = vld [vmem:[%s2236] ss:$2 sm:$0xff]
      %s2238 = scalar_lea.vmem [#allocation2], 97
      %v2239 = vld [vmem:[%s2238] ss:$2 sm:$0xff]
      %s2240 = scalar_lea.vmem [#allocation2], 113
      %v2241 = vld [vmem:[%s2240] ss:$2 sm:$0xff]
      %v2242 = vpack.c.bf16 %v2229, %v2227
      %v2243 = vpack.c.bf16 %v2233, %v2231
      %v2244 = vpack.c.bf16 %v2237, %v2235
      %v2245 = vpack.c.bf16 %v2241, %v2239
      %s2246 = scalar_lea.vmem [#allocation2], 2
      %v2247 = vld [vmem:[%s2246] ss:$2 sm:$0xff]
      %s2248 = scalar_lea.vmem [#allocation2], 18
      %v2249 = vld [vmem:[%s2248] ss:$2 sm:$0xff]
      %s2250 = scalar_lea.vmem [#allocation2], 34
      %v2251 = vld [vmem:[%s2250] ss:$2 sm:$0xff]
      %s2252 = scalar_lea.vmem [#allocation2], 50
      %v2253 = vld [vmem:[%s2252] ss:$2 sm:$0xff]
      %s2254 = scalar_lea.vmem [#allocation2], 66
      %v2255 = vld [vmem:[%s2254] ss:$2 sm:$0xff]
      %s2256 = scalar_lea.vmem [#allocation2], 82
      %v2257 = vld [vmem:[%s2256] ss:$2 sm:$0xff]
      %s2258 = scalar_lea.vmem [#allocation2], 98
      %v2259 = vld [vmem:[%s2258] ss:$2 sm:$0xff]
      %s2260 = scalar_lea.vmem [#allocation2], 114
      %v2261 = vld [vmem:[%s2260] ss:$2 sm:$0xff]
      %v2262 = vpack.c.bf16 %v2249, %v2247
      %v2263 = vpack.c.bf16 %v2253, %v2251
      %v2264 = vpack.c.bf16 %v2257, %v2255
      %v2265 = vpack.c.bf16 %v2261, %v2259
      %s2266 = scalar_lea.vmem [#allocation2], 3
      %v2267 = vld [vmem:[%s2266] ss:$2 sm:$0xff]
      %s2268 = scalar_lea.vmem [#allocation2], 19
      %v2269 = vld [vmem:[%s2268] ss:$2 sm:$0xff]
      %s2270 = scalar_lea.vmem [#allocation2], 35
      %v2271 = vld [vmem:[%s2270] ss:$2 sm:$0xff]
      %s2272 = scalar_lea.vmem [#allocation2], 51
      %v2273 = vld [vmem:[%s2272] ss:$2 sm:$0xff]
      %s2274 = scalar_lea.vmem [#allocation2], 67
      %v2275 = vld [vmem:[%s2274] ss:$2 sm:$0xff]
      %s2276 = scalar_lea.vmem [#allocation2], 83
      %v2277 = vld [vmem:[%s2276] ss:$2 sm:$0xff]
      %s2278 = scalar_lea.vmem [#allocation2], 99
      %v2279 = vld [vmem:[%s2278] ss:$2 sm:$0xff]
      %s2280 = scalar_lea.vmem [#allocation2], 115
      %v2281 = vld [vmem:[%s2280] ss:$2 sm:$0xff]
      %v2282 = vpack.c.bf16 %v2269, %v2267
      %v2283 = vpack.c.bf16 %v2273, %v2271
      %v2284 = vpack.c.bf16 %v2277, %v2275
      %v2285 = vpack.c.bf16 %v2281, %v2279
      %s2286 = scalar_lea.vmem [#allocation2], 4
      %v2287 = vld [vmem:[%s2286] ss:$2 sm:$0xff]
      %s2288 = scalar_lea.vmem [#allocation2], 20
      %v2289 = vld [vmem:[%s2288] ss:$2 sm:$0xff]
      %s2290 = scalar_lea.vmem [#allocation2], 36
      %v2291 = vld [vmem:[%s2290] ss:$2 sm:$0xff]
      %s2292 = scalar_lea.vmem [#allocation2], 52
      %v2293 = vld [vmem:[%s2292] ss:$2 sm:$0xff]
      %s2294 = scalar_lea.vmem [#allocation2], 68
      %v2295 = vld [vmem:[%s2294] ss:$2 sm:$0xff]
      %s2296 = scalar_lea.vmem [#allocation2], 84
      %v2297 = vld [vmem:[%s2296] ss:$2 sm:$0xff]
      %s2298 = scalar_lea.vmem [#allocation2], 100
      %v2299 = vld [vmem:[%s2298] ss:$2 sm:$0xff]
      %s2300 = scalar_lea.vmem [#allocation2], 116
      %v2301 = vld [vmem:[%s2300] ss:$2 sm:$0xff]
      %v2302 = vpack.c.bf16 %v2289, %v2287
      %v2303 = vpack.c.bf16 %v2293, %v2291
      %v2304 = vpack.c.bf16 %v2297, %v2295
      %v2305 = vpack.c.bf16 %v2301, %v2299
      %s2306 = scalar_lea.vmem [#allocation2], 5
      %v2307 = vld [vmem:[%s2306] ss:$2 sm:$0xff]
      %s2308 = scalar_lea.vmem [#allocation2], 21
      %v2309 = vld [vmem:[%s2308] ss:$2 sm:$0xff]
      %s2310 = scalar_lea.vmem [#allocation2], 37
      %v2311 = vld [vmem:[%s2310] ss:$2 sm:$0xff]
      %s2312 = scalar_lea.vmem [#allocation2], 53
      %v2313 = vld [vmem:[%s2312] ss:$2 sm:$0xff]
      %s2314 = scalar_lea.vmem [#allocation2], 69
      %v2315 = vld [vmem:[%s2314] ss:$2 sm:$0xff]
      %s2316 = scalar_lea.vmem [#allocation2], 85
      %v2317 = vld [vmem:[%s2316] ss:$2 sm:$0xff]
      %s2318 = scalar_lea.vmem [#allocation2], 101
      %v2319 = vld [vmem:[%s2318] ss:$2 sm:$0xff]
      %s2320 = scalar_lea.vmem [#allocation2], 117
      %v2321 = vld [vmem:[%s2320] ss:$2 sm:$0xff]
      %v2322 = vpack.c.bf16 %v2309, %v2307
      %v2323 = vpack.c.bf16 %v2313, %v2311
      %v2324 = vpack.c.bf16 %v2317, %v2315
      %v2325 = vpack.c.bf16 %v2321, %v2319
      %s2326 = scalar_lea.vmem [#allocation2], 6
      %v2327 = vld [vmem:[%s2326] ss:$2 sm:$0xff]
      %s2328 = scalar_lea.vmem [#allocation2], 22
      %v2329 = vld [vmem:[%s2328] ss:$2 sm:$0xff]
      %s2330 = scalar_lea.vmem [#allocation2], 38
      %v2331 = vld [vmem:[%s2330] ss:$2 sm:$0xff]
      %s2332 = scalar_lea.vmem [#allocation2], 54
      %v2333 = vld [vmem:[%s2332] ss:$2 sm:$0xff]
      %s2334 = scalar_lea.vmem [#allocation2], 70
      %v2335 = vld [vmem:[%s2334] ss:$2 sm:$0xff]
      %s2336 = scalar_lea.vmem [#allocation2], 86
      %v2337 = vld [vmem:[%s2336] ss:$2 sm:$0xff]
      %s2338 = scalar_lea.vmem [#allocation2], 102
      %v2339 = vld [vmem:[%s2338] ss:$2 sm:$0xff]
      %s2340 = scalar_lea.vmem [#allocation2], 118
      %v2341 = vld [vmem:[%s2340] ss:$2 sm:$0xff]
      %v2342 = vpack.c.bf16 %v2329, %v2327
      %v2343 = vpack.c.bf16 %v2333, %v2331
      %v2344 = vpack.c.bf16 %v2337, %v2335
      %v2345 = vpack.c.bf16 %v2341, %v2339
      %s2346 = scalar_lea.vmem [#allocation2], 7
      %v2347 = vld [vmem:[%s2346] ss:$2 sm:$0xff]
      %s2348 = scalar_lea.vmem [#allocation2], 23
      %v2349 = vld [vmem:[%s2348] ss:$2 sm:$0xff]
      %s2350 = scalar_lea.vmem [#allocation2], 39
      %v2351 = vld [vmem:[%s2350] ss:$2 sm:$0xff]
      %s2352 = scalar_lea.vmem [#allocation2], 55
      %v2353 = vld [vmem:[%s2352] ss:$2 sm:$0xff]
      %s2354 = scalar_lea.vmem [#allocation2], 71
      %v2355 = vld [vmem:[%s2354] ss:$2 sm:$0xff]
      %s2356 = scalar_lea.vmem [#allocation2], 87
      %v2357 = vld [vmem:[%s2356] ss:$2 sm:$0xff]
      %s2358 = scalar_lea.vmem [#allocation2], 103
      %v2359 = vld [vmem:[%s2358] ss:$2 sm:$0xff]
      %s2360 = scalar_lea.vmem [#allocation2], 119
      %v2361 = vld [vmem:[%s2360] ss:$2 sm:$0xff]
      %v2362 = vpack.c.bf16 %v2349, %v2347
      %v2363 = vpack.c.bf16 %v2353, %v2351
      %v2364 = vpack.c.bf16 %v2357, %v2355
      %v2365 = vpack.c.bf16 %v2361, %v2359
      %s2366 = scalar_lea.vmem [#allocation2], 8
      %v2367 = vld [vmem:[%s2366] ss:$2 sm:$0xff]
      %s2368 = scalar_lea.vmem [#allocation2], 24
      %v2369 = vld [vmem:[%s2368] ss:$2 sm:$0xff]
      %s2370 = scalar_lea.vmem [#allocation2], 40
      %v2371 = vld [vmem:[%s2370] ss:$2 sm:$0xff]
      %s2372 = scalar_lea.vmem [#allocation2], 56
      %v2373 = vld [vmem:[%s2372] ss:$2 sm:$0xff]
      %s2374 = scalar_lea.vmem [#allocation2], 72
      %v2375 = vld [vmem:[%s2374] ss:$2 sm:$0xff]
      %s2376 = scalar_lea.vmem [#allocation2], 88
      %v2377 = vld [vmem:[%s2376] ss:$2 sm:$0xff]
      %s2378 = scalar_lea.vmem [#allocation2], 104
      %v2379 = vld [vmem:[%s2378] ss:$2 sm:$0xff]
      %s2380 = scalar_lea.vmem [#allocation2], 120
      %v2381 = vld [vmem:[%s2380] ss:$2 sm:$0xff]
      %v2382 = vpack.c.bf16 %v2369, %v2367
      %v2383 = vpack.c.bf16 %v2373, %v2371
      %v2384 = vpack.c.bf16 %v2377, %v2375
      %v2385 = vpack.c.bf16 %v2381, %v2379
      %s2386 = scalar_lea.vmem [#allocation2], 9
      %v2387 = vld [vmem:[%s2386] ss:$2 sm:$0xff]
      %s2388 = scalar_lea.vmem [#allocation2], 25
      %v2389 = vld [vmem:[%s2388] ss:$2 sm:$0xff]
      %s2390 = scalar_lea.vmem [#allocation2], 41
      %v2391 = vld [vmem:[%s2390] ss:$2 sm:$0xff]
      %s2392 = scalar_lea.vmem [#allocation2], 57
      %v2393 = vld [vmem:[%s2392] ss:$2 sm:$0xff]
      %s2394 = scalar_lea.vmem [#allocation2], 73
      %v2395 = vld [vmem:[%s2394] ss:$2 sm:$0xff]
      %s2396 = scalar_lea.vmem [#allocation2], 89
      %v2397 = vld [vmem:[%s2396] ss:$2 sm:$0xff]
      %s2398 = scalar_lea.vmem [#allocation2], 105
      %v2399 = vld [vmem:[%s2398] ss:$2 sm:$0xff]
      %s2400 = scalar_lea.vmem [#allocation2], 121
      %v2401 = vld [vmem:[%s2400] ss:$2 sm:$0xff]
      %v2402 = vpack.c.bf16 %v2389, %v2387
      %v2403 = vpack.c.bf16 %v2393, %v2391
      %v2404 = vpack.c.bf16 %v2397, %v2395
      %v2405 = vpack.c.bf16 %v2401, %v2399
      %2410 = vrot.lane.b32.xlu0 %v2242, 16
      %v2411 = vpop.permute.xlu0 %2410
      %2412 = vrot.lane.b32.xlu0 %v2243, 16
      %v2413 = vpop.permute.xlu0 %2412
      %2414 = vrot.lane.b32.xlu0 %v2244, 16
      %v2415 = vpop.permute.xlu0 %2414
      %2416 = vrot.lane.b32.xlu0 %v2245, 16
      %v2417 = vpop.permute.xlu0 %2416
      %2422 = vrot.lane.b32.xlu0 %v2262, 32
      %v2423 = vpop.permute.xlu0 %2422
      %2424 = vrot.lane.b32.xlu0 %v2263, 32
      %v2425 = vpop.permute.xlu0 %2424
      %2426 = vrot.lane.b32.xlu0 %v2264, 32
      %v2427 = vpop.permute.xlu0 %2426
      %2428 = vrot.lane.b32.xlu0 %v2265, 32
      %v2429 = vpop.permute.xlu0 %2428
      %2434 = vrot.lane.b32.xlu0 %v2282, 48
      %v2435 = vpop.permute.xlu0 %2434
      %2436 = vrot.lane.b32.xlu0 %v2283, 48
      %v2437 = vpop.permute.xlu0 %2436
      %2438 = vrot.lane.b32.xlu0 %v2284, 48
      %v2439 = vpop.permute.xlu0 %2438
      %2440 = vrot.lane.b32.xlu0 %v2285, 48
      %v2441 = vpop.permute.xlu0 %2440
      %2446 = vrot.lane.b32.xlu0 %v2302, 64
      %v2447 = vpop.permute.xlu0 %2446
      %2448 = vrot.lane.b32.xlu0 %v2303, 64
      %v2449 = vpop.permute.xlu0 %2448
      %2450 = vrot.lane.b32.xlu0 %v2304, 64
      %v2451 = vpop.permute.xlu0 %2450
      %2452 = vrot.lane.b32.xlu0 %v2305, 64
      %v2453 = vpop.permute.xlu0 %2452
      %2458 = vrot.lane.b32.xlu0 %v2322, 80
      %v2459 = vpop.permute.xlu0 %2458
      %2460 = vrot.lane.b32.xlu0 %v2323, 80
      %v2461 = vpop.permute.xlu0 %2460
      %2462 = vrot.lane.b32.xlu0 %v2324, 80
      %v2463 = vpop.permute.xlu0 %2462
      %2464 = vrot.lane.b32.xlu0 %v2325, 80
      %v2465 = vpop.permute.xlu0 %2464
      %2470 = vrot.lane.b32.xlu0 %v2342, 96
      %v2471 = vpop.permute.xlu0 %2470
      %2472 = vrot.lane.b32.xlu0 %v2343, 96
      %v2473 = vpop.permute.xlu0 %2472
      %2474 = vrot.lane.b32.xlu0 %v2344, 96
      %v2475 = vpop.permute.xlu0 %2474
      %2476 = vrot.lane.b32.xlu0 %v2345, 96
      %v2477 = vpop.permute.xlu0 %2476
      %2482 = vrot.lane.b32.xlu0 %v2362, 112
      %v2483 = vpop.permute.xlu0 %2482
      %2484 = vrot.lane.b32.xlu0 %v2363, 112
      %v2485 = vpop.permute.xlu0 %2484
      %2486 = vrot.lane.b32.xlu0 %v2364, 112
      %v2487 = vpop.permute.xlu0 %2486
      %2488 = vrot.lane.b32.xlu0 %v2365, 112
      %v2489 = vpop.permute.xlu0 %2488
      %2494 = vrot.lane.b32.xlu0 %v2402, 16
      %v2495 = vpop.permute.xlu0 %2494
      %2496 = vrot.lane.b32.xlu0 %v2403, 16
      %v2497 = vpop.permute.xlu0 %2496
      %2498 = vrot.lane.b32.xlu0 %v2404, 16
      %v2499 = vpop.permute.xlu0 %2498
      %2500 = vrot.lane.b32.xlu0 %v2405, 16
      %v2501 = vpop.permute.xlu0 %2500
      %v2504 = vsel %vm749, %v2222, %v2411
      %v2507 = vsel %vm749, %v2223, %v2413
      %v2510 = vsel %vm749, %v2224, %v2415
      %v2513 = vsel %vm749, %v2225, %v2417
      %v2515 = vsel %vm783, %v2504, %v2423
      %v2517 = vsel %vm783, %v2507, %v2425
      %v2519 = vsel %vm783, %v2510, %v2427
      %v2521 = vsel %vm783, %v2513, %v2429
      %vm2522 = vcmask 392192
      %v2524 = vsel %vm2522, %v2515, %v2435
      %v2526 = vsel %vm2522, %v2517, %v2437
      %v2528 = vsel %vm2522, %v2519, %v2439
      %v2530 = vsel %vm2522, %v2521, %v2441
      %vm2531 = vcmask 523264
      %v2533 = vsel %vm2531, %v2524, %v2447
      %v2535 = vsel %vm2531, %v2526, %v2449
      %v2537 = vsel %vm2531, %v2528, %v2451
      %v2539 = vsel %vm2531, %v2530, %v2453
      %vm2540 = vcmask 654336
      %v2542 = vsel %vm2540, %v2533, %v2459
      %v2544 = vsel %vm2540, %v2535, %v2461
      %v2546 = vsel %vm2540, %v2537, %v2463
      %v2548 = vsel %vm2540, %v2539, %v2465
      %vm2549 = vcmask 785408
      %v2551 = vsel %vm2549, %v2542, %v2471
      %v2553 = vsel %vm2549, %v2544, %v2473
      %v2555 = vsel %vm2549, %v2546, %v2475
      %v2557 = vsel %vm2549, %v2548, %v2477
      %vm2558 = vcmask 916480
      %v2560 = vsel %vm2558, %v2551, %v2483
      %v2563 = vsel %vm2558, %v2553, %v2485
      %v2566 = vsel %vm2558, %v2555, %v2487
      %v2569 = vsel %vm2558, %v2557, %v2489
      %v2573 = vsel %vm749, %v2382, %v2495
      %v2576 = vsel %vm749, %v2383, %v2497
      %v2579 = vsel %vm749, %v2384, %v2499
      %v2582 = vsel %vm749, %v2385, %v2501
      %v2583 = vld [vmem:[%s3] sm:$0xf]
      %v2584 = vld [vmem:[%s3 + $0x4] sm:$0xf]
      %v2585 = vld [vmem:[%s3 + $0x8] sm:$0xf]
      %v2586 = vld [vmem:[%s3 + $0xc] sm:$0xf]
      %v2587 = vld [vmem:[%s3 + $0x10] sm:$0xf]
      %v2588 = vld [vmem:[%s3 + $0x14] sm:$0xf]
      %v2589 = vld [vmem:[%s3 + $0x18] sm:$0xf]
      %v2590 = vld [vmem:[%s3 + $0x1c] sm:$0xf]
      %v2591 = vld [vmem:[%s3 + $0x20] sm:$0xf]
      %v2592 = vld [vmem:[%s3 + $0x24] sm:$0xf]
      %v2593 = vld [vmem:[%s3 + $0x28] sm:$0xf]
      %v2594 = vld [vmem:[%s3 + $0x2c] sm:$0xf]
      %v2595 = vld [vmem:[%s3 + $0x30] sm:$0xf]
      %v2596 = vld [vmem:[%s3 + $0x34] sm:$0xf]
      %v2597 = vld [vmem:[%s3 + $0x38] sm:$0xf]
      %v2598 = vld [vmem:[%s3 + $0x3c] sm:$0xf]
      %v2599 = vld [vmem:[%s3 + $0x40] sm:$0xf]
      %v2600 = vld [vmem:[%s3 + $0x44] sm:$0xf]
      %v2601 = vld [vmem:[%s3 + $0x48] sm:$0xf]
      %v2602 = vld [vmem:[%s3 + $0x4c] sm:$0xf]
      %v2623 = vunpack.c.l.b16 %v2583
      %v2624 = vunpack.c.l.b16 %v2584
      %v2625 = vunpack.c.l.b16 %v2585
      %v2626 = vunpack.c.l.b16 %v2586
      %v2627 = vunpack.c.l.b16 %v2587
      %v2628 = vunpack.c.l.b16 %v2588
      %v2629 = vunpack.c.l.b16 %v2589
      %v2630 = vunpack.c.l.b16 %v2590
      %v2631 = vunpack.c.l.b16 %v2591
      %v2632 = vunpack.c.l.b16 %v2592
      %v2633 = vunpack.c.l.b16 %v2593
      %v2634 = vunpack.c.l.b16 %v2594
      %v2635 = vunpack.c.l.b16 %v2595
      %v2636 = vunpack.c.l.b16 %v2596
      %v2637 = vunpack.c.l.b16 %v2597
      %v2638 = vunpack.c.l.b16 %v2598
      %v2639 = vunpack.c.l.b16 %v2599
      %v2640 = vunpack.c.l.b16 %v2600
      %v2641 = vunpack.c.l.b16 %v2601
      %v2642 = vunpack.c.l.b16 %v2602
      %v2643 = vpack.c.b16 %v2624, %v2623
      %v2644 = vpack.c.b16 %v2626, %v2625
      %v2645 = vpack.c.b16 %v2628, %v2627
      %v2646 = vpack.c.b16 %v2630, %v2629
      %v2647 = vpack.c.b16 %v2632, %v2631
      %v2648 = vpack.c.b16 %v2634, %v2633
      %v2649 = vpack.c.b16 %v2636, %v2635
      %v2650 = vpack.c.b16 %v2638, %v2637
      %v2651 = vpack.c.b16 %v2640, %v2639
      %v2652 = vpack.c.b16 %v2642, %v2641
      %v2663 = vsel %vm783, %v2573, 0
      %v2665 = vsel %vm783, %v2576, 0
      %v2667 = vsel %vm783, %v2579, 0
      %v2669 = vsel %vm783, %v2582, 0
      %2671 = vmatprep.subr.bf16.mxu0 0
      %2672 = vmatpush1.bf16.msra.mxu0 %v2643
      %2673 = vmatprep.subr.bf16.mxu0 0
      %2674 = vmatpush1.bf16.msra.mxu0 %v2644
      %2675 = vmatprep.subr.bf16.mxu0 0
      %2676 = vmatpush1.bf16.msra.mxu0 %v2645
      %2677 = vmatprep.subr.bf16.mxu0 0
      %2678 = vmatpush1.bf16.msra.mxu0 %v2646
      %2679 = vmatprep.subr.bf16.mxu0 0
      %2680 = vmatpush1.bf16.msra.mxu0 %v2647
      %2681 = vmatprep.subr.bf16.mxu0 0
      %2682 = vmatpush1.bf16.msra.mxu0 %v2648
      %2683 = vmatprep.subr.bf16.mxu0 0
      %2684 = vmatpush1.bf16.msra.mxu0 %v2649
      %2685 = vmatprep.subr.bf16.mxu0 0
      %2686 = vmatpush1.bf16.msra.mxu0 %v2650
      %2687 = vmatprep.subr.bf16.mxu0 0
      %2688 = vmatpush1.bf16.msra.mxu0 %v2651
      %2689 = vmatprep.subr.bf16.mxu0 0
      %2690 = vmatpush1.bf16.msra.mxu0 %v2652
      %2691 = vmatprep.subr.bf16.mxu0 0
      %2692 = vmatpush1.bf16.msra.mxu0 0
      %2693 = vmatprep.subr.bf16.mxu0 0
      %2694 = vmatpush1.bf16.msra.mxu0 0
      %2695 = vmatprep.subr.bf16.mxu0 0
      %2696 = vmatpush1.bf16.msra.mxu0 0
      %2697 = vmatprep.subr.bf16.mxu0 0
      %2698 = vmatpush1.bf16.msra.mxu0 0
      %2699 = vmatprep.subr.bf16.mxu0 0
      %2700 = vmatpush1.bf16.msra.mxu0 0
      %2701 = vmatprep.subr.bf16.mxu0 0
      %2702 = vmatpush1.bf16.msra.mxu0 0
      %2703 = vmatprep.mubr.bf16.mxu0 %v2663
      %2704 = vmatmul.mubr.bf16.gmra.mrb[0].mxu0 %v2560
      %v2705 = vpop.f32.mrb[0].mxu0
      %v2706 = vadd.f32 0.0, %v2705
      %v2707 = vpop.f32.mrb[0].mxu0
      %v2708 = vpop.f32.mrb[0].mxu0
      %v2709 = vadd.f32 0.0, %v2708
      %v2710 = vpop.f32.mrb[0].mxu0
      %2711 = vmatprep.mubr.bf16.mxu0 %v2665
      %2712 = vmatmul.mubr.bf16.gmra.mrb[0].mxu0 %v2563
      %v2713 = vpop.f32.mrb[0].mxu0
      %v2714 = vadd.f32 0.0, %v2713
      %v2715 = vpop.f32.mrb[0].mxu0
      %v2716 = vpop.f32.mrb[0].mxu0
      %v2717 = vadd.f32 0.0, %v2716
      %v2718 = vpop.f32.mrb[0].mxu0
      %2719 = vmatprep.mubr.bf16.mxu0 %v2667
      %2720 = vmatmul.mubr.bf16.gmra.mrb[0].mxu0 %v2566
      %v2721 = vpop.f32.mrb[0].mxu0
      %v2722 = vadd.f32 0.0, %v2721
      %v2723 = vpop.f32.mrb[0].mxu0
      %v2724 = vpop.f32.mrb[0].mxu0
      %v2725 = vadd.f32 0.0, %v2724
      %v2726 = vpop.f32.mrb[0].mxu0
      %2727 = vmatprep.mubr.bf16.mxu0 %v2669
      %2728 = vmatmul.mubr.bf16.gmra.mrb[0].mxu0 %v2569
      %v2729 = vpop.f32.mrb[0].mxu0
      %v2730 = vadd.f32 0.0, %v2729
      %v2731 = vpop.f32.mrb[0].mxu0
      %v2732 = vpop.f32.mrb[0].mxu0
      %v2733 = vadd.f32 0.0, %v2732
      %v2734 = vpop.f32.mrb[0].mxu0
      %2735 = vdwg.mxu0
      %v2736 = vlaneseq
      %v2737 = vshrl.u32 %v2736, 7
      %v2738 = vsub.s32 0, %v2737
      %v2739 = vrot.slane %v2204, %v2738
      %v2740 = vmul.f32 %v2706, %v2739
      %v2741 = vmul.f32 %v2709, %v2739
      %v2742 = vmul.f32 %v2714, %v2739
      %v2743 = vmul.f32 %v2717, %v2739
      %v2744 = vmul.f32 %v2722, %v2739
      %v2745 = vmul.f32 %v2725, %v2739
      %v2746 = vmul.f32 %v2730, %v2739
      %v2747 = vmul.f32 %v2733, %v2739
      %v2748 = vlaneseq
      %v2749 = vshrl.u32 %v2748, 7
      %v2750 = vsub.s32 0, %v2749
      %v2751 = vrot.slane %v2205, %v2750
      %v2752 = vadd.f32 %v2740, %v2751
      %v2753 = vadd.f32 %v2741, %v2751
      %v2754 = vadd.f32 %v2742, %v2751
      %v2755 = vadd.f32 %v2743, %v2751
      %v2756 = vadd.f32 %v2744, %v2751
      %v2757 = vadd.f32 %v2745, %v2751
      %v2758 = vadd.f32 %v2746, %v2751
      %v2759 = vadd.f32 %v2747, %v2751
      %vm2760 = vcmp.ge.f32.partialorder %v2752, 0.0
      %vm2761 = vcmp.ge.f32.partialorder %v2753, 0.0
      %vm2762 = vcmp.ge.f32.partialorder %v2754, 0.0
      %vm2763 = vcmp.ge.f32.partialorder %v2755, 0.0
      %vm2764 = vcmp.ge.f32.partialorder %v2756, 0.0
      %vm2765 = vcmp.ge.f32.partialorder %v2757, 0.0
      %vm2766 = vcmp.ge.f32.partialorder %v2758, 0.0
      %vm2767 = vcmp.ge.f32.partialorder %v2759, 0.0
      %v2768 = vlaneseq
      %v2769 = vshrl.u32 %v2768, 7
      %v2770 = vsub.s32 0, %v2769
      %v2771 = vrot.slane %v2206, %v2770
      %v2772 = vmul.f32 %v2771, %v2752
      %v2773 = vmul.f32 %v2771, %v2753
      %v2774 = vmul.f32 %v2771, %v2754
      %v2775 = vmul.f32 %v2771, %v2755
      %v2776 = vmul.f32 %v2771, %v2756
      %v2777 = vmul.f32 %v2771, %v2757
      %v2778 = vmul.f32 %v2771, %v2758
      %v2779 = vmul.f32 %v2771, %v2759
      %v2780 = vsel %vm2760, %v2752, %v2772
      %v2781 = vsel %vm2761, %v2753, %v2773
      %v2782 = vsel %vm2762, %v2754, %v2774
      %v2783 = vsel %vm2763, %v2755, %v2775
      %v2784 = vsel %vm2764, %v2756, %v2776
      %v2785 = vsel %vm2765, %v2757, %v2777
      %v2786 = vsel %vm2766, %v2758, %v2778
      %v2787 = vsel %vm2767, %v2759, %v2779
      %2788 = vst.msk [vmem:[#allocation3] sm:$0xff] %vm783, %v2780
      %2789 = vst.msk [vmem:[#allocation3 + $0x8] sm:$0xff] %vm783, %v2781
      %2790 = vst.msk [vmem:[#allocation3 + $0x10] sm:$0xff] %vm783, %v2782
      %2791 = vst.msk [vmem:[#allocation3 + $0x18] sm:$0xff] %vm783, %v2783
      %2792 = vst.msk [vmem:[#allocation3 + $0x20] sm:$0xff] %vm783, %v2784
      %2793 = vst.msk [vmem:[#allocation3 + $0x28] sm:$0xff] %vm783, %v2785
      %2794 = vst.msk [vmem:[#allocation3 + $0x30] sm:$0xff] %vm783, %v2786
      %2795 = vst.msk [vmem:[#allocation3 + $0x38] sm:$0xff] %vm783, %v2787
      %s2796 = scalar_lea.vmem [#allocation2], 128
      %v2797 = vld [vmem:[%s2796] ss:$2 sm:$0xff]
      %s2798 = scalar_lea.vmem [#allocation2], 144
      %v2799 = vld [vmem:[%s2798] ss:$2 sm:$0xff]
      %s2800 = scalar_lea.vmem [#allocation2], 160
      %v2801 = vld [vmem:[%s2800] ss:$2 sm:$0xff]
      %s2802 = scalar_lea.vmem [#allocation2], 176
      %v2803 = vld [vmem:[%s2802] ss:$2 sm:$0xff]
      %s2804 = scalar_lea.vmem [#allocation2], 192
      %v2805 = vld [vmem:[%s2804] ss:$2 sm:$0xff]
      %s2806 = scalar_lea.vmem [#allocation2], 208
      %v2807 = vld [vmem:[%s2806] ss:$2 sm:$0xff]
      %s2808 = scalar_lea.vmem [#allocation2], 224
      %v2809 = vld [vmem:[%s2808] ss:$2 sm:$0xff]
      %s2810 = scalar_lea.vmem [#allocation2], 240
      %v2811 = vld [vmem:[%s2810] ss:$2 sm:$0xff]
      %v2812 = vpack.c.bf16 %v2799, %v2797
      %v2813 = vpack.c.bf16 %v2803, %v2801
      %v2814 = vpack.c.bf16 %v2807, %v2805
      %v2815 = vpack.c.bf16 %v2811, %v2809
      %s2816 = scalar_lea.vmem [#allocation2], 129
      %v2817 = vld [vmem:[%s2816] ss:$2 sm:$0xff]
      %s2818 = scalar_lea.vmem [#allocation2], 145
      %v2819 = vld [vmem:[%s2818] ss:$2 sm:$0xff]
      %s2820 = scalar_lea.vmem [#allocation2], 161
      %v2821 = vld [vmem:[%s2820] ss:$2 sm:$0xff]
      %s2822 = scalar_lea.vmem [#allocation2], 177
      %v2823 = vld [vmem:[%s2822] ss:$2 sm:$0xff]
      %s2824 = scalar_lea.vmem [#allocation2], 193
      %v2825 = vld [vmem:[%s2824] ss:$2 sm:$0xff]
      %s2826 = scalar_lea.vmem [#allocation2], 209
      %v2827 = vld [vmem:[%s2826] ss:$2 sm:$0xff]
      %s2828 = scalar_lea.vmem [#allocation2], 225
      %v2829 = vld [vmem:[%s2828] ss:$2 sm:$0xff]
      %s2830 = scalar_lea.vmem [#allocation2], 241
      %v2831 = vld [vmem:[%s2830] ss:$2 sm:$0xff]
      %v2832 = vpack.c.bf16 %v2819, %v2817
      %v2833 = vpack.c.bf16 %v2823, %v2821
      %v2834 = vpack.c.bf16 %v2827, %v2825
      %v2835 = vpack.c.bf16 %v2831, %v2829
      %s2836 = scalar_lea.vmem [#allocation2], 130
      %v2837 = vld [vmem:[%s2836] ss:$2 sm:$0xff]
      %s2838 = scalar_lea.vmem [#allocation2], 146
      %v2839 = vld [vmem:[%s2838] ss:$2 sm:$0xff]
      %s2840 = scalar_lea.vmem [#allocation2], 162
      %v2841 = vld [vmem:[%s2840] ss:$2 sm:$0xff]
      %s2842 = scalar_lea.vmem [#allocation2], 178
      %v2843 = vld [vmem:[%s2842] ss:$2 sm:$0xff]
      %s2844 = scalar_lea.vmem [#allocation2], 194
      %v2845 = vld [vmem:[%s2844] ss:$2 sm:$0xff]
      %s2846 = scalar_lea.vmem [#allocation2], 210
      %v2847 = vld [vmem:[%s2846] ss:$2 sm:$0xff]
      %s2848 = scalar_lea.vmem [#allocation2], 226
      %v2849 = vld [vmem:[%s2848] ss:$2 sm:$0xff]
      %s2850 = scalar_lea.vmem [#allocation2], 242
      %v2851 = vld [vmem:[%s2850] ss:$2 sm:$0xff]
      %v2852 = vpack.c.bf16 %v2839, %v2837
      %v2853 = vpack.c.bf16 %v2843, %v2841
      %v2854 = vpack.c.bf16 %v2847, %v2845
      %v2855 = vpack.c.bf16 %v2851, %v2849
      %s2856 = scalar_lea.vmem [#allocation2], 131
      %v2857 = vld [vmem:[%s2856] ss:$2 sm:$0xff]
      %s2858 = scalar_lea.vmem [#allocation2], 147
      %v2859 = vld [vmem:[%s2858] ss:$2 sm:$0xff]
      %s2860 = scalar_lea.vmem [#allocation2], 163
      %v2861 = vld [vmem:[%s2860] ss:$2 sm:$0xff]
      %s2862 = scalar_lea.vmem [#allocation2], 179
      %v2863 = vld [vmem:[%s2862] ss:$2 sm:$0xff]
      %s2864 = scalar_lea.vmem [#allocation2], 195
      %v2865 = vld [vmem:[%s2864] ss:$2 sm:$0xff]
      %s2866 = scalar_lea.vmem [#allocation2], 211
      %v2867 = vld [vmem:[%s2866] ss:$2 sm:$0xff]
      %s2868 = scalar_lea.vmem [#allocation2], 227
      %v2869 = vld [vmem:[%s2868] ss:$2 sm:$0xff]
      %s2870 = scalar_lea.vmem [#allocation2], 243
      %v2871 = vld [vmem:[%s2870] ss:$2 sm:$0xff]
      %v2872 = vpack.c.bf16 %v2859, %v2857
      %v2873 = vpack.c.bf16 %v2863, %v2861
      %v2874 = vpack.c.bf16 %v2867, %v2865
      %v2875 = vpack.c.bf16 %v2871, %v2869
      %s2876 = scalar_lea.vmem [#allocation2], 132
      %v2877 = vld [vmem:[%s2876] ss:$2 sm:$0xff]
      %s2878 = scalar_lea.vmem [#allocation2], 148
      %v2879 = vld [vmem:[%s2878] ss:$2 sm:$0xff]
      %s2880 = scalar_lea.vmem [#allocation2], 164
      %v2881 = vld [vmem:[%s2880] ss:$2 sm:$0xff]
      %s2882 = scalar_lea.vmem [#allocation2], 180
      %v2883 = vld [vmem:[%s2882] ss:$2 sm:$0xff]
      %s2884 = scalar_lea.vmem [#allocation2], 196
      %v2885 = vld [vmem:[%s2884] ss:$2 sm:$0xff]
      %s2886 = scalar_lea.vmem [#allocation2], 212
      %v2887 = vld [vmem:[%s2886] ss:$2 sm:$0xff]
      %s2888 = scalar_lea.vmem [#allocation2], 228
      %v2889 = vld [vmem:[%s2888] ss:$2 sm:$0xff]
      %s2890 = scalar_lea.vmem [#allocation2], 244
      %v2891 = vld [vmem:[%s2890] ss:$2 sm:$0xff]
      %v2892 = vpack.c.bf16 %v2879, %v2877
      %v2893 = vpack.c.bf16 %v2883, %v2881
      %v2894 = vpack.c.bf16 %v2887, %v2885
      %v2895 = vpack.c.bf16 %v2891, %v2889
      %s2896 = scalar_lea.vmem [#allocation2], 133
      %v2897 = vld [vmem:[%s2896] ss:$2 sm:$0xff]
      %s2898 = scalar_lea.vmem [#allocation2], 149
      %v2899 = vld [vmem:[%s2898] ss:$2 sm:$0xff]
      %s2900 = scalar_lea.vmem [#allocation2], 165
      %v2901 = vld [vmem:[%s2900] ss:$2 sm:$0xff]
      %s2902 = scalar_lea.vmem [#allocation2], 181
      %v2903 = vld [vmem:[%s2902] ss:$2 sm:$0xff]
      %s2904 = scalar_lea.vmem [#allocation2], 197
      %v2905 = vld [vmem:[%s2904] ss:$2 sm:$0xff]
      %s2906 = scalar_lea.vmem [#allocation2], 213
      %v2907 = vld [vmem:[%s2906] ss:$2 sm:$0xff]
      %s2908 = scalar_lea.vmem [#allocation2], 229
      %v2909 = vld [vmem:[%s2908] ss:$2 sm:$0xff]
      %s2910 = scalar_lea.vmem [#allocation2], 245
      %v2911 = vld [vmem:[%s2910] ss:$2 sm:$0xff]
      %v2912 = vpack.c.bf16 %v2899, %v2897
      %v2913 = vpack.c.bf16 %v2903, %v2901
      %v2914 = vpack.c.bf16 %v2907, %v2905
      %v2915 = vpack.c.bf16 %v2911, %v2909
      %s2916 = scalar_lea.vmem [#allocation2], 134
      %v2917 = vld [vmem:[%s2916] ss:$2 sm:$0xff]
      %s2918 = scalar_lea.vmem [#allocation2], 150
      %v2919 = vld [vmem:[%s2918] ss:$2 sm:$0xff]
      %s2920 = scalar_lea.vmem [#allocation2], 166
      %v2921 = vld [vmem:[%s2920] ss:$2 sm:$0xff]
      %s2922 = scalar_lea.vmem [#allocation2], 182
      %v2923 = vld [vmem:[%s2922] ss:$2 sm:$0xff]
      %s2924 = scalar_lea.vmem [#allocation2], 198
      %v2925 = vld [vmem:[%s2924] ss:$2 sm:$0xff]
      %s2926 = scalar_lea.vmem [#allocation2], 214
      %v2927 = vld [vmem:[%s2926] ss:$2 sm:$0xff]
      %s2928 = scalar_lea.vmem [#allocation2], 230
      %v2929 = vld [vmem:[%s2928] ss:$2 sm:$0xff]
      %s2930 = scalar_lea.vmem [#allocation2], 246
      %v2931 = vld [vmem:[%s2930] ss:$2 sm:$0xff]
      %v2932 = vpack.c.bf16 %v2919, %v2917
      %v2933 = vpack.c.bf16 %v2923, %v2921
      %v2934 = vpack.c.bf16 %v2927, %v2925
      %v2935 = vpack.c.bf16 %v2931, %v2929
      %s2936 = scalar_lea.vmem [#allocation2], 135
      %v2937 = vld [vmem:[%s2936] ss:$2 sm:$0xff]
      %s2938 = scalar_lea.vmem [#allocation2], 151
      %v2939 = vld [vmem:[%s2938] ss:$2 sm:$0xff]
      %s2940 = scalar_lea.vmem [#allocation2], 167
      %v2941 = vld [vmem:[%s2940] ss:$2 sm:$0xff]
      %s2942 = scalar_lea.vmem [#allocation2], 183
      %v2943 = vld [vmem:[%s2942] ss:$2 sm:$0xff]
      %s2944 = scalar_lea.vmem [#allocation2], 199
      %v2945 = vld [vmem:[%s2944] ss:$2 sm:$0xff]
      %s2946 = scalar_lea.vmem [#allocation2], 215
      %v2947 = vld [vmem:[%s2946] ss:$2 sm:$0xff]
      %s2948 = scalar_lea.vmem [#allocation2], 231
      %v2949 = vld [vmem:[%s2948] ss:$2 sm:$0xff]
      %s2950 = scalar_lea.vmem [#allocation2], 247
      %v2951 = vld [vmem:[%s2950] ss:$2 sm:$0xff]
      %v2952 = vpack.c.bf16 %v2939, %v2937
      %v2953 = vpack.c.bf16 %v2943, %v2941
      %v2954 = vpack.c.bf16 %v2947, %v2945
      %v2955 = vpack.c.bf16 %v2951, %v2949
      %s2956 = scalar_lea.vmem [#allocation2], 136
      %v2957 = vld [vmem:[%s2956] ss:$2 sm:$0xff]
      %s2958 = scalar_lea.vmem [#allocation2], 152
      %v2959 = vld [vmem:[%s2958] ss:$2 sm:$0xff]
      %s2960 = scalar_lea.vmem [#allocation2], 168
      %v2961 = vld [vmem:[%s2960] ss:$2 sm:$0xff]
      %s2962 = scalar_lea.vmem [#allocation2], 184
      %v2963 = vld [vmem:[%s2962] ss:$2 sm:$0xff]
      %s2964 = scalar_lea.vmem [#allocation2], 200
      %v2965 = vld [vmem:[%s2964] ss:$2 sm:$0xff]
      %s2966 = scalar_lea.vmem [#allocation2], 216
      %v2967 = vld [vmem:[%s2966] ss:$2 sm:$0xff]
      %s2968 = scalar_lea.vmem [#allocation2], 232
      %v2969 = vld [vmem:[%s2968] ss:$2 sm:$0xff]
      %s2970 = scalar_lea.vmem [#allocation2], 248
      %v2971 = vld [vmem:[%s2970] ss:$2 sm:$0xff]
      %v2972 = vpack.c.bf16 %v2959, %v2957
      %v2973 = vpack.c.bf16 %v2963, %v2961
      %v2974 = vpack.c.bf16 %v2967, %v2965
      %v2975 = vpack.c.bf16 %v2971, %v2969
      %s2976 = scalar_lea.vmem [#allocation2], 137
      %v2977 = vld [vmem:[%s2976] ss:$2 sm:$0xff]
      %s2978 = scalar_lea.vmem [#allocation2], 153
      %v2979 = vld [vmem:[%s2978] ss:$2 sm:$0xff]
      %s2980 = scalar_lea.vmem [#allocation2], 169
      %v2981 = vld [vmem:[%s2980] ss:$2 sm:$0xff]
      %s2982 = scalar_lea.vmem [#allocation2], 185
      %v2983 = vld [vmem:[%s2982] ss:$2 sm:$0xff]
      %s2984 = scalar_lea.vmem [#allocation2], 201
      %v2985 = vld [vmem:[%s2984] ss:$2 sm:$0xff]
      %s2986 = scalar_lea.vmem [#allocation2], 217
      %v2987 = vld [vmem:[%s2986] ss:$2 sm:$0xff]
      %s2988 = scalar_lea.vmem [#allocation2], 233
      %v2989 = vld [vmem:[%s2988] ss:$2 sm:$0xff]
      %s2990 = scalar_lea.vmem [#allocation2], 249
      %v2991 = vld [vmem:[%s2990] ss:$2 sm:$0xff]
      %v2992 = vpack.c.bf16 %v2979, %v2977
      %v2993 = vpack.c.bf16 %v2983, %v2981
      %v2994 = vpack.c.bf16 %v2987, %v2985
      %v2995 = vpack.c.bf16 %v2991, %v2989
      %3000 = vrot.lane.b32.xlu0 %v2832, 16
      %v3001 = vpop.permute.xlu0 %3000
      %3002 = vrot.lane.b32.xlu0 %v2833, 16
      %v3003 = vpop.permute.xlu0 %3002
      %3004 = vrot.lane.b32.xlu0 %v2834, 16
      %v3005 = vpop.permute.xlu0 %3004
      %3006 = vrot.lane.b32.xlu0 %v2835, 16
      %v3007 = vpop.permute.xlu0 %3006
      %3012 = vrot.lane.b32.xlu0 %v2852, 32
      %v3013 = vpop.permute.xlu0 %3012
      %3014 = vrot.lane.b32.xlu0 %v2853, 32
      %v3015 = vpop.permute.xlu0 %3014
      %3016 = vrot.lane.b32.xlu0 %v2854, 32
      %v3017 = vpop.permute.xlu0 %3016
      %3018 = vrot.lane.b32.xlu0 %v2855, 32
      %v3019 = vpop.permute.xlu0 %3018
      %3024 = vrot.lane.b32.xlu0 %v2872, 48
      %v3025 = vpop.permute.xlu0 %3024
      %3026 = vrot.lane.b32.xlu0 %v2873, 48
      %v3027 = vpop.permute.xlu0 %3026
      %3028 = vrot.lane.b32.xlu0 %v2874, 48
      %v3029 = vpop.permute.xlu0 %3028
      %3030 = vrot.lane.b32.xlu0 %v2875, 48
      %v3031 = vpop.permute.xlu0 %3030
      %3036 = vrot.lane.b32.xlu0 %v2892, 64
      %v3037 = vpop.permute.xlu0 %3036
      %3038 = vrot.lane.b32.xlu0 %v2893, 64
      %v3039 = vpop.permute.xlu0 %3038
      %3040 = vrot.lane.b32.xlu0 %v2894, 64
      %v3041 = vpop.permute.xlu0 %3040
      %3042 = vrot.lane.b32.xlu0 %v2895, 64
      %v3043 = vpop.permute.xlu0 %3042
      %3048 = vrot.lane.b32.xlu0 %v2912, 80
      %v3049 = vpop.permute.xlu0 %3048
      %3050 = vrot.lane.b32.xlu0 %v2913, 80
      %v3051 = vpop.permute.xlu0 %3050
      %3052 = vrot.lane.b32.xlu0 %v2914, 80
      %v3053 = vpop.permute.xlu0 %3052
      %3054 = vrot.lane.b32.xlu0 %v2915, 80
      %v3055 = vpop.permute.xlu0 %3054
      %3060 = vrot.lane.b32.xlu0 %v2932, 96
      %v3061 = vpop.permute.xlu0 %3060
      %3062 = vrot.lane.b32.xlu0 %v2933, 96
      %v3063 = vpop.permute.xlu0 %3062
      %3064 = vrot.lane.b32.xlu0 %v2934, 96
      %v3065 = vpop.permute.xlu0 %3064
      %3066 = vrot.lane.b32.xlu0 %v2935, 96
      %v3067 = vpop.permute.xlu0 %3066
      %3072 = vrot.lane.b32.xlu0 %v2952, 112
      %v3073 = vpop.permute.xlu0 %3072
      %3074 = vrot.lane.b32.xlu0 %v2953, 112
      %v3075 = vpop.permute.xlu0 %3074
      %3076 = vrot.lane.b32.xlu0 %v2954, 112
      %v3077 = vpop.permute.xlu0 %3076
      %3078 = vrot.lane.b32.xlu0 %v2955, 112
      %v3079 = vpop.permute.xlu0 %3078
      %3084 = vrot.lane.b32.xlu0 %v2992, 16
      %v3085 = vpop.permute.xlu0 %3084
      %3086 = vrot.lane.b32.xlu0 %v2993, 16
      %v3087 = vpop.permute.xlu0 %3086
      %3088 = vrot.lane.b32.xlu0 %v2994, 16
      %v3089 = vpop.permute.xlu0 %3088
      %3090 = vrot.lane.b32.xlu0 %v2995, 16
      %v3091 = vpop.permute.xlu0 %3090
      %v3094 = vsel %vm749, %v2812, %v3001
      %v3097 = vsel %vm749, %v2813, %v3003
      %v3100 = vsel %vm749, %v2814, %v3005
      %v3103 = vsel %vm749, %v2815, %v3007
      %v3105 = vsel %vm783, %v3094, %v3013
      %v3107 = vsel %vm783, %v3097, %v3015
      %v3109 = vsel %vm783, %v3100, %v3017
      %v3111 = vsel %vm783, %v3103, %v3019
      %v3113 = vsel %vm2522, %v3105, %v3025
      %v3115 = vsel %vm2522, %v3107, %v3027
      %v3117 = vsel %vm2522, %v3109, %v3029
      %v3119 = vsel %vm2522, %v3111, %v3031
      %v3121 = vsel %vm2531, %v3113, %v3037
      %v3123 = vsel %vm2531, %v3115, %v3039
      %v3125 = vsel %vm2531, %v3117, %v3041
      %v3127 = vsel %vm2531, %v3119, %v3043
      %v3129 = vsel %vm2540, %v3121, %v3049
      %v3131 = vsel %vm2540, %v3123, %v3051
      %v3133 = vsel %vm2540, %v3125, %v3053
      %v3135 = vsel %vm2540, %v3127, %v3055
      %v3137 = vsel %vm2549, %v3129, %v3061
      %v3139 = vsel %vm2549, %v3131, %v3063
      %v3141 = vsel %vm2549, %v3133, %v3065
      %v3143 = vsel %vm2549, %v3135, %v3067
      %v3145 = vsel %vm2558, %v3137, %v3073
      %v3148 = vsel %vm2558, %v3139, %v3075
      %v3151 = vsel %vm2558, %v3141, %v3077
      %v3154 = vsel %vm2558, %v3143, %v3079
      %v3158 = vsel %vm749, %v2972, %v3085
      %v3161 = vsel %vm749, %v2973, %v3087
      %v3164 = vsel %vm749, %v2974, %v3089
      %v3167 = vsel %vm749, %v2975, %v3091
      %v3168 = vld [vmem:[%s3] sm:$0xf]
      %v3169 = vld [vmem:[%s3 + $0x4] sm:$0xf]
      %v3170 = vld [vmem:[%s3 + $0x8] sm:$0xf]
      %v3171 = vld [vmem:[%s3 + $0xc] sm:$0xf]
      %v3172 = vld [vmem:[%s3 + $0x10] sm:$0xf]
      %v3173 = vld [vmem:[%s3 + $0x14] sm:$0xf]
      %v3174 = vld [vmem:[%s3 + $0x18] sm:$0xf]
      %v3175 = vld [vmem:[%s3 + $0x1c] sm:$0xf]
      %v3176 = vld [vmem:[%s3 + $0x20] sm:$0xf]
      %v3177 = vld [vmem:[%s3 + $0x24] sm:$0xf]
      %v3178 = vld [vmem:[%s3 + $0x28] sm:$0xf]
      %v3179 = vld [vmem:[%s3 + $0x2c] sm:$0xf]
      %v3180 = vld [vmem:[%s3 + $0x30] sm:$0xf]
      %v3181 = vld [vmem:[%s3 + $0x34] sm:$0xf]
      %v3182 = vld [vmem:[%s3 + $0x38] sm:$0xf]
      %v3183 = vld [vmem:[%s3 + $0x3c] sm:$0xf]
      %v3184 = vld [vmem:[%s3 + $0x40] sm:$0xf]
      %v3185 = vld [vmem:[%s3 + $0x44] sm:$0xf]
      %v3186 = vld [vmem:[%s3 + $0x48] sm:$0xf]
      %v3187 = vld [vmem:[%s3 + $0x4c] sm:$0xf]
      %v3208 = vunpack.c.l.b16 %v3168
      %v3209 = vunpack.c.l.b16 %v3169
      %v3210 = vunpack.c.l.b16 %v3170
      %v3211 = vunpack.c.l.b16 %v3171
      %v3212 = vunpack.c.l.b16 %v3172
      %v3213 = vunpack.c.l.b16 %v3173
      %v3214 = vunpack.c.l.b16 %v3174
      %v3215 = vunpack.c.l.b16 %v3175
      %v3216 = vunpack.c.l.b16 %v3176
      %v3217 = vunpack.c.l.b16 %v3177
      %v3218 = vunpack.c.l.b16 %v3178
      %v3219 = vunpack.c.l.b16 %v3179
      %v3220 = vunpack.c.l.b16 %v3180
      %v3221 = vunpack.c.l.b16 %v3181
      %v3222 = vunpack.c.l.b16 %v3182
      %v3223 = vunpack.c.l.b16 %v3183
      %v3224 = vunpack.c.l.b16 %v3184
      %v3225 = vunpack.c.l.b16 %v3185
      %v3226 = vunpack.c.l.b16 %v3186
      %v3227 = vunpack.c.l.b16 %v3187
      %v3228 = vpack.c.b16 %v3209, %v3208
      %v3229 = vpack.c.b16 %v3211, %v3210
      %v3230 = vpack.c.b16 %v3213, %v3212
      %v3231 = vpack.c.b16 %v3215, %v3214
      %v3232 = vpack.c.b16 %v3217, %v3216
      %v3233 = vpack.c.b16 %v3219, %v3218
      %v3234 = vpack.c.b16 %v3221, %v3220
      %v3235 = vpack.c.b16 %v3223, %v3222
      %v3236 = vpack.c.b16 %v3225, %v3224
      %v3237 = vpack.c.b16 %v3227, %v3226
      %v3248 = vsel %vm783, %v3158, 0
      %v3250 = vsel %vm783, %v3161, 0
      %v3252 = vsel %vm783, %v3164, 0
      %v3254 = vsel %vm783, %v3167, 0
      %3256 = vmatprep.subr.bf16.mxu0 0
      %3257 = vmatpush1.bf16.msra.mxu0 %v3228
      %3258 = vmatprep.subr.bf16.mxu0 0
      %3259 = vmatpush1.bf16.msra.mxu0 %v3229
      %3260 = vmatprep.subr.bf16.mxu0 0
      %3261 = vmatpush1.bf16.msra.mxu0 %v3230
      %3262 = vmatprep.subr.bf16.mxu0 0
      %3263 = vmatpush1.bf16.msra.mxu0 %v3231
      %3264 = vmatprep.subr.bf16.mxu0 0
      %3265 = vmatpush1.bf16.msra.mxu0 %v3232
      %3266 = vmatprep.subr.bf16.mxu0 0
      %3267 = vmatpush1.bf16.msra.mxu0 %v3233
      %3268 = vmatprep.subr.bf16.mxu0 0
      %3269 = vmatpush1.bf16.msra.mxu0 %v3234
      %3270 = vmatprep.subr.bf16.mxu0 0
      %3271 = vmatpush1.bf16.msra.mxu0 %v3235
      %3272 = vmatprep.subr.bf16.mxu0 0
      %3273 = vmatpush1.bf16.msra.mxu0 %v3236
      %3274 = vmatprep.subr.bf16.mxu0 0
      %3275 = vmatpush1.bf16.msra.mxu0 %v3237
      %3276 = vmatprep.subr.bf16.mxu0 0
      %3277 = vmatpush1.bf16.msra.mxu0 0
      %3278 = vmatprep.subr.bf16.mxu0 0
      %3279 = vmatpush1.bf16.msra.mxu0 0
      %3280 = vmatprep.subr.bf16.mxu0 0
      %3281 = vmatpush1.bf16.msra.mxu0 0
      %3282 = vmatprep.subr.bf16.mxu0 0
      %3283 = vmatpush1.bf16.msra.mxu0 0
      %3284 = vmatprep.subr.bf16.mxu0 0
      %3285 = vmatpush1.bf16.msra.mxu0 0
      %3286 = vmatprep.subr.bf16.mxu0 0
      %3287 = vmatpush1.bf16.msra.mxu0 0
      %3288 = vmatprep.mubr.bf16.mxu0 %v3248
      %3289 = vmatmul.mubr.bf16.gmra.mrb[0].mxu0 %v3145
      %v3290 = vpop.f32.mrb[0].mxu0
      %v3291 = vadd.f32 0.0, %v3290
      %v3292 = vpop.f32.mrb[0].mxu0
      %v3293 = vpop.f32.mrb[0].mxu0
      %v3294 = vadd.f32 0.0, %v3293
      %v3295 = vpop.f32.mrb[0].mxu0
      %3296 = vmatprep.mubr.bf16.mxu0 %v3250
      %3297 = vmatmul.mubr.bf16.gmra.mrb[0].mxu0 %v3148
      %v3298 = vpop.f32.mrb[0].mxu0
      %v3299 = vadd.f32 0.0, %v3298
      %v3300 = vpop.f32.mrb[0].mxu0
      %v3301 = vpop.f32.mrb[0].mxu0
      %v3302 = vadd.f32 0.0, %v3301
      %v3303 = vpop.f32.mrb[0].mxu0
      %3304 = vmatprep.mubr.bf16.mxu0 %v3252
      %3305 = vmatmul.mubr.bf16.gmra.mrb[0].mxu0 %v3151
      %v3306 = vpop.f32.mrb[0].mxu0
      %v3307 = vadd.f32 0.0, %v3306
      %v3308 = vpop.f32.mrb[0].mxu0
      %v3309 = vpop.f32.mrb[0].mxu0
      %v3310 = vadd.f32 0.0, %v3309
      %v3311 = vpop.f32.mrb[0].mxu0
      %3312 = vmatprep.mubr.bf16.mxu0 %v3254
      %3313 = vmatmul.mubr.bf16.gmra.mrb[0].mxu0 %v3154
      %v3314 = vpop.f32.mrb[0].mxu0
      %v3315 = vadd.f32 0.0, %v3314
      %v3316 = vpop.f32.mrb[0].mxu0
      %v3317 = vpop.f32.mrb[0].mxu0
      %v3318 = vadd.f32 0.0, %v3317
      %v3319 = vpop.f32.mrb[0].mxu0
      %3320 = vdwg.mxu0
      %v3321 = vmul.f32 %v3291, %v2739
      %v3322 = vmul.f32 %v3294, %v2739
      %v3323 = vmul.f32 %v3299, %v2739
      %v3324 = vmul.f32 %v3302, %v2739
      %v3325 = vmul.f32 %v3307, %v2739
      %v3326 = vmul.f32 %v3310, %v2739
      %v3327 = vmul.f32 %v3315, %v2739
      %v3328 = vmul.f32 %v3318, %v2739
      %v3329 = vadd.f32 %v3321, %v2751
      %v3330 = vadd.f32 %v3322, %v2751
      %v3331 = vadd.f32 %v3323, %v2751
      %v3332 = vadd.f32 %v3324, %v2751
      %v3333 = vadd.f32 %v3325, %v2751
      %v3334 = vadd.f32 %v3326, %v2751
      %v3335 = vadd.f32 %v3327, %v2751
      %v3336 = vadd.f32 %v3328, %v2751
      %vm3337 = vcmp.ge.f32.partialorder %v3329, 0.0
      %vm3338 = vcmp.ge.f32.partialorder %v3330, 0.0
      %vm3339 = vcmp.ge.f32.partialorder %v3331, 0.0
      %vm3340 = vcmp.ge.f32.partialorder %v3332, 0.0
      %vm3341 = vcmp.ge.f32.partialorder %v3333, 0.0
      %vm3342 = vcmp.ge.f32.partialorder %v3334, 0.0
      %vm3343 = vcmp.ge.f32.partialorder %v3335, 0.0
      %vm3344 = vcmp.ge.f32.partialorder %v3336, 0.0
      %v3345 = vmul.f32 %v2771, %v3329
      %v3346 = vmul.f32 %v2771, %v3330
      %v3347 = vmul.f32 %v2771, %v3331
      %v3348 = vmul.f32 %v2771, %v3332
      %v3349 = vmul.f32 %v2771, %v3333
      %v3350 = vmul.f32 %v2771, %v3334
      %v3351 = vmul.f32 %v2771, %v3335
      %v3352 = vmul.f32 %v2771, %v3336
      %v3353 = vsel %vm3337, %v3329, %v3345
      %v3354 = vsel %vm3338, %v3330, %v3346
      %v3355 = vsel %vm3339, %v3331, %v3347
      %v3356 = vsel %vm3340, %v3332, %v3348
      %v3357 = vsel %vm3341, %v3333, %v3349
      %v3358 = vsel %vm3342, %v3334, %v3350
      %v3359 = vsel %vm3343, %v3335, %v3351
      %v3360 = vsel %vm3344, %v3336, %v3352
      %3361 = vst.msk [vmem:[#allocation3 + $0x40] sm:$0xff] %vm783, %v3353
      %3362 = vst.msk [vmem:[#allocation3 + $0x48] sm:$0xff] %vm783, %v3354
      %3363 = vst.msk [vmem:[#allocation3 + $0x50] sm:$0xff] %vm783, %v3355
      %3364 = vst.msk [vmem:[#allocation3 + $0x58] sm:$0xff] %vm783, %v3356
      %3365 = vst.msk [vmem:[#allocation3 + $0x60] sm:$0xff] %vm783, %v3357
      %3366 = vst.msk [vmem:[#allocation3 + $0x68] sm:$0xff] %vm783, %v3358
      %3367 = vst.msk [vmem:[#allocation3 + $0x70] sm:$0xff] %vm783, %v3359
      %3368 = vst.msk [vmem:[#allocation3 + $0x78] sm:$0xff] %vm783, %v3360
      %s3369 = scalar_lea.vmem [#allocation2], 256
      %v3370 = vld [vmem:[%s3369] ss:$2 sm:$0xff]
      %s3371 = scalar_lea.vmem [#allocation2], 272
      %v3372 = vld [vmem:[%s3371] ss:$2 sm:$0xff]
      %s3373 = scalar_lea.vmem [#allocation2], 288
      %v3374 = vld [vmem:[%s3373] ss:$2 sm:$0xff]
      %s3375 = scalar_lea.vmem [#allocation2], 304
      %v3376 = vld [vmem:[%s3375] ss:$2 sm:$0xff]
      %s3377 = scalar_lea.vmem [#allocation2], 320
      %v3378 = vld [vmem:[%s3377] ss:$2 sm:$0xff]
      %s3379 = scalar_lea.vmem [#allocation2], 336
      %v3380 = vld [vmem:[%s3379] ss:$2 sm:$0xff]
      %s3381 = scalar_lea.vmem [#allocation2], 352
      %v3382 = vld [vmem:[%s3381] ss:$2 sm:$0x1f]
      %v3383 = vpack.c.bf16 %v3372, %v3370
      %v3384 = vpack.c.bf16 %v3376, %v3374
      %v3385 = vpack.c.bf16 %v3380, %v3378
      %v3386 = vpack.c.bf16 %v3382, %v3382
      %s3387 = scalar_lea.vmem [#allocation2], 257
      %v3388 = vld [vmem:[%s3387] ss:$2 sm:$0xff]
      %s3389 = scalar_lea.vmem [#allocation2], 273
      %v3390 = vld [vmem:[%s3389] ss:$2 sm:$0xff]
      %s3391 = scalar_lea.vmem [#allocation2], 289
      %v3392 = vld [vmem:[%s3391] ss:$2 sm:$0xff]
      %s3393 = scalar_lea.vmem [#allocation2], 305
      %v3394 = vld [vmem:[%s3393] ss:$2 sm:$0xff]
      %s3395 = scalar_lea.vmem [#allocation2], 321
      %v3396 = vld [vmem:[%s3395] ss:$2 sm:$0xff]
      %s3397 = scalar_lea.vmem [#allocation2], 337
      %v3398 = vld [vmem:[%s3397] ss:$2 sm:$0xff]
      %s3399 = scalar_lea.vmem [#allocation2], 353
      %v3400 = vld [vmem:[%s3399] ss:$2 sm:$0x1f]
      %v3401 = vpack.c.bf16 %v3390, %v3388
      %v3402 = vpack.c.bf16 %v3394, %v3392
      %v3403 = vpack.c.bf16 %v3398, %v3396
      %v3404 = vpack.c.bf16 %v3400, %v3400
      %s3405 = scalar_lea.vmem [#allocation2], 258
      %v3406 = vld [vmem:[%s3405] ss:$2 sm:$0xff]
      %s3407 = scalar_lea.vmem [#allocation2], 274
      %v3408 = vld [vmem:[%s3407] ss:$2 sm:$0xff]
      %s3409 = scalar_lea.vmem [#allocation2], 290
      %v3410 = vld [vmem:[%s3409] ss:$2 sm:$0xff]
      %s3411 = scalar_lea.vmem [#allocation2], 306
      %v3412 = vld [vmem:[%s3411] ss:$2 sm:$0xff]
      %s3413 = scalar_lea.vmem [#allocation2], 322
      %v3414 = vld [vmem:[%s3413] ss:$2 sm:$0xff]
      %s3415 = scalar_lea.vmem [#allocation2], 338
      %v3416 = vld [vmem:[%s3415] ss:$2 sm:$0xff]
      %s3417 = scalar_lea.vmem [#allocation2], 354
      %v3418 = vld [vmem:[%s3417] ss:$2 sm:$0x1f]
      %v3419 = vpack.c.bf16 %v3408, %v3406
      %v3420 = vpack.c.bf16 %v3412, %v3410
      %v3421 = vpack.c.bf16 %v3416, %v3414
      %v3422 = vpack.c.bf16 %v3418, %v3418
      %s3423 = scalar_lea.vmem [#allocation2], 259
      %v3424 = vld [vmem:[%s3423] ss:$2 sm:$0xff]
      %s3425 = scalar_lea.vmem [#allocation2], 275
      %v3426 = vld [vmem:[%s3425] ss:$2 sm:$0xff]
      %s3427 = scalar_lea.vmem [#allocation2], 291
      %v3428 = vld [vmem:[%s3427] ss:$2 sm:$0xff]
      %s3429 = scalar_lea.vmem [#allocation2], 307
      %v3430 = vld [vmem:[%s3429] ss:$2 sm:$0xff]
      %s3431 = scalar_lea.vmem [#allocation2], 323
      %v3432 = vld [vmem:[%s3431] ss:$2 sm:$0xff]
      %s3433 = scalar_lea.vmem [#allocation2], 339
      %v3434 = vld [vmem:[%s3433] ss:$2 sm:$0xff]
      %s3435 = scalar_lea.vmem [#allocation2], 355
      %v3436 = vld [vmem:[%s3435] ss:$2 sm:$0x1f]
      %v3437 = vpack.c.bf16 %v3426, %v3424
      %v3438 = vpack.c.bf16 %v3430, %v3428
      %v3439 = vpack.c.bf16 %v3434, %v3432
      %v3440 = vpack.c.bf16 %v3436, %v3436
      %s3441 = scalar_lea.vmem [#allocation2], 260
      %v3442 = vld [vmem:[%s3441] ss:$2 sm:$0xff]
      %s3443 = scalar_lea.vmem [#allocation2], 276
      %v3444 = vld [vmem:[%s3443] ss:$2 sm:$0xff]
      %s3445 = scalar_lea.vmem [#allocation2], 292
      %v3446 = vld [vmem:[%s3445] ss:$2 sm:$0xff]
      %s3447 = scalar_lea.vmem [#allocation2], 308
      %v3448 = vld [vmem:[%s3447] ss:$2 sm:$0xff]
      %s3449 = scalar_lea.vmem [#allocation2], 324
      %v3450 = vld [vmem:[%s3449] ss:$2 sm:$0xff]
      %s3451 = scalar_lea.vmem [#allocation2], 340
      %v3452 = vld [vmem:[%s3451] ss:$2 sm:$0xff]
      %s3453 = scalar_lea.vmem [#allocation2], 356
      %v3454 = vld [vmem:[%s3453] ss:$2 sm:$0x1f]
      %v3455 = vpack.c.bf16 %v3444, %v3442
      %v3456 = vpack.c.bf16 %v3448, %v3446
      %v3457 = vpack.c.bf16 %v3452, %v3450
      %v3458 = vpack.c.bf16 %v3454, %v3454
      %s3459 = scalar_lea.vmem [#allocation2], 261
      %v3460 = vld [vmem:[%s3459] ss:$2 sm:$0xff]
      %s3461 = scalar_lea.vmem [#allocation2], 277
      %v3462 = vld [vmem:[%s3461] ss:$2 sm:$0xff]
      %s3463 = scalar_lea.vmem [#allocation2], 293
      %v3464 = vld [vmem:[%s3463] ss:$2 sm:$0xff]
      %s3465 = scalar_lea.vmem [#allocation2], 309
      %v3466 = vld [vmem:[%s3465] ss:$2 sm:$0xff]
      %s3467 = scalar_lea.vmem [#allocation2], 325
      %v3468 = vld [vmem:[%s3467] ss:$2 sm:$0xff]
      %s3469 = scalar_lea.vmem [#allocation2], 341
      %v3470 = vld [vmem:[%s3469] ss:$2 sm:$0xff]
      %s3471 = scalar_lea.vmem [#allocation2], 357
      %v3472 = vld [vmem:[%s3471] ss:$2 sm:$0x1f]
      %v3473 = vpack.c.bf16 %v3462, %v3460
      %v3474 = vpack.c.bf16 %v3466, %v3464
      %v3475 = vpack.c.bf16 %v3470, %v3468
      %v3476 = vpack.c.bf16 %v3472, %v3472
      %s3477 = scalar_lea.vmem [#allocation2], 262
      %v3478 = vld [vmem:[%s3477] ss:$2 sm:$0xff]
      %s3479 = scalar_lea.vmem [#allocation2], 278
      %v3480 = vld [vmem:[%s3479] ss:$2 sm:$0xff]
      %s3481 = scalar_lea.vmem [#allocation2], 294
      %v3482 = vld [vmem:[%s3481] ss:$2 sm:$0xff]
      %s3483 = scalar_lea.vmem [#allocation2], 310
      %v3484 = vld [vmem:[%s3483] ss:$2 sm:$0xff]
      %s3485 = scalar_lea.vmem [#allocation2], 326
      %v3486 = vld [vmem:[%s3485] ss:$2 sm:$0xff]
      %s3487 = scalar_lea.vmem [#allocation2], 342
      %v3488 = vld [vmem:[%s3487] ss:$2 sm:$0xff]
      %s3489 = scalar_lea.vmem [#allocation2], 358
      %v3490 = vld [vmem:[%s3489] ss:$2 sm:$0x1f]
      %v3491 = vpack.c.bf16 %v3480, %v3478
      %v3492 = vpack.c.bf16 %v3484, %v3482
      %v3493 = vpack.c.bf16 %v3488, %v3486
      %v3494 = vpack.c.bf16 %v3490, %v3490
      %s3495 = scalar_lea.vmem [#allocation2], 263
      %v3496 = vld [vmem:[%s3495] ss:$2 sm:$0xff]
      %s3497 = scalar_lea.vmem [#allocation2], 279
      %v3498 = vld [vmem:[%s3497] ss:$2 sm:$0xff]
      %s3499 = scalar_lea.vmem [#allocation2], 295
      %v3500 = vld [vmem:[%s3499] ss:$2 sm:$0xff]
      %s3501 = scalar_lea.vmem [#allocation2], 311
      %v3502 = vld [vmem:[%s3501] ss:$2 sm:$0xff]
      %s3503 = scalar_lea.vmem [#allocation2], 327
      %v3504 = vld [vmem:[%s3503] ss:$2 sm:$0xff]
      %s3505 = scalar_lea.vmem [#allocation2], 343
      %v3506 = vld [vmem:[%s3505] ss:$2 sm:$0xff]
      %s3507 = scalar_lea.vmem [#allocation2], 359
      %v3508 = vld [vmem:[%s3507] ss:$2 sm:$0x1f]
      %v3509 = vpack.c.bf16 %v3498, %v3496
      %v3510 = vpack.c.bf16 %v3502, %v3500
      %v3511 = vpack.c.bf16 %v3506, %v3504
      %v3512 = vpack.c.bf16 %v3508, %v3508
      %s3513 = scalar_lea.vmem [#allocation2], 264
      %v3514 = vld [vmem:[%s3513] ss:$2 sm:$0xff]
      %s3515 = scalar_lea.vmem [#allocation2], 280
      %v3516 = vld [vmem:[%s3515] ss:$2 sm:$0xff]
      %s3517 = scalar_lea.vmem [#allocation2], 296
      %v3518 = vld [vmem:[%s3517] ss:$2 sm:$0xff]
      %s3519 = scalar_lea.vmem [#allocation2], 312
      %v3520 = vld [vmem:[%s3519] ss:$2 sm:$0xff]
      %s3521 = scalar_lea.vmem [#allocation2], 328
      %v3522 = vld [vmem:[%s3521] ss:$2 sm:$0xff]
      %s3523 = scalar_lea.vmem [#allocation2], 344
      %v3524 = vld [vmem:[%s3523] ss:$2 sm:$0xff]
      %s3525 = scalar_lea.vmem [#allocation2], 360
      %v3526 = vld [vmem:[%s3525] ss:$2 sm:$0x1f]
      %v3527 = vpack.c.bf16 %v3516, %v3514
      %v3528 = vpack.c.bf16 %v3520, %v3518
      %v3529 = vpack.c.bf16 %v3524, %v3522
      %v3530 = vpack.c.bf16 %v3526, %v3526
      %s3531 = scalar_lea.vmem [#allocation2], 265
      %v3532 = vld [vmem:[%s3531] ss:$2 sm:$0xff]
      %s3533 = scalar_lea.vmem [#allocation2], 281
      %v3534 = vld [vmem:[%s3533] ss:$2 sm:$0xff]
      %s3535 = scalar_lea.vmem [#allocation2], 297
      %v3536 = vld [vmem:[%s3535] ss:$2 sm:$0xff]
      %s3537 = scalar_lea.vmem [#allocation2], 313
      %v3538 = vld [vmem:[%s3537] ss:$2 sm:$0xff]
      %s3539 = scalar_lea.vmem [#allocation2], 329
      %v3540 = vld [vmem:[%s3539] ss:$2 sm:$0xff]
      %s3541 = scalar_lea.vmem [#allocation2], 345
      %v3542 = vld [vmem:[%s3541] ss:$2 sm:$0xff]
      %s3543 = scalar_lea.vmem [#allocation2], 361
      %v3544 = vld [vmem:[%s3543] ss:$2 sm:$0x1f]
      %v3545 = vpack.c.bf16 %v3534, %v3532
      %v3546 = vpack.c.bf16 %v3538, %v3536
      %v3547 = vpack.c.bf16 %v3542, %v3540
      %v3548 = vpack.c.bf16 %v3544, %v3544
      %3553 = vrot.lane.b32.xlu0 %v3401, 16
      %v3554 = vpop.permute.xlu0 %3553
      %3555 = vrot.lane.b32.xlu0 %v3402, 16
      %v3556 = vpop.permute.xlu0 %3555
      %3557 = vrot.lane.b32.xlu0 %v3403, 16
      %v3558 = vpop.permute.xlu0 %3557
      %3559 = vrot.lane.b32.xlu0 %v3404, 16
      %v3560 = vpop.permute.xlu0 %3559
      %3565 = vrot.lane.b32.xlu0 %v3419, 32
      %v3566 = vpop.permute.xlu0 %3565
      %3567 = vrot.lane.b32.xlu0 %v3420, 32
      %v3568 = vpop.permute.xlu0 %3567
      %3569 = vrot.lane.b32.xlu0 %v3421, 32
      %v3570 = vpop.permute.xlu0 %3569
      %3571 = vrot.lane.b32.xlu0 %v3422, 32
      %v3572 = vpop.permute.xlu0 %3571
      %3577 = vrot.lane.b32.xlu0 %v3437, 48
      %v3578 = vpop.permute.xlu0 %3577
      %3579 = vrot.lane.b32.xlu0 %v3438, 48
      %v3580 = vpop.permute.xlu0 %3579
      %3581 = vrot.lane.b32.xlu0 %v3439, 48
      %v3582 = vpop.permute.xlu0 %3581
      %3583 = vrot.lane.b32.xlu0 %v3440, 48
      %v3584 = vpop.permute.xlu0 %3583
      %3589 = vrot.lane.b32.xlu0 %v3455, 64
      %v3590 = vpop.permute.xlu0 %3589
      %3591 = vrot.lane.b32.xlu0 %v3456, 64
      %v3592 = vpop.permute.xlu0 %3591
      %3593 = vrot.lane.b32.xlu0 %v3457, 64
      %v3594 = vpop.permute.xlu0 %3593
      %3595 = vrot.lane.b32.xlu0 %v3458, 64
      %v3596 = vpop.permute.xlu0 %3595
      %3601 = vrot.lane.b32.xlu0 %v3473, 80
      %v3602 = vpop.permute.xlu0 %3601
      %3603 = vrot.lane.b32.xlu0 %v3474, 80
      %v3604 = vpop.permute.xlu0 %3603
      %3605 = vrot.lane.b32.xlu0 %v3475, 80
      %v3606 = vpop.permute.xlu0 %3605
      %3607 = vrot.lane.b32.xlu0 %v3476, 80
      %v3608 = vpop.permute.xlu0 %3607
      %3613 = vrot.lane.b32.xlu0 %v3491, 96
      %v3614 = vpop.permute.xlu0 %3613
      %3615 = vrot.lane.b32.xlu0 %v3492, 96
      %v3616 = vpop.permute.xlu0 %3615
      %3617 = vrot.lane.b32.xlu0 %v3493, 96
      %v3618 = vpop.permute.xlu0 %3617
      %3619 = vrot.lane.b32.xlu0 %v3494, 96
      %v3620 = vpop.permute.xlu0 %3619
      %3625 = vrot.lane.b32.xlu0 %v3509, 112
      %v3626 = vpop.permute.xlu0 %3625
      %3627 = vrot.lane.b32.xlu0 %v3510, 112
      %v3628 = vpop.permute.xlu0 %3627
      %3629 = vrot.lane.b32.xlu0 %v3511, 112
      %v3630 = vpop.permute.xlu0 %3629
      %3631 = vrot.lane.b32.xlu0 %v3512, 112
      %v3632 = vpop.permute.xlu0 %3631
      %3637 = vrot.lane.b32.xlu0 %v3545, 16
      %v3638 = vpop.permute.xlu0 %3637
      %3639 = vrot.lane.b32.xlu0 %v3546, 16
      %v3640 = vpop.permute.xlu0 %3639
      %3641 = vrot.lane.b32.xlu0 %v3547, 16
      %v3642 = vpop.permute.xlu0 %3641
      %3643 = vrot.lane.b32.xlu0 %v3548, 16
      %v3644 = vpop.permute.xlu0 %3643
      %v3647 = vsel %vm749, %v3383, %v3554
      %v3650 = vsel %vm749, %v3384, %v3556
      %v3653 = vsel %vm749, %v3385, %v3558
      %v3656 = vsel %vm749, %v3386, %v3560
      %v3658 = vsel %vm783, %v3647, %v3566
      %v3660 = vsel %vm783, %v3650, %v3568
      %v3662 = vsel %vm783, %v3653, %v3570
      %v3664 = vsel %vm783, %v3656, %v3572
      %v3666 = vsel %vm2522, %v3658, %v3578
      %v3668 = vsel %vm2522, %v3660, %v3580
      %v3670 = vsel %vm2522, %v3662, %v3582
      %v3672 = vsel %vm2522, %v3664, %v3584
      %v3674 = vsel %vm2531, %v3666, %v3590
      %v3676 = vsel %vm2531, %v3668, %v3592
      %v3678 = vsel %vm2531, %v3670, %v3594
      %v3680 = vsel %vm2531, %v3672, %v3596
      %v3682 = vsel %vm2540, %v3674, %v3602
      %v3684 = vsel %vm2540, %v3676, %v3604
      %v3686 = vsel %vm2540, %v3678, %v3606
      %v3688 = vsel %vm2540, %v3680, %v3608
      %v3690 = vsel %vm2549, %v3682, %v3614
      %v3692 = vsel %vm2549, %v3684, %v3616
      %v3694 = vsel %vm2549, %v3686, %v3618
      %v3696 = vsel %vm2549, %v3688, %v3620
      %v3698 = vsel %vm2558, %v3690, %v3626
      %v3701 = vsel %vm2558, %v3692, %v3628
      %v3704 = vsel %vm2558, %v3694, %v3630
      %v3707 = vsel %vm2558, %v3696, %v3632
      %v3711 = vsel %vm749, %v3527, %v3638
      %v3714 = vsel %vm749, %v3528, %v3640
      %v3717 = vsel %vm749, %v3529, %v3642
      %v3720 = vsel %vm749, %v3530, %v3644
      %v3721 = vld [vmem:[%s3] sm:$0xf]
      %v3722 = vld [vmem:[%s3 + $0x4] sm:$0xf]
      %v3723 = vld [vmem:[%s3 + $0x8] sm:$0xf]
      %v3724 = vld [vmem:[%s3 + $0xc] sm:$0xf]
      %v3725 = vld [vmem:[%s3 + $0x10] sm:$0xf]
      %v3726 = vld [vmem:[%s3 + $0x14] sm:$0xf]
      %v3727 = vld [vmem:[%s3 + $0x18] sm:$0xf]
      %v3728 = vld [vmem:[%s3 + $0x1c] sm:$0xf]
      %v3729 = vld [vmem:[%s3 + $0x20] sm:$0xf]
      %v3730 = vld [vmem:[%s3 + $0x24] sm:$0xf]
      %v3731 = vld [vmem:[%s3 + $0x28] sm:$0xf]
      %v3732 = vld [vmem:[%s3 + $0x2c] sm:$0xf]
      %v3733 = vld [vmem:[%s3 + $0x30] sm:$0xf]
      %v3734 = vld [vmem:[%s3 + $0x34] sm:$0xf]
      %v3735 = vld [vmem:[%s3 + $0x38] sm:$0xf]
      %v3736 = vld [vmem:[%s3 + $0x3c] sm:$0xf]
      %v3737 = vld [vmem:[%s3 + $0x40] sm:$0xf]
      %v3738 = vld [vmem:[%s3 + $0x44] sm:$0xf]
      %v3739 = vld [vmem:[%s3 + $0x48] sm:$0xf]
      %v3740 = vld [vmem:[%s3 + $0x4c] sm:$0xf]
      %v3761 = vunpack.c.l.b16 %v3721
      %v3762 = vunpack.c.l.b16 %v3722
      %v3763 = vunpack.c.l.b16 %v3723
      %v3764 = vunpack.c.l.b16 %v3724
      %v3765 = vunpack.c.l.b16 %v3725
      %v3766 = vunpack.c.l.b16 %v3726
      %v3767 = vunpack.c.l.b16 %v3727
      %v3768 = vunpack.c.l.b16 %v3728
      %v3769 = vunpack.c.l.b16 %v3729
      %v3770 = vunpack.c.l.b16 %v3730
      %v3771 = vunpack.c.l.b16 %v3731
      %v3772 = vunpack.c.l.b16 %v3732
      %v3773 = vunpack.c.l.b16 %v3733
      %v3774 = vunpack.c.l.b16 %v3734
      %v3775 = vunpack.c.l.b16 %v3735
      %v3776 = vunpack.c.l.b16 %v3736
      %v3777 = vunpack.c.l.b16 %v3737
      %v3778 = vunpack.c.l.b16 %v3738
      %v3779 = vunpack.c.l.b16 %v3739
      %v3780 = vunpack.c.l.b16 %v3740
      %v3781 = vpack.c.b16 %v3762, %v3761
      %v3782 = vpack.c.b16 %v3764, %v3763
      %v3783 = vpack.c.b16 %v3766, %v3765
      %v3784 = vpack.c.b16 %v3768, %v3767
      %v3785 = vpack.c.b16 %v3770, %v3769
      %v3786 = vpack.c.b16 %v3772, %v3771
      %v3787 = vpack.c.b16 %v3774, %v3773
      %v3788 = vpack.c.b16 %v3776, %v3775
      %v3789 = vpack.c.b16 %v3778, %v3777
      %v3790 = vpack.c.b16 %v3780, %v3779
      %v3801 = vsel %vm783, %v3711, 0
      %v3803 = vsel %vm783, %v3714, 0
      %v3805 = vsel %vm783, %v3717, 0
      %v3807 = vsel %vm783, %v3720, 0
      %3809 = vmatprep.subr.bf16.mxu0 0
      %3810 = vmatpush1.bf16.msra.mxu0 %v3781
      %3811 = vmatprep.subr.bf16.mxu0 0
      %3812 = vmatpush1.bf16.msra.mxu0 %v3782
      %3813 = vmatprep.subr.bf16.mxu0 0
      %3814 = vmatpush1.bf16.msra.mxu0 %v3783
      %3815 = vmatprep.subr.bf16.mxu0 0
      %3816 = vmatpush1.bf16.msra.mxu0 %v3784
      %3817 = vmatprep.subr.bf16.mxu0 0
      %3818 = vmatpush1.bf16.msra.mxu0 %v3785
      %3819 = vmatprep.subr.bf16.mxu0 0
      %3820 = vmatpush1.bf16.msra.mxu0 %v3786
      %3821 = vmatprep.subr.bf16.mxu0 0
      %3822 = vmatpush1.bf16.msra.mxu0 %v3787
      %3823 = vmatprep.subr.bf16.mxu0 0
      %3824 = vmatpush1.bf16.msra.mxu0 %v3788
      %3825 = vmatprep.subr.bf16.mxu0 0
      %3826 = vmatpush1.bf16.msra.mxu0 %v3789
      %3827 = vmatprep.subr.bf16.mxu0 0
      %3828 = vmatpush1.bf16.msra.mxu0 %v3790
      %3829 = vmatprep.subr.bf16.mxu0 0
      %3830 = vmatpush1.bf16.msra.mxu0 0
      %3831 = vmatprep.subr.bf16.mxu0 0
      %3832 = vmatpush1.bf16.msra.mxu0 0
      %3833 = vmatprep.subr.bf16.mxu0 0
      %3834 = vmatpush1.bf16.msra.mxu0 0
      %3835 = vmatprep.subr.bf16.mxu0 0
      %3836 = vmatpush1.bf16.msra.mxu0 0
      %3837 = vmatprep.subr.bf16.mxu0 0
      %3838 = vmatpush1.bf16.msra.mxu0 0
      %3839 = vmatprep.subr.bf16.mxu0 0
      %3840 = vmatpush1.bf16.msra.mxu0 0
      %3841 = vmatprep.mubr.bf16.mxu0 %v3801
      %3842 = vmatmul.mubr.bf16.gmra.mrb[0].mxu0 %v3698
      %v3843 = vpop.f32.mrb[0].mxu0
      %v3844 = vadd.f32 0.0, %v3843
      %v3845 = vpop.f32.mrb[0].mxu0
      %v3846 = vpop.f32.mrb[0].mxu0
      %v3847 = vadd.f32 0.0, %v3846
      %v3848 = vpop.f32.mrb[0].mxu0
      %3849 = vmatprep.mubr.bf16.mxu0 %v3803
      %3850 = vmatmul.mubr.bf16.gmra.mrb[0].mxu0 %v3701
      %v3851 = vpop.f32.mrb[0].mxu0
      %v3852 = vadd.f32 0.0, %v3851
      %v3853 = vpop.f32.mrb[0].mxu0
      %v3854 = vpop.f32.mrb[0].mxu0
      %v3855 = vadd.f32 0.0, %v3854
      %v3856 = vpop.f32.mrb[0].mxu0
      %3857 = vmatprep.mubr.bf16.mxu0 %v3805
      %3858 = vmatmul.mubr.bf16.gmra.mrb[0].mxu0 %v3704
      %v3859 = vpop.f32.mrb[0].mxu0
      %v3860 = vadd.f32 0.0, %v3859
      %v3861 = vpop.f32.mrb[0].mxu0
      %v3862 = vpop.f32.mrb[0].mxu0
      %v3863 = vadd.f32 0.0, %v3862
      %v3864 = vpop.f32.mrb[0].mxu0
      %3865 = vmatprep.mubr.bf16.mxu0 %v3807
      %3866 = vmatmul.mubr.bf16.gmra.mrb[0].mxu0 %v3707
      %v3867 = vpop.f32.mrb[0].mxu0
      %v3868 = vadd.f32 0.0, %v3867
      %v3869 = vpop.f32.mrb[0].mxu0
      %v3870 = vpop.f32.mrb[0].mxu0
      %v3871 = vpop.f32.mrb[0].mxu0
      %3872 = vdwg.mxu0
      %v3873 = vmul.f32 %v3844, %v2739
      %v3874 = vmul.f32 %v3847, %v2739
      %v3875 = vmul.f32 %v3852, %v2739
      %v3876 = vmul.f32 %v3855, %v2739
      %v3877 = vmul.f32 %v3860, %v2739
      %v3878 = vmul.f32 %v3863, %v2739
      %v3879 = vmul.f32 %v3868, %v2739
      %v3880 = vadd.f32 %v3873, %v2751
      %v3881 = vadd.f32 %v3874, %v2751
      %v3882 = vadd.f32 %v3875, %v2751
      %v3883 = vadd.f32 %v3876, %v2751
      %v3884 = vadd.f32 %v3877, %v2751
      %v3885 = vadd.f32 %v3878, %v2751
      %v3886 = vadd.f32 %v3879, %v2751
      %vm3887 = vcmp.ge.f32.partialorder %v3880, 0.0
      %vm3888 = vcmp.ge.f32.partialorder %v3881, 0.0
      %vm3889 = vcmp.ge.f32.partialorder %v3882, 0.0
      %vm3890 = vcmp.ge.f32.partialorder %v3883, 0.0
      %vm3891 = vcmp.ge.f32.partialorder %v3884, 0.0
      %vm3892 = vcmp.ge.f32.partialorder %v3885, 0.0
      %vm3893 = vcmp.ge.f32.partialorder %v3886, 0.0
      %v3894 = vmul.f32 %v2771, %v3880
      %v3895 = vmul.f32 %v2771, %v3881
      %v3896 = vmul.f32 %v2771, %v3882
      %v3897 = vmul.f32 %v2771, %v3883
      %v3898 = vmul.f32 %v2771, %v3884
      %v3899 = vmul.f32 %v2771, %v3885
      %v3900 = vmul.f32 %v2771, %v3886
      %v3901 = vsel %vm3887, %v3880, %v3894
      %v3902 = vsel %vm3888, %v3881, %v3895
      %v3903 = vsel %vm3889, %v3882, %v3896
      %v3904 = vsel %vm3890, %v3883, %v3897
      %v3905 = vsel %vm3891, %v3884, %v3898
      %v3906 = vsel %vm3892, %v3885, %v3899
      %v3907 = vsel %vm3893, %v3886, %v3900
      %3908 = vst.msk [vmem:[#allocation3 + $0x80] sm:$0xff] %vm783, %v3901
      %3909 = vst.msk [vmem:[#allocation3 + $0x88] sm:$0xff] %vm783, %v3902
      %3910 = vst.msk [vmem:[#allocation3 + $0x90] sm:$0xff] %vm783, %v3903
      %3911 = vst.msk [vmem:[#allocation3 + $0x98] sm:$0xff] %vm783, %v3904
      %3912 = vst.msk [vmem:[#allocation3 + $0xa0] sm:$0xff] %vm783, %v3905
      %3913 = vst.msk [vmem:[#allocation3 + $0xa8] sm:$0xff] %vm783, %v3906
      %vm3914 = vcmask 258048
      %3915 = vst.msk [vmem:[#allocation3 + $0xb0] sm:$0x1f] %vm3914, %v3907
      %v3916 = vld [vmem:[%s6] sm:$0x1]
      %v3917 = vld [vmem:[%s6 + $0x1] sm:$0x1]
      %v3918 = vld [vmem:[%s6 + $0x2] sm:$0x1]
      %v3919 = vld [vmem:[#allocation3] ss:$2 sm:$0xff]
      %s3920 = scalar_lea.vmem [#allocation3], 16
      %v3921 = vld [vmem:[%s3920] ss:$2 sm:$0xff]
      %s3922 = scalar_lea.vmem [#allocation3], 32
      %v3923 = vld [vmem:[%s3922] ss:$2 sm:$0xff]
      %s3924 = scalar_lea.vmem [#allocation3], 48
      %v3925 = vld [vmem:[%s3924] ss:$2 sm:$0xff]
      %s3926 = scalar_lea.vmem [#allocation3], 64
      %v3927 = vld [vmem:[%s3926] ss:$2 sm:$0xff]
      %s3928 = scalar_lea.vmem [#allocation3], 80
      %v3929 = vld [vmem:[%s3928] ss:$2 sm:$0xff]
      %s3930 = scalar_lea.vmem [#allocation3], 96
      %v3931 = vld [vmem:[%s3930] ss:$2 sm:$0xff]
      %s3932 = scalar_lea.vmem [#allocation3], 112
      %v3933 = vld [vmem:[%s3932] ss:$2 sm:$0xff]
      %s3934 = scalar_lea.vmem [#allocation3], 128
      %v3935 = vld [vmem:[%s3934] ss:$2 sm:$0xff]
      %s3936 = scalar_lea.vmem [#allocation3], 144
      %v3937 = vld [vmem:[%s3936] ss:$2 sm:$0xff]
      %s3938 = scalar_lea.vmem [#allocation3], 160
      %v3939 = vld [vmem:[%s3938] ss:$2 sm:$0xff]
      %s3940 = scalar_lea.vmem [#allocation3], 176
      %v3941 = vld [vmem:[%s3940] ss:$2 sm:$0x1]
      %v3942 = vpack.c.bf16 %v3921, %v3919
      %v3943 = vpack.c.bf16 %v3925, %v3923
      %v3944 = vpack.c.bf16 %v3929, %v3927
      %v3945 = vpack.c.bf16 %v3933, %v3931
      %v3946 = vpack.c.bf16 %v3937, %v3935
      %v3947 = vpack.c.bf16 %v3941, %v3939
      %s3948 = scalar_lea.vmem [#allocation3], 1
      %v3949 = vld [vmem:[%s3948] ss:$2 sm:$0xff]
      %s3950 = scalar_lea.vmem [#allocation3], 17
      %v3951 = vld [vmem:[%s3950] ss:$2 sm:$0xff]
      %s3952 = scalar_lea.vmem [#allocation3], 33
      %v3953 = vld [vmem:[%s3952] ss:$2 sm:$0xff]
      %s3954 = scalar_lea.vmem [#allocation3], 49
      %v3955 = vld [vmem:[%s3954] ss:$2 sm:$0xff]
      %s3956 = scalar_lea.vmem [#allocation3], 65
      %v3957 = vld [vmem:[%s3956] ss:$2 sm:$0xff]
      %s3958 = scalar_lea.vmem [#allocation3], 81
      %v3959 = vld [vmem:[%s3958] ss:$2 sm:$0xff]
      %s3960 = scalar_lea.vmem [#allocation3], 97
      %v3961 = vld [vmem:[%s3960] ss:$2 sm:$0xff]
      %s3962 = scalar_lea.vmem [#allocation3], 113
      %v3963 = vld [vmem:[%s3962] ss:$2 sm:$0xff]
      %s3964 = scalar_lea.vmem [#allocation3], 129
      %v3965 = vld [vmem:[%s3964] ss:$2 sm:$0xff]
      %s3966 = scalar_lea.vmem [#allocation3], 145
      %v3967 = vld [vmem:[%s3966] ss:$2 sm:$0xff]
      %s3968 = scalar_lea.vmem [#allocation3], 161
      %v3969 = vld [vmem:[%s3968] ss:$2 sm:$0xff]
      %s3970 = scalar_lea.vmem [#allocation3], 177
      %v3971 = vld [vmem:[%s3970] ss:$2 sm:$0x1]
      %v3972 = vpack.c.bf16 %v3951, %v3949
      %v3973 = vpack.c.bf16 %v3955, %v3953
      %v3974 = vpack.c.bf16 %v3959, %v3957
      %v3975 = vpack.c.bf16 %v3963, %v3961
      %v3976 = vpack.c.bf16 %v3967, %v3965
      %v3977 = vpack.c.bf16 %v3971, %v3969
      %s3978 = scalar_lea.vmem [#allocation3], 2
      %v3979 = vld [vmem:[%s3978] ss:$2 sm:$0xff]
      %s3980 = scalar_lea.vmem [#allocation3], 18
      %v3981 = vld [vmem:[%s3980] ss:$2 sm:$0xff]
      %s3982 = scalar_lea.vmem [#allocation3], 34
      %v3983 = vld [vmem:[%s3982] ss:$2 sm:$0xff]
      %s3984 = scalar_lea.vmem [#allocation3], 50
      %v3985 = vld [vmem:[%s3984] ss:$2 sm:$0xff]
      %s3986 = scalar_lea.vmem [#allocation3], 66
      %v3987 = vld [vmem:[%s3986] ss:$2 sm:$0xff]
      %s3988 = scalar_lea.vmem [#allocation3], 82
      %v3989 = vld [vmem:[%s3988] ss:$2 sm:$0xff]
      %s3990 = scalar_lea.vmem [#allocation3], 98
      %v3991 = vld [vmem:[%s3990] ss:$2 sm:$0xff]
      %s3992 = scalar_lea.vmem [#allocation3], 114
      %v3993 = vld [vmem:[%s3992] ss:$2 sm:$0xff]
      %s3994 = scalar_lea.vmem [#allocation3], 130
      %v3995 = vld [vmem:[%s3994] ss:$2 sm:$0xff]
      %s3996 = scalar_lea.vmem [#allocation3], 146
      %v3997 = vld [vmem:[%s3996] ss:$2 sm:$0xff]
      %s3998 = scalar_lea.vmem [#allocation3], 162
      %v3999 = vld [vmem:[%s3998] ss:$2 sm:$0xff]
      %s4000 = scalar_lea.vmem [#allocation3], 178
      %v4001 = vld [vmem:[%s4000] ss:$2 sm:$0x1]
      %v4002 = vpack.c.bf16 %v3981, %v3979
      %v4003 = vpack.c.bf16 %v3985, %v3983
      %v4004 = vpack.c.bf16 %v3989, %v3987
      %v4005 = vpack.c.bf16 %v3993, %v3991
      %v4006 = vpack.c.bf16 %v3997, %v3995
      %v4007 = vpack.c.bf16 %v4001, %v3999
      %s4008 = scalar_lea.vmem [#allocation3], 3
      %v4009 = vld [vmem:[%s4008] ss:$2 sm:$0xff]
      %s4010 = scalar_lea.vmem [#allocation3], 19
      %v4011 = vld [vmem:[%s4010] ss:$2 sm:$0xff]
      %s4012 = scalar_lea.vmem [#allocation3], 35
      %v4013 = vld [vmem:[%s4012] ss:$2 sm:$0xff]
      %s4014 = scalar_lea.vmem [#allocation3], 51
      %v4015 = vld [vmem:[%s4014] ss:$2 sm:$0xff]
      %s4016 = scalar_lea.vmem [#allocation3], 67
      %v4017 = vld [vmem:[%s4016] ss:$2 sm:$0xff]
      %s4018 = scalar_lea.vmem [#allocation3], 83
      %v4019 = vld [vmem:[%s4018] ss:$2 sm:$0xff]
      %s4020 = scalar_lea.vmem [#allocation3], 99
      %v4021 = vld [vmem:[%s4020] ss:$2 sm:$0xff]
      %s4022 = scalar_lea.vmem [#allocation3], 115
      %v4023 = vld [vmem:[%s4022] ss:$2 sm:$0xff]
      %s4024 = scalar_lea.vmem [#allocation3], 131
      %v4025 = vld [vmem:[%s4024] ss:$2 sm:$0xff]
      %s4026 = scalar_lea.vmem [#allocation3], 147
      %v4027 = vld [vmem:[%s4026] ss:$2 sm:$0xff]
      %s4028 = scalar_lea.vmem [#allocation3], 163
      %v4029 = vld [vmem:[%s4028] ss:$2 sm:$0xff]
      %s4030 = scalar_lea.vmem [#allocation3], 179
      %v4031 = vld [vmem:[%s4030] ss:$2 sm:$0x1]
      %v4032 = vpack.c.bf16 %v4011, %v4009
      %v4033 = vpack.c.bf16 %v4015, %v4013
      %v4034 = vpack.c.bf16 %v4019, %v4017
      %v4035 = vpack.c.bf16 %v4023, %v4021
      %v4036 = vpack.c.bf16 %v4027, %v4025
      %v4037 = vpack.c.bf16 %v4031, %v4029
      %s4038 = scalar_lea.vmem [#allocation3], 4
      %v4039 = vld [vmem:[%s4038] ss:$2 sm:$0xff]
      %s4040 = scalar_lea.vmem [#allocation3], 20
      %v4041 = vld [vmem:[%s4040] ss:$2 sm:$0xff]
      %s4042 = scalar_lea.vmem [#allocation3], 36
      %v4043 = vld [vmem:[%s4042] ss:$2 sm:$0xff]
      %s4044 = scalar_lea.vmem [#allocation3], 52
      %v4045 = vld [vmem:[%s4044] ss:$2 sm:$0xff]
      %s4046 = scalar_lea.vmem [#allocation3], 68
      %v4047 = vld [vmem:[%s4046] ss:$2 sm:$0xff]
      %s4048 = scalar_lea.vmem [#allocation3], 84
      %v4049 = vld [vmem:[%s4048] ss:$2 sm:$0xff]
      %s4050 = scalar_lea.vmem [#allocation3], 100
      %v4051 = vld [vmem:[%s4050] ss:$2 sm:$0xff]
      %s4052 = scalar_lea.vmem [#allocation3], 116
      %v4053 = vld [vmem:[%s4052] ss:$2 sm:$0xff]
      %s4054 = scalar_lea.vmem [#allocation3], 132
      %v4055 = vld [vmem:[%s4054] ss:$2 sm:$0xff]
      %s4056 = scalar_lea.vmem [#allocation3], 148
      %v4057 = vld [vmem:[%s4056] ss:$2 sm:$0xff]
      %s4058 = scalar_lea.vmem [#allocation3], 164
      %v4059 = vld [vmem:[%s4058] ss:$2 sm:$0xff]
      %s4060 = scalar_lea.vmem [#allocation3], 180
      %v4061 = vld [vmem:[%s4060] ss:$2 sm:$0x1]
      %v4062 = vpack.c.bf16 %v4041, %v4039
      %v4063 = vpack.c.bf16 %v4045, %v4043
      %v4064 = vpack.c.bf16 %v4049, %v4047
      %v4065 = vpack.c.bf16 %v4053, %v4051
      %v4066 = vpack.c.bf16 %v4057, %v4055
      %v4067 = vpack.c.bf16 %v4061, %v4059
      %4074 = vrot.lane.b32.xlu0 %v3972, 32
      %v4075 = vpop.permute.xlu0 %4074
      %4076 = vrot.lane.b32.xlu0 %v3973, 32
      %v4077 = vpop.permute.xlu0 %4076
      %4078 = vrot.lane.b32.xlu0 %v3974, 32
      %v4079 = vpop.permute.xlu0 %4078
      %4080 = vrot.lane.b32.xlu0 %v3975, 32
      %v4081 = vpop.permute.xlu0 %4080
      %4082 = vrot.lane.b32.xlu0 %v3976, 32
      %v4083 = vpop.permute.xlu0 %4082
      %4084 = vrot.lane.b32.xlu0 %v3977, 32
      %v4085 = vpop.permute.xlu0 %4084
      %4092 = vrot.lane.b32.xlu0 %v4002, 64
      %v4093 = vpop.permute.xlu0 %4092
      %4094 = vrot.lane.b32.xlu0 %v4003, 64
      %v4095 = vpop.permute.xlu0 %4094
      %4096 = vrot.lane.b32.xlu0 %v4004, 64
      %v4097 = vpop.permute.xlu0 %4096
      %4098 = vrot.lane.b32.xlu0 %v4005, 64
      %v4099 = vpop.permute.xlu0 %4098
      %4100 = vrot.lane.b32.xlu0 %v4006, 64
      %v4101 = vpop.permute.xlu0 %4100
      %4102 = vrot.lane.b32.xlu0 %v4007, 64
      %v4103 = vpop.permute.xlu0 %4102
      %4110 = vrot.lane.b32.xlu0 %v4032, 96
      %v4111 = vpop.permute.xlu0 %4110
      %4112 = vrot.lane.b32.xlu0 %v4033, 96
      %v4113 = vpop.permute.xlu0 %4112
      %4114 = vrot.lane.b32.xlu0 %v4034, 96
      %v4115 = vpop.permute.xlu0 %4114
      %4116 = vrot.lane.b32.xlu0 %v4035, 96
      %v4117 = vpop.permute.xlu0 %4116
      %4118 = vrot.lane.b32.xlu0 %v4036, 96
      %v4119 = vpop.permute.xlu0 %4118
      %4120 = vrot.lane.b32.xlu0 %v4037, 96
      %v4121 = vpop.permute.xlu0 %4120
      %v4124 = vsel %vm783, %v3942, %v4075
      %v4127 = vsel %vm783, %v3943, %v4077
      %v4130 = vsel %vm783, %v3944, %v4079
      %v4133 = vsel %vm783, %v3945, %v4081
      %v4136 = vsel %vm783, %v3946, %v4083
      %v4139 = vsel %vm783, %v3947, %v4085
      %v4141 = vsel %vm2531, %v4124, %v4093
      %v4143 = vsel %vm2531, %v4127, %v4095
      %v4145 = vsel %vm2531, %v4130, %v4097
      %v4147 = vsel %vm2531, %v4133, %v4099
      %v4149 = vsel %vm2531, %v4136, %v4101
      %v4151 = vsel %vm2531, %v4139, %v4103
      %v4153 = vsel %vm2549, %v4141, %v4111
      %v4156 = vsel %vm2549, %v4143, %v4113
      %v4159 = vsel %vm2549, %v4145, %v4115
      %v4162 = vsel %vm2549, %v4147, %v4117
      %v4165 = vsel %vm2549, %v4149, %v4119
      %v4168 = vsel %vm2549, %v4151, %v4121
      %v4170 = vld [vmem:[%s5] sm:$0xf]
      %v4171 = vld [vmem:[%s5 + $0x4] sm:$0xf]
      %v4172 = vld [vmem:[%s5 + $0x8] sm:$0xf]
      %v4173 = vld [vmem:[%s5 + $0xc] sm:$0xf]
      %v4174 = vld [vmem:[%s5 + $0x10] sm:$0xf]
      %v4175 = vld [vmem:[%s5 + $0x14] sm:$0xf]
      %v4176 = vld [vmem:[%s5 + $0x18] sm:$0xf]
      %v4177 = vld [vmem:[%s5 + $0x1c] sm:$0xf]
      %v4178 = vld [vmem:[%s5 + $0x20] sm:$0xf]
      %v4179 = vld [vmem:[%s5 + $0x24] sm:$0xf]
      %v4180 = vld [vmem:[%s5 + $0x28] sm:$0xf]
      %v4181 = vld [vmem:[%s5 + $0x2c] sm:$0xf]
      %v4182 = vld [vmem:[%s5 + $0x30] sm:$0xf]
      %v4183 = vld [vmem:[%s5 + $0x34] sm:$0xf]
      %v4184 = vld [vmem:[%s5 + $0x38] sm:$0xf]
      %v4185 = vld [vmem:[%s5 + $0x3c] sm:$0xf]
      %v4186 = vld [vmem:[%s5 + $0x40] sm:$0xf]
      %v4187 = vld [vmem:[%s5 + $0x44] sm:$0xf]
      %v4188 = vld [vmem:[%s5 + $0x48] sm:$0xf]
      %v4189 = vld [vmem:[%s5 + $0x4c] sm:$0xf]
      %v4210 = vunpack.c.l.b16 %v4170
      %v4211 = vunpack.c.l.b16 %v4171
      %v4212 = vunpack.c.l.b16 %v4172
      %v4213 = vunpack.c.l.b16 %v4173
      %v4214 = vunpack.c.l.b16 %v4174
      %v4215 = vunpack.c.l.b16 %v4175
      %v4216 = vunpack.c.l.b16 %v4176
      %v4217 = vunpack.c.l.b16 %v4177
      %v4218 = vunpack.c.l.b16 %v4178
      %v4219 = vunpack.c.l.b16 %v4179
      %v4220 = vunpack.c.l.b16 %v4180
      %v4221 = vunpack.c.l.b16 %v4181
      %v4222 = vunpack.c.l.b16 %v4182
      %v4223 = vunpack.c.l.b16 %v4183
      %v4224 = vunpack.c.l.b16 %v4184
      %v4225 = vunpack.c.l.b16 %v4185
      %v4226 = vunpack.c.l.b16 %v4186
      %v4227 = vunpack.c.l.b16 %v4187
      %v4228 = vunpack.c.l.b16 %v4188
      %v4229 = vunpack.c.l.b16 %v4189
      %v4230 = vpack.c.b16 %v4211, %v4210
      %v4231 = vpack.c.b16 %v4213, %v4212
      %v4232 = vpack.c.b16 %v4215, %v4214
      %v4233 = vpack.c.b16 %v4217, %v4216
      %v4234 = vpack.c.b16 %v4219, %v4218
      %v4235 = vpack.c.b16 %v4221, %v4220
      %v4236 = vpack.c.b16 %v4223, %v4222
      %v4237 = vpack.c.b16 %v4225, %v4224
      %v4238 = vpack.c.b16 %v4227, %v4226
      %v4239 = vpack.c.b16 %v4229, %v4228
      %v4251 = vsel %vm783, %v4062, 0
      %v4254 = vsel %vm783, %v4063, 0
      %v4257 = vsel %vm783, %v4064, 0
      %v4260 = vsel %vm783, %v4065, 0
      %v4263 = vsel %vm783, %v4066, 0
      %v4266 = vsel %vm783, %v4067, 0
      %4268 = vmatprep.subr.bf16.mxu0 0
      %4269 = vmatpush1.bf16.msra.mxu0 %v4230
      %4270 = vmatprep.subr.bf16.mxu0 0
      %4271 = vmatpush1.bf16.msra.mxu0 %v4231
      %4272 = vmatprep.subr.bf16.mxu0 0
      %4273 = vmatpush1.bf16.msra.mxu0 %v4232
      %4274 = vmatprep.subr.bf16.mxu0 0
      %4275 = vmatpush1.bf16.msra.mxu0 %v4233
      %4276 = vmatprep.subr.bf16.mxu0 0
      %4277 = vmatpush1.bf16.msra.mxu0 %v4234
      %4278 = vmatprep.subr.bf16.mxu0 0
      %4279 = vmatpush1.bf16.msra.mxu0 %v4235
      %4280 = vmatprep.subr.bf16.mxu0 0
      %4281 = vmatpush1.bf16.msra.mxu0 %v4236
      %4282 = vmatprep.subr.bf16.mxu0 0
      %4283 = vmatpush1.bf16.msra.mxu0 %v4237
      %4284 = vmatprep.subr.bf16.mxu0 0
      %4285 = vmatpush1.bf16.msra.mxu0 %v4238
      %4286 = vmatprep.subr.bf16.mxu0 0
      %4287 = vmatpush1.bf16.msra.mxu0 %v4239
      %4288 = vmatprep.subr.bf16.mxu0 0
      %4289 = vmatpush1.bf16.msra.mxu0 0
      %4290 = vmatprep.subr.bf16.mxu0 0
      %4291 = vmatpush1.bf16.msra.mxu0 0
      %4292 = vmatprep.subr.bf16.mxu0 0
      %4293 = vmatpush1.bf16.msra.mxu0 0
      %4294 = vmatprep.subr.bf16.mxu0 0
      %4295 = vmatpush1.bf16.msra.mxu0 0
      %4296 = vmatprep.subr.bf16.mxu0 0
      %4297 = vmatpush1.bf16.msra.mxu0 0
      %4298 = vmatprep.subr.bf16.mxu0 0
      %4299 = vmatpush1.bf16.msra.mxu0 0
      %4300 = vmatprep.mubr.bf16.mxu0 %v4251
      %4301 = vmatmul.mubr.bf16.gmra.mrb[0].mxu0 %v4153
      %v4302 = vpop.f32.mrb[0].mxu0
      %v4303 = vadd.f32 0.0, %v4302
      %v4304 = vpop.f32.mrb[0].mxu0
      %v4305 = vpop.f32.mrb[0].mxu0
      %v4306 = vadd.f32 0.0, %v4305
      %v4307 = vpop.f32.mrb[0].mxu0
      %4308 = vmatprep.mubr.bf16.mxu0 %v4254
      %4309 = vmatmul.mubr.bf16.gmra.mrb[0].mxu0 %v4156
      %v4310 = vpop.f32.mrb[0].mxu0
      %v4311 = vadd.f32 0.0, %v4310
      %v4312 = vpop.f32.mrb[0].mxu0
      %v4313 = vpop.f32.mrb[0].mxu0
      %v4314 = vadd.f32 0.0, %v4313
      %v4315 = vpop.f32.mrb[0].mxu0
      %4316 = vmatprep.mubr.bf16.mxu0 %v4257
      %4317 = vmatmul.mubr.bf16.gmra.mrb[0].mxu0 %v4159
      %v4318 = vpop.f32.mrb[0].mxu0
      %v4319 = vadd.f32 0.0, %v4318
      %v4320 = vpop.f32.mrb[0].mxu0
      %v4321 = vpop.f32.mrb[0].mxu0
      %v4322 = vadd.f32 0.0, %v4321
      %v4323 = vpop.f32.mrb[0].mxu0
      %4324 = vmatprep.mubr.bf16.mxu0 %v4260
      %4325 = vmatmul.mubr.bf16.gmra.mrb[0].mxu0 %v4162
      %v4326 = vpop.f32.mrb[0].mxu0
      %v4327 = vadd.f32 0.0, %v4326
      %v4328 = vpop.f32.mrb[0].mxu0
      %v4329 = vpop.f32.mrb[0].mxu0
      %v4330 = vadd.f32 0.0, %v4329
      %v4331 = vpop.f32.mrb[0].mxu0
      %4332 = vmatprep.mubr.bf16.mxu0 %v4263
      %4333 = vmatmul.mubr.bf16.gmra.mrb[0].mxu0 %v4165
      %v4334 = vpop.f32.mrb[0].mxu0
      %v4335 = vadd.f32 0.0, %v4334
      %v4336 = vpop.f32.mrb[0].mxu0
      %v4337 = vpop.f32.mrb[0].mxu0
      %v4338 = vadd.f32 0.0, %v4337
      %v4339 = vpop.f32.mrb[0].mxu0
      %4340 = vmatprep.mubr.bf16.mxu0 %v4266
      %4341 = vmatmul.mubr.bf16.gmra.mrb[0].mxu0 %v4168
      %v4342 = vpop.f32.mrb[0].mxu0
      %v4343 = vadd.f32 0.0, %v4342
      %v4344 = vpop.f32.mrb[0].mxu0
      %v4345 = vpop.f32.mrb[0].mxu0
      %v4346 = vadd.f32 0.0, %v4345
      %v4347 = vpop.f32.mrb[0].mxu0
      %4348 = vdwg.mxu0
      %v4349 = vlaneseq
      %v4350 = vshrl.u32 %v4349, 7
      %v4351 = vsub.s32 0, %v4350
      %v4352 = vrot.slane %v3916, %v4351
      %v4353 = vmul.f32 %v4303, %v4352
      %v4354 = vmul.f32 %v4306, %v4352
      %v4355 = vmul.f32 %v4311, %v4352
      %v4356 = vmul.f32 %v4314, %v4352
      %v4357 = vmul.f32 %v4319, %v4352
      %v4358 = vmul.f32 %v4322, %v4352
      %v4359 = vmul.f32 %v4327, %v4352
      %v4360 = vmul.f32 %v4330, %v4352
      %v4361 = vmul.f32 %v4335, %v4352
      %v4362 = vmul.f32 %v4338, %v4352
      %v4363 = vmul.f32 %v4343, %v4352
      %v4364 = vmul.f32 %v4346, %v4352
      %v4365 = vlaneseq
      %v4366 = vshrl.u32 %v4365, 7
      %v4367 = vsub.s32 0, %v4366
      %v4368 = vrot.slane %v3917, %v4367
      %v4369 = vadd.f32 %v4353, %v4368
      %v4370 = vadd.f32 %v4354, %v4368
      %v4371 = vadd.f32 %v4355, %v4368
      %v4372 = vadd.f32 %v4356, %v4368
      %v4373 = vadd.f32 %v4357, %v4368
      %v4374 = vadd.f32 %v4358, %v4368
      %v4375 = vadd.f32 %v4359, %v4368
      %v4376 = vadd.f32 %v4360, %v4368
      %v4377 = vadd.f32 %v4361, %v4368
      %v4378 = vadd.f32 %v4362, %v4368
      %v4379 = vadd.f32 %v4363, %v4368
      %v4380 = vadd.f32 %v4364, %v4368
      %vm4381 = vcmp.ge.f32.partialorder %v4369, 0.0
      %vm4382 = vcmp.ge.f32.partialorder %v4370, 0.0
      %vm4383 = vcmp.ge.f32.partialorder %v4371, 0.0
      %vm4384 = vcmp.ge.f32.partialorder %v4372, 0.0
      %vm4385 = vcmp.ge.f32.partialorder %v4373, 0.0
      %vm4386 = vcmp.ge.f32.partialorder %v4374, 0.0
      %vm4387 = vcmp.ge.f32.partialorder %v4375, 0.0
      %vm4388 = vcmp.ge.f32.partialorder %v4376, 0.0
      %vm4389 = vcmp.ge.f32.partialorder %v4377, 0.0
      %vm4390 = vcmp.ge.f32.partialorder %v4378, 0.0
      %vm4391 = vcmp.ge.f32.partialorder %v4379, 0.0
      %vm4392 = vcmp.ge.f32.partialorder %v4380, 0.0
      %v4393 = vlaneseq
      %v4394 = vshrl.u32 %v4393, 7
      %v4395 = vsub.s32 0, %v4394
      %v4396 = vrot.slane %v3918, %v4395
      %v4397 = vmul.f32 %v4396, %v4369
      %v4398 = vmul.f32 %v4396, %v4370
      %v4399 = vmul.f32 %v4396, %v4371
      %v4400 = vmul.f32 %v4396, %v4372
      %v4401 = vmul.f32 %v4396, %v4373
      %v4402 = vmul.f32 %v4396, %v4374
      %v4403 = vmul.f32 %v4396, %v4375
      %v4404 = vmul.f32 %v4396, %v4376
      %v4405 = vmul.f32 %v4396, %v4377
      %v4406 = vmul.f32 %v4396, %v4378
      %v4407 = vmul.f32 %v4396, %v4379
      %v4408 = vmul.f32 %v4396, %v4380
      %v4409 = vsel %vm4381, %v4369, %v4397
      %v4410 = vsel %vm4382, %v4370, %v4398
      %v4411 = vsel %vm4383, %v4371, %v4399
      %v4412 = vsel %vm4384, %v4372, %v4400
      %v4413 = vsel %vm4385, %v4373, %v4401
      %v4414 = vsel %vm4386, %v4374, %v4402
      %v4415 = vsel %vm4387, %v4375, %v4403
      %v4416 = vsel %vm4388, %v4376, %v4404
      %v4417 = vsel %vm4389, %v4377, %v4405
      %v4418 = vsel %vm4390, %v4378, %v4406
      %v4419 = vsel %vm4391, %v4379, %v4407
      %v4420 = vsel %vm4392, %v4380, %v4408
      %4421 = vst.msk [vmem:[#allocation4] sm:$0xff] %vm2531, %v4409
      %4422 = vst.msk [vmem:[#allocation4 + $0x8] sm:$0xff] %vm2531, %v4410
      %4423 = vst.msk [vmem:[#allocation4 + $0x10] sm:$0xff] %vm2531, %v4411
      %4424 = vst.msk [vmem:[#allocation4 + $0x18] sm:$0xff] %vm2531, %v4412
      %4425 = vst.msk [vmem:[#allocation4 + $0x20] sm:$0xff] %vm2531, %v4413
      %4426 = vst.msk [vmem:[#allocation4 + $0x28] sm:$0xff] %vm2531, %v4414
      %4427 = vst.msk [vmem:[#allocation4 + $0x30] sm:$0xff] %vm2531, %v4415
      %4428 = vst.msk [vmem:[#allocation4 + $0x38] sm:$0xff] %vm2531, %v4416
      %4429 = vst.msk [vmem:[#allocation4 + $0x40] sm:$0xff] %vm2531, %v4417
      %4430 = vst.msk [vmem:[#allocation4 + $0x48] sm:$0xff] %vm2531, %v4418
      %4431 = vst.msk [vmem:[#allocation4 + $0x50] sm:$0xff] %vm2531, %v4419
      %vm4432 = vcmask 516096
      %4433 = vst.msk [vmem:[#allocation4 + $0x58] sm:$0x1] %vm4432, %v4420
      %v4434 = vld [vmem:[%s8] sm:$0x1]
      %v4435 = vld [vmem:[%s8 + $0x1] sm:$0x1]
      %v4436 = vld [vmem:[%s8 + $0x2] sm:$0x1]
      %v4437 = vld [vmem:[#allocation4] ss:$2 sm:$0xff]
      %s4438 = scalar_lea.vmem [#allocation4], 16
      %v4439 = vld [vmem:[%s4438] ss:$2 sm:$0xff]
      %s4440 = scalar_lea.vmem [#allocation4], 32
      %v4441 = vld [vmem:[%s4440] ss:$2 sm:$0xff]
      %s4442 = scalar_lea.vmem [#allocation4], 48
      %v4443 = vld [vmem:[%s4442] ss:$2 sm:$0xff]
      %s4444 = scalar_lea.vmem [#allocation4], 64
      %v4445 = vld [vmem:[%s4444] ss:$2 sm:$0xff]
      %s4446 = scalar_lea.vmem [#allocation4], 80
      %v4447 = vld [vmem:[%s4446] ss:$2 sm:$0xf]
      %v4448 = vpack.c.bf16 %v4439, %v4437
      %v4449 = vpack.c.bf16 %v4443, %v4441
      %v4450 = vpack.c.bf16 %v4447, %v4445
      %s4451 = scalar_lea.vmem [#allocation4], 1
      %v4452 = vld [vmem:[%s4451] ss:$2 sm:$0xff]
      %s4453 = scalar_lea.vmem [#allocation4], 17
      %v4454 = vld [vmem:[%s4453] ss:$2 sm:$0xff]
      %s4455 = scalar_lea.vmem [#allocation4], 33
      %v4456 = vld [vmem:[%s4455] ss:$2 sm:$0xff]
      %s4457 = scalar_lea.vmem [#allocation4], 49
      %v4458 = vld [vmem:[%s4457] ss:$2 sm:$0xff]
      %s4459 = scalar_lea.vmem [#allocation4], 65
      %v4460 = vld [vmem:[%s4459] ss:$2 sm:$0xff]
      %s4461 = scalar_lea.vmem [#allocation4], 81
      %v4462 = vld [vmem:[%s4461] ss:$2 sm:$0xf]
      %v4463 = vpack.c.bf16 %v4454, %v4452
      %v4464 = vpack.c.bf16 %v4458, %v4456
      %v4465 = vpack.c.bf16 %v4462, %v4460
      %s4466 = scalar_lea.vmem [#allocation4], 2
      %v4467 = vld [vmem:[%s4466] ss:$2 sm:$0xff]
      %s4468 = scalar_lea.vmem [#allocation4], 18
      %v4469 = vld [vmem:[%s4468] ss:$2 sm:$0xff]
      %s4470 = scalar_lea.vmem [#allocation4], 34
      %v4471 = vld [vmem:[%s4470] ss:$2 sm:$0xff]
      %s4472 = scalar_lea.vmem [#allocation4], 50
      %v4473 = vld [vmem:[%s4472] ss:$2 sm:$0xff]
      %s4474 = scalar_lea.vmem [#allocation4], 66
      %v4475 = vld [vmem:[%s4474] ss:$2 sm:$0xff]
      %s4476 = scalar_lea.vmem [#allocation4], 82
      %v4477 = vld [vmem:[%s4476] ss:$2 sm:$0xf]
      %v4478 = vpack.c.bf16 %v4469, %v4467
      %v4479 = vpack.c.bf16 %v4473, %v4471
      %v4480 = vpack.c.bf16 %v4477, %v4475
      %4484 = vrot.lane.b32.xlu0 %v4463, 64
      %v4485 = vpop.permute.xlu0 %4484
      %4486 = vrot.lane.b32.xlu0 %v4464, 64
      %v4487 = vpop.permute.xlu0 %4486
      %4488 = vrot.lane.b32.xlu0 %v4465, 64
      %v4489 = vpop.permute.xlu0 %4488
      %v4492 = vsel %vm2531, %v4448, %v4485
      %v4496 = vsel %vm2531, %v4449, %v4487
      %v4500 = vsel %vm2531, %v4450, %v4489
      %v4502 = vld [vmem:[%s7] sm:$0xf]
      %v4503 = vld [vmem:[%s7 + $0x4] sm:$0xf]
      %v4504 = vld [vmem:[%s7 + $0x8] sm:$0xf]
      %v4505 = vld [vmem:[%s7 + $0xc] sm:$0xf]
      %v4506 = vld [vmem:[%s7 + $0x10] sm:$0xf]
      %v4507 = vld [vmem:[%s7 + $0x14] sm:$0xf]
      %v4508 = vld [vmem:[%s7 + $0x18] sm:$0xf]
      %v4509 = vld [vmem:[%s7 + $0x1c] sm:$0xf]
      %v4510 = vld [vmem:[%s7 + $0x20] sm:$0xf]
      %v4511 = vld [vmem:[%s7 + $0x24] sm:$0xf]
      %v4512 = vld [vmem:[%s7 + $0x28] sm:$0xf]
      %v4513 = vld [vmem:[%s7 + $0x2c] sm:$0xf]
      %v4514 = vld [vmem:[%s7 + $0x30] sm:$0xf]
      %v4515 = vld [vmem:[%s7 + $0x34] sm:$0xf]
      %v4516 = vld [vmem:[%s7 + $0x38] sm:$0xf]
      %v4517 = vld [vmem:[%s7 + $0x3c] sm:$0xf]
      %v4518 = vld [vmem:[%s7 + $0x40] sm:$0xf]
      %v4519 = vld [vmem:[%s7 + $0x44] sm:$0xf]
      %v4520 = vld [vmem:[%s7 + $0x48] sm:$0xf]
      %v4521 = vld [vmem:[%s7 + $0x4c] sm:$0xf]
      %v4522 = vld [vmem:[%s7 + $0x50] sm:$0xf]
      %v4523 = vld [vmem:[%s7 + $0x54] sm:$0xf]
      %v4524 = vld [vmem:[%s7 + $0x58] sm:$0xf]
      %v4525 = vld [vmem:[%s7 + $0x5c] sm:$0xf]
      %v4550 = vunpack.c.l.b16 %v4502
      %v4551 = vunpack.c.l.b16 %v4503
      %v4552 = vunpack.c.l.b16 %v4504
      %v4553 = vunpack.c.l.b16 %v4505
      %v4554 = vunpack.c.l.b16 %v4506
      %v4555 = vunpack.c.l.b16 %v4507
      %v4556 = vunpack.c.l.b16 %v4508
      %v4557 = vunpack.c.l.b16 %v4509
      %v4558 = vunpack.c.l.b16 %v4510
      %v4559 = vunpack.c.l.b16 %v4511
      %v4560 = vunpack.c.l.b16 %v4512
      %v4561 = vunpack.c.l.b16 %v4513
      %v4562 = vunpack.c.l.b16 %v4514
      %v4563 = vunpack.c.l.b16 %v4515
      %v4564 = vunpack.c.l.b16 %v4516
      %v4565 = vunpack.c.l.b16 %v4517
      %v4566 = vunpack.c.l.b16 %v4518
      %v4567 = vunpack.c.l.b16 %v4519
      %v4568 = vunpack.c.l.b16 %v4520
      %v4569 = vunpack.c.l.b16 %v4521
      %v4570 = vunpack.c.l.b16 %v4522
      %v4571 = vunpack.c.l.b16 %v4523
      %v4572 = vunpack.c.l.b16 %v4524
      %v4573 = vunpack.c.l.b16 %v4525
      %v4574 = vpack.c.b16 %v4551, %v4550
      %v4575 = vpack.c.b16 %v4553, %v4552
      %v4576 = vpack.c.b16 %v4555, %v4554
      %v4577 = vpack.c.b16 %v4557, %v4556
      %v4578 = vpack.c.b16 %v4559, %v4558
      %v4579 = vpack.c.b16 %v4561, %v4560
      %v4580 = vpack.c.b16 %v4563, %v4562
      %v4581 = vpack.c.b16 %v4565, %v4564
      %v4582 = vpack.c.b16 %v4567, %v4566
      %v4583 = vpack.c.b16 %v4569, %v4568
      %v4584 = vpack.c.b16 %v4571, %v4570
      %v4585 = vpack.c.b16 %v4573, %v4572
      %v4599 = vsel %vm2531, %v4478, 0
      %v4602 = vsel %vm2531, %v4479, 0
      %v4605 = vsel %vm2531, %v4480, 0
      %4607 = vmatprep.subr.bf16.mxu0 0
      %4608 = vmatpush1.bf16.msra.mxu0 %v4574
      %4609 = vmatprep.subr.bf16.mxu0 0
      %4610 = vmatpush1.bf16.msra.mxu0 %v4575
      %4611 = vmatprep.subr.bf16.mxu0 0
      %4612 = vmatpush1.bf16.msra.mxu0 %v4576
      %4613 = vmatprep.subr.bf16.mxu0 0
      %4614 = vmatpush1.bf16.msra.mxu0 %v4577
      %4615 = vmatprep.subr.bf16.mxu0 0
      %4616 = vmatpush1.bf16.msra.mxu0 %v4578
      %4617 = vmatprep.subr.bf16.mxu0 0
      %4618 = vmatpush1.bf16.msra.mxu0 %v4579
      %4619 = vmatprep.subr.bf16.mxu0 0
      %4620 = vmatpush1.bf16.msra.mxu0 %v4580
      %4621 = vmatprep.subr.bf16.mxu0 0
      %4622 = vmatpush1.bf16.msra.mxu0 %v4581
      %4623 = vmatprep.subr.bf16.mxu0 0
      %4624 = vmatpush1.bf16.msra.mxu0 %v4582
      %4625 = vmatprep.subr.bf16.mxu0 0
      %4626 = vmatpush1.bf16.msra.mxu0 %v4583
      %4627 = vmatprep.subr.bf16.mxu0 0
      %4628 = vmatpush1.bf16.msra.mxu0 %v4584
      %4629 = vmatprep.subr.bf16.mxu0 0
      %4630 = vmatpush1.bf16.msra.mxu0 %v4585
      %4631 = vmatprep.subr.bf16.mxu0 0
      %4632 = vmatpush1.bf16.msra.mxu0 0
      %4633 = vmatprep.subr.bf16.mxu0 0
      %4634 = vmatpush1.bf16.msra.mxu0 0
      %4635 = vmatprep.subr.bf16.mxu0 0
      %4636 = vmatpush1.bf16.msra.mxu0 0
      %4637 = vmatprep.subr.bf16.mxu0 0
      %4638 = vmatpush1.bf16.msra.mxu0 0
      %4639 = vmatprep.mubr.bf16.mxu0 %v4599
      %4640 = vmatmul.mubr.bf16.gmra.mrb[0].mxu0 %v4492
      %v4641 = vpop.f32.mrb[0].mxu0
      %v4642 = vadd.f32 0.0, %v4641
      %v4643 = vpop.f32.mrb[0].mxu0
      %v4644 = vpop.f32.mrb[0].mxu0
      %v4645 = vadd.f32 0.0, %v4644
      %v4646 = vpop.f32.mrb[0].mxu0
      %4647 = vmatprep.mubr.bf16.mxu0 %v4602
      %4648 = vmatmul.mubr.bf16.gmra.mrb[0].mxu0 %v4496
      %v4649 = vpop.f32.mrb[0].mxu0
      %v4650 = vadd.f32 0.0, %v4649
      %v4651 = vpop.f32.mrb[0].mxu0
      %v4652 = vpop.f32.mrb[0].mxu0
      %v4653 = vadd.f32 0.0, %v4652
      %v4654 = vpop.f32.mrb[0].mxu0
      %4655 = vmatprep.mubr.bf16.mxu0 %v4605
      %4656 = vmatmul.mubr.bf16.gmra.mrb[0].mxu0 %v4500
      %v4657 = vpop.f32.mrb[0].mxu0
      %v4658 = vadd.f32 0.0, %v4657
      %v4659 = vpop.f32.mrb[0].mxu0
      %v4660 = vpop.f32.mrb[0].mxu0
      %v4661 = vadd.f32 0.0, %v4660
      %v4662 = vpop.f32.mrb[0].mxu0
      %4663 = vdwg.mxu0
      %v4664 = vlaneseq
      %v4665 = vshrl.u32 %v4664, 7
      %v4666 = vsub.s32 0, %v4665
      %v4667 = vrot.slane %v4434, %v4666
      %v4668 = vmul.f32 %v4642, %v4667
      %v4669 = vmul.f32 %v4645, %v4667
      %v4670 = vmul.f32 %v4650, %v4667
      %v4671 = vmul.f32 %v4653, %v4667
      %v4672 = vmul.f32 %v4658, %v4667
      %v4673 = vmul.f32 %v4661, %v4667
      %v4674 = vlaneseq
      %v4675 = vshrl.u32 %v4674, 7
      %v4676 = vsub.s32 0, %v4675
      %v4677 = vrot.slane %v4435, %v4676
      %v4678 = vadd.f32 %v4668, %v4677
      %v4679 = vadd.f32 %v4669, %v4677
      %v4680 = vadd.f32 %v4670, %v4677
      %v4681 = vadd.f32 %v4671, %v4677
      %v4682 = vadd.f32 %v4672, %v4677
      %v4683 = vadd.f32 %v4673, %v4677
      %vm4684 = vcmp.ge.f32.partialorder %v4678, 0.0
      %vm4685 = vcmp.ge.f32.partialorder %v4679, 0.0
      %vm4686 = vcmp.ge.f32.partialorder %v4680, 0.0
      %vm4687 = vcmp.ge.f32.partialorder %v4681, 0.0
      %vm4688 = vcmp.ge.f32.partialorder %v4682, 0.0
      %vm4689 = vcmp.ge.f32.partialorder %v4683, 0.0
      %v4690 = vlaneseq
      %v4691 = vshrl.u32 %v4690, 7
      %v4692 = vsub.s32 0, %v4691
      %v4693 = vrot.slane %v4436, %v4692
      %v4694 = vmul.f32 %v4693, %v4678
      %v4695 = vmul.f32 %v4693, %v4679
      %v4696 = vmul.f32 %v4693, %v4680
      %v4697 = vmul.f32 %v4693, %v4681
      %v4698 = vmul.f32 %v4693, %v4682
      %v4699 = vmul.f32 %v4693, %v4683
      %v4700 = vsel %vm4684, %v4678, %v4694
      %v4701 = vsel %vm4685, %v4679, %v4695
      %v4702 = vsel %vm4686, %v4680, %v4696
      %v4703 = vsel %vm4687, %v4681, %v4697
      %v4704 = vsel %vm4688, %v4682, %v4698
      %v4705 = vsel %vm4689, %v4683, %v4699
      %4706 = vst [vmem:[#allocation5] sm:$0xff] %v4700
      %4707 = vst [vmem:[#allocation5 + $0x8] sm:$0xff] %v4701
      %4708 = vst [vmem:[#allocation5 + $0x10] sm:$0xff] %v4702
      %4709 = vst [vmem:[#allocation5 + $0x18] sm:$0xff] %v4703
      %4710 = vst [vmem:[#allocation5 + $0x20] sm:$0xff] %v4704
      %4711 = vst [vmem:[#allocation5 + $0x28] sm:$0xf] %v4705
      %v4712 = vld [vmem:[%s10] ss:$4 sm:$0x3]
      %s4713 = scalar_lea.vmem %s10, 1
      %v4714 = vld [vmem:[%s4713] ss:$4 sm:$0x3]
      %s4715 = scalar_lea.vmem %s10, 2
      %v4716 = vld [vmem:[%s4715] ss:$4 sm:$0x3]
      %v4717 = vld [vmem:[#allocation5] ss:$4 sm:$0xff]
      %s4718 = scalar_lea.vmem [#allocation5], 32
      %v4719 = vld [vmem:[%s4718] ss:$4 sm:$0x7]
      %v4720 = vpack.c.bf16 %v4719, %v4717
      %s4721 = scalar_lea.vmem [#allocation5], 1
      %v4722 = vld [vmem:[%s4721] ss:$4 sm:$0xff]
      %s4723 = scalar_lea.vmem [#allocation5], 33
      %v4724 = vld [vmem:[%s4723] ss:$4 sm:$0x7]
      %v4725 = vpack.c.bf16 %v4724, %v4722
      %v4726 = vld [vmem:[%s9] sm:$0xff]
      %v4727 = vld [vmem:[%s9 + $0x8] sm:$0xff]
      %v4728 = vld [vmem:[%s9 + $0x10] sm:$0xff]
      %v4729 = vld [vmem:[%s9 + $0x18] sm:$0xff]
      %v4730 = vld [vmem:[%s9 + $0x20] sm:$0xff]
      %v4731 = vld [vmem:[%s9 + $0x28] sm:$0xff]
      %v4732 = vld [vmem:[%s9 + $0x30] sm:$0xff]
      %v4733 = vld [vmem:[%s9 + $0x38] sm:$0xff]
      %v4734 = vld [vmem:[%s9 + $0x40] sm:$0xff]
      %v4735 = vld [vmem:[%s9 + $0x48] sm:$0xff]
      %v4736 = vld [vmem:[%s9 + $0x50] sm:$0xff]
      %v4737 = vld [vmem:[%s9 + $0x58] sm:$0xff]
      %v4738 = vld [vmem:[%s9 + $0x60] sm:$0xff]
      %v4739 = vld [vmem:[%s9 + $0x68] sm:$0xff]
      %v4740 = vld [vmem:[%s9 + $0x70] sm:$0xff]
      %v4741 = vld [vmem:[%s9 + $0x78] sm:$0xff]
      %v4742 = vld [vmem:[%s9 + $0x80] sm:$0xff]
      %v4743 = vld [vmem:[%s9 + $0x88] sm:$0xff]
      %v4744 = vld [vmem:[%s9 + $0x90] sm:$0xff]
      %v4745 = vld [vmem:[%s9 + $0x98] sm:$0xff]
      %v4746 = vld [vmem:[%s9 + $0xa0] sm:$0xff]
      %v4747 = vld [vmem:[%s9 + $0xa8] sm:$0xff]
      %v4748 = vld [vmem:[%s9 + $0xb0] sm:$0xff]
      %v4749 = vld [vmem:[%s9 + $0xb8] sm:$0xff]
      %v4750 = vld [vmem:[%s9 + $0xc0] sm:$0xff]
      %v4751 = vld [vmem:[%s9 + $0xc8] sm:$0xff]
      %v4752 = vld [vmem:[%s9 + $0xd0] sm:$0xff]
      %v4753 = vld [vmem:[%s9 + $0xd8] sm:$0xff]
      %v4754 = vld [vmem:[%s9 + $0xe0] sm:$0xff]
      %v4755 = vld [vmem:[%s9 + $0xe8] sm:$0xff]
      %v4756 = vld [vmem:[%s9 + $0xf0] sm:$0xff]
      %v4757 = vld [vmem:[%s9 + $0xf8] sm:$0xff]
      %v4790 = vunpack.c.l.b16 %v4726
      %v4791 = vunpack.c.h.b16 %v4726
      %v4792 = vunpack.c.l.b16 %v4727
      %v4793 = vunpack.c.h.b16 %v4727
      %v4794 = vunpack.c.l.b16 %v4728
      %v4795 = vunpack.c.h.b16 %v4728
      %v4796 = vunpack.c.l.b16 %v4729
      %v4797 = vunpack.c.h.b16 %v4729
      %v4798 = vunpack.c.l.b16 %v4730
      %v4799 = vunpack.c.h.b16 %v4730
      %v4800 = vunpack.c.l.b16 %v4731
      %v4801 = vunpack.c.h.b16 %v4731
      %v4802 = vunpack.c.l.b16 %v4732
      %v4803 = vunpack.c.h.b16 %v4732
      %v4804 = vunpack.c.l.b16 %v4733
      %v4805 = vunpack.c.h.b16 %v4733
      %v4806 = vunpack.c.l.b16 %v4734
      %v4807 = vunpack.c.h.b16 %v4734
      %v4808 = vunpack.c.l.b16 %v4735
      %v4809 = vunpack.c.h.b16 %v4735
      %v4810 = vunpack.c.l.b16 %v4736
      %v4811 = vunpack.c.h.b16 %v4736
      %v4812 = vunpack.c.l.b16 %v4737
      %v4813 = vunpack.c.h.b16 %v4737
      %v4814 = vunpack.c.l.b16 %v4738
      %v4815 = vunpack.c.h.b16 %v4738
      %v4816 = vunpack.c.l.b16 %v4739
      %v4817 = vunpack.c.h.b16 %v4739
      %v4818 = vunpack.c.l.b16 %v4740
      %v4819 = vunpack.c.h.b16 %v4740
      %v4820 = vunpack.c.l.b16 %v4741
      %v4821 = vunpack.c.h.b16 %v4741
      %v4822 = vunpack.c.l.b16 %v4742
      %v4823 = vunpack.c.h.b16 %v4742
      %v4824 = vunpack.c.l.b16 %v4743
      %v4825 = vunpack.c.h.b16 %v4743
      %v4826 = vunpack.c.l.b16 %v4744
      %v4827 = vunpack.c.h.b16 %v4744
      %v4828 = vunpack.c.l.b16 %v4745
      %v4829 = vunpack.c.h.b16 %v4745
      %v4830 = vunpack.c.l.b16 %v4746
      %v4831 = vunpack.c.h.b16 %v4746
      %v4832 = vunpack.c.l.b16 %v4747
      %v4833 = vunpack.c.h.b16 %v4747
      %v4834 = vunpack.c.l.b16 %v4748
      %v4835 = vunpack.c.h.b16 %v4748
      %v4836 = vunpack.c.l.b16 %v4749
      %v4837 = vunpack.c.h.b16 %v4749
      %v4838 = vunpack.c.l.b16 %v4750
      %v4839 = vunpack.c.h.b16 %v4750
      %v4840 = vunpack.c.l.b16 %v4751
      %v4841 = vunpack.c.h.b16 %v4751
      %v4842 = vunpack.c.l.b16 %v4752
      %v4843 = vunpack.c.h.b16 %v4752
      %v4844 = vunpack.c.l.b16 %v4753
      %v4845 = vunpack.c.h.b16 %v4753
      %v4846 = vunpack.c.l.b16 %v4754
      %v4847 = vunpack.c.h.b16 %v4754
      %v4848 = vunpack.c.l.b16 %v4755
      %v4849 = vunpack.c.h.b16 %v4755
      %v4850 = vunpack.c.l.b16 %v4756
      %v4851 = vunpack.c.h.b16 %v4756
      %v4852 = vunpack.c.l.b16 %v4757
      %v4853 = vunpack.c.h.b16 %v4757
      %v4854 = vpack.c.b16 %v4792, %v4790
      %v4855 = vpack.c.b16 %v4793, %v4791
      %v4856 = vpack.c.b16 %v4796, %v4794
      %v4857 = vpack.c.b16 %v4797, %v4795
      %v4858 = vpack.c.b16 %v4800, %v4798
      %v4859 = vpack.c.b16 %v4801, %v4799
      %v4860 = vpack.c.b16 %v4804, %v4802
      %v4861 = vpack.c.b16 %v4805, %v4803
      %v4862 = vpack.c.b16 %v4808, %v4806
      %v4863 = vpack.c.b16 %v4809, %v4807
      %v4864 = vpack.c.b16 %v4812, %v4810
      %v4865 = vpack.c.b16 %v4813, %v4811
      %v4866 = vpack.c.b16 %v4816, %v4814
      %v4867 = vpack.c.b16 %v4817, %v4815
      %v4868 = vpack.c.b16 %v4820, %v4818
      %v4869 = vpack.c.b16 %v4821, %v4819
      %v4870 = vpack.c.b16 %v4824, %v4822
      %v4871 = vpack.c.b16 %v4825, %v4823
      %v4872 = vpack.c.b16 %v4828, %v4826
      %v4873 = vpack.c.b16 %v4829, %v4827
      %v4874 = vpack.c.b16 %v4832, %v4830
      %v4875 = vpack.c.b16 %v4833, %v4831
      %v4876 = vpack.c.b16 %v4836, %v4834
      %v4877 = vpack.c.b16 %v4837, %v4835
      %v4878 = vpack.c.b16 %v4840, %v4838
      %v4879 = vpack.c.b16 %v4841, %v4839
      %v4880 = vpack.c.b16 %v4844, %v4842
      %v4881 = vpack.c.b16 %v4845, %v4843
      %v4882 = vpack.c.b16 %v4848, %v4846
      %v4883 = vpack.c.b16 %v4849, %v4847
      %v4884 = vpack.c.b16 %v4852, %v4850
      %v4885 = vpack.c.b16 %v4853, %v4851
      %4918 = vmatprep.subr.bf16.mxu0 %v4855
      %4919 = vmatpush1.bf16.msra.mxu0 %v4854
      %4920 = vmatprep.subr.bf16.mxu0 %v4857
      %4921 = vmatpush1.bf16.msra.mxu0 %v4856
      %4922 = vmatprep.subr.bf16.mxu0 %v4859
      %4923 = vmatpush1.bf16.msra.mxu0 %v4858
      %4924 = vmatprep.subr.bf16.mxu0 %v4861
      %4925 = vmatpush1.bf16.msra.mxu0 %v4860
      %4926 = vmatprep.subr.bf16.mxu0 %v4863
      %4927 = vmatpush1.bf16.msra.mxu0 %v4862
      %4928 = vmatprep.subr.bf16.mxu0 %v4865
      %4929 = vmatpush1.bf16.msra.mxu0 %v4864
      %4930 = vmatprep.subr.bf16.mxu0 %v4867
      %4931 = vmatpush1.bf16.msra.mxu0 %v4866
      %4932 = vmatprep.subr.bf16.mxu0 %v4869
      %4933 = vmatpush1.bf16.msra.mxu0 %v4868
      %4934 = vmatprep.subr.bf16.mxu0 %v4871
      %4935 = vmatpush1.bf16.msra.mxu0 %v4870
      %4936 = vmatprep.subr.bf16.mxu0 %v4873
      %4937 = vmatpush1.bf16.msra.mxu0 %v4872
      %4938 = vmatprep.subr.bf16.mxu0 %v4875
      %4939 = vmatpush1.bf16.msra.mxu0 %v4874
      %4940 = vmatprep.subr.bf16.mxu0 %v4877
      %4941 = vmatpush1.bf16.msra.mxu0 %v4876
      %4942 = vmatprep.subr.bf16.mxu0 %v4879
      %4943 = vmatpush1.bf16.msra.mxu0 %v4878
      %4944 = vmatprep.subr.bf16.mxu0 %v4881
      %4945 = vmatpush1.bf16.msra.mxu0 %v4880
      %4946 = vmatprep.subr.bf16.mxu0 %v4883
      %4947 = vmatpush1.bf16.msra.mxu0 %v4882
      %4948 = vmatprep.subr.bf16.mxu0 %v4885
      %4949 = vmatpush1.bf16.msra.mxu0 %v4884
      %4950 = vmatprep.mubr.bf16.mxu0 %v4725
      %4951 = vmatmul.mubr.bf16.gmra.mrb[0].mxu0 %v4720
      %v4952 = vpop.f32.mrb[0].mxu0
      %v4953 = vadd.f32 0.0, %v4952
      %v4954 = vpop.f32.mrb[0].mxu0
      %v4955 = vadd.f32 0.0, %v4954
      %v4956 = vpop.f32.mrb[0].mxu0
      %v4957 = vadd.f32 0.0, %v4956
      %v4958 = vpop.f32.mrb[0].mxu0
      %v4959 = vadd.f32 0.0, %v4958
      %4960 = vdwg.mxu0
      %v4962 = vlaneseq
      %v4963 = vshrl.u32 %v4962, 7
      %v4964 = vsub.s32 0, %v4963
      %v4965 = vrot.slane %v4712, %v4964
      %v4966 = vlaneseq
      %v4967 = vshrl.u32 %v4966, 7
      %v4968 = vsub.s32 1, %v4967
      %v4969 = vrot.slane %v4712, %v4968
      %v4972 = vmul.f32 %v4953, %v4965
      %v4973 = vmul.f32 %v4955, %v4969
      %v4974 = vmul.f32 %v4957, %v4965
      %v4975 = vmul.f32 %v4959, %v4969
      %v4977 = vlaneseq
      %v4978 = vshrl.u32 %v4977, 7
      %v4979 = vsub.s32 0, %v4978
      %v4980 = vrot.slane %v4714, %v4979
      %v4981 = vlaneseq
      %v4982 = vshrl.u32 %v4981, 7
      %v4983 = vsub.s32 1, %v4982
      %v4984 = vrot.slane %v4714, %v4983
      %v4987 = vadd.f32 %v4972, %v4980
      %v4988 = vadd.f32 %v4973, %v4984
      %v4989 = vadd.f32 %v4974, %v4980
      %v4990 = vadd.f32 %v4975, %v4984
      %vm4991 = vcmp.ge.f32.partialorder %v4987, 0.0
      %vm4992 = vcmp.ge.f32.partialorder %v4988, 0.0
      %vm4993 = vcmp.ge.f32.partialorder %v4989, 0.0
      %vm4994 = vcmp.ge.f32.partialorder %v4990, 0.0
      %v4996 = vlaneseq
      %v4997 = vshrl.u32 %v4996, 7
      %v4998 = vsub.s32 0, %v4997
      %v4999 = vrot.slane %v4716, %v4998
      %v5000 = vlaneseq
      %v5001 = vshrl.u32 %v5000, 7
      %v5002 = vsub.s32 1, %v5001
      %v5003 = vrot.slane %v4716, %v5002
      %v5006 = vmul.f32 %v4999, %v4987
      %v5007 = vmul.f32 %v5003, %v4988
      %v5008 = vmul.f32 %v4999, %v4989
      %v5009 = vmul.f32 %v5003, %v4990
      %v5010 = vsel %vm4991, %v4987, %v5006
      %v5011 = vsel %vm4992, %v4988, %v5007
      %v5012 = vsel %vm4993, %v4989, %v5008
      %v5013 = vsel %vm4994, %v4990, %v5009
      %v5014 = vpack.c.bf16 %v5012, %v5010
      %v5015 = vpack.c.bf16 %v5013, %v5011
      %vm5016 = vsmask.f32 5376
      %vm5017 = vmand %vm698, %vm5016
      %v5018 = vld [vmem:[#allocation6] sm:$0x3f]
      %v5019 = vsel %vm5017, %v5014, %v5018
      %5020 = vst [vmem:[#allocation6] sm:$0x3f] %v5019
      %v5021 = vld [vmem:[#allocation6 + $0x8] sm:$0x3f]
      %v5022 = vsel %vm5017, %v5015, %v5021
      %5023 = vst [vmem:[#allocation6 + $0x8] sm:$0x3f] %v5022
      %v5024 = vld [vmem:[%s12 + $0x1] sm:$0x1]
      %v5025 = vld [vmem:[#allocation6] sm:$0x1]
      %v5026 = vld [vmem:[#allocation6 + $0x8] sm:$0x1]
      %v5027 = vld [vmem:[#allocation6] sm:$0x2]
      %v5028 = vld [vmem:[#allocation6 + $0x8] sm:$0x2]
      %v5029 = vld [vmem:[#allocation6] sm:$0x4]
      %v5030 = vld [vmem:[#allocation6 + $0x8] sm:$0x4]
      %v5031 = vld [vmem:[#allocation6] sm:$0x8]
      %v5032 = vld [vmem:[#allocation6 + $0x8] sm:$0x8]
      %v5033 = vld [vmem:[#allocation6] sm:$0x10]
      %v5034 = vld [vmem:[#allocation6 + $0x8] sm:$0x10]
      %v5035 = vld [vmem:[#allocation6] sm:$0x20]
      %v5036 = vld [vmem:[#allocation6 + $0x8] sm:$0x20]
      %v5038 = vshrl.u32 %v5025, 16
      %v5041 = vshrl.u32 %v5026, 16
      %v5047 = vrot.slane %v5027, 1
      %v5048 = vrot.slane %v5028, 1
      %v5052 = vshrl.u32 %v5027, 16
      %v5054 = vrot.slane %v5052, 1
      %v5056 = vshrl.u32 %v5028, 16
      %v5058 = vrot.slane %v5056, 1
      %v5063 = vrot.slane %v5029, 2
      %v5064 = vrot.slane %v5030, 2
      %v5068 = vshrl.u32 %v5029, 16
      %v5070 = vrot.slane %v5068, 2
      %v5072 = vshrl.u32 %v5030, 16
      %v5074 = vrot.slane %v5072, 2
      %v5079 = vrot.slane %v5031, 3
      %v5080 = vrot.slane %v5032, 3
      %v5084 = vshrl.u32 %v5031, 16
      %v5086 = vrot.slane %v5084, 3
      %v5088 = vshrl.u32 %v5032, 16
      %v5090 = vrot.slane %v5088, 3
      %v5095 = vrot.slane %v5033, 4
      %v5096 = vrot.slane %v5034, 4
      %v5100 = vshrl.u32 %v5033, 16
      %v5102 = vrot.slane %v5100, 4
      %v5104 = vshrl.u32 %v5034, 16
      %v5106 = vrot.slane %v5104, 4
      %v5111 = vrot.slane %v5035, 5
      %v5112 = vrot.slane %v5036, 5
      %v5115 = vld [vmem:[%s11] sm:$0xf]
      %v5116 = vld [vmem:[%s11 + $0x4] sm:$0xf]
      %v5117 = vld [vmem:[%s11 + $0x8] sm:$0xf]
      %v5118 = vld [vmem:[%s11 + $0xc] sm:$0xf]
      %v5119 = vld [vmem:[%s11 + $0x10] sm:$0xf]
      %v5120 = vld [vmem:[%s11 + $0x14] sm:$0xf]
      %v5121 = vld [vmem:[%s11 + $0x18] sm:$0xf]
      %v5122 = vld [vmem:[%s11 + $0x1c] sm:$0xf]
      %v5123 = vld [vmem:[%s11 + $0x20] sm:$0xf]
      %v5124 = vld [vmem:[%s11 + $0x24] sm:$0xf]
      %v5125 = vld [vmem:[%s11 + $0x28] sm:$0xf]
      %v5126 = vld [vmem:[%s11 + $0x2c] sm:$0xf]
      %v5127 = vld [vmem:[%s11 + $0x30] sm:$0xf]
      %v5128 = vld [vmem:[%s11 + $0x34] sm:$0xf]
      %v5129 = vld [vmem:[%s11 + $0x38] sm:$0xf]
      %v5130 = vld [vmem:[%s11 + $0x3c] sm:$0xf]
      %v5131 = vld [vmem:[%s11 + $0x40] sm:$0xf]
      %v5132 = vld [vmem:[%s11 + $0x44] sm:$0xf]
      %v5133 = vld [vmem:[%s11 + $0x48] sm:$0xf]
      %v5134 = vld [vmem:[%s11 + $0x4c] sm:$0xf]
      %v5135 = vld [vmem:[%s11 + $0x50] sm:$0xf]
      %v5136 = vld [vmem:[%s11 + $0x54] sm:$0xf]
      %v5137 = vld [vmem:[%s11 + $0x58] sm:$0xf]
      %v5138 = vld [vmem:[%s11 + $0x5c] sm:$0xf]
      %v5139 = vld [vmem:[%s11 + $0x60] sm:$0xf]
      %v5140 = vld [vmem:[%s11 + $0x64] sm:$0xf]
      %v5141 = vld [vmem:[%s11 + $0x68] sm:$0xf]
      %v5142 = vld [vmem:[%s11 + $0x6c] sm:$0xf]
      %v5143 = vld [vmem:[%s11 + $0x70] sm:$0xf]
      %v5144 = vld [vmem:[%s11 + $0x74] sm:$0xf]
      %v5145 = vld [vmem:[%s11 + $0x78] sm:$0xf]
      %v5146 = vld [vmem:[%s11 + $0x7c] sm:$0xf]
      %v5147 = vld [vmem:[%s11 + $0x80] sm:$0xf]
      %v5148 = vld [vmem:[%s11 + $0x84] sm:$0xf]
      %v5149 = vld [vmem:[%s11 + $0x88] sm:$0xf]
      %v5150 = vld [vmem:[%s11 + $0x8c] sm:$0xf]
      %v5151 = vld [vmem:[%s11 + $0x90] sm:$0xf]
      %v5152 = vld [vmem:[%s11 + $0x94] sm:$0xf]
      %v5153 = vld [vmem:[%s11 + $0x98] sm:$0xf]
      %v5154 = vld [vmem:[%s11 + $0x9c] sm:$0xf]
      %v5155 = vld [vmem:[%s11 + $0xa0] sm:$0xf]
      %v5156 = vld [vmem:[%s11 + $0xa4] sm:$0xf]
      %v5157 = vld [vmem:[%s11 + $0xa8] sm:$0xf]
      %v5158 = vld [vmem:[%s11 + $0xac] sm:$0xf]
      %v5159 = vld [vmem:[%s11 + $0xb0] sm:$0xf]
      %v5160 = vld [vmem:[%s11 + $0xb4] sm:$0xf]
      %v5161 = vld [vmem:[%s11 + $0xb8] sm:$0xf]
      %v5162 = vld [vmem:[%s11 + $0xbc] sm:$0xf]
      %v5163 = vld [vmem:[%s11 + $0xc0] sm:$0xf]
      %v5164 = vld [vmem:[%s11 + $0xc4] sm:$0xf]
      %v5165 = vld [vmem:[%s11 + $0xc8] sm:$0xf]
      %v5166 = vld [vmem:[%s11 + $0xcc] sm:$0xf]
      %v5167 = vld [vmem:[%s11 + $0xd0] sm:$0xf]
      %v5168 = vld [vmem:[%s11 + $0xd4] sm:$0xf]
      %v5169 = vld [vmem:[%s11 + $0xd8] sm:$0xf]
      %v5170 = vld [vmem:[%s11 + $0xdc] sm:$0xf]
      %v5171 = vld [vmem:[%s11 + $0xe0] sm:$0xf]
      %v5172 = vld [vmem:[%s11 + $0xe4] sm:$0xf]
      %v5173 = vld [vmem:[%s11 + $0xe8] sm:$0xf]
      %v5174 = vld [vmem:[%s11 + $0xec] sm:$0xf]
      %v5175 = vld [vmem:[%s11 + $0xf0] sm:$0xf]
      %v5176 = vld [vmem:[%s11 + $0xf4] sm:$0xf]
      %v5177 = vld [vmem:[%s11 + $0xf8] sm:$0xf]
      %v5178 = vld [vmem:[%s11 + $0xfc] sm:$0xf]
      %v5179 = vld [vmem:[%s11 + $0x100] sm:$0xf]
      %v5180 = vld [vmem:[%s11 + $0x104] sm:$0xf]
      %v5181 = vld [vmem:[%s11 + $0x108] sm:$0xf]
      %v5182 = vld [vmem:[%s11 + $0x10c] sm:$0xf]
      %v5183 = vld [vmem:[%s11 + $0x110] sm:$0xf]
      %v5184 = vld [vmem:[%s11 + $0x114] sm:$0xf]
      %v5185 = vld [vmem:[%s11 + $0x118] sm:$0xf]
      %v5186 = vld [vmem:[%s11 + $0x11c] sm:$0xf]
      %v5187 = vld [vmem:[%s11 + $0x120] sm:$0xf]
      %v5188 = vld [vmem:[%s11 + $0x124] sm:$0xf]
      %v5189 = vld [vmem:[%s11 + $0x128] sm:$0xf]
      %v5190 = vld [vmem:[%s11 + $0x12c] sm:$0xf]
      %v5191 = vld [vmem:[%s11 + $0x130] sm:$0xf]
      %v5192 = vld [vmem:[%s11 + $0x134] sm:$0xf]
      %v5193 = vld [vmem:[%s11 + $0x138] sm:$0xf]
      %v5194 = vld [vmem:[%s11 + $0x13c] sm:$0xf]
      %v5195 = vld [vmem:[%s11 + $0x140] sm:$0xf]
      %v5196 = vld [vmem:[%s11 + $0x144] sm:$0xf]
      %v5197 = vld [vmem:[%s11 + $0x148] sm:$0xf]
      %v5198 = vld [vmem:[%s11 + $0x14c] sm:$0xf]
      %v5199 = vld [vmem:[%s11 + $0x150] sm:$0xf]
      %v5200 = vld [vmem:[%s11 + $0x154] sm:$0xf]
      %v5201 = vld [vmem:[%s11 + $0x158] sm:$0xf]
      %v5202 = vld [vmem:[%s11 + $0x15c] sm:$0xf]
      %v5203 = vld [vmem:[%s11 + $0x160] sm:$0xf]
      %v5204 = vld [vmem:[%s11 + $0x164] sm:$0xf]
      %v5205 = vld [vmem:[%s11 + $0x168] sm:$0xf]
      %v5206 = vld [vmem:[%s11 + $0x16c] sm:$0xf]
      %v5207 = vld [vmem:[%s11 + $0x170] sm:$0xf]
      %v5208 = vld [vmem:[%s11 + $0x174] sm:$0xf]
      %v5209 = vld [vmem:[%s11 + $0x178] sm:$0xf]
      %v5210 = vld [vmem:[%s11 + $0x17c] sm:$0xf]
      %v5211 = vld [vmem:[%s11 + $0x180] sm:$0xf]
      %v5212 = vld [vmem:[%s11 + $0x184] sm:$0xf]
      %v5213 = vld [vmem:[%s11 + $0x188] sm:$0xf]
      %v5214 = vld [vmem:[%s11 + $0x18c] sm:$0xf]
      %v5215 = vld [vmem:[%s11 + $0x190] sm:$0xf]
      %v5216 = vld [vmem:[%s11 + $0x194] sm:$0xf]
      %v5217 = vld [vmem:[%s11 + $0x198] sm:$0xf]
      %v5218 = vld [vmem:[%s11 + $0x19c] sm:$0xf]
      %v5219 = vld [vmem:[%s11 + $0x1a0] sm:$0xf]
      %v5220 = vld [vmem:[%s11 + $0x1a4] sm:$0xf]
      %v5221 = vld [vmem:[%s11 + $0x1a8] sm:$0xf]
      %v5222 = vld [vmem:[%s11 + $0x1ac] sm:$0xf]
      %v5223 = vld [vmem:[%s11 + $0x1b0] sm:$0xf]
      %v5224 = vld [vmem:[%s11 + $0x1b4] sm:$0xf]
      %v5225 = vld [vmem:[%s11 + $0x1b8] sm:$0xf]
      %v5226 = vld [vmem:[%s11 + $0x1bc] sm:$0xf]
      %v5227 = vld [vmem:[%s11 + $0x1c0] sm:$0xf]
      %v5228 = vld [vmem:[%s11 + $0x1c4] sm:$0xf]
      %v5229 = vld [vmem:[%s11 + $0x1c8] sm:$0xf]
      %v5230 = vld [vmem:[%s11 + $0x1cc] sm:$0xf]
      %v5231 = vld [vmem:[%s11 + $0x1d0] sm:$0xf]
      %v5232 = vld [vmem:[%s11 + $0x1d4] sm:$0xf]
      %v5233 = vld [vmem:[%s11 + $0x1d8] sm:$0xf]
      %v5234 = vld [vmem:[%s11 + $0x1dc] sm:$0xf]
      %v5235 = vld [vmem:[%s11 + $0x1e0] sm:$0xf]
      %v5236 = vld [vmem:[%s11 + $0x1e4] sm:$0xf]
      %v5237 = vld [vmem:[%s11 + $0x1e8] sm:$0xf]
      %v5238 = vld [vmem:[%s11 + $0x1ec] sm:$0xf]
      %v5239 = vld [vmem:[%s11 + $0x1f0] sm:$0xf]
      %v5240 = vld [vmem:[%s11 + $0x1f4] sm:$0xf]
      %v5241 = vld [vmem:[%s11 + $0x1f8] sm:$0xf]
      %v5242 = vld [vmem:[%s11 + $0x1fc] sm:$0xf]
      %v5243 = vld [vmem:[%s11 + $0x200] sm:$0xf]
      %v5244 = vld [vmem:[%s11 + $0x204] sm:$0xf]
      %v5245 = vld [vmem:[%s11 + $0x208] sm:$0xf]
      %v5246 = vld [vmem:[%s11 + $0x20c] sm:$0xf]
      %v5247 = vld [vmem:[%s11 + $0x210] sm:$0xf]
      %v5248 = vld [vmem:[%s11 + $0x214] sm:$0xf]
      %v5249 = vld [vmem:[%s11 + $0x218] sm:$0xf]
      %v5250 = vld [vmem:[%s11 + $0x21c] sm:$0xf]
      %v5251 = vld [vmem:[%s11 + $0x220] sm:$0xf]
      %v5252 = vld [vmem:[%s11 + $0x224] sm:$0xf]
      %v5253 = vld [vmem:[%s11 + $0x228] sm:$0xf]
      %v5254 = vld [vmem:[%s11 + $0x22c] sm:$0xf]
      %v5255 = vld [vmem:[%s11 + $0x230] sm:$0xf]
      %v5256 = vld [vmem:[%s11 + $0x234] sm:$0xf]
      %v5257 = vld [vmem:[%s11 + $0x238] sm:$0xf]
      %v5258 = vld [vmem:[%s11 + $0x23c] sm:$0xf]
      %v5259 = vld [vmem:[%s11 + $0x240] sm:$0xf]
      %v5260 = vld [vmem:[%s11 + $0x244] sm:$0xf]
      %v5261 = vld [vmem:[%s11 + $0x248] sm:$0xf]
      %v5262 = vld [vmem:[%s11 + $0x24c] sm:$0xf]
      %v5263 = vld [vmem:[%s11 + $0x250] sm:$0xf]
      %v5264 = vld [vmem:[%s11 + $0x254] sm:$0xf]
      %v5265 = vld [vmem:[%s11 + $0x258] sm:$0xf]
      %v5266 = vld [vmem:[%s11 + $0x25c] sm:$0xf]
      %v5267 = vld [vmem:[%s11 + $0x260] sm:$0xf]
      %v5268 = vld [vmem:[%s11 + $0x264] sm:$0xf]
      %v5269 = vld [vmem:[%s11 + $0x268] sm:$0xf]
      %v5270 = vld [vmem:[%s11 + $0x26c] sm:$0xf]
      %v5271 = vld [vmem:[%s11 + $0x270] sm:$0xf]
      %v5272 = vld [vmem:[%s11 + $0x274] sm:$0xf]
      %v5273 = vld [vmem:[%s11 + $0x278] sm:$0xf]
      %v5274 = vld [vmem:[%s11 + $0x27c] sm:$0xf]
      %v5275 = vld [vmem:[%s11 + $0x280] sm:$0xf]
      %v5276 = vld [vmem:[%s11 + $0x284] sm:$0xf]
      %v5277 = vld [vmem:[%s11 + $0x288] sm:$0xf]
      %v5278 = vld [vmem:[%s11 + $0x28c] sm:$0xf]
      %v5279 = vld [vmem:[%s11 + $0x290] sm:$0xf]
      %v5280 = vld [vmem:[%s11 + $0x294] sm:$0xf]
      %v5281 = vld [vmem:[%s11 + $0x298] sm:$0xf]
      %v5282 = vld [vmem:[%s11 + $0x29c] sm:$0xf]
      %v5283 = vld [vmem:[%s11 + $0x2a0] sm:$0xf]
      %v5284 = vld [vmem:[%s11 + $0x2a4] sm:$0xf]
      %v5285 = vld [vmem:[%s11 + $0x2a8] sm:$0xf]
      %v5286 = vld [vmem:[%s11 + $0x2ac] sm:$0xf]
      %v5287 = vld [vmem:[%s11 + $0x2b0] sm:$0xf]
      %v5288 = vld [vmem:[%s11 + $0x2b4] sm:$0xf]
      %v5289 = vld [vmem:[%s11 + $0x2b8] sm:$0xf]
      %v5290 = vld [vmem:[%s11 + $0x2bc] sm:$0xf]
      %v5291 = vld [vmem:[%s11 + $0x2c0] sm:$0xf]
      %v5292 = vld [vmem:[%s11 + $0x2c4] sm:$0xf]
      %v5293 = vld [vmem:[%s11 + $0x2c8] sm:$0xf]
      %v5294 = vld [vmem:[%s11 + $0x2cc] sm:$0xf]
      %v5295 = vld [vmem:[%s11 + $0x2d0] sm:$0xf]
      %v5296 = vld [vmem:[%s11 + $0x2d4] sm:$0xf]
      %v5297 = vld [vmem:[%s11 + $0x2d8] sm:$0xf]
      %v5298 = vld [vmem:[%s11 + $0x2dc] sm:$0xf]
      %v5299 = vld [vmem:[%s11 + $0x2e0] sm:$0xf]
      %v5300 = vld [vmem:[%s11 + $0x2e4] sm:$0xf]
      %v5301 = vld [vmem:[%s11 + $0x2e8] sm:$0xf]
      %v5302 = vld [vmem:[%s11 + $0x2ec] sm:$0xf]
      %v5303 = vld [vmem:[%s11 + $0x2f0] sm:$0xf]
      %v5304 = vld [vmem:[%s11 + $0x2f4] sm:$0xf]
      %v5305 = vld [vmem:[%s11 + $0x2f8] sm:$0xf]
      %v5306 = vld [vmem:[%s11 + $0x2fc] sm:$0xf]
      %v5307 = vld [vmem:[%s11 + $0x300] sm:$0xf]
      %v5308 = vld [vmem:[%s11 + $0x304] sm:$0xf]
      %v5309 = vld [vmem:[%s11 + $0x308] sm:$0xf]
      %v5310 = vld [vmem:[%s11 + $0x30c] sm:$0xf]
      %v5311 = vld [vmem:[%s11 + $0x310] sm:$0xf]
      %v5312 = vld [vmem:[%s11 + $0x314] sm:$0xf]
      %v5313 = vld [vmem:[%s11 + $0x318] sm:$0xf]
      %v5314 = vld [vmem:[%s11 + $0x31c] sm:$0xf]
      %v5315 = vld [vmem:[%s11 + $0x320] sm:$0xf]
      %v5316 = vld [vmem:[%s11 + $0x324] sm:$0xf]
      %v5317 = vld [vmem:[%s11 + $0x328] sm:$0xf]
      %v5318 = vld [vmem:[%s11 + $0x32c] sm:$0xf]
      %v5319 = vld [vmem:[%s11 + $0x330] sm:$0xf]
      %v5320 = vld [vmem:[%s11 + $0x334] sm:$0xf]
      %v5321 = vld [vmem:[%s11 + $0x338] sm:$0xf]
      %v5322 = vld [vmem:[%s11 + $0x33c] sm:$0xf]
      %v5323 = vld [vmem:[%s11 + $0x340] sm:$0xf]
      %v5324 = vld [vmem:[%s11 + $0x344] sm:$0xf]
      %v5325 = vld [vmem:[%s11 + $0x348] sm:$0xf]
      %v5326 = vld [vmem:[%s11 + $0x34c] sm:$0xf]
      %v5327 = vld [vmem:[%s11 + $0x350] sm:$0xf]
      %v5328 = vld [vmem:[%s11 + $0x354] sm:$0xf]
      %v5329 = vld [vmem:[%s11 + $0x358] sm:$0xf]
      %v5330 = vld [vmem:[%s11 + $0x35c] sm:$0xf]
      %v5331 = vld [vmem:[%s11 + $0x360] sm:$0xf]
      %v5332 = vld [vmem:[%s11 + $0x364] sm:$0xf]
      %v5333 = vld [vmem:[%s11 + $0x368] sm:$0xf]
      %v5334 = vld [vmem:[%s11 + $0x36c] sm:$0xf]
      %v5335 = vld [vmem:[%s11 + $0x370] sm:$0xf]
      %v5336 = vld [vmem:[%s11 + $0x374] sm:$0xf]
      %v5337 = vld [vmem:[%s11 + $0x378] sm:$0xf]
      %v5338 = vld [vmem:[%s11 + $0x37c] sm:$0xf]
      %v5339 = vld [vmem:[%s11 + $0x380] sm:$0xf]
      %v5340 = vld [vmem:[%s11 + $0x384] sm:$0xf]
      %v5341 = vld [vmem:[%s11 + $0x388] sm:$0xf]
      %v5342 = vld [vmem:[%s11 + $0x38c] sm:$0xf]
      %v5343 = vld [vmem:[%s11 + $0x390] sm:$0xf]
      %v5344 = vld [vmem:[%s11 + $0x394] sm:$0xf]
      %v5345 = vld [vmem:[%s11 + $0x398] sm:$0xf]
      %v5346 = vld [vmem:[%s11 + $0x39c] sm:$0xf]
      %v5347 = vld [vmem:[%s11 + $0x3a0] sm:$0xf]
      %v5348 = vld [vmem:[%s11 + $0x3a4] sm:$0xf]
      %v5349 = vld [vmem:[%s11 + $0x3a8] sm:$0xf]
      %v5350 = vld [vmem:[%s11 + $0x3ac] sm:$0xf]
      %v5351 = vld [vmem:[%s11 + $0x3b0] sm:$0xf]
      %v5352 = vld [vmem:[%s11 + $0x3b4] sm:$0xf]
      %v5353 = vld [vmem:[%s11 + $0x3b8] sm:$0xf]
      %v5354 = vld [vmem:[%s11 + $0x3bc] sm:$0xf]
      %v5355 = vld [vmem:[%s11 + $0x3c0] sm:$0xf]
      %v5356 = vld [vmem:[%s11 + $0x3c4] sm:$0xf]
      %v5357 = vld [vmem:[%s11 + $0x3c8] sm:$0xf]
      %v5358 = vld [vmem:[%s11 + $0x3cc] sm:$0xf]
      %v5359 = vld [vmem:[%s11 + $0x3d0] sm:$0xf]
      %v5360 = vld [vmem:[%s11 + $0x3d4] sm:$0xf]
      %v5361 = vld [vmem:[%s11 + $0x3d8] sm:$0xf]
      %v5362 = vld [vmem:[%s11 + $0x3dc] sm:$0xf]
      %v5363 = vld [vmem:[%s11 + $0x3e0] sm:$0xf]
      %v5364 = vld [vmem:[%s11 + $0x3e4] sm:$0xf]
      %v5365 = vld [vmem:[%s11 + $0x3e8] sm:$0xf]
      %v5366 = vld [vmem:[%s11 + $0x3ec] sm:$0xf]
      %v5367 = vld [vmem:[%s11 + $0x3f0] sm:$0xf]
      %v5368 = vld [vmem:[%s11 + $0x3f4] sm:$0xf]
      %v5369 = vld [vmem:[%s11 + $0x3f8] sm:$0xf]
      %v5370 = vld [vmem:[%s11 + $0x3fc] sm:$0xf]
      %v5371 = vld [vmem:[%s11 + $0x400] sm:$0xf]
      %v5372 = vld [vmem:[%s11 + $0x404] sm:$0xf]
      %v5373 = vld [vmem:[%s11 + $0x408] sm:$0xf]
      %v5374 = vld [vmem:[%s11 + $0x40c] sm:$0xf]
      %v5375 = vld [vmem:[%s11 + $0x410] sm:$0xf]
      %v5376 = vld [vmem:[%s11 + $0x414] sm:$0xf]
      %v5377 = vld [vmem:[%s11 + $0x418] sm:$0xf]
      %v5378 = vld [vmem:[%s11 + $0x41c] sm:$0xf]
      %v5379 = vld [vmem:[%s11 + $0x420] sm:$0xf]
      %v5380 = vld [vmem:[%s11 + $0x424] sm:$0xf]
      %v5381 = vld [vmem:[%s11 + $0x428] sm:$0xf]
      %v5382 = vld [vmem:[%s11 + $0x42c] sm:$0xf]
      %v5383 = vld [vmem:[%s11 + $0x430] sm:$0xf]
      %v5384 = vld [vmem:[%s11 + $0x434] sm:$0xf]
      %v5385 = vld [vmem:[%s11 + $0x438] sm:$0xf]
      %v5386 = vld [vmem:[%s11 + $0x43c] sm:$0xf]
      %v5387 = vld [vmem:[%s11 + $0x440] sm:$0xf]
      %v5388 = vld [vmem:[%s11 + $0x444] sm:$0xf]
      %v5389 = vld [vmem:[%s11 + $0x448] sm:$0xf]
      %v5390 = vld [vmem:[%s11 + $0x44c] sm:$0xf]
      %v5391 = vld [vmem:[%s11 + $0x450] sm:$0xf]
      %v5392 = vld [vmem:[%s11 + $0x454] sm:$0xf]
      %v5393 = vld [vmem:[%s11 + $0x458] sm:$0xf]
      %v5394 = vld [vmem:[%s11 + $0x45c] sm:$0xf]
      %v5395 = vld [vmem:[%s11 + $0x460] sm:$0xf]
      %v5396 = vld [vmem:[%s11 + $0x464] sm:$0xf]
      %v5397 = vld [vmem:[%s11 + $0x468] sm:$0xf]
      %v5398 = vld [vmem:[%s11 + $0x46c] sm:$0xf]
      %v5399 = vld [vmem:[%s11 + $0x470] sm:$0xf]
      %v5400 = vld [vmem:[%s11 + $0x474] sm:$0xf]
      %v5401 = vld [vmem:[%s11 + $0x478] sm:$0xf]
      %v5402 = vld [vmem:[%s11 + $0x47c] sm:$0xf]
      %v5403 = vld [vmem:[%s11 + $0x480] sm:$0xf]
      %v5404 = vld [vmem:[%s11 + $0x484] sm:$0xf]
      %v5405 = vld [vmem:[%s11 + $0x488] sm:$0xf]
      %v5406 = vld [vmem:[%s11 + $0x48c] sm:$0xf]
      %v5407 = vld [vmem:[%s11 + $0x490] sm:$0xf]
      %v5408 = vld [vmem:[%s11 + $0x494] sm:$0xf]
      %v5409 = vld [vmem:[%s11 + $0x498] sm:$0xf]
      %v5410 = vld [vmem:[%s11 + $0x49c] sm:$0xf]
      %v5411 = vld [vmem:[%s11 + $0x4a0] sm:$0xf]
      %v5412 = vld [vmem:[%s11 + $0x4a4] sm:$0xf]
      %v5413 = vld [vmem:[%s11 + $0x4a8] sm:$0xf]
      %v5414 = vld [vmem:[%s11 + $0x4ac] sm:$0xf]
      %v5415 = vld [vmem:[%s11 + $0x4b0] sm:$0xf]
      %v5416 = vld [vmem:[%s11 + $0x4b4] sm:$0xf]
      %v5417 = vld [vmem:[%s11 + $0x4b8] sm:$0xf]
      %v5418 = vld [vmem:[%s11 + $0x4bc] sm:$0xf]
      %v5419 = vld [vmem:[%s11 + $0x4c0] sm:$0xf]
      %v5420 = vld [vmem:[%s11 + $0x4c4] sm:$0xf]
      %v5421 = vld [vmem:[%s11 + $0x4c8] sm:$0xf]
      %v5422 = vld [vmem:[%s11 + $0x4cc] sm:$0xf]
      %v5423 = vld [vmem:[%s11 + $0x4d0] sm:$0xf]
      %v5424 = vld [vmem:[%s11 + $0x4d4] sm:$0xf]
      %v5425 = vld [vmem:[%s11 + $0x4d8] sm:$0xf]
      %v5426 = vld [vmem:[%s11 + $0x4dc] sm:$0xf]
      %v5427 = vld [vmem:[%s11 + $0x4e0] sm:$0xf]
      %v5428 = vld [vmem:[%s11 + $0x4e4] sm:$0xf]
      %v5429 = vld [vmem:[%s11 + $0x4e8] sm:$0xf]
      %v5430 = vld [vmem:[%s11 + $0x4ec] sm:$0xf]
      %v5431 = vld [vmem:[%s11 + $0x4f0] sm:$0xf]
      %v5432 = vld [vmem:[%s11 + $0x4f4] sm:$0xf]
      %v5433 = vld [vmem:[%s11 + $0x4f8] sm:$0xf]
      %v5434 = vld [vmem:[%s11 + $0x4fc] sm:$0xf]
      %v5435 = vld [vmem:[%s11 + $0x500] sm:$0xf]
      %v5436 = vld [vmem:[%s11 + $0x504] sm:$0xf]
      %v5437 = vld [vmem:[%s11 + $0x508] sm:$0xf]
      %v5438 = vld [vmem:[%s11 + $0x50c] sm:$0xf]
      %v5439 = vld [vmem:[%s11 + $0x510] sm:$0xf]
      %v5440 = vld [vmem:[%s11 + $0x514] sm:$0xf]
      %v5441 = vld [vmem:[%s11 + $0x518] sm:$0xf]
      %v5442 = vld [vmem:[%s11 + $0x51c] sm:$0xf]
      %v5443 = vld [vmem:[%s11 + $0x520] sm:$0xf]
      %v5444 = vld [vmem:[%s11 + $0x524] sm:$0xf]
      %v5445 = vld [vmem:[%s11 + $0x528] sm:$0xf]
      %v5446 = vld [vmem:[%s11 + $0x52c] sm:$0xf]
      %v5447 = vld [vmem:[%s11 + $0x530] sm:$0xf]
      %v5448 = vld [vmem:[%s11 + $0x534] sm:$0xf]
      %v5449 = vld [vmem:[%s11 + $0x538] sm:$0xf]
      %v5450 = vld [vmem:[%s11 + $0x53c] sm:$0xf]
      %v5451 = vld [vmem:[%s11 + $0x540] sm:$0xf]
      %v5452 = vld [vmem:[%s11 + $0x544] sm:$0xf]
      %v5453 = vld [vmem:[%s11 + $0x548] sm:$0xf]
      %v5454 = vld [vmem:[%s11 + $0x54c] sm:$0xf]
      %v5455 = vld [vmem:[%s11 + $0x550] sm:$0xf]
      %v5456 = vld [vmem:[%s11 + $0x554] sm:$0xf]
      %v5457 = vld [vmem:[%s11 + $0x558] sm:$0xf]
      %v5458 = vld [vmem:[%s11 + $0x55c] sm:$0xf]
      %v5459 = vld [vmem:[%s11 + $0x560] sm:$0xf]
      %v5460 = vld [vmem:[%s11 + $0x564] sm:$0xf]
      %v5461 = vld [vmem:[%s11 + $0x568] sm:$0xf]
      %v5462 = vld [vmem:[%s11 + $0x56c] sm:$0xf]
      %v5463 = vld [vmem:[%s11 + $0x570] sm:$0xf]
      %v5464 = vld [vmem:[%s11 + $0x574] sm:$0xf]
      %v5465 = vld [vmem:[%s11 + $0x578] sm:$0xf]
      %v5466 = vld [vmem:[%s11 + $0x57c] sm:$0xf]
      %v5819 = vunpack.c.l.b16 %v5115
      %v5820 = vunpack.c.l.b16 %v5116
      %v5821 = vunpack.c.l.b16 %v5117
      %v5822 = vunpack.c.l.b16 %v5118
      %v5823 = vunpack.c.l.b16 %v5119
      %v5824 = vunpack.c.l.b16 %v5120
      %v5825 = vunpack.c.l.b16 %v5121
      %v5826 = vunpack.c.l.b16 %v5122
      %v5827 = vunpack.c.l.b16 %v5123
      %v5828 = vunpack.c.l.b16 %v5124
      %v5829 = vunpack.c.l.b16 %v5125
      %v5830 = vunpack.c.l.b16 %v5126
      %v5831 = vunpack.c.l.b16 %v5127
      %v5832 = vunpack.c.l.b16 %v5128
      %v5833 = vunpack.c.l.b16 %v5129
      %v5834 = vunpack.c.l.b16 %v5130
      %v5835 = vunpack.c.l.b16 %v5131
      %v5836 = vunpack.c.l.b16 %v5132
      %v5837 = vunpack.c.l.b16 %v5133
      %v5838 = vunpack.c.l.b16 %v5134
      %v5839 = vunpack.c.l.b16 %v5135
      %v5840 = vunpack.c.l.b16 %v5136
      %v5841 = vunpack.c.l.b16 %v5137
      %v5842 = vunpack.c.l.b16 %v5138
      %v5843 = vunpack.c.l.b16 %v5139
      %v5844 = vunpack.c.l.b16 %v5140
      %v5845 = vunpack.c.l.b16 %v5141
      %v5846 = vunpack.c.l.b16 %v5142
      %v5847 = vunpack.c.l.b16 %v5143
      %v5848 = vunpack.c.l.b16 %v5144
      %v5849 = vunpack.c.l.b16 %v5145
      %v5850 = vunpack.c.l.b16 %v5146
      %v5851 = vunpack.c.l.b16 %v5147
      %v5852 = vunpack.c.l.b16 %v5148
      %v5853 = vunpack.c.l.b16 %v5149
      %v5854 = vunpack.c.l.b16 %v5150
      %v5855 = vunpack.c.l.b16 %v5151
      %v5856 = vunpack.c.l.b16 %v5152
      %v5857 = vunpack.c.l.b16 %v5153
      %v5858 = vunpack.c.l.b16 %v5154
      %v5859 = vunpack.c.l.b16 %v5155
      %v5860 = vunpack.c.l.b16 %v5156
      %v5861 = vunpack.c.l.b16 %v5157
      %v5862 = vunpack.c.l.b16 %v5158
      %v5863 = vunpack.c.l.b16 %v5159
      %v5864 = vunpack.c.l.b16 %v5160
      %v5865 = vunpack.c.l.b16 %v5161
      %v5866 = vunpack.c.l.b16 %v5162
      %v5867 = vunpack.c.l.b16 %v5163
      %v5868 = vunpack.c.l.b16 %v5164
      %v5869 = vunpack.c.l.b16 %v5165
      %v5870 = vunpack.c.l.b16 %v5166
      %v5871 = vunpack.c.l.b16 %v5167
      %v5872 = vunpack.c.l.b16 %v5168
      %v5873 = vunpack.c.l.b16 %v5169
      %v5874 = vunpack.c.l.b16 %v5170
      %v5875 = vunpack.c.l.b16 %v5171
      %v5876 = vunpack.c.l.b16 %v5172
      %v5877 = vunpack.c.l.b16 %v5173
      %v5878 = vunpack.c.l.b16 %v5174
      %v5879 = vunpack.c.l.b16 %v5175
      %v5880 = vunpack.c.l.b16 %v5176
      %v5881 = vunpack.c.l.b16 %v5177
      %v5882 = vunpack.c.l.b16 %v5178
      %v5883 = vunpack.c.l.b16 %v5179
      %v5884 = vunpack.c.l.b16 %v5180
      %v5885 = vunpack.c.l.b16 %v5181
      %v5886 = vunpack.c.l.b16 %v5182
      %v5887 = vunpack.c.l.b16 %v5183
      %v5888 = vunpack.c.l.b16 %v5184
      %v5889 = vunpack.c.l.b16 %v5185
      %v5890 = vunpack.c.l.b16 %v5186
      %v5891 = vunpack.c.l.b16 %v5187
      %v5892 = vunpack.c.l.b16 %v5188
      %v5893 = vunpack.c.l.b16 %v5189
      %v5894 = vunpack.c.l.b16 %v5190
      %v5895 = vunpack.c.l.b16 %v5191
      %v5896 = vunpack.c.l.b16 %v5192
      %v5897 = vunpack.c.l.b16 %v5193
      %v5898 = vunpack.c.l.b16 %v5194
      %v5899 = vunpack.c.l.b16 %v5195
      %v5900 = vunpack.c.l.b16 %v5196
      %v5901 = vunpack.c.l.b16 %v5197
      %v5902 = vunpack.c.l.b16 %v5198
      %v5903 = vunpack.c.l.b16 %v5199
      %v5904 = vunpack.c.l.b16 %v5200
      %v5905 = vunpack.c.l.b16 %v5201
      %v5906 = vunpack.c.l.b16 %v5202
      %v5907 = vunpack.c.l.b16 %v5203
      %v5908 = vunpack.c.l.b16 %v5204
      %v5909 = vunpack.c.l.b16 %v5205
      %v5910 = vunpack.c.l.b16 %v5206
      %v5911 = vunpack.c.l.b16 %v5207
      %v5912 = vunpack.c.l.b16 %v5208
      %v5913 = vunpack.c.l.b16 %v5209
      %v5914 = vunpack.c.l.b16 %v5210
      %v5915 = vunpack.c.l.b16 %v5211
      %v5916 = vunpack.c.l.b16 %v5212
      %v5917 = vunpack.c.l.b16 %v5213
      %v5918 = vunpack.c.l.b16 %v5214
      %v5919 = vunpack.c.l.b16 %v5215
      %v5920 = vunpack.c.l.b16 %v5216
      %v5921 = vunpack.c.l.b16 %v5217
      %v5922 = vunpack.c.l.b16 %v5218
      %v5923 = vunpack.c.l.b16 %v5219
      %v5924 = vunpack.c.l.b16 %v5220
      %v5925 = vunpack.c.l.b16 %v5221
      %v5926 = vunpack.c.l.b16 %v5222
      %v5927 = vunpack.c.l.b16 %v5223
      %v5928 = vunpack.c.l.b16 %v5224
      %v5929 = vunpack.c.l.b16 %v5225
      %v5930 = vunpack.c.l.b16 %v5226
      %v5931 = vunpack.c.l.b16 %v5227
      %v5932 = vunpack.c.l.b16 %v5228
      %v5933 = vunpack.c.l.b16 %v5229
      %v5934 = vunpack.c.l.b16 %v5230
      %v5935 = vunpack.c.l.b16 %v5231
      %v5936 = vunpack.c.l.b16 %v5232
      %v5937 = vunpack.c.l.b16 %v5233
      %v5938 = vunpack.c.l.b16 %v5234
      %v5939 = vunpack.c.l.b16 %v5235
      %v5940 = vunpack.c.l.b16 %v5236
      %v5941 = vunpack.c.l.b16 %v5237
      %v5942 = vunpack.c.l.b16 %v5238
      %v5943 = vunpack.c.l.b16 %v5239
      %v5944 = vunpack.c.l.b16 %v5240
      %v5945 = vunpack.c.l.b16 %v5241
      %v5946 = vunpack.c.l.b16 %v5242
      %v5947 = vunpack.c.l.b16 %v5243
      %v5948 = vunpack.c.l.b16 %v5244
      %v5949 = vunpack.c.l.b16 %v5245
      %v5950 = vunpack.c.l.b16 %v5246
      %v5951 = vunpack.c.l.b16 %v5247
      %v5952 = vunpack.c.l.b16 %v5248
      %v5953 = vunpack.c.l.b16 %v5249
      %v5954 = vunpack.c.l.b16 %v5250
      %v5955 = vunpack.c.l.b16 %v5251
      %v5956 = vunpack.c.l.b16 %v5252
      %v5957 = vunpack.c.l.b16 %v5253
      %v5958 = vunpack.c.l.b16 %v5254
      %v5959 = vunpack.c.l.b16 %v5255
      %v5960 = vunpack.c.l.b16 %v5256
      %v5961 = vunpack.c.l.b16 %v5257
      %v5962 = vunpack.c.l.b16 %v5258
      %v5963 = vunpack.c.l.b16 %v5259
      %v5964 = vunpack.c.l.b16 %v5260
      %v5965 = vunpack.c.l.b16 %v5261
      %v5966 = vunpack.c.l.b16 %v5262
      %v5967 = vunpack.c.l.b16 %v5263
      %v5968 = vunpack.c.l.b16 %v5264
      %v5969 = vunpack.c.l.b16 %v5265
      %v5970 = vunpack.c.l.b16 %v5266
      %v5971 = vunpack.c.l.b16 %v5267
      %v5972 = vunpack.c.l.b16 %v5268
      %v5973 = vunpack.c.l.b16 %v5269
      %v5974 = vunpack.c.l.b16 %v5270
      %v5975 = vunpack.c.l.b16 %v5271
      %v5976 = vunpack.c.l.b16 %v5272
      %v5977 = vunpack.c.l.b16 %v5273
      %v5978 = vunpack.c.l.b16 %v5274
      %v5979 = vunpack.c.l.b16 %v5275
      %v5980 = vunpack.c.l.b16 %v5276
      %v5981 = vunpack.c.l.b16 %v5277
      %v5982 = vunpack.c.l.b16 %v5278
      %v5983 = vunpack.c.l.b16 %v5279
      %v5984 = vunpack.c.l.b16 %v5280
      %v5985 = vunpack.c.l.b16 %v5281
      %v5986 = vunpack.c.l.b16 %v5282
      %v5987 = vunpack.c.l.b16 %v5283
      %v5988 = vunpack.c.l.b16 %v5284
      %v5989 = vunpack.c.l.b16 %v5285
      %v5990 = vunpack.c.l.b16 %v5286
      %v5991 = vunpack.c.l.b16 %v5287
      %v5992 = vunpack.c.l.b16 %v5288
      %v5993 = vunpack.c.l.b16 %v5289
      %v5994 = vunpack.c.l.b16 %v5290
      %v5995 = vunpack.c.l.b16 %v5291
      %v5996 = vunpack.c.l.b16 %v5292
      %v5997 = vunpack.c.l.b16 %v5293
      %v5998 = vunpack.c.l.b16 %v5294
      %v5999 = vunpack.c.l.b16 %v5295
      %v6000 = vunpack.c.l.b16 %v5296
      %v6001 = vunpack.c.l.b16 %v5297
      %v6002 = vunpack.c.l.b16 %v5298
      %v6003 = vunpack.c.l.b16 %v5299
      %v6004 = vunpack.c.l.b16 %v5300
      %v6005 = vunpack.c.l.b16 %v5301
      %v6006 = vunpack.c.l.b16 %v5302
      %v6007 = vunpack.c.l.b16 %v5303
      %v6008 = vunpack.c.l.b16 %v5304
      %v6009 = vunpack.c.l.b16 %v5305
      %v6010 = vunpack.c.l.b16 %v5306
      %v6011 = vunpack.c.l.b16 %v5307
      %v6012 = vunpack.c.l.b16 %v5308
      %v6013 = vunpack.c.l.b16 %v5309
      %v6014 = vunpack.c.l.b16 %v5310
      %v6015 = vunpack.c.l.b16 %v5311
      %v6016 = vunpack.c.l.b16 %v5312
      %v6017 = vunpack.c.l.b16 %v5313
      %v6018 = vunpack.c.l.b16 %v5314
      %v6019 = vunpack.c.l.b16 %v5315
      %v6020 = vunpack.c.l.b16 %v5316
      %v6021 = vunpack.c.l.b16 %v5317
      %v6022 = vunpack.c.l.b16 %v5318
      %v6023 = vunpack.c.l.b16 %v5319
      %v6024 = vunpack.c.l.b16 %v5320
      %v6025 = vunpack.c.l.b16 %v5321
      %v6026 = vunpack.c.l.b16 %v5322
      %v6027 = vunpack.c.l.b16 %v5323
      %v6028 = vunpack.c.l.b16 %v5324
      %v6029 = vunpack.c.l.b16 %v5325
      %v6030 = vunpack.c.l.b16 %v5326
      %v6031 = vunpack.c.l.b16 %v5327
      %v6032 = vunpack.c.l.b16 %v5328
      %v6033 = vunpack.c.l.b16 %v5329
      %v6034 = vunpack.c.l.b16 %v5330
      %v6035 = vunpack.c.l.b16 %v5331
      %v6036 = vunpack.c.l.b16 %v5332
      %v6037 = vunpack.c.l.b16 %v5333
      %v6038 = vunpack.c.l.b16 %v5334
      %v6039 = vunpack.c.l.b16 %v5335
      %v6040 = vunpack.c.l.b16 %v5336
      %v6041 = vunpack.c.l.b16 %v5337
      %v6042 = vunpack.c.l.b16 %v5338
      %v6043 = vunpack.c.l.b16 %v5339
      %v6044 = vunpack.c.l.b16 %v5340
      %v6045 = vunpack.c.l.b16 %v5341
      %v6046 = vunpack.c.l.b16 %v5342
      %v6047 = vunpack.c.l.b16 %v5343
      %v6048 = vunpack.c.l.b16 %v5344
      %v6049 = vunpack.c.l.b16 %v5345
      %v6050 = vunpack.c.l.b16 %v5346
      %v6051 = vunpack.c.l.b16 %v5347
      %v6052 = vunpack.c.l.b16 %v5348
      %v6053 = vunpack.c.l.b16 %v5349
      %v6054 = vunpack.c.l.b16 %v5350
      %v6055 = vunpack.c.l.b16 %v5351
      %v6056 = vunpack.c.l.b16 %v5352
      %v6057 = vunpack.c.l.b16 %v5353
      %v6058 = vunpack.c.l.b16 %v5354
      %v6059 = vunpack.c.l.b16 %v5355
      %v6060 = vunpack.c.l.b16 %v5356
      %v6061 = vunpack.c.l.b16 %v5357
      %v6062 = vunpack.c.l.b16 %v5358
      %v6063 = vunpack.c.l.b16 %v5359
      %v6064 = vunpack.c.l.b16 %v5360
      %v6065 = vunpack.c.l.b16 %v5361
      %v6066 = vunpack.c.l.b16 %v5362
      %v6067 = vunpack.c.l.b16 %v5363
      %v6068 = vunpack.c.l.b16 %v5364
      %v6069 = vunpack.c.l.b16 %v5365
      %v6070 = vunpack.c.l.b16 %v5366
      %v6071 = vunpack.c.l.b16 %v5367
      %v6072 = vunpack.c.l.b16 %v5368
      %v6073 = vunpack.c.l.b16 %v5369
      %v6074 = vunpack.c.l.b16 %v5370
      %v6075 = vunpack.c.l.b16 %v5371
      %v6076 = vunpack.c.l.b16 %v5372
      %v6077 = vunpack.c.l.b16 %v5373
      %v6078 = vunpack.c.l.b16 %v5374
      %v6079 = vunpack.c.l.b16 %v5375
      %v6080 = vunpack.c.l.b16 %v5376
      %v6081 = vunpack.c.l.b16 %v5377
      %v6082 = vunpack.c.l.b16 %v5378
      %v6083 = vunpack.c.l.b16 %v5379
      %v6084 = vunpack.c.l.b16 %v5380
      %v6085 = vunpack.c.l.b16 %v5381
      %v6086 = vunpack.c.l.b16 %v5382
      %v6087 = vunpack.c.l.b16 %v5383
      %v6088 = vunpack.c.l.b16 %v5384
      %v6089 = vunpack.c.l.b16 %v5385
      %v6090 = vunpack.c.l.b16 %v5386
      %v6091 = vunpack.c.l.b16 %v5387
      %v6092 = vunpack.c.l.b16 %v5388
      %v6093 = vunpack.c.l.b16 %v5389
      %v6094 = vunpack.c.l.b16 %v5390
      %v6095 = vunpack.c.l.b16 %v5391
      %v6096 = vunpack.c.l.b16 %v5392
      %v6097 = vunpack.c.l.b16 %v5393
      %v6098 = vunpack.c.l.b16 %v5394
      %v6099 = vunpack.c.l.b16 %v5395
      %v6100 = vunpack.c.l.b16 %v5396
      %v6101 = vunpack.c.l.b16 %v5397
      %v6102 = vunpack.c.l.b16 %v5398
      %v6103 = vunpack.c.l.b16 %v5399
      %v6104 = vunpack.c.l.b16 %v5400
      %v6105 = vunpack.c.l.b16 %v5401
      %v6106 = vunpack.c.l.b16 %v5402
      %v6107 = vunpack.c.l.b16 %v5403
      %v6108 = vunpack.c.l.b16 %v5404
      %v6109 = vunpack.c.l.b16 %v5405
      %v6110 = vunpack.c.l.b16 %v5406
      %v6111 = vunpack.c.l.b16 %v5407
      %v6112 = vunpack.c.l.b16 %v5408
      %v6113 = vunpack.c.l.b16 %v5409
      %v6114 = vunpack.c.l.b16 %v5410
      %v6115 = vunpack.c.l.b16 %v5411
      %v6116 = vunpack.c.l.b16 %v5412
      %v6117 = vunpack.c.l.b16 %v5413
      %v6118 = vunpack.c.l.b16 %v5414
      %v6119 = vunpack.c.l.b16 %v5415
      %v6120 = vunpack.c.l.b16 %v5416
      %v6121 = vunpack.c.l.b16 %v5417
      %v6122 = vunpack.c.l.b16 %v5418
      %v6123 = vunpack.c.l.b16 %v5419
      %v6124 = vunpack.c.l.b16 %v5420
      %v6125 = vunpack.c.l.b16 %v5421
      %v6126 = vunpack.c.l.b16 %v5422
      %v6127 = vunpack.c.l.b16 %v5423
      %v6128 = vunpack.c.l.b16 %v5424
      %v6129 = vunpack.c.l.b16 %v5425
      %v6130 = vunpack.c.l.b16 %v5426
      %v6131 = vunpack.c.l.b16 %v5427
      %v6132 = vunpack.c.l.b16 %v5428
      %v6133 = vunpack.c.l.b16 %v5429
      %v6134 = vunpack.c.l.b16 %v5430
      %v6135 = vunpack.c.l.b16 %v5431
      %v6136 = vunpack.c.l.b16 %v5432
      %v6137 = vunpack.c.l.b16 %v5433
      %v6138 = vunpack.c.l.b16 %v5434
      %v6139 = vunpack.c.l.b16 %v5435
      %v6140 = vunpack.c.l.b16 %v5436
      %v6141 = vunpack.c.l.b16 %v5437
      %v6142 = vunpack.c.l.b16 %v5438
      %v6143 = vunpack.c.l.b16 %v5439
      %v6144 = vunpack.c.l.b16 %v5440
      %v6145 = vunpack.c.l.b16 %v5441
      %v6146 = vunpack.c.l.b16 %v5442
      %v6147 = vunpack.c.l.b16 %v5443
      %v6148 = vunpack.c.l.b16 %v5444
      %v6149 = vunpack.c.l.b16 %v5445
      %v6150 = vunpack.c.l.b16 %v5446
      %v6151 = vunpack.c.l.b16 %v5447
      %v6152 = vunpack.c.l.b16 %v5448
      %v6153 = vunpack.c.l.b16 %v5449
      %v6154 = vunpack.c.l.b16 %v5450
      %v6155 = vunpack.c.l.b16 %v5451
      %v6156 = vunpack.c.l.b16 %v5452
      %v6157 = vunpack.c.l.b16 %v5453
      %v6158 = vunpack.c.l.b16 %v5454
      %v6159 = vunpack.c.l.b16 %v5455
      %v6160 = vunpack.c.l.b16 %v5456
      %v6161 = vunpack.c.l.b16 %v5457
      %v6162 = vunpack.c.l.b16 %v5458
      %v6163 = vunpack.c.l.b16 %v5459
      %v6164 = vunpack.c.l.b16 %v5460
      %v6165 = vunpack.c.l.b16 %v5461
      %v6166 = vunpack.c.l.b16 %v5462
      %v6167 = vunpack.c.l.b16 %v5463
      %v6168 = vunpack.c.l.b16 %v5464
      %v6169 = vunpack.c.l.b16 %v5465
      %v6170 = vunpack.c.l.b16 %v5466
      %v6171 = vpack.c.b16 %v5820, %v5819
      %v6172 = vpack.c.b16 %v5822, %v5821
      %v6173 = vpack.c.b16 %v5824, %v5823
      %v6174 = vpack.c.b16 %v5826, %v5825
      %v6175 = vpack.c.b16 %v5828, %v5827
      %v6176 = vpack.c.b16 %v5830, %v5829
      %v6177 = vpack.c.b16 %v5832, %v5831
      %v6178 = vpack.c.b16 %v5834, %v5833
      %v6179 = vpack.c.b16 %v5836, %v5835
      %v6180 = vpack.c.b16 %v5838, %v5837
      %v6181 = vpack.c.b16 %v5840, %v5839
      %v6182 = vpack.c.b16 %v5842, %v5841
      %v6183 = vpack.c.b16 %v5844, %v5843
      %v6184 = vpack.c.b16 %v5846, %v5845
      %v6185 = vpack.c.b16 %v5848, %v5847
      %v6186 = vpack.c.b16 %v5850, %v5849
      %v6187 = vpack.c.b16 %v5852, %v5851
      %v6188 = vpack.c.b16 %v5854, %v5853
      %v6189 = vpack.c.b16 %v5856, %v5855
      %v6190 = vpack.c.b16 %v5858, %v5857
      %v6191 = vpack.c.b16 %v5860, %v5859
      %v6192 = vpack.c.b16 %v5862, %v5861
      %v6193 = vpack.c.b16 %v5864, %v5863
      %v6194 = vpack.c.b16 %v5866, %v5865
      %v6195 = vpack.c.b16 %v5868, %v5867
      %v6196 = vpack.c.b16 %v5870, %v5869
      %v6197 = vpack.c.b16 %v5872, %v5871
      %v6198 = vpack.c.b16 %v5874, %v5873
      %v6199 = vpack.c.b16 %v5876, %v5875
      %v6200 = vpack.c.b16 %v5878, %v5877
      %v6201 = vpack.c.b16 %v5880, %v5879
      %v6202 = vpack.c.b16 %v5882, %v5881
      %v6203 = vpack.c.b16 %v5884, %v5883
      %v6204 = vpack.c.b16 %v5886, %v5885
      %v6205 = vpack.c.b16 %v5888, %v5887
      %v6206 = vpack.c.b16 %v5890, %v5889
      %v6207 = vpack.c.b16 %v5892, %v5891
      %v6208 = vpack.c.b16 %v5894, %v5893
      %v6209 = vpack.c.b16 %v5896, %v5895
      %v6210 = vpack.c.b16 %v5898, %v5897
      %v6211 = vpack.c.b16 %v5900, %v5899
      %v6212 = vpack.c.b16 %v5902, %v5901
      %v6213 = vpack.c.b16 %v5904, %v5903
      %v6214 = vpack.c.b16 %v5906, %v5905
      %v6215 = vpack.c.b16 %v5908, %v5907
      %v6216 = vpack.c.b16 %v5910, %v5909
      %v6217 = vpack.c.b16 %v5912, %v5911
      %v6218 = vpack.c.b16 %v5914, %v5913
      %v6219 = vpack.c.b16 %v5916, %v5915
      %v6220 = vpack.c.b16 %v5918, %v5917
      %v6221 = vpack.c.b16 %v5920, %v5919
      %v6222 = vpack.c.b16 %v5922, %v5921
      %v6223 = vpack.c.b16 %v5924, %v5923
      %v6224 = vpack.c.b16 %v5926, %v5925
      %v6225 = vpack.c.b16 %v5928, %v5927
      %v6226 = vpack.c.b16 %v5930, %v5929
      %v6227 = vpack.c.b16 %v5932, %v5931
      %v6228 = vpack.c.b16 %v5934, %v5933
      %v6229 = vpack.c.b16 %v5936, %v5935
      %v6230 = vpack.c.b16 %v5938, %v5937
      %v6231 = vpack.c.b16 %v5940, %v5939
      %v6232 = vpack.c.b16 %v5942, %v5941
      %v6233 = vpack.c.b16 %v5944, %v5943
      %v6234 = vpack.c.b16 %v5946, %v5945
      %v6235 = vpack.c.b16 %v5948, %v5947
      %v6236 = vpack.c.b16 %v5950, %v5949
      %v6237 = vpack.c.b16 %v5952, %v5951
      %v6238 = vpack.c.b16 %v5954, %v5953
      %v6239 = vpack.c.b16 %v5956, %v5955
      %v6240 = vpack.c.b16 %v5958, %v5957
      %v6241 = vpack.c.b16 %v5960, %v5959
      %v6242 = vpack.c.b16 %v5962, %v5961
      %v6243 = vpack.c.b16 %v5964, %v5963
      %v6244 = vpack.c.b16 %v5966, %v5965
      %v6245 = vpack.c.b16 %v5968, %v5967
      %v6246 = vpack.c.b16 %v5970, %v5969
      %v6247 = vpack.c.b16 %v5972, %v5971
      %v6248 = vpack.c.b16 %v5974, %v5973
      %v6249 = vpack.c.b16 %v5976, %v5975
      %v6250 = vpack.c.b16 %v5978, %v5977
      %v6251 = vpack.c.b16 %v5980, %v5979
      %v6252 = vpack.c.b16 %v5982, %v5981
      %v6253 = vpack.c.b16 %v5984, %v5983
      %v6254 = vpack.c.b16 %v5986, %v5985
      %v6255 = vpack.c.b16 %v5988, %v5987
      %v6256 = vpack.c.b16 %v5990, %v5989
      %v6257 = vpack.c.b16 %v5992, %v5991
      %v6258 = vpack.c.b16 %v5994, %v5993
      %v6259 = vpack.c.b16 %v5996, %v5995
      %v6260 = vpack.c.b16 %v5998, %v5997
      %v6261 = vpack.c.b16 %v6000, %v5999
      %v6262 = vpack.c.b16 %v6002, %v6001
      %v6263 = vpack.c.b16 %v6004, %v6003
      %v6264 = vpack.c.b16 %v6006, %v6005
      %v6265 = vpack.c.b16 %v6008, %v6007
      %v6266 = vpack.c.b16 %v6010, %v6009
      %v6267 = vpack.c.b16 %v6012, %v6011
      %v6268 = vpack.c.b16 %v6014, %v6013
      %v6269 = vpack.c.b16 %v6016, %v6015
      %v6270 = vpack.c.b16 %v6018, %v6017
      %v6271 = vpack.c.b16 %v6020, %v6019
      %v6272 = vpack.c.b16 %v6022, %v6021
      %v6273 = vpack.c.b16 %v6024, %v6023
      %v6274 = vpack.c.b16 %v6026, %v6025
      %v6275 = vpack.c.b16 %v6028, %v6027
      %v6276 = vpack.c.b16 %v6030, %v6029
      %v6277 = vpack.c.b16 %v6032, %v6031
      %v6278 = vpack.c.b16 %v6034, %v6033
      %v6279 = vpack.c.b16 %v6036, %v6035
      %v6280 = vpack.c.b16 %v6038, %v6037
      %v6281 = vpack.c.b16 %v6040, %v6039
      %v6282 = vpack.c.b16 %v6042, %v6041
      %v6283 = vpack.c.b16 %v6044, %v6043
      %v6284 = vpack.c.b16 %v6046, %v6045
      %v6285 = vpack.c.b16 %v6048, %v6047
      %v6286 = vpack.c.b16 %v6050, %v6049
      %v6287 = vpack.c.b16 %v6052, %v6051
      %v6288 = vpack.c.b16 %v6054, %v6053
      %v6289 = vpack.c.b16 %v6056, %v6055
      %v6290 = vpack.c.b16 %v6058, %v6057
      %v6291 = vpack.c.b16 %v6060, %v6059
      %v6292 = vpack.c.b16 %v6062, %v6061
      %v6293 = vpack.c.b16 %v6064, %v6063
      %v6294 = vpack.c.b16 %v6066, %v6065
      %v6295 = vpack.c.b16 %v6068, %v6067
      %v6296 = vpack.c.b16 %v6070, %v6069
      %v6297 = vpack.c.b16 %v6072, %v6071
      %v6298 = vpack.c.b16 %v6074, %v6073
      %v6299 = vpack.c.b16 %v6076, %v6075
      %v6300 = vpack.c.b16 %v6078, %v6077
      %v6301 = vpack.c.b16 %v6080, %v6079
      %v6302 = vpack.c.b16 %v6082, %v6081
      %v6303 = vpack.c.b16 %v6084, %v6083
      %v6304 = vpack.c.b16 %v6086, %v6085
      %v6305 = vpack.c.b16 %v6088, %v6087
      %v6306 = vpack.c.b16 %v6090, %v6089
      %v6307 = vpack.c.b16 %v6092, %v6091
      %v6308 = vpack.c.b16 %v6094, %v6093
      %v6309 = vpack.c.b16 %v6096, %v6095
      %v6310 = vpack.c.b16 %v6098, %v6097
      %v6311 = vpack.c.b16 %v6100, %v6099
      %v6312 = vpack.c.b16 %v6102, %v6101
      %v6313 = vpack.c.b16 %v6104, %v6103
      %v6314 = vpack.c.b16 %v6106, %v6105
      %v6315 = vpack.c.b16 %v6108, %v6107
      %v6316 = vpack.c.b16 %v6110, %v6109
      %v6317 = vpack.c.b16 %v6112, %v6111
      %v6318 = vpack.c.b16 %v6114, %v6113
      %v6319 = vpack.c.b16 %v6116, %v6115
      %v6320 = vpack.c.b16 %v6118, %v6117
      %v6321 = vpack.c.b16 %v6120, %v6119
      %v6322 = vpack.c.b16 %v6122, %v6121
      %v6323 = vpack.c.b16 %v6124, %v6123
      %v6324 = vpack.c.b16 %v6126, %v6125
      %v6325 = vpack.c.b16 %v6128, %v6127
      %v6326 = vpack.c.b16 %v6130, %v6129
      %v6327 = vpack.c.b16 %v6132, %v6131
      %v6328 = vpack.c.b16 %v6134, %v6133
      %v6329 = vpack.c.b16 %v6136, %v6135
      %v6330 = vpack.c.b16 %v6138, %v6137
      %v6331 = vpack.c.b16 %v6140, %v6139
      %v6332 = vpack.c.b16 %v6142, %v6141
      %v6333 = vpack.c.b16 %v6144, %v6143
      %v6334 = vpack.c.b16 %v6146, %v6145
      %v6335 = vpack.c.b16 %v6148, %v6147
      %v6336 = vpack.c.b16 %v6150, %v6149
      %v6337 = vpack.c.b16 %v6152, %v6151
      %v6338 = vpack.c.b16 %v6154, %v6153
      %v6339 = vpack.c.b16 %v6156, %v6155
      %v6340 = vpack.c.b16 %v6158, %v6157
      %v6341 = vpack.c.b16 %v6160, %v6159
      %v6342 = vpack.c.b16 %v6162, %v6161
      %v6343 = vpack.c.b16 %v6164, %v6163
      %v6344 = vpack.c.b16 %v6166, %v6165
      %v6345 = vpack.c.b16 %v6168, %v6167
      %v6346 = vpack.c.b16 %v6170, %v6169
      %6523 = vmatprep.subr.bf16.mxu0 0
      %6524 = vmatpush1.bf16.msra.mxu0 %v6171
      %6525 = vmatprep.subr.bf16.mxu0 0
      %6526 = vmatpush1.bf16.msra.mxu0 %v6172
      %6527 = vmatprep.subr.bf16.mxu0 0
      %6528 = vmatpush1.bf16.msra.mxu0 %v6173
      %6529 = vmatprep.subr.bf16.mxu0 0
      %6530 = vmatpush1.bf16.msra.mxu0 %v6174
      %6531 = vmatprep.subr.bf16.mxu0 0
      %6532 = vmatpush1.bf16.msra.mxu0 %v6175
      %6533 = vmatprep.subr.bf16.mxu0 0
      %6534 = vmatpush1.bf16.msra.mxu0 %v6176
      %6535 = vmatprep.subr.bf16.mxu0 0
      %6536 = vmatpush1.bf16.msra.mxu0 %v6177
      %6537 = vmatprep.subr.bf16.mxu0 0
      %6538 = vmatpush1.bf16.msra.mxu0 %v6178
      %6539 = vmatprep.subr.bf16.mxu0 0
      %6540 = vmatpush1.bf16.msra.mxu0 %v6179
      %6541 = vmatprep.subr.bf16.mxu0 0
      %6542 = vmatpush1.bf16.msra.mxu0 %v6180
      %6543 = vmatprep.subr.bf16.mxu0 0
      %6544 = vmatpush1.bf16.msra.mxu0 %v6181
      %6545 = vmatprep.subr.bf16.mxu0 0
      %6546 = vmatpush1.bf16.msra.mxu0 %v6182
      %6547 = vmatprep.subr.bf16.mxu0 0
      %6548 = vmatpush1.bf16.msra.mxu0 %v6183
      %6549 = vmatprep.subr.bf16.mxu0 0
      %6550 = vmatpush1.bf16.msra.mxu0 %v6184
      %6551 = vmatprep.subr.bf16.mxu0 0
      %6552 = vmatpush1.bf16.msra.mxu0 %v6185
      %6553 = vmatprep.subr.bf16.mxu0 0
      %6554 = vmatpush1.bf16.msra.mxu0 %v6186
      %6555 = vmatprep.mubr.bf16.mxu0 %v5026
      %6556 = vmatmul.mubr.bf16.gmra.mrb[0].mxu0 %v5025
      %v6557 = vpop.f32.mrb[0].mxu0
      %v6558 = vadd.f32 %v5024, %v6557
      %v6559 = vpop.f32.mrb[0].mxu0
      %v6560 = vpop.f32.mrb[0].mxu0
      %v6561 = vpop.f32.mrb[0].mxu0
      %6562 = vdwg.mxu0
      %6563 = vmatprep.subr.bf16.mxu0 0
      %6564 = vmatpush1.bf16.msra.mxu0 %v6187
      %6565 = vmatprep.subr.bf16.mxu0 0
      %6566 = vmatpush1.bf16.msra.mxu0 %v6188
      %6567 = vmatprep.subr.bf16.mxu0 0
      %6568 = vmatpush1.bf16.msra.mxu0 %v6189
      %6569 = vmatprep.subr.bf16.mxu0 0
      %6570 = vmatpush1.bf16.msra.mxu0 %v6190
      %6571 = vmatprep.subr.bf16.mxu0 0
      %6572 = vmatpush1.bf16.msra.mxu0 %v6191
      %6573 = vmatprep.subr.bf16.mxu0 0
      %6574 = vmatpush1.bf16.msra.mxu0 %v6192
      %6575 = vmatprep.subr.bf16.mxu0 0
      %6576 = vmatpush1.bf16.msra.mxu0 %v6193
      %6577 = vmatprep.subr.bf16.mxu0 0
      %6578 = vmatpush1.bf16.msra.mxu0 %v6194
      %6579 = vmatprep.subr.bf16.mxu0 0
      %6580 = vmatpush1.bf16.msra.mxu0 %v6195
      %6581 = vmatprep.subr.bf16.mxu0 0
      %6582 = vmatpush1.bf16.msra.mxu0 %v6196
      %6583 = vmatprep.subr.bf16.mxu0 0
      %6584 = vmatpush1.bf16.msra.mxu0 %v6197
      %6585 = vmatprep.subr.bf16.mxu0 0
      %6586 = vmatpush1.bf16.msra.mxu0 %v6198
      %6587 = vmatprep.subr.bf16.mxu0 0
      %6588 = vmatpush1.bf16.msra.mxu0 %v6199
      %6589 = vmatprep.subr.bf16.mxu0 0
      %6590 = vmatpush1.bf16.msra.mxu0 %v6200
      %6591 = vmatprep.subr.bf16.mxu0 0
      %6592 = vmatpush1.bf16.msra.mxu0 %v6201
      %6593 = vmatprep.subr.bf16.mxu0 0
      %6594 = vmatpush1.bf16.msra.mxu0 %v6202
      %6595 = vmatprep.mubr.bf16.mxu0 %v5041
      %6596 = vmatmul.mubr.bf16.gmra.mrb[0].mxu0 %v5038
      %v6597 = vpop.f32.mrb[0].mxu0
      %v6598 = vadd.f32 %v6558, %v6597
      %v6599 = vpop.f32.mrb[0].mxu0
      %v6600 = vpop.f32.mrb[0].mxu0
      %v6601 = vpop.f32.mrb[0].mxu0
      %6602 = vdwg.mxu0
      %6603 = vmatprep.subr.bf16.mxu0 0
      %6604 = vmatpush1.bf16.msra.mxu0 %v6203
      %6605 = vmatprep.subr.bf16.mxu0 0
      %6606 = vmatpush1.bf16.msra.mxu0 %v6204
      %6607 = vmatprep.subr.bf16.mxu0 0
      %6608 = vmatpush1.bf16.msra.mxu0 %v6205
      %6609 = vmatprep.subr.bf16.mxu0 0
      %6610 = vmatpush1.bf16.msra.mxu0 %v6206
      %6611 = vmatprep.subr.bf16.mxu0 0
      %6612 = vmatpush1.bf16.msra.mxu0 %v6207
      %6613 = vmatprep.subr.bf16.mxu0 0
      %6614 = vmatpush1.bf16.msra.mxu0 %v6208
      %6615 = vmatprep.subr.bf16.mxu0 0
      %6616 = vmatpush1.bf16.msra.mxu0 %v6209
      %6617 = vmatprep.subr.bf16.mxu0 0
      %6618 = vmatpush1.bf16.msra.mxu0 %v6210
      %6619 = vmatprep.subr.bf16.mxu0 0
      %6620 = vmatpush1.bf16.msra.mxu0 %v6211
      %6621 = vmatprep.subr.bf16.mxu0 0
      %6622 = vmatpush1.bf16.msra.mxu0 %v6212
      %6623 = vmatprep.subr.bf16.mxu0 0
      %6624 = vmatpush1.bf16.msra.mxu0 %v6213
      %6625 = vmatprep.subr.bf16.mxu0 0
      %6626 = vmatpush1.bf16.msra.mxu0 %v6214
      %6627 = vmatprep.subr.bf16.mxu0 0
      %6628 = vmatpush1.bf16.msra.mxu0 %v6215
      %6629 = vmatprep.subr.bf16.mxu0 0
      %6630 = vmatpush1.bf16.msra.mxu0 %v6216
      %6631 = vmatprep.subr.bf16.mxu0 0
      %6632 = vmatpush1.bf16.msra.mxu0 %v6217
      %6633 = vmatprep.subr.bf16.mxu0 0
      %6634 = vmatpush1.bf16.msra.mxu0 %v6218
      %6635 = vmatprep.mubr.bf16.mxu0 %v5048
      %6636 = vmatmul.mubr.bf16.gmra.mrb[0].mxu0 %v5047
      %v6637 = vpop.f32.mrb[0].mxu0
      %v6638 = vadd.f32 %v6598, %v6637
      %v6639 = vpop.f32.mrb[0].mxu0
      %v6640 = vpop.f32.mrb[0].mxu0
      %v6641 = vpop.f32.mrb[0].mxu0
      %6642 = vdwg.mxu0
      %6643 = vmatprep.subr.bf16.mxu0 0
      %6644 = vmatpush1.bf16.msra.mxu0 %v6219
      %6645 = vmatprep.subr.bf16.mxu0 0
      %6646 = vmatpush1.bf16.msra.mxu0 %v6220
      %6647 = vmatprep.subr.bf16.mxu0 0
      %6648 = vmatpush1.bf16.msra.mxu0 %v6221
      %6649 = vmatprep.subr.bf16.mxu0 0
      %6650 = vmatpush1.bf16.msra.mxu0 %v6222
      %6651 = vmatprep.subr.bf16.mxu0 0
      %6652 = vmatpush1.bf16.msra.mxu0 %v6223
      %6653 = vmatprep.subr.bf16.mxu0 0
      %6654 = vmatpush1.bf16.msra.mxu0 %v6224
      %6655 = vmatprep.subr.bf16.mxu0 0
      %6656 = vmatpush1.bf16.msra.mxu0 %v6225
      %6657 = vmatprep.subr.bf16.mxu0 0
      %6658 = vmatpush1.bf16.msra.mxu0 %v6226
      %6659 = vmatprep.subr.bf16.mxu0 0
      %6660 = vmatpush1.bf16.msra.mxu0 %v6227
      %6661 = vmatprep.subr.bf16.mxu0 0
      %6662 = vmatpush1.bf16.msra.mxu0 %v6228
      %6663 = vmatprep.subr.bf16.mxu0 0
      %6664 = vmatpush1.bf16.msra.mxu0 %v6229
      %6665 = vmatprep.subr.bf16.mxu0 0
      %6666 = vmatpush1.bf16.msra.mxu0 %v6230
      %6667 = vmatprep.subr.bf16.mxu0 0
      %6668 = vmatpush1.bf16.msra.mxu0 %v6231
      %6669 = vmatprep.subr.bf16.mxu0 0
      %6670 = vmatpush1.bf16.msra.mxu0 %v6232
      %6671 = vmatprep.subr.bf16.mxu0 0
      %6672 = vmatpush1.bf16.msra.mxu0 %v6233
      %6673 = vmatprep.subr.bf16.mxu0 0
      %6674 = vmatpush1.bf16.msra.mxu0 %v6234
      %6675 = vmatprep.mubr.bf16.mxu0 %v5058
      %6676 = vmatmul.mubr.bf16.gmra.mrb[0].mxu0 %v5054
      %v6677 = vpop.f32.mrb[0].mxu0
      %v6678 = vadd.f32 %v6638, %v6677
      %v6679 = vpop.f32.mrb[0].mxu0
      %v6680 = vpop.f32.mrb[0].mxu0
      %v6681 = vpop.f32.mrb[0].mxu0
      %6682 = vdwg.mxu0
      %6683 = vmatprep.subr.bf16.mxu0 0
      %6684 = vmatpush1.bf16.msra.mxu0 %v6235
      %6685 = vmatprep.subr.bf16.mxu0 0
      %6686 = vmatpush1.bf16.msra.mxu0 %v6236
      %6687 = vmatprep.subr.bf16.mxu0 0
      %6688 = vmatpush1.bf16.msra.mxu0 %v6237
      %6689 = vmatprep.subr.bf16.mxu0 0
      %6690 = vmatpush1.bf16.msra.mxu0 %v6238
      %6691 = vmatprep.subr.bf16.mxu0 0
      %6692 = vmatpush1.bf16.msra.mxu0 %v6239
      %6693 = vmatprep.subr.bf16.mxu0 0
      %6694 = vmatpush1.bf16.msra.mxu0 %v6240
      %6695 = vmatprep.subr.bf16.mxu0 0
      %6696 = vmatpush1.bf16.msra.mxu0 %v6241
      %6697 = vmatprep.subr.bf16.mxu0 0
      %6698 = vmatpush1.bf16.msra.mxu0 %v6242
      %6699 = vmatprep.subr.bf16.mxu0 0
      %6700 = vmatpush1.bf16.msra.mxu0 %v6243
      %6701 = vmatprep.subr.bf16.mxu0 0
      %6702 = vmatpush1.bf16.msra.mxu0 %v6244
      %6703 = vmatprep.subr.bf16.mxu0 0
      %6704 = vmatpush1.bf16.msra.mxu0 %v6245
      %6705 = vmatprep.subr.bf16.mxu0 0
      %6706 = vmatpush1.bf16.msra.mxu0 %v6246
      %6707 = vmatprep.subr.bf16.mxu0 0
      %6708 = vmatpush1.bf16.msra.mxu0 %v6247
      %6709 = vmatprep.subr.bf16.mxu0 0
      %6710 = vmatpush1.bf16.msra.mxu0 %v6248
      %6711 = vmatprep.subr.bf16.mxu0 0
      %6712 = vmatpush1.bf16.msra.mxu0 %v6249
      %6713 = vmatprep.subr.bf16.mxu0 0
      %6714 = vmatpush1.bf16.msra.mxu0 %v6250
      %6715 = vmatprep.mubr.bf16.mxu0 %v5064
      %6716 = vmatmul.mubr.bf16.gmra.mrb[0].mxu0 %v5063
      %v6717 = vpop.f32.mrb[0].mxu0
      %v6718 = vadd.f32 %v6678, %v6717
      %v6719 = vpop.f32.mrb[0].mxu0
      %v6720 = vpop.f32.mrb[0].mxu0
      %v6721 = vpop.f32.mrb[0].mxu0
      %6722 = vdwg.mxu0
      %6723 = vmatprep.subr.bf16.mxu0 0
      %6724 = vmatpush1.bf16.msra.mxu0 %v6251
      %6725 = vmatprep.subr.bf16.mxu0 0
      %6726 = vmatpush1.bf16.msra.mxu0 %v6252
      %6727 = vmatprep.subr.bf16.mxu0 0
      %6728 = vmatpush1.bf16.msra.mxu0 %v6253
      %6729 = vmatprep.subr.bf16.mxu0 0
      %6730 = vmatpush1.bf16.msra.mxu0 %v6254
      %6731 = vmatprep.subr.bf16.mxu0 0
      %6732 = vmatpush1.bf16.msra.mxu0 %v6255
      %6733 = vmatprep.subr.bf16.mxu0 0
      %6734 = vmatpush1.bf16.msra.mxu0 %v6256
      %6735 = vmatprep.subr.bf16.mxu0 0
      %6736 = vmatpush1.bf16.msra.mxu0 %v6257
      %6737 = vmatprep.subr.bf16.mxu0 0
      %6738 = vmatpush1.bf16.msra.mxu0 %v6258
      %6739 = vmatprep.subr.bf16.mxu0 0
      %6740 = vmatpush1.bf16.msra.mxu0 %v6259
      %6741 = vmatprep.subr.bf16.mxu0 0
      %6742 = vmatpush1.bf16.msra.mxu0 %v6260
      %6743 = vmatprep.subr.bf16.mxu0 0
      %6744 = vmatpush1.bf16.msra.mxu0 %v6261
      %6745 = vmatprep.subr.bf16.mxu0 0
      %6746 = vmatpush1.bf16.msra.mxu0 %v6262
      %6747 = vmatprep.subr.bf16.mxu0 0
      %6748 = vmatpush1.bf16.msra.mxu0 %v6263
      %6749 = vmatprep.subr.bf16.mxu0 0
      %6750 = vmatpush1.bf16.msra.mxu0 %v6264
      %6751 = vmatprep.subr.bf16.mxu0 0
      %6752 = vmatpush1.bf16.msra.mxu0 %v6265
      %6753 = vmatprep.subr.bf16.mxu0 0
      %6754 = vmatpush1.bf16.msra.mxu0 %v6266
      %6755 = vmatprep.mubr.bf16.mxu0 %v5074
      %6756 = vmatmul.mubr.bf16.gmra.mrb[0].mxu0 %v5070
      %v6757 = vpop.f32.mrb[0].mxu0
      %v6758 = vadd.f32 %v6718, %v6757
      %v6759 = vpop.f32.mrb[0].mxu0
      %v6760 = vpop.f32.mrb[0].mxu0
      %v6761 = vpop.f32.mrb[0].mxu0
      %6762 = vdwg.mxu0
      %6763 = vmatprep.subr.bf16.mxu0 0
      %6764 = vmatpush1.bf16.msra.mxu0 %v6267
      %6765 = vmatprep.subr.bf16.mxu0 0
      %6766 = vmatpush1.bf16.msra.mxu0 %v6268
      %6767 = vmatprep.subr.bf16.mxu0 0
      %6768 = vmatpush1.bf16.msra.mxu0 %v6269
      %6769 = vmatprep.subr.bf16.mxu0 0
      %6770 = vmatpush1.bf16.msra.mxu0 %v6270
      %6771 = vmatprep.subr.bf16.mxu0 0
      %6772 = vmatpush1.bf16.msra.mxu0 %v6271
      %6773 = vmatprep.subr.bf16.mxu0 0
      %6774 = vmatpush1.bf16.msra.mxu0 %v6272
      %6775 = vmatprep.subr.bf16.mxu0 0
      %6776 = vmatpush1.bf16.msra.mxu0 %v6273
      %6777 = vmatprep.subr.bf16.mxu0 0
      %6778 = vmatpush1.bf16.msra.mxu0 %v6274
      %6779 = vmatprep.subr.bf16.mxu0 0
      %6780 = vmatpush1.bf16.msra.mxu0 %v6275
      %6781 = vmatprep.subr.bf16.mxu0 0
      %6782 = vmatpush1.bf16.msra.mxu0 %v6276
      %6783 = vmatprep.subr.bf16.mxu0 0
      %6784 = vmatpush1.bf16.msra.mxu0 %v6277
      %6785 = vmatprep.subr.bf16.mxu0 0
      %6786 = vmatpush1.bf16.msra.mxu0 %v6278
      %6787 = vmatprep.subr.bf16.mxu0 0
      %6788 = vmatpush1.bf16.msra.mxu0 %v6279
      %6789 = vmatprep.subr.bf16.mxu0 0
      %6790 = vmatpush1.bf16.msra.mxu0 %v6280
      %6791 = vmatprep.subr.bf16.mxu0 0
      %6792 = vmatpush1.bf16.msra.mxu0 %v6281
      %6793 = vmatprep.subr.bf16.mxu0 0
      %6794 = vmatpush1.bf16.msra.mxu0 %v6282
      %6795 = vmatprep.mubr.bf16.mxu0 %v5080
      %6796 = vmatmul.mubr.bf16.gmra.mrb[0].mxu0 %v5079
      %v6797 = vpop.f32.mrb[0].mxu0
      %v6798 = vadd.f32 %v6758, %v6797
      %v6799 = vpop.f32.mrb[0].mxu0
      %v6800 = vpop.f32.mrb[0].mxu0
      %v6801 = vpop.f32.mrb[0].mxu0
      %6802 = vdwg.mxu0
      %6803 = vmatprep.subr.bf16.mxu0 0
      %6804 = vmatpush1.bf16.msra.mxu0 %v6283
      %6805 = vmatprep.subr.bf16.mxu0 0
      %6806 = vmatpush1.bf16.msra.mxu0 %v6284
      %6807 = vmatprep.subr.bf16.mxu0 0
      %6808 = vmatpush1.bf16.msra.mxu0 %v6285
      %6809 = vmatprep.subr.bf16.mxu0 0
      %6810 = vmatpush1.bf16.msra.mxu0 %v6286
      %6811 = vmatprep.subr.bf16.mxu0 0
      %6812 = vmatpush1.bf16.msra.mxu0 %v6287
      %6813 = vmatprep.subr.bf16.mxu0 0
      %6814 = vmatpush1.bf16.msra.mxu0 %v6288
      %6815 = vmatprep.subr.bf16.mxu0 0
      %6816 = vmatpush1.bf16.msra.mxu0 %v6289
      %6817 = vmatprep.subr.bf16.mxu0 0
      %6818 = vmatpush1.bf16.msra.mxu0 %v6290
      %6819 = vmatprep.subr.bf16.mxu0 0
      %6820 = vmatpush1.bf16.msra.mxu0 %v6291
      %6821 = vmatprep.subr.bf16.mxu0 0
      %6822 = vmatpush1.bf16.msra.mxu0 %v6292
      %6823 = vmatprep.subr.bf16.mxu0 0
      %6824 = vmatpush1.bf16.msra.mxu0 %v6293
      %6825 = vmatprep.subr.bf16.mxu0 0
      %6826 = vmatpush1.bf16.msra.mxu0 %v6294
      %6827 = vmatprep.subr.bf16.mxu0 0
      %6828 = vmatpush1.bf16.msra.mxu0 %v6295
      %6829 = vmatprep.subr.bf16.mxu0 0
      %6830 = vmatpush1.bf16.msra.mxu0 %v6296
      %6831 = vmatprep.subr.bf16.mxu0 0
      %6832 = vmatpush1.bf16.msra.mxu0 %v6297
      %6833 = vmatprep.subr.bf16.mxu0 0
      %6834 = vmatpush1.bf16.msra.mxu0 %v6298
      %6835 = vmatprep.mubr.bf16.mxu0 %v5090
      %6836 = vmatmul.mubr.bf16.gmra.mrb[0].mxu0 %v5086
      %v6837 = vpop.f32.mrb[0].mxu0
      %v6838 = vadd.f32 %v6798, %v6837
      %v6839 = vpop.f32.mrb[0].mxu0
      %v6840 = vpop.f32.mrb[0].mxu0
      %v6841 = vpop.f32.mrb[0].mxu0
      %6842 = vdwg.mxu0
      %6843 = vmatprep.subr.bf16.mxu0 0
      %6844 = vmatpush1.bf16.msra.mxu0 %v6299
      %6845 = vmatprep.subr.bf16.mxu0 0
      %6846 = vmatpush1.bf16.msra.mxu0 %v6300
      %6847 = vmatprep.subr.bf16.mxu0 0
      %6848 = vmatpush1.bf16.msra.mxu0 %v6301
      %6849 = vmatprep.subr.bf16.mxu0 0
      %6850 = vmatpush1.bf16.msra.mxu0 %v6302
      %6851 = vmatprep.subr.bf16.mxu0 0
      %6852 = vmatpush1.bf16.msra.mxu0 %v6303
      %6853 = vmatprep.subr.bf16.mxu0 0
      %6854 = vmatpush1.bf16.msra.mxu0 %v6304
      %6855 = vmatprep.subr.bf16.mxu0 0
      %6856 = vmatpush1.bf16.msra.mxu0 %v6305
      %6857 = vmatprep.subr.bf16.mxu0 0
      %6858 = vmatpush1.bf16.msra.mxu0 %v6306
      %6859 = vmatprep.subr.bf16.mxu0 0
      %6860 = vmatpush1.bf16.msra.mxu0 %v6307
      %6861 = vmatprep.subr.bf16.mxu0 0
      %6862 = vmatpush1.bf16.msra.mxu0 %v6308
      %6863 = vmatprep.subr.bf16.mxu0 0
      %6864 = vmatpush1.bf16.msra.mxu0 %v6309
      %6865 = vmatprep.subr.bf16.mxu0 0
      %6866 = vmatpush1.bf16.msra.mxu0 %v6310
      %6867 = vmatprep.subr.bf16.mxu0 0
      %6868 = vmatpush1.bf16.msra.mxu0 %v6311
      %6869 = vmatprep.subr.bf16.mxu0 0
      %6870 = vmatpush1.bf16.msra.mxu0 %v6312
      %6871 = vmatprep.subr.bf16.mxu0 0
      %6872 = vmatpush1.bf16.msra.mxu0 %v6313
      %6873 = vmatprep.subr.bf16.mxu0 0
      %6874 = vmatpush1.bf16.msra.mxu0 %v6314
      %6875 = vmatprep.mubr.bf16.mxu0 %v5096
      %6876 = vmatmul.mubr.bf16.gmra.mrb[0].mxu0 %v5095
      %v6877 = vpop.f32.mrb[0].mxu0
      %v6878 = vadd.f32 %v6838, %v6877
      %v6879 = vpop.f32.mrb[0].mxu0
      %v6880 = vpop.f32.mrb[0].mxu0
      %v6881 = vpop.f32.mrb[0].mxu0
      %6882 = vdwg.mxu0
      %6883 = vmatprep.subr.bf16.mxu0 0
      %6884 = vmatpush1.bf16.msra.mxu0 %v6315
      %6885 = vmatprep.subr.bf16.mxu0 0
      %6886 = vmatpush1.bf16.msra.mxu0 %v6316
      %6887 = vmatprep.subr.bf16.mxu0 0
      %6888 = vmatpush1.bf16.msra.mxu0 %v6317
      %6889 = vmatprep.subr.bf16.mxu0 0
      %6890 = vmatpush1.bf16.msra.mxu0 %v6318
      %6891 = vmatprep.subr.bf16.mxu0 0
      %6892 = vmatpush1.bf16.msra.mxu0 %v6319
      %6893 = vmatprep.subr.bf16.mxu0 0
      %6894 = vmatpush1.bf16.msra.mxu0 %v6320
      %6895 = vmatprep.subr.bf16.mxu0 0
      %6896 = vmatpush1.bf16.msra.mxu0 %v6321
      %6897 = vmatprep.subr.bf16.mxu0 0
      %6898 = vmatpush1.bf16.msra.mxu0 %v6322
      %6899 = vmatprep.subr.bf16.mxu0 0
      %6900 = vmatpush1.bf16.msra.mxu0 %v6323
      %6901 = vmatprep.subr.bf16.mxu0 0
      %6902 = vmatpush1.bf16.msra.mxu0 %v6324
      %6903 = vmatprep.subr.bf16.mxu0 0
      %6904 = vmatpush1.bf16.msra.mxu0 %v6325
      %6905 = vmatprep.subr.bf16.mxu0 0
      %6906 = vmatpush1.bf16.msra.mxu0 %v6326
      %6907 = vmatprep.subr.bf16.mxu0 0
      %6908 = vmatpush1.bf16.msra.mxu0 %v6327
      %6909 = vmatprep.subr.bf16.mxu0 0
      %6910 = vmatpush1.bf16.msra.mxu0 %v6328
      %6911 = vmatprep.subr.bf16.mxu0 0
      %6912 = vmatpush1.bf16.msra.mxu0 %v6329
      %6913 = vmatprep.subr.bf16.mxu0 0
      %6914 = vmatpush1.bf16.msra.mxu0 %v6330
      %6915 = vmatprep.mubr.bf16.mxu0 %v5106
      %6916 = vmatmul.mubr.bf16.gmra.mrb[0].mxu0 %v5102
      %v6917 = vpop.f32.mrb[0].mxu0
      %v6918 = vadd.f32 %v6878, %v6917
      %v6919 = vpop.f32.mrb[0].mxu0
      %v6920 = vpop.f32.mrb[0].mxu0
      %v6921 = vpop.f32.mrb[0].mxu0
      %6922 = vdwg.mxu0
      %6923 = vmatprep.subr.bf16.mxu0 0
      %6924 = vmatpush1.bf16.msra.mxu0 %v6331
      %6925 = vmatprep.subr.bf16.mxu0 0
      %6926 = vmatpush1.bf16.msra.mxu0 %v6332
      %6927 = vmatprep.subr.bf16.mxu0 0
      %6928 = vmatpush1.bf16.msra.mxu0 %v6333
      %6929 = vmatprep.subr.bf16.mxu0 0
      %6930 = vmatpush1.bf16.msra.mxu0 %v6334
      %6931 = vmatprep.subr.bf16.mxu0 0
      %6932 = vmatpush1.bf16.msra.mxu0 %v6335
      %6933 = vmatprep.subr.bf16.mxu0 0
      %6934 = vmatpush1.bf16.msra.mxu0 %v6336
      %6935 = vmatprep.subr.bf16.mxu0 0
      %6936 = vmatpush1.bf16.msra.mxu0 %v6337
      %6937 = vmatprep.subr.bf16.mxu0 0
      %6938 = vmatpush1.bf16.msra.mxu0 %v6338
      %6939 = vmatprep.subr.bf16.mxu0 0
      %6940 = vmatpush1.bf16.msra.mxu0 %v6339
      %6941 = vmatprep.subr.bf16.mxu0 0
      %6942 = vmatpush1.bf16.msra.mxu0 %v6340
      %6943 = vmatprep.subr.bf16.mxu0 0
      %6944 = vmatpush1.bf16.msra.mxu0 %v6341
      %6945 = vmatprep.subr.bf16.mxu0 0
      %6946 = vmatpush1.bf16.msra.mxu0 %v6342
      %6947 = vmatprep.subr.bf16.mxu0 0
      %6948 = vmatpush1.bf16.msra.mxu0 %v6343
      %6949 = vmatprep.subr.bf16.mxu0 0
      %6950 = vmatpush1.bf16.msra.mxu0 %v6344
      %6951 = vmatprep.subr.bf16.mxu0 0
      %6952 = vmatpush1.bf16.msra.mxu0 %v6345
      %6953 = vmatprep.subr.bf16.mxu0 0
      %6954 = vmatpush1.bf16.msra.mxu0 %v6346
      %6955 = vmatprep.mubr.bf16.mxu0 %v5112
      %6956 = vmatmul.mubr.bf16.gmra.mrb[0].mxu0 %v5111
      %v6957 = vpop.f32.mrb[0].mxu0
      %v6958 = vadd.f32 %v6918, %v6957
      %v6959 = vpop.f32.mrb[0].mxu0
      %v6960 = vpop.f32.mrb[0].mxu0
      %v6961 = vpop.f32.mrb[0].mxu0
      %6962 = vdwg.mxu0
      %v6963 = vlaneseq
      %v6964 = vshrl.u32 %v6963, 7
      %v6965 = vsub.s32 0, %v6964
      %v6966 = vrot.slane %v6958, %v6965
      %6967 = vst [vmem:[%s440] sm:$0xff] %v6966
      %p6968 = scmp.lt.s32.totalorder %s24, 1
      %s6969 = scalar_select %p6968, %s24, 1
      %s6970 = smul.addr %s6969, 8
      %s6971 = scalar_lea.vmem %s13, %s6970
      // Predicated region
      $region73: #{cnn_forward.1} parent=71 // pred_check
        %p6972 = pneg %p320
      $region74: #{cnn_forward.1} parent=71 // pred_check_branch
        %6974 = sbr.rel (%p6972) target = $region76
      $region75: #{cnn_forward.1} parent=71 // pred_region
        _
      $region76: #{cnn_forward.1} parent=71 // pred_fallthru
        _
    $region72: #{cnn_forward.1} parent=5 // pred_fallthru
      _
    %p6975 = scmp.le.s32.totalorder 2, %s19
    // Predicated region
    $region77: #{cnn_forward.1} parent=5 // pred_check
      %p6976 = pneg %p6975
    $region78: #{cnn_forward.1} parent=5 // pred_check_branch
      %6978 = sbr.rel (%p6976) target = $region80
    $region79: #{cnn_forward.1} parent=5 // pred_region
      %s6979 = ssub.s32 %s19, 2
      // Predicated region
      $region81: #{cnn_forward.1} parent=79 // pred_check
        %p6980 = pneg %p326
      $region82: #{cnn_forward.1} parent=79 // pred_check_branch
        %6982 = sbr.rel (%p6980) target = $region84
      $region83: #{cnn_forward.1} parent=79 // pred_region
        %p6983 = scmp.lt.s32.totalorder %s25, 1
        %s6984 = scalar_select %p6983, %s25, 1
        %s6985 = smul.addr %s6984, 8
        %s6986 = scalar_lea.vmem %s13, %s6985
      $region84: #{cnn_forward.1} parent=79 // pred_fallthru
        _
    $region80: #{cnn_forward.1} parent=5 // pred_fallthru
      _
  $region6: #{cnn_forward.1} parent=0 // loop_footer
    %s23 = sadd.s32 1, %s19
  $region7: #{cnn_forward.1} parent=0 // loop_footer_branch
    %18 = sbr.rel target = $region3
  $region8: #{cnn_forward.1} parent=0 // loop_exit
    _

</llo_original>
